<compile_context>
chip_gen: v7x
topology: tpu7x:2x2x1
jax: 0.10.0
libtpu: 0.0.40
codegen_flags: <defaults>
</compile_context>

<pallas_src>
import functools
import math

import jax
import jax.numpy as jnp
from jax.experimental import pallas as pl
from jax.experimental.pallas import tpu as pltpu


COMPUTE_DTYPE = jnp.bfloat16   # MXU-native; accumulation stays f32
M_TILE_CAP = 2048              # max rows per M block (VMEM has large headroom)
MIN_SPLIT_M = 1024             # M >= this keeps >=2 M blocks (v7x megacore)
K_SINGLE_CAP = 1024            # K up to this uses the no-accumulator fast path
BN_EPS = 1e-5


def _round_up(x, m):
    return (x + m - 1) // m * m


# ----------------------------------------------------------------------------
# Pallas kernels: tiled matmul with fused bias + activation
# ----------------------------------------------------------------------------
def _apply_act(r, activation):
    if activation == "relu":
        return jnp.maximum(r, 0.0)
    if activation == "tanh":
        return jnp.tanh(r)
    return r


def _mm_fast_kernel(x_ref, w_ref, b_ref, o_ref, *, activation):
    # Single K block: no accumulator scratch, no init/finalize predication.
    r = jnp.dot(x_ref[...].astype(COMPUTE_DTYPE),
                w_ref[...].astype(COMPUTE_DTYPE),
                preferred_element_type=jnp.float32)
    o_ref[...] = _apply_act(r + b_ref[...], activation).astype(o_ref.dtype)


def _mm_acc_kernel(x_ref, w_ref, b_ref, o_ref, acc_ref, *, activation):
    # General K-tiled path. Dead code for this model (max K = 576); kept as a
    # fallback for other configurations.
    k = pl.program_id(2)

    @pl.when(k == 0)
    def _():
        acc_ref[...] = jnp.zeros_like(acc_ref)

    acc_ref[...] += jnp.dot(x_ref[...].astype(COMPUTE_DTYPE),
                            w_ref[...].astype(COMPUTE_DTYPE),
                            preferred_element_type=jnp.float32)

    @pl.when(k == pl.num_programs(2) - 1)
    def _():
        o_ref[...] = _apply_act(acc_ref[...] + b_ref[...],
                                activation).astype(o_ref.dtype)


def _m_tiling(m):
    """(tm, Mp): minimal padding, <= M_TILE_CAP rows/block, >=2 blocks for big M."""
    min_blocks = 2 if m >= MIN_SPLIT_M else 1
    nb = max(min_blocks, -(-m // M_TILE_CAP))
    tm = _round_up(-(-m // nb), 8)
    return tm, tm * nb


def _divisor_tile(p, cap):
    if p <= cap:
        return p
    for c in (512, 256, 128):
        if p % c == 0:
            return c
    return p


def matmul_bias_act(x, w_p, b_p, n_out, activation="none", out_dtype=COMPUTE_DTYPE):
    """out = act(x @ w + b).

    x   : (M, K) activation (only M padded here; K never padded for this model)
    w_p : (Kp, Np) bf16 weight, pre-padded at init (Np multiple of 128)
    b_p : (1, Np)  f32 bias, pre-padded at init
    """
    M, K = x.shape
    Kp, Np = w_p.shape
    assert K <= Kp, (K, Kp)

    tm, Mp = _m_tiling(M)
    tn = _divisor_tile(Np, 512)
    tk = _divisor_tile(Kp, K_SINGLE_CAP)

    if Mp != M or Kp != K:
        x = jnp.pad(x, ((0, Mp - M), (0, Kp - K)))

    cost = pl.CostEstimate(
        flops=2 * Mp * Kp * Np,
        transcendentals=Mp * Np if activation == "tanh" else 0,
        bytes_accessed=(x.dtype.itemsize * Mp * Kp + w_p.dtype.itemsize * Kp * Np
                        + b_p.dtype.itemsize * Np
                        + jnp.dtype(out_dtype).itemsize * Mp * Np))

    if tk == Kp:
        out = pl.pallas_call(
            functools.partial(_mm_fast_kernel, activation=activation),
            out_shape=jax.ShapeDtypeStruct((Mp, Np), out_dtype),
            grid_spec=pltpu.PrefetchScalarGridSpec(
                num_scalar_prefetch=0,
                grid=(Mp // tm, Np // tn),
                in_specs=[
                    pl.BlockSpec((tm, Kp), lambda i, j: (i, 0)),
                    pl.BlockSpec((Kp, tn), lambda i, j: (0, j)),
                    pl.BlockSpec((1, tn), lambda i, j: (0, j)),
                ],
                out_specs=pl.BlockSpec((tm, tn), lambda i, j: (i, j)),
            ),
            compiler_params=pltpu.CompilerParams(
                dimension_semantics=("parallel", "parallel")),
            cost_estimate=cost,
        )(x, w_p, b_p)
    else:
        out = pl.pallas_call(
            functools.partial(_mm_acc_kernel, activation=activation),
            out_shape=jax.ShapeDtypeStruct((Mp, Np), out_dtype),
            grid_spec=pltpu.PrefetchScalarGridSpec(
                num_scalar_prefetch=0,
                grid=(Mp // tm, Np // tn, Kp // tk),
                in_specs=[
                    pl.BlockSpec((tm, tk), lambda i, j, k: (i, k)),
                    pl.BlockSpec((tk, tn), lambda i, j, k: (k, j)),
                    pl.BlockSpec((1, tn), lambda i, j, k: (0, j)),
                ],
                out_specs=pl.BlockSpec((tm, tn), lambda i, j, k: (i, j)),
                scratch_shapes=[pltpu.VMEM((tm, tn), jnp.float32)],
            ),
            compiler_params=pltpu.CompilerParams(
                dimension_semantics=("parallel", "parallel", "arbitrary")),
            cost_estimate=cost,
        )(x, w_p, b_p)
    return out[:M, :n_out]


# ----------------------------------------------------------------------------
# Fused tail kernel:
#   conv4 -> conv5 (1x1 out) -> BatchNorm(train) -> ReLU -> concat -> 3xLinear -> tanh
# Everything resident in VMEM in one pallas_call.
# ----------------------------------------------------------------------------
def _fused_tail_kernel(x_ref, w4_ref, b4_ref, w5_ref, b5_ref, g5_ref, be5_ref,
                       w1a_ref, w1b_ref, b1_ref, w2_ref, b2_ref, w3_ref, b3_ref,
                       o_ref, *, n_pos, rows, batch):
    # conv4 over every (spatial position, sample) row in one MXU call.
    h4 = jnp.dot(x_ref[...], w4_ref[...], preferred_element_type=jnp.float32)
    h4 = jnp.maximum(h4 + b4_ref[...], 0.0)                    # (n_pos*rows, N4) f32

    # conv5: its single 1x1 output covers the whole conv4 output, so it is a sum
    # of per-position matmuls over 8-row-aligned slices of h4.
    n5 = b5_ref.shape[-1]
    h5 = jnp.zeros((rows, n5), jnp.float32)
    for p in range(n_pos):
        blk = h4[p * rows:(p + 1) * rows, :].astype(COMPUTE_DTYPE)
        h5 = h5 + jnp.dot(blk, w5_ref[p], preferred_element_type=jnp.float32)
    h5 = h5 + b5_ref[...]                                      # (rows, N5) f32

    # BatchNorm2d (training-mode batch statistics), computed separately for the
    # obs group (rows [0, batch)) and the n_obs group (rows [batch, 2*batch)).
    row = jax.lax.broadcasted_iota(jnp.int32, (rows, 1), 0)
    m1 = (row < batch).astype(jnp.float32)
    m2 = jnp.logical_and(row >= batch, row < 2 * batch).astype(jnp.float32)
    inv_b = 1.0 / batch
    mean1 = jnp.sum(h5 * m1, axis=0, keepdims=True) * inv_b
    mean2 = jnp.sum(h5 * m2, axis=0, keepdims=True) * inv_b
    var1 = jnp.sum(jnp.square((h5 - mean1) * m1), axis=0, keepdims=True) * inv_b
    var2 = jnp.sum(jnp.square((h5 - mean2) * m2), axis=0, keepdims=True) * inv_b
    in_g1 = row < batch
    mean = jnp.where(in_g1, mean1, mean2)
    var = jnp.where(in_g1, var1, var2)
    y = g5_ref[...] * (h5 - mean) * jax.lax.rsqrt(var + BN_EPS) + be5_ref[...]
    y = jnp.maximum(y, 0.0)                                    # (rows, N5) f32

    # cat([obs_emb, n_obs_emb], -1) @ W1  ==  obs_emb @ W1a + n_obs_emb @ W1b.
    # Row b of `pair` selects y[b + batch] via a tiny 0/1 selection matmul.
    ri = jax.lax.broadcasted_iota(jnp.int32, (rows, rows), 0)
    ci = jax.lax.broadcasted_iota(jnp.int32, (rows, rows), 1)
    sel = (ci == ri + batch).astype(COMPUTE_DTYPE)
    y_bf = y.astype(COMPUTE_DTYPE)
    pair = jnp.dot(sel, y_bf, preferred_element_type=jnp.float32).astype(COMPUTE_DTYPE)

    h = (jnp.dot(y_bf, w1a_ref[...], preferred_element_type=jnp.float32)
         + jnp.dot(pair, w1b_ref[...], preferred_element_type=jnp.float32)
         + b1_ref[...])
    h = jnp.dot(h.astype(COMPUTE_DTYPE), w2_ref[...],
                preferred_element_type=jnp.float32) + b2_ref[...]
    h = jnp.dot(h.astype(COMPUTE_DTYPE), w3_ref[...],
                preferred_element_type=jnp.float32) + b3_ref[...]
    o_ref[...] = jnp.tanh(h).astype(o_ref.dtype)


def fused_tail(h3, params, meta, B):
    """Applies conv4..tanh in one pallas_call. Valid when conv5's output is 1x1
    and its kernel covers the whole conv4 output (checked at init)."""
    s = meta["stride"]
    k4 = meta["conv_ksize"][3]
    p4 = jax.lax.conv_general_dilated_patches(
        h3, filter_shape=(k4, k4), window_strides=(s, s), padding="VALID",
        dimension_numbers=("NHWC", "HWIO", "NHWC"))
    n, h4o, w4o, pk = p4.shape                      # n = 2B
    n_pos = h4o * w4o
    rows = _round_up(n, 8)
    # (2B, n_pos, K4) -> (n_pos, rows, K4) -> (n_pos*rows, K4): every position's
    # batch block is 8-row aligned so conv5 consumes aligned slices in-kernel.
    x = jnp.transpose(p4.reshape(n, n_pos, pk), (1, 0, 2))
    x = jnp.pad(x, ((0, 0), (0, rows - n), (0, 0)))
    x = x.reshape(n_pos * rows, pk).astype(COMPUTE_DTYPE)

    c4, c5 = params["c4"], params["c5f"]
    act_p = params["lb3"].shape[-1]
    out = pl.pallas_call(                            # no grid: everything in VMEM
        functools.partial(_fused_tail_kernel, n_pos=n_pos, rows=rows, batch=B),
        out_shape=jax.ShapeDtypeStruct((rows, act_p), jnp.float32),
    )(x, c4["w"], c4["b"], c5["w"], c5["b"], params["g5p"], params["be5p"],
      params["lw1a"], params["lw1b"], params["lb1"],
      params["lw2"], params["lb2"], params["lw3"], params["lb3"])
    return out[:B, :meta["action_dim"]]


# ----------------------------------------------------------------------------
# Fallback MLP head (general-spatial path): Linear x3 + tanh in one kernel
# ----------------------------------------------------------------------------
def _mlp_head_kernel(x_ref, w1_ref, b1_ref, w2_ref, b2_ref, w3_ref, b3_ref, o_ref):
    h = jnp.dot(x_ref[...].astype(COMPUTE_DTYPE), w1_ref[...].astype(COMPUTE_DTYPE),
                preferred_element_type=jnp.float32) + b1_ref[...]
    h = jnp.dot(h.astype(COMPUTE_DTYPE), w2_ref[...].astype(COMPUTE_DTYPE),
                preferred_element_type=jnp.float32) + b2_ref[...]
    h = jnp.dot(h.astype(COMPUTE_DTYPE), w3_ref[...].astype(COMPUTE_DTYPE),
                preferred_element_type=jnp.float32) + b3_ref[...]
    o_ref[...] = jnp.tanh(h).astype(o_ref.dtype)


def mlp_head(x, params, action_dim):
    B, K = x.shape
    w1, b1 = params["lw1"], params["lb1"]
    w2, b2 = params["lw2"], params["lb2"]
    w3, b3 = params["lw3"], params["lb3"]
    assert K == w1.shape[0], (K, w1.shape)
    Mp = _round_up(B, 8)
    if Mp != B:
        x = jnp.pad(x, ((0, Mp - B), (0, 0)))
    out = pl.pallas_call(
        _mlp_head_kernel,
        out_shape=jax.ShapeDtypeStruct((Mp, w3.shape[1]), jnp.float32),
    )(x, w1, b1, w2, b2, w3, b3)
    return out[:B, :action_dim]


# ----------------------------------------------------------------------------
# Conv layer = fused patch extraction (glue) + Pallas matmul (hot path)
# ----------------------------------------------------------------------------
def conv2d(x, w_p, b_p, n_out, ksize, stride, activation):
    """x NHWC bf16; w_p (cin*k*k, cout padded) bf16 in (cin,kh,kw) row order."""
    # TODO(synk): im2col stays an XLA patch op (not in-kernel); the in-kernel
    # strided-read variant from the review is a possible further optimization.
    patches = jax.lax.conv_general_dilated_patches(
        x, filter_shape=(ksize, ksize), window_strides=(stride, stride),
        padding="VALID", dimension_numbers=("NHWC", "HWIO", "NHWC"))
    n, ho, wo, pk = patches.shape
    out = matmul_bias_act(patches.reshape(n * ho * wo, pk).astype(COMPUTE_DTYPE),
                          w_p, b_p, n_out, activation)
    return out.reshape(n, ho, wo, n_out)


def batchnorm_train_grouped(x, gamma, beta, n_groups, eps=BN_EPS):
    # TODO(synk): training-mode batch-stat reduction kept in plain JAX glue;
    # stats are computed separately per encoder pass (obs / n_obs groups) so the
    # batched encoder matches two independent BatchNorm2d applications.
    g = x.astype(jnp.float32).reshape((n_groups, -1) + x.shape[1:])
    mean = jnp.mean(g, axis=(1, 2, 3), keepdims=True)
    var = jnp.mean(jnp.square(g - mean), axis=(1, 2, 3), keepdims=True)
    y = gamma * (g - mean) * jax.lax.rsqrt(var + eps) + beta
    return y.reshape(x.shape).astype(x.dtype)


# ----------------------------------------------------------------------------
# InverseModel forward
# ----------------------------------------------------------------------------
def inverse_model_forward(obs_nchw, n_obs_nchw, params, meta):
    B = obs_nchw.shape[0]
    s, ks, co = meta["stride"], meta["conv_ksize"], meta["conv_cout"]
    # Run both encoder passes as one batch (obs rows first, n_obs rows second).
    x = jnp.concatenate([obs_nchw, n_obs_nchw], axis=0)
    x = jnp.transpose(x, (0, 2, 3, 1)).astype(COMPUTE_DTYPE)    # NCHW -> NHWC bf16
    h = conv2d(x, params["c1"]["w"], params["c1"]["b"], co[0], ks[0], s, "relu")
    h = conv2d(h, params["c2"]["w"], params["c2"]["b"], co[1], ks[1], s, "none")
    h = jnp.maximum(batchnorm_train_grouped(h, params["g2"], params["be2"], 2), 0.0)
    h = conv2d(h, params["c3"]["w"], params["c3"]["b"], co[2], ks[2], s, "relu")

    if meta["fuse_tail"]:
        return fused_tail(h, params, meta, B)

    # General-spatial fallback (conv5 output larger than 1x1).
    h = conv2d(h, params["c4"]["w"], params["c4"]["b"], co[3], ks[3], s, "relu")
    h = conv2d(h, params["c5"]["w"], params["c5"]["b"], co[4], ks[4], s, "none")
    h = jnp.maximum(batchnorm_train_grouped(h, params["g5"], params["be5"], 2), 0.0)
    flat = jnp.transpose(h, (0, 3, 1, 2)).reshape(h.shape[0], -1)   # NCHW flatten
    emb = jnp.concatenate([flat[:B], flat[B:]], axis=-1)
    return mlp_head(emb, params, meta["action_dim"])


# ----------------------------------------------------------------------------
# Deterministic parameter init — weights pre-padded / pre-laid-out ONCE here
# ----------------------------------------------------------------------------
def _pad_conv_weight_bias(w, b):
    K, N = w.shape
    Kp = K if K <= K_SINGLE_CAP else _round_up(K, 512)
    Np = _round_up(N, 128)
    wp = jnp.pad(w, ((0, Kp - K), (0, Np - N))).astype(COMPUTE_DTYPE)
    bp = jnp.pad(b, (0, Np - N)).reshape(1, Np)     # bias stays f32 (f32 accumulator)
    return wp, bp


def init_params(key, image_shape, action_dim, hidden_size, depth, stride):
    H, W, Cin = image_shape

    def conv_out(v, k, s):
        return (v - k) // s + 1

    ksizes = (4, 4, 4, 4, 3)
    couts = (1 * depth, 2 * depth, 4 * depth, 8 * depth, 16 * depth)
    cins = (Cin,) + couts[:-1]

    spatial = []
    sh, sw = H, W
    for k in ksizes:
        sh, sw = conv_out(sh, k, stride), conv_out(sw, k, stride)
        spatial.append((sh, sw))
    conv_out_size = couts[-1] * spatial[-1][0] * spatial[-1][1]
    embed_size = 2 * conv_out_size
    # Fused tail is valid when conv5's single 1x1 output covers all of conv4's output.
    fuse_tail = spatial[3] == (ksizes[4], ksizes[4])

    keys = iter(jax.random.split(key, 64))

    def conv_w_raw(cout, cin, k):
        w = jax.random.normal(next(keys), (cout, cin, k, k), jnp.float32)
        return w / math.sqrt(cin * k * k)

    def lin_w(out_dim, in_dim):
        w = jax.random.normal(next(keys), (out_dim, in_dim), jnp.float32)
        return (w / math.sqrt(in_dim)).T

    def bias(n):
        return 0.01 * jax.random.normal(next(keys), (n,), jnp.float32)

    params = {}
    raw_conv = []
    for idx, (cin, cout, k) in enumerate(zip(cins, couts, ksizes), start=1):
        w_raw, b_raw = conv_w_raw(cout, cin, k), bias(cout)
        raw_conv.append((w_raw, b_raw))
        # (Cout,Cin,kh,kw) -> (Cin*kh*kw, Cout), rows ordered (cin,kh,kw),
        # matching lax.conv_general_dilated_patches feature ordering.
        wp, bp = _pad_conv_weight_bias(w_raw.reshape(cout, cin * k * k).T, b_raw)
        params[f"c{idx}"] = {"w": wp, "b": bp}

    params["g2"] = 1.0 + 0.1 * jax.random.normal(next(keys), (couts[1],), jnp.float32)
    params["be2"] = 0.1 * jax.random.normal(next(keys), (couts[1],), jnp.float32)
    params["g5"] = 1.0 + 0.1 * jax.random.normal(next(keys), (couts[4],), jnp.float32)
    params["be5"] = 0.1 * jax.random.normal(next(keys), (couts[4],), jnp.float32)

    lw1, lb1 = lin_w(hidden_size, embed_size), bias(hidden_size)
    lw2, lb2 = lin_w(hidden_size, hidden_size), bias(hidden_size)
    lw3, lb3 = lin_w(action_dim, hidden_size), bias(action_dim)

    hid_p = _round_up(hidden_size, 128)
    act_p = _round_up(action_dim, 128)
    params["lw1"] = jnp.pad(lw1, ((0, 0), (0, hid_p - hidden_size))).astype(COMPUTE_DTYPE)
    params["lb1"] = jnp.pad(lb1, (0, hid_p - hidden_size)).reshape(1, hid_p)
    params["lw2"] = jnp.pad(lw2, ((0, hid_p - hidden_size),
                                  (0, hid_p - hidden_size))).astype(COMPUTE_DTYPE)
    params["lb2"] = jnp.pad(lb2, (0, hid_p - hidden_size)).reshape(1, hid_p)
    params["lw3"] = jnp.pad(lw3, ((0, hid_p - hidden_size),
                                  (0, act_p - action_dim))).astype(COMPUTE_DTYPE)
    params["lb3"] = jnp.pad(lb3, (0, act_p - action_dim)).reshape(1, act_p)

    if fuse_tail:
        k5, cin5, cout5 = ksizes[4], cins[4], couts[4]
        n4p = params["c4"]["w"].shape[1]       # padded conv4 output channels
        n5p = params["c5"]["w"].shape[1]       # padded conv5 output channels
        w5_raw, b5_raw = raw_conv[4]
        # Per-spatial-position conv5 weight blocks: (k5*k5, cin5 pad, cout5 pad).
        w5f = jnp.transpose(w5_raw, (2, 3, 1, 0)).reshape(k5 * k5, cin5, cout5)
        w5f = jnp.pad(w5f, ((0, 0), (0, n4p - cin5), (0, n5p - cout5)))
        params["c5f"] = {"w": w5f.astype(COMPUTE_DTYPE),
                         "b": jnp.pad(b5_raw, (0, n5p - cout5)).reshape(1, n5p)}
        params["g5p"] = jnp.pad(params["g5"], (0, n5p - cout5)).reshape(1, n5p)
        params["be5p"] = jnp.pad(params["be5"], (0, n5p - cout5)).reshape(1, n5p)
        # Linear-1 split so the channel concat becomes two in-kernel matmuls.
        params["lw1a"] = jnp.pad(lw1[:conv_out_size],
                                 ((0, n5p - conv_out_size),
                                  (0, hid_p - hidden_size))).astype(COMPUTE_DTYPE)
        params["lw1b"] = jnp.pad(lw1[conv_out_size:],
                                 ((0, n5p - conv_out_size),
                                  (0, hid_p - hidden_size))).astype(COMPUTE_DTYPE)

    meta = {"stride": stride, "action_dim": action_dim,
            "conv_ksize": ksizes, "conv_cout": couts, "fuse_tail": bool(fuse_tail)}
    return params, meta


# ----------------------------------------------------------------------------
if __name__ == "__main__":
    # Small config consistent with the module's conv stack
    # (spatial 80 is the smallest "nice" size giving conv5 output 1x1).
    BATCH = 2
    IMAGE_SHAPE = (80, 80, 3)     # (H, W, C) as in the PyTorch ctor
    ACTION_DIM = 4
    HIDDEN = 32
    DEPTH = 8
    STRIDE = 2

    key = jax.random.PRNGKey(0)
    k_par, k_obs, k_nobs = jax.random.split(key, 3)

    params, meta = init_params(k_par, IMAGE_SHAPE, ACTION_DIM, HIDDEN, DEPTH, STRIDE)

    # PyTorch conv inputs are NCHW
    obs = jax.random.normal(
        k_obs, (BATCH, IMAGE_SHAPE[2], IMAGE_SHAPE[0], IMAGE_SHAPE[1]), jnp.float32)
    n_obs = jax.random.normal(
        k_nobs, (BATCH, IMAGE_SHAPE[2], IMAGE_SHAPE[0], IMAGE_SHAPE[1]), jnp.float32)

    fwd = jax.jit(lambda o, n, p: inverse_model_forward(o, n, p, meta))
    out = jax.block_until_ready(fwd(obs, n_obs, params))

    assert out.shape == (BATCH, ACTION_DIM), out.shape
    assert bool(jnp.all(jnp.isfinite(out)))
    assert bool(jnp.all(jnp.abs(out) <= 1.0 + 1e-6))   # tanh output range
    print("KERNEL_OK")
</pallas_src>

<mosaic_0001>
module attributes {stable_mosaic.version = 11 : i64} {
  func.func @_mm_fast_kernel(%arg0: i32, %arg1: i32, %arg2: memref<2032x48xbf16, #tpu.memory_space<vmem>>, %arg3: memref<48x128xbf16, #tpu.memory_space<vmem>>, %arg4: memref<1x128xf32, #tpu.memory_space<vmem>>, %arg5: memref<2032x128xbf16, #tpu.memory_space<vmem>>) attributes {dimension_semantics = [#tpu.dimension_semantics<parallel>, #tpu.dimension_semantics<parallel>], iteration_bounds = array<i64: 3, 1>, scalar_prefetch = 0 : i64, scratch_operands = 0 : i64, tpu.core_type = #tpu.core_type<tc>, window_params = [{transform_indices = @transform_0, window_bounds = array<i64: 2032, 48>}, {transform_indices = @transform_1, window_bounds = array<i64: 48, 128>}, {transform_indices = @transform_2, window_bounds = array<i64: 1, 128>}, {transform_indices = @transform_3, window_bounds = array<i64: 2032, 128>}]} {
    %c0 = arith.constant 0 : index
    %c0_0 = arith.constant 0 : index
    %0 = vector.load %arg2[%c0, %c0_0] : memref<2032x48xbf16, #tpu.memory_space<vmem>>, vector<2032x48xbf16>
    %c0_1 = arith.constant 0 : index
    %c0_2 = arith.constant 0 : index
    %1 = vector.load %arg3[%c0_1, %c0_2] : memref<48x128xbf16, #tpu.memory_space<vmem>>, vector<48x128xbf16>
    %cst = arith.constant dense<0.000000e+00> : vector<2032x128xf32>
    %2 = tpu.matmul %0, %1, %cst {dimension_numbers = #tpu.dot_dimension_numbers<[1], [0], [0], [1], [0, 0, 1, 1], [], []>} : vector<2032x48xbf16>, vector<48x128xbf16>, vector<2032x128xf32> -> vector<2032x128xf32>
    %c0_3 = arith.constant 0 : index
    %c0_4 = arith.constant 0 : index
    %3 = vector.load %arg4[%c0_3, %c0_4] : memref<1x128xf32, #tpu.memory_space<vmem>>, vector<1x128xf32>
    %4 = vector.broadcast %3 : vector<1x128xf32> to vector<2032x128xf32>
    %5 = arith.addf %2, %4 : vector<2032x128xf32>
    %cst_5 = arith.constant 0.000000e+00 : f32
    %6 = vector.broadcast %cst_5 : f32 to vector<2032x128xf32>
    %7 = arith.maximumf %5, %6 : vector<2032x128xf32>
    %8 = arith.truncf %7 : vector<2032x128xf32> to vector<2032x128xbf16>
    %c0_6 = arith.constant 0 : index
    %c0_7 = arith.constant 0 : index
    %9 = vector.load %arg5[%c0_6, %c0_7] : memref<2032x128xbf16, #tpu.memory_space<vmem>>, vector<2032x128xbf16>
    tpu.vector_store %arg5[%c0_6, %c0_7], %8 {strides = array<i32>} : memref<2032x128xbf16, #tpu.memory_space<vmem>>, vector<2032x128xbf16>,
    return
  }
  func.func @transform_0(%arg0: i32, %arg1: i32) -> (i32, i32) {
    %c0_i32 = arith.constant 0 : i32
    %c0_i32_0 = arith.constant 0 : i32
    return %arg0, %c0_i32 : i32, i32
  }
  func.func @transform_1(%arg0: i32, %arg1: i32) -> (i32, i32) {
    %c0_i32 = arith.constant 0 : i32
    %c0_i32_0 = arith.constant 0 : i32
    return %c0_i32, %arg1 : i32, i32
  }
  func.func @transform_2(%arg0: i32, %arg1: i32) -> (i32, i32) {
    %c0_i32 = arith.constant 0 : i32
    %c0_i32_0 = arith.constant 0 : i32
    return %c0_i32, %arg1 : i32, i32
  }
  func.func @transform_3(%arg0: i32, %arg1: i32) -> (i32, i32) {
    %c0_i32 = arith.constant 0 : i32
    return %arg0, %arg1 : i32, i32
  }
}

module attributes {stable_mosaic.version = 11 : i64} {
  func.func @_mm_fast_kernel(%arg0: i32, %arg1: i32, %arg2: memref<648x128xbf16, #tpu.memory_space<vmem>>, %arg3: memref<128x128xbf16, #tpu.memory_space<vmem>>, %arg4: memref<1x128xf32, #tpu.memory_space<vmem>>, %arg5: memref<648x128xbf16, #tpu.memory_space<vmem>>) attributes {dimension_semantics = [#tpu.dimension_semantics<parallel>, #tpu.dimension_semantics<parallel>], iteration_bounds = array<i64: 2, 1>, scalar_prefetch = 0 : i64, scratch_operands = 0 : i64, tpu.core_type = #tpu.core_type<tc>, window_params = [{transform_indices = @transform_0, window_bounds = array<i64: 648, 128>}, {transform_indices = @transform_1, window_bounds = array<i64: 128, 128>}, {transform_indices = @transform_2, window_bounds = array<i64: 1, 128>}, {transform_indices = @transform_3, window_bounds = array<i64: 648, 128>}]} {
    %c0 = arith.constant 0 : index
    %c0_0 = arith.constant 0 : index
    %0 = vector.load %arg2[%c0, %c0_0] : memref<648x128xbf16, #tpu.memory_space<vmem>>, vector<648x128xbf16>
    %c0_1 = arith.constant 0 : index
    %c0_2 = arith.constant 0 : index
    %1 = vector.load %arg3[%c0_1, %c0_2] : memref<128x128xbf16, #tpu.memory_space<vmem>>, vector<128x128xbf16>
    %cst = arith.constant dense<0.000000e+00> : vector<648x128xf32>
    %2 = tpu.matmul %0, %1, %cst {dimension_numbers = #tpu.dot_dimension_numbers<[1], [0], [0], [1], [0, 0, 1, 1], [], []>} : vector<648x128xbf16>, vector<128x128xbf16>, vector<648x128xf32> -> vector<648x128xf32>
    %c0_3 = arith.constant 0 : index
    %c0_4 = arith.constant 0 : index
    %3 = vector.load %arg4[%c0_3, %c0_4] : memref<1x128xf32, #tpu.memory_space<vmem>>, vector<1x128xf32>
    %4 = vector.broadcast %3 : vector<1x128xf32> to vector<648x128xf32>
    %5 = arith.addf %2, %4 : vector<648x128xf32>
    %6 = arith.truncf %5 : vector<648x128xf32> to vector<648x128xbf16>
    %c0_5 = arith.constant 0 : index
    %c0_6 = arith.constant 0 : index
    %7 = vector.load %arg5[%c0_5, %c0_6] : memref<648x128xbf16, #tpu.memory_space<vmem>>, vector<648x128xbf16>
    tpu.vector_store %arg5[%c0_5, %c0_6], %6 {strides = array<i32>} : memref<648x128xbf16, #tpu.memory_space<vmem>>, vector<648x128xbf16>,
    return
  }
  func.func @transform_0(%arg0: i32, %arg1: i32) -> (i32, i32) {
    %c0_i32 = arith.constant 0 : i32
    %c0_i32_0 = arith.constant 0 : i32
    return %arg0, %c0_i32 : i32, i32
  }
  func.func @transform_1(%arg0: i32, %arg1: i32) -> (i32, i32) {
    %c0_i32 = arith.constant 0 : i32
    %c0_i32_0 = arith.constant 0 : i32
    return %c0_i32, %arg1 : i32, i32
  }
  func.func @transform_2(%arg0: i32, %arg1: i32) -> (i32, i32) {
    %c0_i32 = arith.constant 0 : i32
    %c0_i32_0 = arith.constant 0 : i32
    return %c0_i32, %arg1 : i32, i32
  }
  func.func @transform_3(%arg0: i32, %arg1: i32) -> (i32, i32) {
    %c0_i32 = arith.constant 0 : i32
    return %arg0, %arg1 : i32, i32
  }
}

module attributes {stable_mosaic.version = 11 : i64} {
  func.func @_mm_fast_kernel(%arg0: i32, %arg1: i32, %arg2: memref<256x256xbf16, #tpu.memory_space<vmem>>, %arg3: memref<256x128xbf16, #tpu.memory_space<vmem>>, %arg4: memref<1x128xf32, #tpu.memory_space<vmem>>, %arg5: memref<256x128xbf16, #tpu.memory_space<vmem>>) attributes {dimension_semantics = [#tpu.dimension_semantics<parallel>, #tpu.dimension_semantics<parallel>], iteration_bounds = array<i64: 1, 1>, scalar_prefetch = 0 : i64, scratch_operands = 0 : i64, tpu.core_type = #tpu.core_type<tc>, window_params = [{transform_indices = @transform_0, window_bounds = array<i64: 256, 256>}, {transform_indices = @transform_1, window_bounds = array<i64: 256, 128>}, {transform_indices = @transform_2, window_bounds = array<i64: 1, 128>}, {transform_indices = @transform_3, window_bounds = array<i64: 256, 128>}]} {
    %c0 = arith.constant 0 : index
    %c0_0 = arith.constant 0 : index
    %0 = vector.load %arg2[%c0, %c0_0] : memref<256x256xbf16, #tpu.memory_space<vmem>>, vector<256x256xbf16>
    %c0_1 = arith.constant 0 : index
    %c0_2 = arith.constant 0 : index
    %1 = vector.load %arg3[%c0_1, %c0_2] : memref<256x128xbf16, #tpu.memory_space<vmem>>, vector<256x128xbf16>
    %cst = arith.constant dense<0.000000e+00> : vector<256x128xf32>
    %2 = tpu.matmul %0, %1, %cst {dimension_numbers = #tpu.dot_dimension_numbers<[1], [0], [0], [1], [0, 0, 1, 1], [], []>} : vector<256x256xbf16>, vector<256x128xbf16>, vector<256x128xf32> -> vector<256x128xf32>
    %c0_3 = arith.constant 0 : index
    %c0_4 = arith.constant 0 : index
    %3 = vector.load %arg4[%c0_3, %c0_4] : memref<1x128xf32, #tpu.memory_space<vmem>>, vector<1x128xf32>
    %4 = vector.broadcast %3 : vector<1x128xf32> to vector<256x128xf32>
    %5 = arith.addf %2, %4 : vector<256x128xf32>
    %cst_5 = arith.constant 0.000000e+00 : f32
    %6 = vector.broadcast %cst_5 : f32 to vector<256x128xf32>
    %7 = arith.maximumf %5, %6 : vector<256x128xf32>
    %8 = arith.truncf %7 : vector<256x128xf32> to vector<256x128xbf16>
    %c0_6 = arith.constant 0 : index
    %c0_7 = arith.constant 0 : index
    %9 = vector.load %arg5[%c0_6, %c0_7] : memref<256x128xbf16, #tpu.memory_space<vmem>>, vector<256x128xbf16>
    tpu.vector_store %arg5[%c0_6, %c0_7], %8 {strides = array<i32>} : memref<256x128xbf16, #tpu.memory_space<vmem>>, vector<256x128xbf16>,
    return
  }
  func.func @transform_0(%arg0: i32, %arg1: i32) -> (i32, i32) {
    %c0_i32 = arith.constant 0 : i32
    %c0_i32_0 = arith.constant 0 : i32
    return %arg0, %c0_i32 : i32, i32
  }
  func.func @transform_1(%arg0: i32, %arg1: i32) -> (i32, i32) {
    %c0_i32 = arith.constant 0 : i32
    %c0_i32_0 = arith.constant 0 : i32
    return %c0_i32, %arg1 : i32, i32
  }
  func.func @transform_2(%arg0: i32, %arg1: i32) -> (i32, i32) {
    %c0_i32 = arith.constant 0 : i32
    %c0_i32_0 = arith.constant 0 : i32
    return %c0_i32, %arg1 : i32, i32
  }
  func.func @transform_3(%arg0: i32, %arg1: i32) -> (i32, i32) {
    %c0_i32 = arith.constant 0 : i32
    return %arg0, %arg1 : i32, i32
  }
}

module attributes {stable_mosaic.version = 11 : i64} {
  func.func @_fused_tail_kernel(%arg0: memref<72x512xbf16, #tpu.memory_space<vmem>>, %arg1: memref<512x128xbf16, #tpu.memory_space<vmem>>, %arg2: memref<1x128xf32, #tpu.memory_space<vmem>>, %arg3: memref<9x128x128xbf16, #tpu.memory_space<vmem>>, %arg4: memref<1x128xf32, #tpu.memory_space<vmem>>, %arg5: memref<1x128xf32, #tpu.memory_space<vmem>>, %arg6: memref<1x128xf32, #tpu.memory_space<vmem>>, %arg7: memref<128x128xbf16, #tpu.memory_space<vmem>>, %arg8: memref<128x128xbf16, #tpu.memory_space<vmem>>, %arg9: memref<1x128xf32, #tpu.memory_space<vmem>>, %arg10: memref<128x128xbf16, #tpu.memory_space<vmem>>, %arg11: memref<1x128xf32, #tpu.memory_space<vmem>>, %arg12: memref<128x128xbf16, #tpu.memory_space<vmem>>, %arg13: memref<1x128xf32, #tpu.memory_space<vmem>>, %arg14: memref<8x128xf32, #tpu.memory_space<vmem>>) attributes {dimension_semantics = [], scalar_prefetch = 0 : i64, scratch_operands = 0 : i64, tpu.core_type = #tpu.core_type<tc>} {
    %c0 = arith.constant 0 : index
    %c0_0 = arith.constant 0 : index
    %0 = vector.load %arg0[%c0, %c0_0] : memref<72x512xbf16, #tpu.memory_space<vmem>>, vector<72x512xbf16>
    %c0_1 = arith.constant 0 : index
    %c0_2 = arith.constant 0 : index
    %1 = vector.load %arg1[%c0_1, %c0_2] : memref<512x128xbf16, #tpu.memory_space<vmem>>, vector<512x128xbf16>
    %cst = arith.constant dense<0.000000e+00> : vector<72x128xf32>
    %2 = tpu.matmul %0, %1, %cst {dimension_numbers = #tpu.dot_dimension_numbers<[1], [0], [0], [1], [0, 0, 1, 1], [], []>} : vector<72x512xbf16>, vector<512x128xbf16>, vector<72x128xf32> -> vector<72x128xf32>
    %c0_3 = arith.constant 0 : index
    %c0_4 = arith.constant 0 : index
    %3 = vector.load %arg2[%c0_3, %c0_4] : memref<1x128xf32, #tpu.memory_space<vmem>>, vector<1x128xf32>
    %4 = vector.broadcast %3 : vector<1x128xf32> to vector<72x128xf32>
    %5 = arith.addf %2, %4 : vector<72x128xf32>
    %cst_5 = arith.constant 0.000000e+00 : f32
    %6 = vector.broadcast %cst_5 : f32 to vector<72x128xf32>
    %7 = arith.maximumf %5, %6 : vector<72x128xf32>
    %cst_6 = arith.constant 0.000000e+00 : f32
    %8 = vector.broadcast %cst_6 : f32 to vector<8x128xf32>
    %9 = vector.extract_strided_slice %7 {offsets = [0, 0], sizes = [8, 128], strides = [1, 1]} : vector<72x128xf32> to vector<8x128xf32>
    %10 = arith.truncf %9 : vector<8x128xf32> to vector<8x128xbf16>
    %c0_7 = arith.constant 0 : index
    %c0_8 = arith.constant 0 : index
    %c0_9 = arith.constant 0 : index
    %11 = vector.load %arg3[%c0_7, %c0_8, %c0_9] : memref<9x128x128xbf16, #tpu.memory_space<vmem>>, vector<1x128x128xbf16>
    %12 = vector.shape_cast %11 : vector<1x128x128xbf16> to vector<128x128xbf16>
    %cst_10 = arith.constant dense<0.000000e+00> : vector<8x128xf32>
    %13 = tpu.matmul %10, %12, %cst_10 {dimension_numbers = #tpu.dot_dimension_numbers<[1], [0], [0], [1], [0, 0, 1, 1], [], []>} : vector<8x128xbf16>, vector<128x128xbf16>, vector<8x128xf32> -> vector<8x128xf32>
    %14 = arith.addf %8, %13 : vector<8x128xf32>
    %15 = vector.extract_strided_slice %7 {offsets = [8, 0], sizes = [8, 128], strides = [1, 1]} : vector<72x128xf32> to vector<8x128xf32>
    %16 = arith.truncf %15 : vector<8x128xf32> to vector<8x128xbf16>
    %c1 = arith.constant 1 : index
    %c0_11 = arith.constant 0 : index
    %c0_12 = arith.constant 0 : index
    %17 = vector.load %arg3[%c1, %c0_11, %c0_12] : memref<9x128x128xbf16, #tpu.memory_space<vmem>>, vector<1x128x128xbf16>
    %18 = vector.shape_cast %17 : vector<1x128x128xbf16> to vector<128x128xbf16>
    %cst_13 = arith.constant dense<0.000000e+00> : vector<8x128xf32>
    %19 = tpu.matmul %16, %18, %cst_13 {dimension_numbers = #tpu.dot_dimension_numbers<[1], [0], [0], [1], [0, 0, 1, 1], [], []>} : vector<8x128xbf16>, vector<128x128xbf16>, vector<8x128xf32> -> vector<8x128xf32>
    %20 = arith.addf %14, %19 : vector<8x128xf32>
    %21 = vector.extract_strided_slice %7 {offsets = [16, 0], sizes = [8, 128], strides = [1, 1]} : vector<72x128xf32> to vector<8x128xf32>
    %22 = arith.truncf %21 : vector<8x128xf32> to vector<8x128xbf16>
    %c2 = arith.constant 2 : index
    %c0_14 = arith.constant 0 : index
    %c0_15 = arith.constant 0 : index
    %23 = vector.load %arg3[%c2, %c0_14, %c0_15] : memref<9x128x128xbf16, #tpu.memory_space<vmem>>, vector<1x128x128xbf16>
    %24 = vector.shape_cast %23 : vector<1x128x128xbf16> to vector<128x128xbf16>
    %cst_16 = arith.constant dense<0.000000e+00> : vector<8x128xf32>
    %25 = tpu.matmul %22, %24, %cst_16 {dimension_numbers = #tpu.dot_dimension_numbers<[1], [0], [0], [1], [0, 0, 1, 1], [], []>} : vector<8x128xbf16>, vector<128x128xbf16>, vector<8x128xf32> -> vector<8x128xf32>
    %26 = arith.addf %20, %25 : vector<8x128xf32>
    %27 = vector.extract_strided_slice %7 {offsets = [24, 0], sizes = [8, 128], strides = [1, 1]} : vector<72x128xf32> to vector<8x128xf32>
    %28 = arith.truncf %27 : vector<8x128xf32> to vector<8x128xbf16>
    %c3 = arith.constant 3 : index
    %c0_17 = arith.constant 0 : index
    %c0_18 = arith.constant 0 : index
    %29 = vector.load %arg3[%c3, %c0_17, %c0_18] : memref<9x128x128xbf16, #tpu.memory_space<vmem>>, vector<1x128x128xbf16>
    %30 = vector.shape_cast %29 : vector<1x128x128xbf16> to vector<128x128xbf16>
    %cst_19 = arith.constant dense<0.000000e+00> : vector<8x128xf32>
    %31 = tpu.matmul %28, %30, %cst_19 {dimension_numbers = #tpu.dot_dimension_numbers<[1], [0], [0], [1], [0, 0, 1, 1], [], []>} : vector<8x128xbf16>, vector<128x128xbf16>, vector<8x128xf32> -> vector<8x128xf32>
    %32 = arith.addf %26, %31 : vector<8x128xf32>
    %33 = vector.extract_strided_slice %7 {offsets = [32, 0], sizes = [8, 128], strides = [1, 1]} : vector<72x128xf32> to vector<8x128xf32>
    %34 = arith.truncf %33 : vector<8x128xf32> to vector<8x128xbf16>
    %c4 = arith.constant 4 : index
    %c0_20 = arith.constant 0 : index
    %c0_21 = arith.constant 0 : index
    %35 = vector.load %arg3[%c4, %c0_20, %c0_21] : memref<9x128x128xbf16, #tpu.memory_space<vmem>>, vector<1x128x128xbf16>
    %36 = vector.shape_cast %35 : vector<1x128x128xbf16> to vector<128x128xbf16>
    %cst_22 = arith.constant dense<0.000000e+00> : vector<8x128xf32>
    %37 = tpu.matmul %34, %36, %cst_22 {dimension_numbers = #tpu.dot_dimension_numbers<[1], [0], [0], [1], [0, 0, 1, 1], [], []>} : vector<8x128xbf16>, vector<128x128xbf16>, vector<8x128xf32> -> vector<8x128xf32>
    %38 = arith.addf %32, %37 : vector<8x128xf32>
    %39 = vector.extract_strided_slice %7 {offsets = [40, 0], sizes = [8, 128], strides = [1, 1]} : vector<72x128xf32> to vector<8x128xf32>
    %40 = arith.truncf %39 : vector<8x128xf32> to vector<8x128xbf16>
    %c5 = arith.constant 5 : index
    %c0_23 = arith.constant 0 : index
    %c0_24 = arith.constant 0 : index
    %41 = vector.load %arg3[%c5, %c0_23, %c0_24] : memref<9x128x128xbf16, #tpu.memory_space<vmem>>, vector<1x128x128xbf16>
    %42 = vector.shape_cast %41 : vector<1x128x128xbf16> to vector<128x128xbf16>
    %cst_25 = arith.constant dense<0.000000e+00> : vector<8x128xf32>
    %43 = tpu.matmul %40, %42, %cst_25 {dimension_numbers = #tpu.dot_dimension_numbers<[1], [0], [0], [1], [0, 0, 1, 1], [], []>} : vector<8x128xbf16>, vector<128x128xbf16>, vector<8x128xf32> -> vector<8x128xf32>
    %44 = arith.addf %38, %43 : vector<8x128xf32>
    %45 = vector.extract_strided_slice %7 {offsets = [48, 0], sizes = [8, 128], strides = [1, 1]} : vector<72x128xf32> to vector<8x128xf32>
    %46 = arith.truncf %45 : vector<8x128xf32> to vector<8x128xbf16>
    %c6 = arith.constant 6 : index
    %c0_26 = arith.constant 0 : index
    %c0_27 = arith.constant 0 : index
    %47 = vector.load %arg3[%c6, %c0_26, %c0_27] : memref<9x128x128xbf16, #tpu.memory_space<vmem>>, vector<1x128x128xbf16>
    %48 = vector.shape_cast %47 : vector<1x128x128xbf16> to vector<128x128xbf16>
    %cst_28 = arith.constant dense<0.000000e+00> : vector<8x128xf32>
    %49 = tpu.matmul %46, %48, %cst_28 {dimension_numbers = #tpu.dot_dimension_numbers<[1], [0], [0], [1], [0, 0, 1, 1], [], []>} : vector<8x128xbf16>, vector<128x128xbf16>, vector<8x128xf32> -> vector<8x128xf32>
    %50 = arith.addf %44, %49 : vector<8x128xf32>
    %51 = vector.extract_strided_slice %7 {offsets = [56, 0], sizes = [8, 128], strides = [1, 1]} : vector<72x128xf32> to vector<8x128xf32>
    %52 = arith.truncf %51 : vector<8x128xf32> to vector<8x128xbf16>
    %c7 = arith.constant 7 : index
    %c0_29 = arith.constant 0 : index
    %c0_30 = arith.constant 0 : index
    %53 = vector.load %arg3[%c7, %c0_29, %c0_30] : memref<9x128x128xbf16, #tpu.memory_space<vmem>>, vector<1x128x128xbf16>
    %54 = vector.shape_cast %53 : vector<1x128x128xbf16> to vector<128x128xbf16>
    %cst_31 = arith.constant dense<0.000000e+00> : vector<8x128xf32>
    %55 = tpu.matmul %52, %54, %cst_31 {dimension_numbers = #tpu.dot_dimension_numbers<[1], [0], [0], [1], [0, 0, 1, 1], [], []>} : vector<8x128xbf16>, vector<128x128xbf16>, vector<8x128xf32> -> vector<8x128xf32>
    %56 = arith.addf %50, %55 : vector<8x128xf32>
    %57 = vector.extract_strided_slice %7 {offsets = [64, 0], sizes = [8, 128], strides = [1, 1]} : vector<72x128xf32> to vector<8x128xf32>
    %58 = arith.truncf %57 : vector<8x128xf32> to vector<8x128xbf16>
    %c8 = arith.constant 8 : index
    %c0_32 = arith.constant 0 : index
    %c0_33 = arith.constant 0 : index
    %59 = vector.load %arg3[%c8, %c0_32, %c0_33] : memref<9x128x128xbf16, #tpu.memory_space<vmem>>, vector<1x128x128xbf16>
    %60 = vector.shape_cast %59 : vector<1x128x128xbf16> to vector<128x128xbf16>
    %cst_34 = arith.constant dense<0.000000e+00> : vector<8x128xf32>
    %61 = tpu.matmul %58, %60, %cst_34 {dimension_numbers = #tpu.dot_dimension_numbers<[1], [0], [0], [1], [0, 0, 1, 1], [], []>} : vector<8x128xbf16>, vector<128x128xbf16>, vector<8x128xf32> -> vector<8x128xf32>
    %62 = arith.addf %56, %61 : vector<8x128xf32>
    %c0_35 = arith.constant 0 : index
    %c0_36 = arith.constant 0 : index
    %63 = vector.load %arg4[%c0_35, %c0_36] : memref<1x128xf32, #tpu.memory_space<vmem>>, vector<1x128xf32>
    %64 = vector.broadcast %63 : vector<1x128xf32> to vector<8x128xf32>
    %65 = arith.addf %62, %64 : vector<8x128xf32>
    %66 = tpu.iota {dimensions = array<i32: 0>} : vector<8x1xi32>
    %c2_i32 = arith.constant 2 : i32
    %67 = vector.broadcast %c2_i32 : i32 to vector<8x1xi32>
    %68 = arith.cmpi slt, %66, %67 : vector<8x1xi32>
    %69 = arith.extui %68 : vector<8x1xi1> to vector<8x1xi32>
    %70 = arith.sitofp %69 : vector<8x1xi32> to vector<8x1xf32>
    %c2_i32_37 = arith.constant 2 : i32
    %71 = vector.broadcast %c2_i32_37 : i32 to vector<8x1xi32>
    %72 = arith.cmpi sge, %66, %71 : vector<8x1xi32>
    %c4_i32 = arith.constant 4 : i32
    %73 = vector.broadcast %c4_i32 : i32 to vector<8x1xi32>
    %74 = arith.cmpi slt, %66, %73 : vector<8x1xi32>
    %75 = arith.andi %72, %74 : vector<8x1xi1>
    %76 = arith.extui %75 : vector<8x1xi1> to vector<8x1xi32>
    %77 = arith.sitofp %76 : vector<8x1xi32> to vector<8x1xf32>
    %78 = vector.broadcast %70 : vector<8x1xf32> to vector<8x128xf32>
    %79 = arith.mulf %65, %78 : vector<8x128xf32>
    %cst_38 = arith.constant dense<0.000000e+00> : vector<128xf32>
    %80 = vector.multi_reduction <add>, %79, %cst_38 [0] : vector<8x128xf32> to vector<128xf32>
    %81 = vector.shape_cast %80 : vector<128xf32> to vector<1x128xf32>
    %cst_39 = arith.constant 5.000000e-01 : f32
    %82 = vector.broadcast %cst_39 : f32 to vector<1x128xf32>
    %83 = arith.mulf %81, %82 : vector<1x128xf32>
    %84 = vector.broadcast %77 : vector<8x1xf32> to vector<8x128xf32>
    %85 = arith.mulf %65, %84 : vector<8x128xf32>
    %cst_40 = arith.constant dense<0.000000e+00> : vector<128xf32>
    %86 = vector.multi_reduction <add>, %85, %cst_40 [0] : vector<8x128xf32> to vector<128xf32>
    %87 = vector.shape_cast %86 : vector<128xf32> to vector<1x128xf32>
    %cst_41 = arith.constant 5.000000e-01 : f32
    %88 = vector.broadcast %cst_41 : f32 to vector<1x128xf32>
    %89 = arith.mulf %87, %88 : vector<1x128xf32>
    %90 = vector.broadcast %83 : vector<1x128xf32> to vector<8x128xf32>
    %91 = arith.subf %65, %90 : vector<8x128xf32>
    %92 = vector.broadcast %70 : vector<8x1xf32> to vector<8x128xf32>
    %93 = arith.mulf %91, %92 : vector<8x128xf32>
    %94 = arith.mulf %93, %93 : vector<8x128xf32>
    %cst_42 = arith.constant dense<0.000000e+00> : vector<128xf32>
    %95 = vector.multi_reduction <add>, %94, %cst_42 [0] : vector<8x128xf32> to vector<128xf32>
    %96 = vector.shape_cast %95 : vector<128xf32> to vector<1x128xf32>
    %cst_43 = arith.constant 5.000000e-01 : f32
    %97 = vector.broadcast %cst_43 : f32 to vector<1x128xf32>
    %98 = arith.mulf %96, %97 : vector<1x128xf32>
    %99 = vector.broadcast %89 : vector<1x128xf32> to vector<8x128xf32>
    %100 = arith.subf %65, %99 : vector<8x128xf32>
    %101 = vector.broadcast %77 : vector<8x1xf32> to vector<8x128xf32>
    %102 = arith.mulf %100, %101 : vector<8x128xf32>
    %103 = arith.mulf %102, %102 : vector<8x128xf32>
    %cst_44 = arith.constant dense<0.000000e+00> : vector<128xf32>
    %104 = vector.multi_reduction <add>, %103, %cst_44 [0] : vector<8x128xf32> to vector<128xf32>
    %105 = vector.shape_cast %104 : vector<128xf32> to vector<1x128xf32>
    %cst_45 = arith.constant 5.000000e-01 : f32
    %106 = vector.broadcast %cst_45 : f32 to vector<1x128xf32>
    %107 = arith.mulf %105, %106 : vector<1x128xf32>
    %c2_i32_46 = arith.constant 2 : i32
    %108 = vector.broadcast %c2_i32_46 : i32 to vector<8x1xi32>
    %109 = arith.cmpi slt, %66, %108 : vector<8x1xi32>
    %110 = vector.shape_cast %109 : vector<8x1xi1> to vector<8x1xi1>
    %111 = vector.broadcast %110 : vector<8x1xi1> to vector<8x128xi1>
    %112 = vector.shape_cast %83 : vector<1x128xf32> to vector<1x128xf32>
    %113 = vector.broadcast %112 : vector<1x128xf32> to vector<8x128xf32>
    %114 = vector.shape_cast %89 : vector<1x128xf32> to vector<1x128xf32>
    %115 = vector.broadcast %114 : vector<1x128xf32> to vector<8x128xf32>
    %116 = arith.select %111, %113, %115 : vector<8x128xi1>, vector<8x128xf32>
    %117 = vector.shape_cast %109 : vector<8x1xi1> to vector<8x1xi1>
    %118 = vector.broadcast %117 : vector<8x1xi1> to vector<8x128xi1>
    %119 = vector.shape_cast %98 : vector<1x128xf32> to vector<1x128xf32>
    %120 = vector.broadcast %119 : vector<1x128xf32> to vector<8x128xf32>
    %121 = vector.shape_cast %107 : vector<1x128xf32> to vector<1x128xf32>
    %122 = vector.broadcast %121 : vector<1x128xf32> to vector<8x128xf32>
    %123 = arith.select %118, %120, %122 : vector<8x128xi1>, vector<8x128xf32>
    %c0_47 = arith.constant 0 : index
    %c0_48 = arith.constant 0 : index
    %124 = vector.load %arg5[%c0_47, %c0_48] : memref<1x128xf32, #tpu.memory_space<vmem>>, vector<1x128xf32>
    %125 = arith.subf %65, %116 : vector<8x128xf32>
    %126 = vector.broadcast %124 : vector<1x128xf32> to vector<8x128xf32>
    %127 = arith.mulf %126, %125 : vector<8x128xf32>
    %cst_49 = arith.constant 9.99999974E-6 : f32
    %128 = vector.broadcast %cst_49 : f32 to vector<8x128xf32>
    %129 = arith.addf %123, %128 : vector<8x128xf32>
    %130 = math.rsqrt %129 : vector<8x128xf32>
    %131 = arith.mulf %127, %130 : vector<8x128xf32>
    %c0_50 = arith.constant 0 : index
    %c0_51 = arith.constant 0 : index
    %132 = vector.load %arg6[%c0_50, %c0_51] : memref<1x128xf32, #tpu.memory_space<vmem>>, vector<1x128xf32>
    %133 = vector.broadcast %132 : vector<1x128xf32> to vector<8x128xf32>
    %134 = arith.addf %131, %133 : vector<8x128xf32>
    %cst_52 = arith.constant 0.000000e+00 : f32
    %135 = vector.broadcast %cst_52 : f32 to vector<8x128xf32>
    %136 = arith.maximumf %134, %135 : vector<8x128xf32>
    %137 = tpu.iota {dimensions = array<i32: 0>} : vector<8x8xi32>
    %138 = tpu.iota {dimensions = array<i32: 1>} : vector<8x8xi32>
    %c2_i32_53 = arith.constant 2 : i32
    %139 = vector.broadcast %c2_i32_53 : i32 to vector<8x8xi32>
    %140 = arith.addi %137, %139 : vector<8x8xi32>
    %141 = arith.cmpi eq, %138, %140 : vector<8x8xi32>
    %142 = arith.extui %141 : vector<8x8xi1> to vector<8x8xi32>
    %143 = arith.sitofp %142 : vector<8x8xi32> to vector<8x8xf32>
    %144 = arith.truncf %143 : vector<8x8xf32> to vector<8x8xbf16>
    %145 = arith.truncf %136 : vector<8x128xf32> to vector<8x128xbf16>
    %cst_54 = arith.constant dense<0.000000e+00> : vector<8x128xf32>
    %146 = tpu.matmul %144, %145, %cst_54 {dimension_numbers = #tpu.dot_dimension_numbers<[1], [0], [0], [1], [0, 0, 1, 1], [], []>} : vector<8x8xbf16>, vector<8x128xbf16>, vector<8x128xf32> -> vector<8x128xf32>
    %147 = arith.truncf %146 : vector<8x128xf32> to vector<8x128xbf16>
    %c0_55 = arith.constant 0 : index
    %c0_56 = arith.constant 0 : index
    %148 = vector.load %arg7[%c0_55, %c0_56] : memref<128x128xbf16, #tpu.memory_space<vmem>>, vector<128x128xbf16>
    %cst_57 = arith.constant dense<0.000000e+00> : vector<8x128xf32>
    %149 = tpu.matmul %145, %148, %cst_57 {dimension_numbers = #tpu.dot_dimension_numbers<[1], [0], [0], [1], [0, 0, 1, 1], [], []>} : vector<8x128xbf16>, vector<128x128xbf16>, vector<8x128xf32> -> vector<8x128xf32>
    %c0_58 = arith.constant 0 : index
    %c0_59 = arith.constant 0 : index
    %150 = vector.load %arg8[%c0_58, %c0_59] : memref<128x128xbf16, #tpu.memory_space<vmem>>, vector<128x128xbf16>
    %cst_60 = arith.constant dense<0.000000e+00> : vector<8x128xf32>
    %151 = tpu.matmul %147, %150, %cst_60 {dimension_numbers = #tpu.dot_dimension_numbers<[1], [0], [0], [1], [0, 0, 1, 1], [], []>} : vector<8x128xbf16>, vector<128x128xbf16>, vector<8x128xf32> -> vector<8x128xf32>
    %152 = arith.addf %149, %151 : vector<8x128xf32>
    %c0_61 = arith.constant 0 : index
    %c0_62 = arith.constant 0 : index
    %153 = vector.load %arg9[%c0_61, %c0_62] : memref<1x128xf32, #tpu.memory_space<vmem>>, vector<1x128xf32>
    %154 = vector.broadcast %153 : vector<1x128xf32> to vector<8x128xf32>
    %155 = arith.addf %152, %154 : vector<8x128xf32>
    %156 = arith.truncf %155 : vector<8x128xf32> to vector<8x128xbf16>
    %c0_63 = arith.constant 0 : index
    %c0_64 = arith.constant 0 : index
    %157 = vector.load %arg10[%c0_63, %c0_64] : memref<128x128xbf16, #tpu.memory_space<vmem>>, vector<128x128xbf16>
    %cst_65 = arith.constant dense<0.000000e+00> : vector<8x128xf32>
    %158 = tpu.matmul %156, %157, %cst_65 {dimension_numbers = #tpu.dot_dimension_numbers<[1], [0], [0], [1], [0, 0, 1, 1], [], []>} : vector<8x128xbf16>, vector<128x128xbf16>, vector<8x128xf32> -> vector<8x128xf32>
    %c0_66 = arith.constant 0 : index
    %c0_67 = arith.constant 0 : index
    %159 = vector.load %arg11[%c0_66, %c0_67] : memref<1x128xf32, #tpu.memory_space<vmem>>, vector<1x128xf32>
    %160 = vector.broadcast %159 : vector<1x128xf32> to vector<8x128xf32>
    %161 = arith.addf %158, %160 : vector<8x128xf32>
    %162 = arith.truncf %161 : vector<8x128xf32> to vector<8x128xbf16>
    %c0_68 = arith.constant 0 : index
    %c0_69 = arith.constant 0 : index
    %163 = vector.load %arg12[%c0_68, %c0_69] : memref<128x128xbf16, #tpu.memory_space<vmem>>, vector<128x128xbf16>
    %cst_70 = arith.constant dense<0.000000e+00> : vector<8x128xf32>
    %164 = tpu.matmul %162, %163, %cst_70 {dimension_numbers = #tpu.dot_dimension_numbers<[1], [0], [0], [1], [0, 0, 1, 1], [], []>} : vector<8x128xbf16>, vector<128x128xbf16>, vector<8x128xf32> -> vector<8x128xf32>
    %c0_71 = arith.constant 0 : index
    %c0_72 = arith.constant 0 : index
    %165 = vector.load %arg13[%c0_71, %c0_72] : memref<1x128xf32, #tpu.memory_space<vmem>>, vector<1x128xf32>
    %166 = vector.broadcast %165 : vector<1x128xf32> to vector<8x128xf32>
    %167 = arith.addf %164, %166 : vector<8x128xf32>
    %168 = math.tanh %167 : vector<8x128xf32>
    %c0_73 = arith.constant 0 : index
    %c0_74 = arith.constant 0 : index
    %169 = vector.load %arg14[%c0_73, %c0_74] : memref<8x128xf32, #tpu.memory_space<vmem>>, vector<8x128xf32>
    tpu.vector_store %arg14[%c0_73, %c0_74], %168 {strides = array<i32>} : memref<8x128xf32, #tpu.memory_space<vmem>>, vector<8x128xf32>,
    return
  }
}

</mosaic_0001>

<llo_original>
// kernel: _lambda_.4
$region0: #{_lambda_.4}
  #allocation0 [shape = 'u32[]', space=smem, size = 0x4, offset = 0x4, fixed_abs, tag = 'smem constant byte address 0x4 - core index']
  #allocation1 [shape = 'u32[144,128]{1,0:T(1,128)}', space=vmem, size = 0x12000, scoped, tag = 'internal scratch']
  %s0 = inlined_call_operand.vmem [shape: bf16[6096,48], index: 0, kind: input, shape index: {}]
  %s1 = inlined_call_operand.vmem [shape: bf16[48,128], index: 1, kind: input, shape index: {}]
  %s2 = inlined_call_operand.vmem [shape: f32[1,128], index: 2, kind: input, shape index: {}]
  %s3 = inlined_call_operand.vmem [shape: bf16[6096,128], index: 3, kind: output, shape index: {}]
  %s4 = sld [smem:[#allocation0]]
  $region45: #{_lambda_.4} parent=0
    _
  %s6 = ssub.s32 1, %s4
  %s7 = scalar_select 0, %s6, %s4
  loop: start=0, step=1, limit=5
  $region2: #{_lambda_.4} parent=0 // loop_pre_header
    _
  $region3: #{_lambda_.4} parent=0 // loop_header
    %s9 = sphi 0, %s13
    %p10 = scmp.ge.s32.totalorder %s9, 5
    %s16 = sphi 0, %s28
    %s17 = sphi 0, %s24
    %s18 = sphi 0, %s16
    %s19 = sphi 0, %s17
    %s20 = sphi 0, %s18
    %s21 = sphi 0, %s19
    %s31 = sphi 0, %s33
    %s34 = sphi 0, %s31
    %s35 = sphi 0, %s34
    %s51 = sphi 0, %s35
    %s57 = sphi 0, %s59
    %s60 = sphi 0, %s57
    %s61 = sphi 0, %s60
    %s77 = sphi 0, %s61
    %s83 = sphi 0, %s85
    %s86 = sphi 0, %s83
    %s87 = sphi 0, %s86
    %s103 = sphi 0, %s87
    %s111 = sphi 0, %s113
    %s114 = sphi 0, %s111
    %s115 = sphi 0, %s114
    %s131 = sphi 0, %s115
  $region4: #{_lambda_.4} parent=0 // loop_header_branch
    %12 = sbr.rel (%p10) target = $region8
  $region5: #{_lambda_.4} parent=0 // loop_body
    %s14 = ssub.s32 %s9, 1
    %s15 = ssub.s32 %s9, 2
    %s22 = sadd.s32 1, %s17
    %p23 = scmp.ge.s32.totalorder %s22, 1
    %s24 = scalar_select %p23, 0, %s22
    %s25 = sadd.s32 1, %s16
    %s26 = scalar_select %p23, %s25, %s16
    %p27 = scmp.ge.s32.totalorder %s26, 3
    %s28 = scalar_select %p27, 0, %s26
    %s29 = ssub.s32 %s16, %s28
    %p30 = scmp.eq.s32.totalorder %s29, 0
    %s32 = sadd.s32 %s31, 1
    %s33 = scalar_select %p30, %s31, %s32
    %p36 = pneg %p30
    %p37 = scmp.eq.s32.totalorder %s9, 2
    %p38 = por %p36, %p37
    %p39 = scmp.ne.s32.totalorder %s31, %s34
    %p40 = scmp.eq.s32.totalorder %s9, 0
    %p41 = por %p39, %p40
    %p42 = scmp.ne.s32.totalorder %s31, %s34
    %p43 = scmp.eq.s32.totalorder %s14, 2
    %p44 = por %p42, %p43
    %p45 = scmp.ne.s32.totalorder %s34, %s35
    %p46 = scmp.eq.s32.totalorder %s14, 0
    %p47 = por %p45, %p46
    %p48 = scmp.ne.s32.totalorder %s34, %s35
    %p49 = scmp.eq.s32.totalorder %s15, 2
    %p50 = por %p48, %p49
    %p52 = scmp.ne.s32.totalorder %s35, %s51
    %p53 = scmp.eq.s32.totalorder %s15, 0
    %p54 = por %p52, %p53
    %s55 = ssub.s32 %s17, %s24
    %p56 = scmp.eq.s32.totalorder %s55, 0
    %s58 = sadd.s32 %s57, 1
    %s59 = scalar_select %p56, %s57, %s58
    %p62 = pneg %p56
    %p63 = scmp.eq.s32.totalorder %s9, 2
    %p64 = por %p62, %p63
    %p65 = scmp.ne.s32.totalorder %s57, %s60
    %p66 = scmp.eq.s32.totalorder %s9, 0
    %p67 = por %p65, %p66
    %p68 = scmp.ne.s32.totalorder %s57, %s60
    %p69 = scmp.eq.s32.totalorder %s14, 2
    %p70 = por %p68, %p69
    %p71 = scmp.ne.s32.totalorder %s60, %s61
    %p72 = scmp.eq.s32.totalorder %s14, 0
    %p73 = por %p71, %p72
    %p74 = scmp.ne.s32.totalorder %s60, %s61
    %p75 = scmp.eq.s32.totalorder %s15, 2
    %p76 = por %p74, %p75
    %p78 = scmp.ne.s32.totalorder %s61, %s77
    %p79 = scmp.eq.s32.totalorder %s15, 0
    %p80 = por %p78, %p79
    %s81 = ssub.s32 %s17, %s24
    %p82 = scmp.eq.s32.totalorder %s81, 0
    %s84 = sadd.s32 %s83, 1
    %s85 = scalar_select %p82, %s83, %s84
    %p88 = pneg %p82
    %p89 = scmp.eq.s32.totalorder %s9, 2
    %p90 = por %p88, %p89
    %p91 = scmp.ne.s32.totalorder %s83, %s86
    %p92 = scmp.eq.s32.totalorder %s9, 0
    %p93 = por %p91, %p92
    %p94 = scmp.ne.s32.totalorder %s83, %s86
    %p95 = scmp.eq.s32.totalorder %s14, 2
    %p96 = por %p94, %p95
    %p97 = scmp.ne.s32.totalorder %s86, %s87
    %p98 = scmp.eq.s32.totalorder %s14, 0
    %p99 = por %p97, %p98
    %p100 = scmp.ne.s32.totalorder %s86, %s87
    %p101 = scmp.eq.s32.totalorder %s15, 2
    %p102 = por %p100, %p101
    %p104 = scmp.ne.s32.totalorder %s87, %s103
    %p105 = scmp.eq.s32.totalorder %s15, 0
    %p106 = por %p104, %p105
    %s107 = ssub.s32 %s16, %s28
    %s108 = ssub.s32 %s17, %s24
    %s109 = sor.u32 %s107, %s108
    %p110 = scmp.eq.s32.totalorder %s109, 0
    %s112 = sadd.s32 %s111, 1
    %s113 = scalar_select %p110, %s111, %s112
    %p116 = pneg %p110
    %p117 = scmp.eq.s32.totalorder %s9, 2
    %p118 = por %p116, %p117
    %p119 = scmp.ne.s32.totalorder %s111, %s114
    %p120 = scmp.eq.s32.totalorder %s9, 0
    %p121 = por %p119, %p120
    %p122 = scmp.ne.s32.totalorder %s111, %s114
    %p123 = scmp.eq.s32.totalorder %s14, 2
    %p124 = por %p122, %p123
    %p125 = scmp.ne.s32.totalorder %s114, %s115
    %p126 = scmp.eq.s32.totalorder %s14, 0
    %p127 = por %p125, %p126
    %p128 = scmp.ne.s32.totalorder %s114, %s115
    %p129 = scmp.eq.s32.totalorder %s15, 2
    %p130 = por %p128, %p129
    %p132 = scmp.ne.s32.totalorder %s115, %s131
    %p133 = scmp.eq.s32.totalorder %s15, 0
    %p134 = por %p132, %p133
    %p135 = scmp.le.s32.totalorder 1, %s9
    %p136 = scmp.lt.s32.totalorder %s9, 4
    %p137 = pnand %p135, %p136
    %p138 = pneg %p137
    // Predicated region
    $region9: #{_lambda_.4} parent=5 // pred_check
      _
    $region10: #{_lambda_.4} parent=5 // pred_check_branch
      %140 = sbr.rel (%p137) target = $region12
    $region11: #{_lambda_.4} parent=5 // pred_region
      %s141 = ssub.s32 %s9, 1
      // Predicated region
      $region13: #{_lambda_.4} parent=11 // pred_check
        %p142 = pneg %p73
      $region14: #{_lambda_.4} parent=11 // pred_check_branch
        %144 = sbr.rel (%p142) target = $region16
      $region15: #{_lambda_.4} parent=11 // pred_region
        %p145 = scmp.lt.s32.totalorder %s19, 0
        %s146 = scalar_select %p145, %s19, 0
        %s147 = smul.addr %s146, 4
        %s148 = scalar_lea.vmem %s1, %s147
      $region16: #{_lambda_.4} parent=11 // pred_fallthru
        _
      // Predicated region
      $region17: #{_lambda_.4} parent=11 // pred_check
        %p149 = pneg %p99
      $region18: #{_lambda_.4} parent=11 // pred_check_branch
        %151 = sbr.rel (%p149) target = $region20
      $region19: #{_lambda_.4} parent=11 // pred_region
        %p152 = scmp.lt.s32.totalorder %s19, 0
        %s153 = scalar_select %p152, %s19, 0
        %s154 = scalar_lea.vmem %s2, %s153
      $region20: #{_lambda_.4} parent=11 // pred_fallthru
        _
    $region12: #{_lambda_.4} parent=5 // pred_fallthru
      _
    %p155 = scmp.lt.s32.totalorder %s9, 3
    // Predicated region
    $region21: #{_lambda_.4} parent=5 // pred_check
      %p156 = pneg %p155
    $region22: #{_lambda_.4} parent=5 // pred_check_branch
      %158 = sbr.rel (%p156) target = $region24
    $region23: #{_lambda_.4} parent=5 // pred_region
      // Predicated region
      $region25: #{_lambda_.4} parent=23 // pred_check
        %p159 = pneg %p41
      $region26: #{_lambda_.4} parent=23 // pred_check_branch
        %161 = sbr.rel (%p159) target = $region28
      $region27: #{_lambda_.4} parent=23 // pred_region
        %s162 = smul.u32 254, %s16
        %p163 = scmp.lt.s32.totalorder %s162, 761
        %s164 = scalar_select %p163, %s162, 761
        %s165 = smul.addr %s164, 4
        %s166 = scalar_lea.vmem %s0, %s165
        %s167 = smul.u32 254, %s16
      $region28: #{_lambda_.4} parent=23 // pred_fallthru
        _
    $region24: #{_lambda_.4} parent=5 // pred_fallthru
      _
    %p168 = scmp.le.s32.totalorder 1, %s9
    %p169 = scmp.lt.s32.totalorder %s9, 4
    %p170 = pnand %p168, %p169
    %p171 = pneg %p170
    // Predicated region
    $region29: #{_lambda_.4} parent=5 // pred_check
      _
    $region30: #{_lambda_.4} parent=5 // pred_check_branch
      %173 = sbr.rel (%p170) target = $region32
    $region31: #{_lambda_.4} parent=5 // pred_region
      %s174 = ssub.s32 %s9, 1
      %s175 = smul.u32 254, %s18
      %p176 = scmp.lt.s32.totalorder %s175, 761
      %s177 = scalar_select %p176, %s175, 761
      %s178 = smul.addr %s177, 4
      %s179 = scalar_lea.vmem %s0, %s178
      %p180 = pneg %p47
      %p181 = pneg %p44
      %p182 = scmp.lt.s32.totalorder %s19, 0
      %s183 = scalar_select %p182, %s19, 0
      %s184 = smul.addr %s183, 4
      %s185 = scalar_lea.vmem %s1, %s184
      %p186 = pneg %p73
      %p187 = pneg %p70
      %p188 = scmp.lt.s32.totalorder %s19, 0
      %s189 = scalar_select %p188, %s19, 0
      %s190 = scalar_lea.vmem %s2, %s189
      %p191 = pneg %p99
      %p192 = pneg %p96
      %p193 = pneg %p127
      %p194 = pneg %p124
      %s195 = smul.u32 254, %s18
      %p196 = scmp.lt.s32.totalorder %s195, 761
      %s197 = scalar_select %p196, %s195, 761
      %p198 = scmp.lt.s32.totalorder %s19, 0
      %s199 = scalar_select %p198, %s19, 0
      %s200 = sadd.s32 %s199, %s197
      %s201 = smul.addr %s200, 4
      %s202 = scalar_lea.vmem %s3, %s201
      %s203 = smul.u32 254, %s18
      %p204 = scmp.lt.s32.totalorder %s203, 761
      %s205 = scalar_select %p204, %s203, 761
      %s206 = smul.addr %s205, 4
      %s207 = scalar_lea.vmem %s0, %s206
      %s208 = smul.u32 254, %s18
      %p209 = scmp.lt.s32.totalorder %s19, 0
      %s210 = scalar_select %p209, %s19, 0
      %s211 = smul.addr %s210, 4
      %s212 = scalar_lea.vmem %s1, %s211
      %p213 = scmp.lt.s32.totalorder %s19, 0
      %s214 = scalar_select %p213, %s19, 0
      %s215 = scalar_lea.vmem %s2, %s214
      %s216 = smul.u32 254, %s18
      %p217 = scmp.lt.s32.totalorder %s216, 761
      %s218 = scalar_select %p217, %s216, 761
      %p219 = scmp.lt.s32.totalorder %s19, 0
      %s220 = scalar_select %p219, %s19, 0
      %s221 = sadd.s32 %s220, %s218
      %s222 = smul.addr %s221, 4
      %s223 = scalar_lea.vmem %s3, %s222
      %s224 = smul.u32 254, %s18
      %v226 = vld [vmem:[%s207] sm:$0xf]
      %v227 = vld [vmem:[%s207 + $0x4] sm:$0xf]
      %v228 = vld [vmem:[%s207 + $0x8] sm:$0xf]
      %v229 = vld [vmem:[%s207 + $0xc] sm:$0xf]
      %v230 = vld [vmem:[%s207 + $0x10] sm:$0xf]
      %v231 = vld [vmem:[%s207 + $0x14] sm:$0xf]
      %v232 = vld [vmem:[%s207 + $0x18] sm:$0xf]
      %v233 = vld [vmem:[%s207 + $0x1c] sm:$0xf]
      %v234 = vld [vmem:[%s207 + $0x20] sm:$0xf]
      %v235 = vld [vmem:[%s207 + $0x24] sm:$0xf]
      %v236 = vld [vmem:[%s207 + $0x28] sm:$0xf]
      %v237 = vld [vmem:[%s207 + $0x2c] sm:$0xf]
      %v238 = vld [vmem:[%s207 + $0x30] sm:$0xf]
      %v239 = vld [vmem:[%s207 + $0x34] sm:$0xf]
      %v240 = vld [vmem:[%s207 + $0x38] sm:$0xf]
      %v241 = vld [vmem:[%s207 + $0x3c] sm:$0xf]
      %v242 = vld [vmem:[%s207 + $0x40] sm:$0xf]
      %v243 = vld [vmem:[%s207 + $0x44] sm:$0xf]
      %v244 = vld [vmem:[%s207 + $0x48] sm:$0xf]
      %v245 = vld [vmem:[%s207 + $0x4c] sm:$0xf]
      %v246 = vld [vmem:[%s207 + $0x50] sm:$0xf]
      %v247 = vld [vmem:[%s207 + $0x54] sm:$0xf]
      %v248 = vld [vmem:[%s207 + $0x58] sm:$0xf]
      %v249 = vld [vmem:[%s207 + $0x5c] sm:$0xf]
      %v250 = vld [vmem:[%s207 + $0x60] sm:$0xf]
      %v251 = vld [vmem:[%s207 + $0x64] sm:$0xf]
      %v252 = vld [vmem:[%s207 + $0x68] sm:$0xf]
      %v253 = vld [vmem:[%s207 + $0x6c] sm:$0xf]
      %v254 = vld [vmem:[%s207 + $0x70] sm:$0xf]
      %v255 = vld [vmem:[%s207 + $0x74] sm:$0xf]
      %v256 = vld [vmem:[%s207 + $0x78] sm:$0xf]
      %v257 = vld [vmem:[%s207 + $0x7c] sm:$0xf]
      %v258 = vld [vmem:[%s207 + $0x80] sm:$0xf]
      %v259 = vld [vmem:[%s207 + $0x84] sm:$0xf]
      %v260 = vld [vmem:[%s207 + $0x88] sm:$0xf]
      %v261 = vld [vmem:[%s207 + $0x8c] sm:$0xf]
      %v262 = vld [vmem:[%s207 + $0x90] sm:$0xf]
      %v263 = vld [vmem:[%s207 + $0x94] sm:$0xf]
      %v264 = vld [vmem:[%s207 + $0x98] sm:$0xf]
      %v265 = vld [vmem:[%s207 + $0x9c] sm:$0xf]
      %v266 = vld [vmem:[%s207 + $0xa0] sm:$0xf]
      %v267 = vld [vmem:[%s207 + $0xa4] sm:$0xf]
      %v268 = vld [vmem:[%s207 + $0xa8] sm:$0xf]
      %v269 = vld [vmem:[%s207 + $0xac] sm:$0xf]
      %v270 = vld [vmem:[%s207 + $0xb0] sm:$0xf]
      %v271 = vld [vmem:[%s207 + $0xb4] sm:$0xf]
      %v272 = vld [vmem:[%s207 + $0xb8] sm:$0xf]
      %v273 = vld [vmem:[%s207 + $0xbc] sm:$0xf]
      %v274 = vld [vmem:[%s207 + $0xc0] sm:$0xf]
      %v275 = vld [vmem:[%s207 + $0xc4] sm:$0xf]
      %v276 = vld [vmem:[%s207 + $0xc8] sm:$0xf]
      %v277 = vld [vmem:[%s207 + $0xcc] sm:$0xf]
      %v278 = vld [vmem:[%s207 + $0xd0] sm:$0xf]
      %v279 = vld [vmem:[%s207 + $0xd4] sm:$0xf]
      %v280 = vld [vmem:[%s207 + $0xd8] sm:$0xf]
      %v281 = vld [vmem:[%s207 + $0xdc] sm:$0xf]
      %v282 = vld [vmem:[%s207 + $0xe0] sm:$0xf]
      %v283 = vld [vmem:[%s207 + $0xe4] sm:$0xf]
      %v284 = vld [vmem:[%s207 + $0xe8] sm:$0xf]
      %v285 = vld [vmem:[%s207 + $0xec] sm:$0xf]
      %v286 = vld [vmem:[%s207 + $0xf0] sm:$0xf]
      %v287 = vld [vmem:[%s207 + $0xf4] sm:$0xf]
      %v288 = vld [vmem:[%s207 + $0xf8] sm:$0xf]
      %v289 = vld [vmem:[%s207 + $0xfc] sm:$0xf]
      %v290 = vld [vmem:[%s207 + $0x100] sm:$0xf]
      %v291 = vld [vmem:[%s207 + $0x104] sm:$0xf]
      %v292 = vld [vmem:[%s207 + $0x108] sm:$0xf]
      %v293 = vld [vmem:[%s207 + $0x10c] sm:$0xf]
      %v294 = vld [vmem:[%s207 + $0x110] sm:$0xf]
      %v295 = vld [vmem:[%s207 + $0x114] sm:$0xf]
      %v296 = vld [vmem:[%s207 + $0x118] sm:$0xf]
      %v297 = vld [vmem:[%s207 + $0x11c] sm:$0xf]
      %v298 = vld [vmem:[%s207 + $0x120] sm:$0xf]
      %v299 = vld [vmem:[%s207 + $0x124] sm:$0xf]
      %v300 = vld [vmem:[%s207 + $0x128] sm:$0xf]
      %v301 = vld [vmem:[%s207 + $0x12c] sm:$0xf]
      %v302 = vld [vmem:[%s207 + $0x130] sm:$0xf]
      %v303 = vld [vmem:[%s207 + $0x134] sm:$0xf]
      %v304 = vld [vmem:[%s207 + $0x138] sm:$0xf]
      %v305 = vld [vmem:[%s207 + $0x13c] sm:$0xf]
      %v306 = vld [vmem:[%s207 + $0x140] sm:$0xf]
      %v307 = vld [vmem:[%s207 + $0x144] sm:$0xf]
      %v308 = vld [vmem:[%s207 + $0x148] sm:$0xf]
      %v309 = vld [vmem:[%s207 + $0x14c] sm:$0xf]
      %v310 = vld [vmem:[%s207 + $0x150] sm:$0xf]
      %v311 = vld [vmem:[%s207 + $0x154] sm:$0xf]
      %v312 = vld [vmem:[%s207 + $0x158] sm:$0xf]
      %v313 = vld [vmem:[%s207 + $0x15c] sm:$0xf]
      %v314 = vld [vmem:[%s207 + $0x160] sm:$0xf]
      %v315 = vld [vmem:[%s207 + $0x164] sm:$0xf]
      %v316 = vld [vmem:[%s207 + $0x168] sm:$0xf]
      %v317 = vld [vmem:[%s207 + $0x16c] sm:$0xf]
      %v318 = vld [vmem:[%s207 + $0x170] sm:$0xf]
      %v319 = vld [vmem:[%s207 + $0x174] sm:$0xf]
      %v320 = vld [vmem:[%s207 + $0x178] sm:$0xf]
      %v321 = vld [vmem:[%s207 + $0x17c] sm:$0xf]
      %v322 = vld [vmem:[%s207 + $0x180] sm:$0xf]
      %v323 = vld [vmem:[%s207 + $0x184] sm:$0xf]
      %v324 = vld [vmem:[%s207 + $0x188] sm:$0xf]
      %v325 = vld [vmem:[%s207 + $0x18c] sm:$0xf]
      %v326 = vld [vmem:[%s207 + $0x190] sm:$0xf]
      %v327 = vld [vmem:[%s207 + $0x194] sm:$0xf]
      %v328 = vld [vmem:[%s207 + $0x198] sm:$0xf]
      %v329 = vld [vmem:[%s207 + $0x19c] sm:$0xf]
      %v330 = vld [vmem:[%s207 + $0x1a0] sm:$0xf]
      %v331 = vld [vmem:[%s207 + $0x1a4] sm:$0xf]
      %v332 = vld [vmem:[%s207 + $0x1a8] sm:$0xf]
      %v333 = vld [vmem:[%s207 + $0x1ac] sm:$0xf]
      %v334 = vld [vmem:[%s207 + $0x1b0] sm:$0xf]
      %v335 = vld [vmem:[%s207 + $0x1b4] sm:$0xf]
      %v336 = vld [vmem:[%s207 + $0x1b8] sm:$0xf]
      %v337 = vld [vmem:[%s207 + $0x1bc] sm:$0xf]
      %v338 = vld [vmem:[%s207 + $0x1c0] sm:$0xf]
      %v339 = vld [vmem:[%s207 + $0x1c4] sm:$0xf]
      %v340 = vld [vmem:[%s207 + $0x1c8] sm:$0xf]
      %v341 = vld [vmem:[%s207 + $0x1cc] sm:$0xf]
      %v342 = vld [vmem:[%s207 + $0x1d0] sm:$0xf]
      %v343 = vld [vmem:[%s207 + $0x1d4] sm:$0xf]
      %v344 = vld [vmem:[%s207 + $0x1d8] sm:$0xf]
      %v345 = vld [vmem:[%s207 + $0x1dc] sm:$0xf]
      %v346 = vld [vmem:[%s207 + $0x1e0] sm:$0xf]
      %v347 = vld [vmem:[%s207 + $0x1e4] sm:$0xf]
      %v348 = vld [vmem:[%s207 + $0x1e8] sm:$0xf]
      %v349 = vld [vmem:[%s207 + $0x1ec] sm:$0xf]
      %v350 = vld [vmem:[%s207 + $0x1f0] sm:$0xf]
      %v351 = vld [vmem:[%s207 + $0x1f4] sm:$0xf]
      %v352 = vld [vmem:[%s207 + $0x1f8] sm:$0xf]
      %v353 = vld [vmem:[%s207 + $0x1fc] sm:$0xf]
      %v354 = vld [vmem:[%s207 + $0x200] sm:$0xf]
      %v355 = vld [vmem:[%s207 + $0x204] sm:$0xf]
      %v356 = vld [vmem:[%s207 + $0x208] sm:$0xf]
      %v357 = vld [vmem:[%s207 + $0x20c] sm:$0xf]
      %v358 = vld [vmem:[%s207 + $0x210] sm:$0xf]
      %v359 = vld [vmem:[%s207 + $0x214] sm:$0xf]
      %v360 = vld [vmem:[%s207 + $0x218] sm:$0xf]
      %v361 = vld [vmem:[%s207 + $0x21c] sm:$0xf]
      %v362 = vld [vmem:[%s207 + $0x220] sm:$0xf]
      %v363 = vld [vmem:[%s207 + $0x224] sm:$0xf]
      %v364 = vld [vmem:[%s207 + $0x228] sm:$0xf]
      %v365 = vld [vmem:[%s207 + $0x22c] sm:$0xf]
      %v366 = vld [vmem:[%s207 + $0x230] sm:$0xf]
      %v367 = vld [vmem:[%s207 + $0x234] sm:$0xf]
      %v368 = vld [vmem:[%s207 + $0x238] sm:$0xf]
      %v369 = vld [vmem:[%s207 + $0x23c] sm:$0xf]
      %v370 = vld [vmem:[%s207 + $0x240] sm:$0xf]
      %v371 = vld [vmem:[%s207 + $0x244] sm:$0xf]
      %v372 = vld [vmem:[%s207 + $0x248] sm:$0xf]
      %v373 = vld [vmem:[%s207 + $0x24c] sm:$0xf]
      %v374 = vld [vmem:[%s207 + $0x250] sm:$0xf]
      %v375 = vld [vmem:[%s207 + $0x254] sm:$0xf]
      %v376 = vld [vmem:[%s207 + $0x258] sm:$0xf]
      %v377 = vld [vmem:[%s207 + $0x25c] sm:$0xf]
      %v378 = vld [vmem:[%s207 + $0x260] sm:$0xf]
      %v379 = vld [vmem:[%s207 + $0x264] sm:$0xf]
      %v380 = vld [vmem:[%s207 + $0x268] sm:$0xf]
      %v381 = vld [vmem:[%s207 + $0x26c] sm:$0xf]
      %v382 = vld [vmem:[%s207 + $0x270] sm:$0xf]
      %v383 = vld [vmem:[%s207 + $0x274] sm:$0xf]
      %v384 = vld [vmem:[%s207 + $0x278] sm:$0xf]
      %v385 = vld [vmem:[%s207 + $0x27c] sm:$0xf]
      %v386 = vld [vmem:[%s207 + $0x280] sm:$0xf]
      %v387 = vld [vmem:[%s207 + $0x284] sm:$0xf]
      %v388 = vld [vmem:[%s207 + $0x288] sm:$0xf]
      %v389 = vld [vmem:[%s207 + $0x28c] sm:$0xf]
      %v390 = vld [vmem:[%s207 + $0x290] sm:$0xf]
      %v391 = vld [vmem:[%s207 + $0x294] sm:$0xf]
      %v392 = vld [vmem:[%s207 + $0x298] sm:$0xf]
      %v393 = vld [vmem:[%s207 + $0x29c] sm:$0xf]
      %v394 = vld [vmem:[%s207 + $0x2a0] sm:$0xf]
      %v395 = vld [vmem:[%s207 + $0x2a4] sm:$0xf]
      %v396 = vld [vmem:[%s207 + $0x2a8] sm:$0xf]
      %v397 = vld [vmem:[%s207 + $0x2ac] sm:$0xf]
      %v398 = vld [vmem:[%s207 + $0x2b0] sm:$0xf]
      %v399 = vld [vmem:[%s207 + $0x2b4] sm:$0xf]
      %v400 = vld [vmem:[%s207 + $0x2b8] sm:$0xf]
      %v401 = vld [vmem:[%s207 + $0x2bc] sm:$0xf]
      %v402 = vld [vmem:[%s207 + $0x2c0] sm:$0xf]
      %v403 = vld [vmem:[%s207 + $0x2c4] sm:$0xf]
      %v404 = vld [vmem:[%s207 + $0x2c8] sm:$0xf]
      %v405 = vld [vmem:[%s207 + $0x2cc] sm:$0xf]
      %v406 = vld [vmem:[%s207 + $0x2d0] sm:$0xf]
      %v407 = vld [vmem:[%s207 + $0x2d4] sm:$0xf]
      %v408 = vld [vmem:[%s207 + $0x2d8] sm:$0xf]
      %v409 = vld [vmem:[%s207 + $0x2dc] sm:$0xf]
      %v410 = vld [vmem:[%s207 + $0x2e0] sm:$0xf]
      %v411 = vld [vmem:[%s207 + $0x2e4] sm:$0xf]
      %v412 = vld [vmem:[%s207 + $0x2e8] sm:$0xf]
      %v413 = vld [vmem:[%s207 + $0x2ec] sm:$0xf]
      %v414 = vld [vmem:[%s207 + $0x2f0] sm:$0xf]
      %v415 = vld [vmem:[%s207 + $0x2f4] sm:$0xf]
      %v416 = vld [vmem:[%s207 + $0x2f8] sm:$0xf]
      %v417 = vld [vmem:[%s207 + $0x2fc] sm:$0xf]
      %v418 = vld [vmem:[%s207 + $0x300] sm:$0xf]
      %v419 = vld [vmem:[%s207 + $0x304] sm:$0xf]
      %v420 = vld [vmem:[%s207 + $0x308] sm:$0xf]
      %v421 = vld [vmem:[%s207 + $0x30c] sm:$0xf]
      %v422 = vld [vmem:[%s207 + $0x310] sm:$0xf]
      %v423 = vld [vmem:[%s207 + $0x314] sm:$0xf]
      %v424 = vld [vmem:[%s207 + $0x318] sm:$0xf]
      %v425 = vld [vmem:[%s207 + $0x31c] sm:$0xf]
      %v426 = vld [vmem:[%s207 + $0x320] sm:$0xf]
      %v427 = vld [vmem:[%s207 + $0x324] sm:$0xf]
      %v428 = vld [vmem:[%s207 + $0x328] sm:$0xf]
      %v429 = vld [vmem:[%s207 + $0x32c] sm:$0xf]
      %v430 = vld [vmem:[%s207 + $0x330] sm:$0xf]
      %v431 = vld [vmem:[%s207 + $0x334] sm:$0xf]
      %v432 = vld [vmem:[%s207 + $0x338] sm:$0xf]
      %v433 = vld [vmem:[%s207 + $0x33c] sm:$0xf]
      %v434 = vld [vmem:[%s207 + $0x340] sm:$0xf]
      %v435 = vld [vmem:[%s207 + $0x344] sm:$0xf]
      %v436 = vld [vmem:[%s207 + $0x348] sm:$0xf]
      %v437 = vld [vmem:[%s207 + $0x34c] sm:$0xf]
      %v438 = vld [vmem:[%s207 + $0x350] sm:$0xf]
      %v439 = vld [vmem:[%s207 + $0x354] sm:$0xf]
      %v440 = vld [vmem:[%s207 + $0x358] sm:$0xf]
      %v441 = vld [vmem:[%s207 + $0x35c] sm:$0xf]
      %v442 = vld [vmem:[%s207 + $0x360] sm:$0xf]
      %v443 = vld [vmem:[%s207 + $0x364] sm:$0xf]
      %v444 = vld [vmem:[%s207 + $0x368] sm:$0xf]
      %v445 = vld [vmem:[%s207 + $0x36c] sm:$0xf]
      %v446 = vld [vmem:[%s207 + $0x370] sm:$0xf]
      %v447 = vld [vmem:[%s207 + $0x374] sm:$0xf]
      %v448 = vld [vmem:[%s207 + $0x378] sm:$0xf]
      %v449 = vld [vmem:[%s207 + $0x37c] sm:$0xf]
      %v450 = vld [vmem:[%s207 + $0x380] sm:$0xf]
      %v451 = vld [vmem:[%s207 + $0x384] sm:$0xf]
      %v452 = vld [vmem:[%s207 + $0x388] sm:$0xf]
      %v453 = vld [vmem:[%s207 + $0x38c] sm:$0xf]
      %v454 = vld [vmem:[%s207 + $0x390] sm:$0xf]
      %v455 = vld [vmem:[%s207 + $0x394] sm:$0xf]
      %v456 = vld [vmem:[%s207 + $0x398] sm:$0xf]
      %v457 = vld [vmem:[%s207 + $0x39c] sm:$0xf]
      %v458 = vld [vmem:[%s207 + $0x3a0] sm:$0xf]
      %v459 = vld [vmem:[%s207 + $0x3a4] sm:$0xf]
      %v460 = vld [vmem:[%s207 + $0x3a8] sm:$0xf]
      %v461 = vld [vmem:[%s207 + $0x3ac] sm:$0xf]
      %v462 = vld [vmem:[%s207 + $0x3b0] sm:$0xf]
      %v463 = vld [vmem:[%s207 + $0x3b4] sm:$0xf]
      %v464 = vld [vmem:[%s207 + $0x3b8] sm:$0xf]
      %v465 = vld [vmem:[%s207 + $0x3bc] sm:$0xf]
      %v466 = vld [vmem:[%s207 + $0x3c0] sm:$0xf]
      %v467 = vld [vmem:[%s207 + $0x3c4] sm:$0xf]
      %v468 = vld [vmem:[%s207 + $0x3c8] sm:$0xf]
      %v469 = vld [vmem:[%s207 + $0x3cc] sm:$0xf]
      %v470 = vld [vmem:[%s207 + $0x3d0] sm:$0xf]
      %v471 = vld [vmem:[%s207 + $0x3d4] sm:$0xf]
      %v472 = vld [vmem:[%s207 + $0x3d8] sm:$0xf]
      %v473 = vld [vmem:[%s207 + $0x3dc] sm:$0xf]
      %v474 = vld [vmem:[%s207 + $0x3e0] sm:$0xf]
      %v475 = vld [vmem:[%s207 + $0x3e4] sm:$0xf]
      %v476 = vld [vmem:[%s207 + $0x3e8] sm:$0xf]
      %v477 = vld [vmem:[%s207 + $0x3ec] sm:$0xf]
      %v478 = vld [vmem:[%s207 + $0x3f0] sm:$0xf]
      %v479 = vld [vmem:[%s207 + $0x3f4] sm:$0xf]
      %v480 = vld [vmem:[%s212] sm:$0xf]
      %v481 = vld [vmem:[%s212 + $0x4] sm:$0xf]
      %v482 = vld [vmem:[%s212 + $0x8] sm:$0xf]
      %v483 = vld [vmem:[%s212 + $0xc] sm:$0xf]
      %v484 = vld [vmem:[%s212 + $0x10] sm:$0xf]
      %v485 = vld [vmem:[%s212 + $0x14] sm:$0xf]
      %v486 = vld [vmem:[%s215] sm:$0x1]
      %v488 = vlaneseq
      %v489 = vshrl.u32 %v488, 7
      %v490 = vsub.s32 0, %v489
      %v491 = vrot.slane %v486, %v490
      %v747 = vunpack.c.l.b16 %v226
      %v748 = vunpack.c.l.b16 %v227
      %v749 = vunpack.c.l.b16 %v228
      %v750 = vunpack.c.l.b16 %v229
      %v751 = vunpack.c.l.b16 %v230
      %v752 = vunpack.c.l.b16 %v231
      %v753 = vunpack.c.l.b16 %v232
      %v754 = vunpack.c.l.b16 %v233
      %v755 = vunpack.c.l.b16 %v234
      %v756 = vunpack.c.l.b16 %v235
      %v757 = vunpack.c.l.b16 %v236
      %v758 = vunpack.c.l.b16 %v237
      %v759 = vunpack.c.l.b16 %v238
      %v760 = vunpack.c.l.b16 %v239
      %v761 = vunpack.c.l.b16 %v240
      %v762 = vunpack.c.l.b16 %v241
      %v763 = vunpack.c.l.b16 %v242
      %v764 = vunpack.c.l.b16 %v243
      %v765 = vunpack.c.l.b16 %v244
      %v766 = vunpack.c.l.b16 %v245
      %v767 = vunpack.c.l.b16 %v246
      %v768 = vunpack.c.l.b16 %v247
      %v769 = vunpack.c.l.b16 %v248
      %v770 = vunpack.c.l.b16 %v249
      %v771 = vunpack.c.l.b16 %v250
      %v772 = vunpack.c.l.b16 %v251
      %v773 = vunpack.c.l.b16 %v252
      %v774 = vunpack.c.l.b16 %v253
      %v775 = vunpack.c.l.b16 %v254
      %v776 = vunpack.c.l.b16 %v255
      %v777 = vunpack.c.l.b16 %v256
      %v778 = vunpack.c.l.b16 %v257
      %v779 = vunpack.c.l.b16 %v258
      %v780 = vunpack.c.l.b16 %v259
      %v781 = vunpack.c.l.b16 %v260
      %v782 = vunpack.c.l.b16 %v261
      %v783 = vunpack.c.l.b16 %v262
      %v784 = vunpack.c.l.b16 %v263
      %v785 = vunpack.c.l.b16 %v264
      %v786 = vunpack.c.l.b16 %v265
      %v787 = vunpack.c.l.b16 %v266
      %v788 = vunpack.c.l.b16 %v267
      %v789 = vunpack.c.l.b16 %v268
      %v790 = vunpack.c.l.b16 %v269
      %v791 = vunpack.c.l.b16 %v270
      %v792 = vunpack.c.l.b16 %v271
      %v793 = vunpack.c.l.b16 %v272
      %v794 = vunpack.c.l.b16 %v273
      %v795 = vunpack.c.l.b16 %v274
      %v796 = vunpack.c.l.b16 %v275
      %v797 = vunpack.c.l.b16 %v276
      %v798 = vunpack.c.l.b16 %v277
      %v799 = vunpack.c.l.b16 %v278
      %v800 = vunpack.c.l.b16 %v279
      %v801 = vunpack.c.l.b16 %v280
      %v802 = vunpack.c.l.b16 %v281
      %v803 = vunpack.c.l.b16 %v282
      %v804 = vunpack.c.l.b16 %v283
      %v805 = vunpack.c.l.b16 %v284
      %v806 = vunpack.c.l.b16 %v285
      %v807 = vunpack.c.l.b16 %v286
      %v808 = vunpack.c.l.b16 %v287
      %v809 = vunpack.c.l.b16 %v288
      %v810 = vunpack.c.l.b16 %v289
      %v811 = vunpack.c.l.b16 %v290
      %v812 = vunpack.c.l.b16 %v291
      %v813 = vunpack.c.l.b16 %v292
      %v814 = vunpack.c.l.b16 %v293
      %v815 = vunpack.c.l.b16 %v294
      %v816 = vunpack.c.l.b16 %v295
      %v817 = vunpack.c.l.b16 %v296
      %v818 = vunpack.c.l.b16 %v297
      %v819 = vunpack.c.l.b16 %v298
      %v820 = vunpack.c.l.b16 %v299
      %v821 = vunpack.c.l.b16 %v300
      %v822 = vunpack.c.l.b16 %v301
      %v823 = vunpack.c.l.b16 %v302
      %v824 = vunpack.c.l.b16 %v303
      %v825 = vunpack.c.l.b16 %v304
      %v826 = vunpack.c.l.b16 %v305
      %v827 = vunpack.c.l.b16 %v306
      %v828 = vunpack.c.l.b16 %v307
      %v829 = vunpack.c.l.b16 %v308
      %v830 = vunpack.c.l.b16 %v309
      %v831 = vunpack.c.l.b16 %v310
      %v832 = vunpack.c.l.b16 %v311
      %v833 = vunpack.c.l.b16 %v312
      %v834 = vunpack.c.l.b16 %v313
      %v835 = vunpack.c.l.b16 %v314
      %v836 = vunpack.c.l.b16 %v315
      %v837 = vunpack.c.l.b16 %v316
      %v838 = vunpack.c.l.b16 %v317
      %v839 = vunpack.c.l.b16 %v318
      %v840 = vunpack.c.l.b16 %v319
      %v841 = vunpack.c.l.b16 %v320
      %v842 = vunpack.c.l.b16 %v321
      %v843 = vunpack.c.l.b16 %v322
      %v844 = vunpack.c.l.b16 %v323
      %v845 = vunpack.c.l.b16 %v324
      %v846 = vunpack.c.l.b16 %v325
      %v847 = vunpack.c.l.b16 %v326
      %v848 = vunpack.c.l.b16 %v327
      %v849 = vunpack.c.l.b16 %v328
      %v850 = vunpack.c.l.b16 %v329
      %v851 = vunpack.c.l.b16 %v330
      %v852 = vunpack.c.l.b16 %v331
      %v853 = vunpack.c.l.b16 %v332
      %v854 = vunpack.c.l.b16 %v333
      %v855 = vunpack.c.l.b16 %v334
      %v856 = vunpack.c.l.b16 %v335
      %v857 = vunpack.c.l.b16 %v336
      %v858 = vunpack.c.l.b16 %v337
      %v859 = vunpack.c.l.b16 %v338
      %v860 = vunpack.c.l.b16 %v339
      %v861 = vunpack.c.l.b16 %v340
      %v862 = vunpack.c.l.b16 %v341
      %v863 = vunpack.c.l.b16 %v342
      %v864 = vunpack.c.l.b16 %v343
      %v865 = vunpack.c.l.b16 %v344
      %v866 = vunpack.c.l.b16 %v345
      %v867 = vunpack.c.l.b16 %v346
      %v868 = vunpack.c.l.b16 %v347
      %v869 = vunpack.c.l.b16 %v348
      %v870 = vunpack.c.l.b16 %v349
      %v871 = vunpack.c.l.b16 %v350
      %v872 = vunpack.c.l.b16 %v351
      %v873 = vunpack.c.l.b16 %v352
      %v874 = vunpack.c.l.b16 %v353
      %v875 = vunpack.c.l.b16 %v354
      %v876 = vunpack.c.l.b16 %v355
      %v877 = vunpack.c.l.b16 %v356
      %v878 = vunpack.c.l.b16 %v357
      %v879 = vunpack.c.l.b16 %v358
      %v880 = vunpack.c.l.b16 %v359
      %v881 = vunpack.c.l.b16 %v360
      %v882 = vunpack.c.l.b16 %v361
      %v883 = vunpack.c.l.b16 %v362
      %v884 = vunpack.c.l.b16 %v363
      %v885 = vunpack.c.l.b16 %v364
      %v886 = vunpack.c.l.b16 %v365
      %v887 = vunpack.c.l.b16 %v366
      %v888 = vunpack.c.l.b16 %v367
      %v889 = vunpack.c.l.b16 %v368
      %v890 = vunpack.c.l.b16 %v369
      %v891 = vunpack.c.l.b16 %v370
      %v892 = vunpack.c.l.b16 %v371
      %v893 = vunpack.c.l.b16 %v372
      %v894 = vunpack.c.l.b16 %v373
      %v895 = vunpack.c.l.b16 %v374
      %v896 = vunpack.c.l.b16 %v375
      %v897 = vunpack.c.l.b16 %v376
      %v898 = vunpack.c.l.b16 %v377
      %v899 = vunpack.c.l.b16 %v378
      %v900 = vunpack.c.l.b16 %v379
      %v901 = vunpack.c.l.b16 %v380
      %v902 = vunpack.c.l.b16 %v381
      %v903 = vunpack.c.l.b16 %v382
      %v904 = vunpack.c.l.b16 %v383
      %v905 = vunpack.c.l.b16 %v384
      %v906 = vunpack.c.l.b16 %v385
      %v907 = vunpack.c.l.b16 %v386
      %v908 = vunpack.c.l.b16 %v387
      %v909 = vunpack.c.l.b16 %v388
      %v910 = vunpack.c.l.b16 %v389
      %v911 = vunpack.c.l.b16 %v390
      %v912 = vunpack.c.l.b16 %v391
      %v913 = vunpack.c.l.b16 %v392
      %v914 = vunpack.c.l.b16 %v393
      %v915 = vunpack.c.l.b16 %v394
      %v916 = vunpack.c.l.b16 %v395
      %v917 = vunpack.c.l.b16 %v396
      %v918 = vunpack.c.l.b16 %v397
      %v919 = vunpack.c.l.b16 %v398
      %v920 = vunpack.c.l.b16 %v399
      %v921 = vunpack.c.l.b16 %v400
      %v922 = vunpack.c.l.b16 %v401
      %v923 = vunpack.c.l.b16 %v402
      %v924 = vunpack.c.l.b16 %v403
      %v925 = vunpack.c.l.b16 %v404
      %v926 = vunpack.c.l.b16 %v405
      %v927 = vunpack.c.l.b16 %v406
      %v928 = vunpack.c.l.b16 %v407
      %v929 = vunpack.c.l.b16 %v408
      %v930 = vunpack.c.l.b16 %v409
      %v931 = vunpack.c.l.b16 %v410
      %v932 = vunpack.c.l.b16 %v411
      %v933 = vunpack.c.l.b16 %v412
      %v934 = vunpack.c.l.b16 %v413
      %v935 = vunpack.c.l.b16 %v414
      %v936 = vunpack.c.l.b16 %v415
      %v937 = vunpack.c.l.b16 %v416
      %v938 = vunpack.c.l.b16 %v417
      %v939 = vunpack.c.l.b16 %v418
      %v940 = vunpack.c.l.b16 %v419
      %v941 = vunpack.c.l.b16 %v420
      %v942 = vunpack.c.l.b16 %v421
      %v943 = vunpack.c.l.b16 %v422
      %v944 = vunpack.c.l.b16 %v423
      %v945 = vunpack.c.l.b16 %v424
      %v946 = vunpack.c.l.b16 %v425
      %v947 = vunpack.c.l.b16 %v426
      %v948 = vunpack.c.l.b16 %v427
      %v949 = vunpack.c.l.b16 %v428
      %v950 = vunpack.c.l.b16 %v429
      %v951 = vunpack.c.l.b16 %v430
      %v952 = vunpack.c.l.b16 %v431
      %v953 = vunpack.c.l.b16 %v432
      %v954 = vunpack.c.l.b16 %v433
      %v955 = vunpack.c.l.b16 %v434
      %v956 = vunpack.c.l.b16 %v435
      %v957 = vunpack.c.l.b16 %v436
      %v958 = vunpack.c.l.b16 %v437
      %v959 = vunpack.c.l.b16 %v438
      %v960 = vunpack.c.l.b16 %v439
      %v961 = vunpack.c.l.b16 %v440
      %v962 = vunpack.c.l.b16 %v441
      %v963 = vunpack.c.l.b16 %v442
      %v964 = vunpack.c.l.b16 %v443
      %v965 = vunpack.c.l.b16 %v444
      %v966 = vunpack.c.l.b16 %v445
      %v967 = vunpack.c.l.b16 %v446
      %v968 = vunpack.c.l.b16 %v447
      %v969 = vunpack.c.l.b16 %v448
      %v970 = vunpack.c.l.b16 %v449
      %v971 = vunpack.c.l.b16 %v450
      %v972 = vunpack.c.l.b16 %v451
      %v973 = vunpack.c.l.b16 %v452
      %v974 = vunpack.c.l.b16 %v453
      %v975 = vunpack.c.l.b16 %v454
      %v976 = vunpack.c.l.b16 %v455
      %v977 = vunpack.c.l.b16 %v456
      %v978 = vunpack.c.l.b16 %v457
      %v979 = vunpack.c.l.b16 %v458
      %v980 = vunpack.c.l.b16 %v459
      %v981 = vunpack.c.l.b16 %v460
      %v982 = vunpack.c.l.b16 %v461
      %v983 = vunpack.c.l.b16 %v462
      %v984 = vunpack.c.l.b16 %v463
      %v985 = vunpack.c.l.b16 %v464
      %v986 = vunpack.c.l.b16 %v465
      %v987 = vunpack.c.l.b16 %v466
      %v988 = vunpack.c.l.b16 %v467
      %v989 = vunpack.c.l.b16 %v468
      %v990 = vunpack.c.l.b16 %v469
      %v991 = vunpack.c.l.b16 %v470
      %v992 = vunpack.c.l.b16 %v471
      %v993 = vunpack.c.l.b16 %v472
      %v994 = vunpack.c.l.b16 %v473
      %v995 = vunpack.c.l.b16 %v474
      %v996 = vunpack.c.l.b16 %v475
      %v997 = vunpack.c.l.b16 %v476
      %v998 = vunpack.c.l.b16 %v477
      %v999 = vunpack.c.l.b16 %v478
      %v1000 = vunpack.c.l.b16 %v479
      %v1001 = vpack.c.b16 %v748, %v747
      %v1002 = vpack.c.b16 %v750, %v749
      %v1003 = vpack.c.b16 %v752, %v751
      %v1004 = vpack.c.b16 %v754, %v753
      %v1005 = vpack.c.b16 %v756, %v755
      %v1006 = vpack.c.b16 %v758, %v757
      %v1007 = vpack.c.b16 %v760, %v759
      %v1008 = vpack.c.b16 %v762, %v761
      %v1009 = vpack.c.b16 %v764, %v763
      %v1010 = vpack.c.b16 %v766, %v765
      %v1011 = vpack.c.b16 %v768, %v767
      %v1012 = vpack.c.b16 %v770, %v769
      %v1013 = vpack.c.b16 %v772, %v771
      %v1014 = vpack.c.b16 %v774, %v773
      %v1015 = vpack.c.b16 %v776, %v775
      %v1016 = vpack.c.b16 %v778, %v777
      %v1017 = vpack.c.b16 %v780, %v779
      %v1018 = vpack.c.b16 %v782, %v781
      %v1019 = vpack.c.b16 %v784, %v783
      %v1020 = vpack.c.b16 %v786, %v785
      %v1021 = vpack.c.b16 %v788, %v787
      %v1022 = vpack.c.b16 %v790, %v789
      %v1023 = vpack.c.b16 %v792, %v791
      %v1024 = vpack.c.b16 %v794, %v793
      %v1025 = vpack.c.b16 %v796, %v795
      %v1026 = vpack.c.b16 %v798, %v797
      %v1027 = vpack.c.b16 %v800, %v799
      %v1028 = vpack.c.b16 %v802, %v801
      %v1029 = vpack.c.b16 %v804, %v803
      %v1030 = vpack.c.b16 %v806, %v805
      %v1031 = vpack.c.b16 %v808, %v807
      %v1032 = vpack.c.b16 %v810, %v809
      %v1033 = vpack.c.b16 %v812, %v811
      %v1034 = vpack.c.b16 %v814, %v813
      %v1035 = vpack.c.b16 %v816, %v815
      %v1036 = vpack.c.b16 %v818, %v817
      %v1037 = vpack.c.b16 %v820, %v819
      %v1038 = vpack.c.b16 %v822, %v821
      %v1039 = vpack.c.b16 %v824, %v823
      %v1040 = vpack.c.b16 %v826, %v825
      %v1041 = vpack.c.b16 %v828, %v827
      %v1042 = vpack.c.b16 %v830, %v829
      %v1043 = vpack.c.b16 %v832, %v831
      %v1044 = vpack.c.b16 %v834, %v833
      %v1045 = vpack.c.b16 %v836, %v835
      %v1046 = vpack.c.b16 %v838, %v837
      %v1047 = vpack.c.b16 %v840, %v839
      %v1048 = vpack.c.b16 %v842, %v841
      %v1049 = vpack.c.b16 %v844, %v843
      %v1050 = vpack.c.b16 %v846, %v845
      %v1051 = vpack.c.b16 %v848, %v847
      %v1052 = vpack.c.b16 %v850, %v849
      %v1053 = vpack.c.b16 %v852, %v851
      %v1054 = vpack.c.b16 %v854, %v853
      %v1055 = vpack.c.b16 %v856, %v855
      %v1056 = vpack.c.b16 %v858, %v857
      %v1057 = vpack.c.b16 %v860, %v859
      %v1058 = vpack.c.b16 %v862, %v861
      %v1059 = vpack.c.b16 %v864, %v863
      %v1060 = vpack.c.b16 %v866, %v865
      %v1061 = vpack.c.b16 %v868, %v867
      %v1062 = vpack.c.b16 %v870, %v869
      %v1063 = vpack.c.b16 %v872, %v871
      %v1064 = vpack.c.b16 %v874, %v873
      %v1065 = vpack.c.b16 %v876, %v875
      %v1066 = vpack.c.b16 %v878, %v877
      %v1067 = vpack.c.b16 %v880, %v879
      %v1068 = vpack.c.b16 %v882, %v881
      %v1069 = vpack.c.b16 %v884, %v883
      %v1070 = vpack.c.b16 %v886, %v885
      %v1071 = vpack.c.b16 %v888, %v887
      %v1072 = vpack.c.b16 %v890, %v889
      %v1073 = vpack.c.b16 %v892, %v891
      %v1074 = vpack.c.b16 %v894, %v893
      %v1075 = vpack.c.b16 %v896, %v895
      %v1076 = vpack.c.b16 %v898, %v897
      %v1077 = vpack.c.b16 %v900, %v899
      %v1078 = vpack.c.b16 %v902, %v901
      %v1079 = vpack.c.b16 %v904, %v903
      %v1080 = vpack.c.b16 %v906, %v905
      %v1081 = vpack.c.b16 %v908, %v907
      %v1082 = vpack.c.b16 %v910, %v909
      %v1083 = vpack.c.b16 %v912, %v911
      %v1084 = vpack.c.b16 %v914, %v913
      %v1085 = vpack.c.b16 %v916, %v915
      %v1086 = vpack.c.b16 %v918, %v917
      %v1087 = vpack.c.b16 %v920, %v919
      %v1088 = vpack.c.b16 %v922, %v921
      %v1089 = vpack.c.b16 %v924, %v923
      %v1090 = vpack.c.b16 %v926, %v925
      %v1091 = vpack.c.b16 %v928, %v927
      %v1092 = vpack.c.b16 %v930, %v929
      %v1093 = vpack.c.b16 %v932, %v931
      %v1094 = vpack.c.b16 %v934, %v933
      %v1095 = vpack.c.b16 %v936, %v935
      %v1096 = vpack.c.b16 %v938, %v937
      %v1097 = vpack.c.b16 %v940, %v939
      %v1098 = vpack.c.b16 %v942, %v941
      %v1099 = vpack.c.b16 %v944, %v943
      %v1100 = vpack.c.b16 %v946, %v945
      %v1101 = vpack.c.b16 %v948, %v947
      %v1102 = vpack.c.b16 %v950, %v949
      %v1103 = vpack.c.b16 %v952, %v951
      %v1104 = vpack.c.b16 %v954, %v953
      %v1105 = vpack.c.b16 %v956, %v955
      %v1106 = vpack.c.b16 %v958, %v957
      %v1107 = vpack.c.b16 %v960, %v959
      %v1108 = vpack.c.b16 %v962, %v961
      %v1109 = vpack.c.b16 %v964, %v963
      %v1110 = vpack.c.b16 %v966, %v965
      %v1111 = vpack.c.b16 %v968, %v967
      %v1112 = vpack.c.b16 %v970, %v969
      %v1113 = vpack.c.b16 %v972, %v971
      %v1114 = vpack.c.b16 %v974, %v973
      %v1115 = vpack.c.b16 %v976, %v975
      %v1116 = vpack.c.b16 %v978, %v977
      %v1117 = vpack.c.b16 %v980, %v979
      %v1118 = vpack.c.b16 %v982, %v981
      %v1119 = vpack.c.b16 %v984, %v983
      %v1120 = vpack.c.b16 %v986, %v985
      %v1121 = vpack.c.b16 %v988, %v987
      %v1122 = vpack.c.b16 %v990, %v989
      %v1123 = vpack.c.b16 %v992, %v991
      %v1124 = vpack.c.b16 %v994, %v993
      %v1125 = vpack.c.b16 %v996, %v995
      %v1126 = vpack.c.b16 %v998, %v997
      %v1127 = vpack.c.b16 %v1000, %v999
      %v1134 = vunpack.c.l.b16 %v480
      %v1135 = vunpack.c.l.b16 %v481
      %v1136 = vunpack.c.l.b16 %v482
      %v1137 = vunpack.c.l.b16 %v483
      %v1138 = vunpack.c.l.b16 %v484
      %v1139 = vunpack.c.l.b16 %v485
      %v1140 = vpack.c.b16 %v1135, %v1134
      %v1141 = vpack.c.b16 %v1137, %v1136
      %v1142 = vpack.c.b16 %v1139, %v1138
      %vm1146 = vcmask 392192
      %v1148 = vsel %vm1146, %v1001, 0
      %v1151 = vsel %vm1146, %v1002, 0
      %v1154 = vsel %vm1146, %v1003, 0
      %v1157 = vsel %vm1146, %v1004, 0
      %v1160 = vsel %vm1146, %v1005, 0
      %v1163 = vsel %vm1146, %v1006, 0
      %v1166 = vsel %vm1146, %v1007, 0
      %v1169 = vsel %vm1146, %v1008, 0
      %v1172 = vsel %vm1146, %v1009, 0
      %v1175 = vsel %vm1146, %v1010, 0
      %v1178 = vsel %vm1146, %v1011, 0
      %v1181 = vsel %vm1146, %v1012, 0
      %v1184 = vsel %vm1146, %v1013, 0
      %v1187 = vsel %vm1146, %v1014, 0
      %v1190 = vsel %vm1146, %v1015, 0
      %v1193 = vsel %vm1146, %v1016, 0
      %v1196 = vsel %vm1146, %v1017, 0
      %v1199 = vsel %vm1146, %v1018, 0
      %v1202 = vsel %vm1146, %v1019, 0
      %v1205 = vsel %vm1146, %v1020, 0
      %v1208 = vsel %vm1146, %v1021, 0
      %v1211 = vsel %vm1146, %v1022, 0
      %v1214 = vsel %vm1146, %v1023, 0
      %v1217 = vsel %vm1146, %v1024, 0
      %v1220 = vsel %vm1146, %v1025, 0
      %v1223 = vsel %vm1146, %v1026, 0
      %v1226 = vsel %vm1146, %v1027, 0
      %v1229 = vsel %vm1146, %v1028, 0
      %v1232 = vsel %vm1146, %v1029, 0
      %v1235 = vsel %vm1146, %v1030, 0
      %v1238 = vsel %vm1146, %v1031, 0
      %v1241 = vsel %vm1146, %v1032, 0
      %v1244 = vsel %vm1146, %v1033, 0
      %v1247 = vsel %vm1146, %v1034, 0
      %v1250 = vsel %vm1146, %v1035, 0
      %v1253 = vsel %vm1146, %v1036, 0
      %v1256 = vsel %vm1146, %v1037, 0
      %v1259 = vsel %vm1146, %v1038, 0
      %v1262 = vsel %vm1146, %v1039, 0
      %v1265 = vsel %vm1146, %v1040, 0
      %v1268 = vsel %vm1146, %v1041, 0
      %v1271 = vsel %vm1146, %v1042, 0
      %v1274 = vsel %vm1146, %v1043, 0
      %v1277 = vsel %vm1146, %v1044, 0
      %v1280 = vsel %vm1146, %v1045, 0
      %v1283 = vsel %vm1146, %v1046, 0
      %v1286 = vsel %vm1146, %v1047, 0
      %v1289 = vsel %vm1146, %v1048, 0
      %v1292 = vsel %vm1146, %v1049, 0
      %v1295 = vsel %vm1146, %v1050, 0
      %v1298 = vsel %vm1146, %v1051, 0
      %v1301 = vsel %vm1146, %v1052, 0
      %v1304 = vsel %vm1146, %v1053, 0
      %v1307 = vsel %vm1146, %v1054, 0
      %v1310 = vsel %vm1146, %v1055, 0
      %v1313 = vsel %vm1146, %v1056, 0
      %v1316 = vsel %vm1146, %v1057, 0
      %v1319 = vsel %vm1146, %v1058, 0
      %v1322 = vsel %vm1146, %v1059, 0
      %v1325 = vsel %vm1146, %v1060, 0
      %v1328 = vsel %vm1146, %v1061, 0
      %v1331 = vsel %vm1146, %v1062, 0
      %v1334 = vsel %vm1146, %v1063, 0
      %v1337 = vsel %vm1146, %v1064, 0
      %v1340 = vsel %vm1146, %v1065, 0
      %v1343 = vsel %vm1146, %v1066, 0
      %v1346 = vsel %vm1146, %v1067, 0
      %v1349 = vsel %vm1146, %v1068, 0
      %v1352 = vsel %vm1146, %v1069, 0
      %v1355 = vsel %vm1146, %v1070, 0
      %v1358 = vsel %vm1146, %v1071, 0
      %v1361 = vsel %vm1146, %v1072, 0
      %v1364 = vsel %vm1146, %v1073, 0
      %v1367 = vsel %vm1146, %v1074, 0
      %v1370 = vsel %vm1146, %v1075, 0
      %v1373 = vsel %vm1146, %v1076, 0
      %v1376 = vsel %vm1146, %v1077, 0
      %v1379 = vsel %vm1146, %v1078, 0
      %v1382 = vsel %vm1146, %v1079, 0
      %v1385 = vsel %vm1146, %v1080, 0
      %v1388 = vsel %vm1146, %v1081, 0
      %v1391 = vsel %vm1146, %v1082, 0
      %v1394 = vsel %vm1146, %v1083, 0
      %v1397 = vsel %vm1146, %v1084, 0
      %v1400 = vsel %vm1146, %v1085, 0
      %v1403 = vsel %vm1146, %v1086, 0
      %v1406 = vsel %vm1146, %v1087, 0
      %v1409 = vsel %vm1146, %v1088, 0
      %v1412 = vsel %vm1146, %v1089, 0
      %v1415 = vsel %vm1146, %v1090, 0
      %v1418 = vsel %vm1146, %v1091, 0
      %v1421 = vsel %vm1146, %v1092, 0
      %v1424 = vsel %vm1146, %v1093, 0
      %v1427 = vsel %vm1146, %v1094, 0
      %v1430 = vsel %vm1146, %v1095, 0
      %v1433 = vsel %vm1146, %v1096, 0
      %v1436 = vsel %vm1146, %v1097, 0
      %v1439 = vsel %vm1146, %v1098, 0
      %v1442 = vsel %vm1146, %v1099, 0
      %v1445 = vsel %vm1146, %v1100, 0
      %v1448 = vsel %vm1146, %v1101, 0
      %v1451 = vsel %vm1146, %v1102, 0
      %v1454 = vsel %vm1146, %v1103, 0
      %v1457 = vsel %vm1146, %v1104, 0
      %v1460 = vsel %vm1146, %v1105, 0
      %v1463 = vsel %vm1146, %v1106, 0
      %v1466 = vsel %vm1146, %v1107, 0
      %v1469 = vsel %vm1146, %v1108, 0
      %v1472 = vsel %vm1146, %v1109, 0
      %v1475 = vsel %vm1146, %v1110, 0
      %v1478 = vsel %vm1146, %v1111, 0
      %v1481 = vsel %vm1146, %v1112, 0
      %v1484 = vsel %vm1146, %v1113, 0
      %v1487 = vsel %vm1146, %v1114, 0
      %v1490 = vsel %vm1146, %v1115, 0
      %v1493 = vsel %vm1146, %v1116, 0
      %v1496 = vsel %vm1146, %v1117, 0
      %v1499 = vsel %vm1146, %v1118, 0
      %v1502 = vsel %vm1146, %v1119, 0
      %v1505 = vsel %vm1146, %v1120, 0
      %v1508 = vsel %vm1146, %v1121, 0
      %v1511 = vsel %vm1146, %v1122, 0
      %v1514 = vsel %vm1146, %v1123, 0
      %v1517 = vsel %vm1146, %v1124, 0
      %v1520 = vsel %vm1146, %v1125, 0
      %v1523 = vsel %vm1146, %v1126, 0
      %v1526 = vsel %vm1146, %v1127, 0
      %1528 = vmatprep.subr.bf16.mxu0 0
      %1529 = vmatpush1.bf16.msra.mxu0 %v1140
      %1530 = vmatprep.subr.bf16.mxu0 0
      %1531 = vmatpush1.bf16.msra.mxu0 %v1141
      %1532 = vmatprep.subr.bf16.mxu0 0
      %1533 = vmatpush1.bf16.msra.mxu0 %v1142
      %1534 = vmatprep.subr.bf16.mxu0 0
      %1535 = vmatpush1.bf16.msra.mxu0 0
      %1536 = vmatprep.subr.bf16.mxu0 0
      %1537 = vmatpush1.bf16.msra.mxu0 0
      %1538 = vmatprep.subr.bf16.mxu0 0
      %1539 = vmatpush1.bf16.msra.mxu0 0
      %1540 = vmatprep.subr.bf16.mxu0 0
      %1541 = vmatpush1.bf16.msra.mxu0 0
      %1542 = vmatprep.subr.bf16.mxu0 0
      %1543 = vmatpush1.bf16.msra.mxu0 0
      %1544 = vmatprep.subr.bf16.mxu0 0
      %1545 = vmatpush1.bf16.msra.mxu0 0
      %1546 = vmatprep.subr.bf16.mxu0 0
      %1547 = vmatpush1.bf16.msra.mxu0 0
      %1548 = vmatprep.subr.bf16.mxu0 0
      %1549 = vmatpush1.bf16.msra.mxu0 0
      %1550 = vmatprep.subr.bf16.mxu0 0
      %1551 = vmatpush1.bf16.msra.mxu0 0
      %1552 = vmatprep.subr.bf16.mxu0 0
      %1553 = vmatpush1.bf16.msra.mxu0 0
      %1554 = vmatprep.subr.bf16.mxu0 0
      %1555 = vmatpush1.bf16.msra.mxu0 0
      %1556 = vmatprep.subr.bf16.mxu0 0
      %1557 = vmatpush1.bf16.msra.mxu0 0
      %1558 = vmatprep.subr.bf16.mxu0 0
      %1559 = vmatpush1.bf16.msra.mxu0 0
      %1560 = vmatprep.mubr.bf16.mxu0 0
      %1561 = vmatmul.mubr.bf16.gmra.mrb[0].mxu0 %v1148
      %v1562 = vpop.f32.mrb[0].mxu0
      %v1563 = vadd.f32 %v491, %v1562
      %v1564 = vpop.f32.mrb[0].mxu0
      %v1565 = vpop.f32.mrb[0].mxu0
      %v1566 = vadd.f32 %v491, %v1565
      %v1567 = vpop.f32.mrb[0].mxu0
      %1568 = vmatprep.mubr.bf16.mxu0 0
      %1569 = vmatmul.mubr.bf16.gmra.mrb[0].mxu0 %v1151
      %v1570 = vpop.f32.mrb[0].mxu0
      %v1571 = vadd.f32 %v491, %v1570
      %v1572 = vpop.f32.mrb[0].mxu0
      %v1573 = vpop.f32.mrb[0].mxu0
      %v1574 = vadd.f32 %v491, %v1573
      %v1575 = vpop.f32.mrb[0].mxu0
      %1576 = vmatprep.mubr.bf16.mxu0 0
      %1577 = vmatmul.mubr.bf16.gmra.mrb[0].mxu0 %v1154
      %v1578 = vpop.f32.mrb[0].mxu0
      %v1579 = vadd.f32 %v491, %v1578
      %v1580 = vpop.f32.mrb[0].mxu0
      %v1581 = vpop.f32.mrb[0].mxu0
      %v1582 = vadd.f32 %v491, %v1581
      %v1583 = vpop.f32.mrb[0].mxu0
      %1584 = vmatprep.mubr.bf16.mxu0 0
      %1585 = vmatmul.mubr.bf16.gmra.mrb[0].mxu0 %v1157
      %v1586 = vpop.f32.mrb[0].mxu0
      %v1587 = vadd.f32 %v491, %v1586
      %v1588 = vpop.f32.mrb[0].mxu0
      %v1589 = vpop.f32.mrb[0].mxu0
      %v1590 = vadd.f32 %v491, %v1589
      %v1591 = vpop.f32.mrb[0].mxu0
      %1592 = vmatprep.mubr.bf16.mxu0 0
      %1593 = vmatmul.mubr.bf16.gmra.mrb[0].mxu0 %v1160
      %v1594 = vpop.f32.mrb[0].mxu0
      %v1595 = vadd.f32 %v491, %v1594
      %v1596 = vpop.f32.mrb[0].mxu0
      %v1597 = vpop.f32.mrb[0].mxu0
      %v1598 = vadd.f32 %v491, %v1597
      %v1599 = vpop.f32.mrb[0].mxu0
      %1600 = vmatprep.mubr.bf16.mxu0 0
      %1601 = vmatmul.mubr.bf16.gmra.mrb[0].mxu0 %v1163
      %v1602 = vpop.f32.mrb[0].mxu0
      %v1603 = vadd.f32 %v491, %v1602
      %v1604 = vpop.f32.mrb[0].mxu0
      %v1605 = vpop.f32.mrb[0].mxu0
      %v1606 = vadd.f32 %v491, %v1605
      %v1607 = vpop.f32.mrb[0].mxu0
      %1608 = vmatprep.mubr.bf16.mxu0 0
      %1609 = vmatmul.mubr.bf16.gmra.mrb[0].mxu0 %v1166
      %v1610 = vpop.f32.mrb[0].mxu0
      %v1611 = vadd.f32 %v491, %v1610
      %v1612 = vpop.f32.mrb[0].mxu0
      %v1613 = vpop.f32.mrb[0].mxu0
      %v1614 = vadd.f32 %v491, %v1613
      %v1615 = vpop.f32.mrb[0].mxu0
      %1616 = vmatprep.mubr.bf16.mxu0 0
      %1617 = vmatmul.mubr.bf16.gmra.mrb[0].mxu0 %v1169
      %v1618 = vpop.f32.mrb[0].mxu0
      %v1619 = vadd.f32 %v491, %v1618
      %v1620 = vpop.f32.mrb[0].mxu0
      %v1621 = vpop.f32.mrb[0].mxu0
      %v1622 = vadd.f32 %v491, %v1621
      %v1623 = vpop.f32.mrb[0].mxu0
      %1624 = vmatprep.mubr.bf16.mxu0 0
      %1625 = vmatmul.mubr.bf16.gmra.mrb[0].mxu0 %v1172
      %v1626 = vpop.f32.mrb[0].mxu0
      %v1627 = vadd.f32 %v491, %v1626
      %v1628 = vpop.f32.mrb[0].mxu0
      %v1629 = vpop.f32.mrb[0].mxu0
      %v1630 = vadd.f32 %v491, %v1629
      %v1631 = vpop.f32.mrb[0].mxu0
      %1632 = vmatprep.mubr.bf16.mxu0 0
      %1633 = vmatmul.mubr.bf16.gmra.mrb[0].mxu0 %v1175
      %v1634 = vpop.f32.mrb[0].mxu0
      %v1635 = vadd.f32 %v491, %v1634
      %v1636 = vpop.f32.mrb[0].mxu0
      %v1637 = vpop.f32.mrb[0].mxu0
      %v1638 = vadd.f32 %v491, %v1637
      %v1639 = vpop.f32.mrb[0].mxu0
      %1640 = vmatprep.mubr.bf16.mxu0 0
      %1641 = vmatmul.mubr.bf16.gmra.mrb[0].mxu0 %v1178
      %v1642 = vpop.f32.mrb[0].mxu0
      %v1643 = vadd.f32 %v491, %v1642
      %v1644 = vpop.f32.mrb[0].mxu0
      %v1645 = vpop.f32.mrb[0].mxu0
      %v1646 = vadd.f32 %v491, %v1645
      %v1647 = vpop.f32.mrb[0].mxu0
      %1648 = vmatprep.mubr.bf16.mxu0 0
      %1649 = vmatmul.mubr.bf16.gmra.mrb[0].mxu0 %v1181
      %v1650 = vpop.f32.mrb[0].mxu0
      %v1651 = vadd.f32 %v491, %v1650
      %v1652 = vpop.f32.mrb[0].mxu0
      %v1653 = vpop.f32.mrb[0].mxu0
      %v1654 = vadd.f32 %v491, %v1653
      %v1655 = vpop.f32.mrb[0].mxu0
      %1656 = vmatprep.mubr.bf16.mxu0 0
      %1657 = vmatmul.mubr.bf16.gmra.mrb[0].mxu0 %v1184
      %v1658 = vpop.f32.mrb[0].mxu0
      %v1659 = vadd.f32 %v491, %v1658
      %v1660 = vpop.f32.mrb[0].mxu0
      %v1661 = vpop.f32.mrb[0].mxu0
      %v1662 = vadd.f32 %v491, %v1661
      %v1663 = vpop.f32.mrb[0].mxu0
      %1664 = vmatprep.mubr.bf16.mxu0 0
      %1665 = vmatmul.mubr.bf16.gmra.mrb[0].mxu0 %v1187
      %v1666 = vpop.f32.mrb[0].mxu0
      %v1667 = vadd.f32 %v491, %v1666
      %v1668 = vpop.f32.mrb[0].mxu0
      %v1669 = vpop.f32.mrb[0].mxu0
      %v1670 = vadd.f32 %v491, %v1669
      %v1671 = vpop.f32.mrb[0].mxu0
      %1672 = vmatprep.mubr.bf16.mxu0 0
      %1673 = vmatmul.mubr.bf16.gmra.mrb[0].mxu0 %v1190
      %v1674 = vpop.f32.mrb[0].mxu0
      %v1675 = vadd.f32 %v491, %v1674
      %v1676 = vpop.f32.mrb[0].mxu0
      %v1677 = vpop.f32.mrb[0].mxu0
      %v1678 = vadd.f32 %v491, %v1677
      %v1679 = vpop.f32.mrb[0].mxu0
      %1680 = vmatprep.mubr.bf16.mxu0 0
      %1681 = vmatmul.mubr.bf16.gmra.mrb[0].mxu0 %v1193
      %v1682 = vpop.f32.mrb[0].mxu0
      %v1683 = vadd.f32 %v491, %v1682
      %v1684 = vpop.f32.mrb[0].mxu0
      %v1685 = vpop.f32.mrb[0].mxu0
      %v1686 = vadd.f32 %v491, %v1685
      %v1687 = vpop.f32.mrb[0].mxu0
      %1688 = vmatprep.mubr.bf16.mxu0 0
      %1689 = vmatmul.mubr.bf16.gmra.mrb[0].mxu0 %v1196
      %v1690 = vpop.f32.mrb[0].mxu0
      %v1691 = vadd.f32 %v491, %v1690
      %v1692 = vpop.f32.mrb[0].mxu0
      %v1693 = vpop.f32.mrb[0].mxu0
      %v1694 = vadd.f32 %v491, %v1693
      %v1695 = vpop.f32.mrb[0].mxu0
      %1696 = vmatprep.mubr.bf16.mxu0 0
      %1697 = vmatmul.mubr.bf16.gmra.mrb[0].mxu0 %v1199
      %v1698 = vpop.f32.mrb[0].mxu0
      %v1699 = vadd.f32 %v491, %v1698
      %v1700 = vpop.f32.mrb[0].mxu0
      %v1701 = vpop.f32.mrb[0].mxu0
      %v1702 = vadd.f32 %v491, %v1701
      %v1703 = vpop.f32.mrb[0].mxu0
      %1704 = vmatprep.mubr.bf16.mxu0 0
      %1705 = vmatmul.mubr.bf16.gmra.mrb[0].mxu0 %v1202
      %v1706 = vpop.f32.mrb[0].mxu0
      %v1707 = vadd.f32 %v491, %v1706
      %v1708 = vpop.f32.mrb[0].mxu0
      %v1709 = vpop.f32.mrb[0].mxu0
      %v1710 = vadd.f32 %v491, %v1709
      %v1711 = vpop.f32.mrb[0].mxu0
      %1712 = vmatprep.mubr.bf16.mxu0 0
      %1713 = vmatmul.mubr.bf16.gmra.mrb[0].mxu0 %v1205
      %v1714 = vpop.f32.mrb[0].mxu0
      %v1715 = vadd.f32 %v491, %v1714
      %v1716 = vpop.f32.mrb[0].mxu0
      %v1717 = vpop.f32.mrb[0].mxu0
      %v1718 = vadd.f32 %v491, %v1717
      %v1719 = vpop.f32.mrb[0].mxu0
      %1720 = vmatprep.mubr.bf16.mxu0 0
      %1721 = vmatmul.mubr.bf16.gmra.mrb[0].mxu0 %v1208
      %v1722 = vpop.f32.mrb[0].mxu0
      %v1723 = vadd.f32 %v491, %v1722
      %v1724 = vpop.f32.mrb[0].mxu0
      %v1725 = vpop.f32.mrb[0].mxu0
      %v1726 = vadd.f32 %v491, %v1725
      %v1727 = vpop.f32.mrb[0].mxu0
      %1728 = vmatprep.mubr.bf16.mxu0 0
      %1729 = vmatmul.mubr.bf16.gmra.mrb[0].mxu0 %v1211
      %v1730 = vpop.f32.mrb[0].mxu0
      %v1731 = vadd.f32 %v491, %v1730
      %v1732 = vpop.f32.mrb[0].mxu0
      %v1733 = vpop.f32.mrb[0].mxu0
      %v1734 = vadd.f32 %v491, %v1733
      %v1735 = vpop.f32.mrb[0].mxu0
      %1736 = vmatprep.mubr.bf16.mxu0 0
      %1737 = vmatmul.mubr.bf16.gmra.mrb[0].mxu0 %v1214
      %v1738 = vpop.f32.mrb[0].mxu0
      %v1739 = vadd.f32 %v491, %v1738
      %v1740 = vpop.f32.mrb[0].mxu0
      %v1741 = vpop.f32.mrb[0].mxu0
      %v1742 = vadd.f32 %v491, %v1741
      %v1743 = vpop.f32.mrb[0].mxu0
      %1744 = vmatprep.mubr.bf16.mxu0 0
      %1745 = vmatmul.mubr.bf16.gmra.mrb[0].mxu0 %v1217
      %v1746 = vpop.f32.mrb[0].mxu0
      %v1747 = vadd.f32 %v491, %v1746
      %v1748 = vpop.f32.mrb[0].mxu0
      %v1749 = vpop.f32.mrb[0].mxu0
      %v1750 = vadd.f32 %v491, %v1749
      %v1751 = vpop.f32.mrb[0].mxu0
      %1752 = vmatprep.mubr.bf16.mxu0 0
      %1753 = vmatmul.mubr.bf16.gmra.mrb[0].mxu0 %v1220
      %v1754 = vpop.f32.mrb[0].mxu0
      %v1755 = vadd.f32 %v491, %v1754
      %v1756 = vpop.f32.mrb[0].mxu0
      %v1757 = vpop.f32.mrb[0].mxu0
      %v1758 = vadd.f32 %v491, %v1757
      %v1759 = vpop.f32.mrb[0].mxu0
      %1760 = vmatprep.mubr.bf16.mxu0 0
      %1761 = vmatmul.mubr.bf16.gmra.mrb[0].mxu0 %v1223
      %v1762 = vpop.f32.mrb[0].mxu0
      %v1763 = vadd.f32 %v491, %v1762
      %v1764 = vpop.f32.mrb[0].mxu0
      %v1765 = vpop.f32.mrb[0].mxu0
      %v1766 = vadd.f32 %v491, %v1765
      %v1767 = vpop.f32.mrb[0].mxu0
      %1768 = vmatprep.mubr.bf16.mxu0 0
      %1769 = vmatmul.mubr.bf16.gmra.mrb[0].mxu0 %v1226
      %v1770 = vpop.f32.mrb[0].mxu0
      %v1771 = vadd.f32 %v491, %v1770
      %v1772 = vpop.f32.mrb[0].mxu0
      %v1773 = vpop.f32.mrb[0].mxu0
      %v1774 = vadd.f32 %v491, %v1773
      %v1775 = vpop.f32.mrb[0].mxu0
      %1776 = vmatprep.mubr.bf16.mxu0 0
      %1777 = vmatmul.mubr.bf16.gmra.mrb[0].mxu0 %v1229
      %v1778 = vpop.f32.mrb[0].mxu0
      %v1779 = vadd.f32 %v491, %v1778
      %v1780 = vpop.f32.mrb[0].mxu0
      %v1781 = vpop.f32.mrb[0].mxu0
      %v1782 = vadd.f32 %v491, %v1781
      %v1783 = vpop.f32.mrb[0].mxu0
      %1784 = vmatprep.mubr.bf16.mxu0 0
      %1785 = vmatmul.mubr.bf16.gmra.mrb[0].mxu0 %v1232
      %v1786 = vpop.f32.mrb[0].mxu0
      %v1787 = vadd.f32 %v491, %v1786
      %v1788 = vpop.f32.mrb[0].mxu0
      %v1789 = vpop.f32.mrb[0].mxu0
      %v1790 = vadd.f32 %v491, %v1789
      %v1791 = vpop.f32.mrb[0].mxu0
      %1792 = vmatprep.mubr.bf16.mxu0 0
      %1793 = vmatmul.mubr.bf16.gmra.mrb[0].mxu0 %v1235
      %v1794 = vpop.f32.mrb[0].mxu0
      %v1795 = vadd.f32 %v491, %v1794
      %v1796 = vpop.f32.mrb[0].mxu0
      %v1797 = vpop.f32.mrb[0].mxu0
      %v1798 = vadd.f32 %v491, %v1797
      %v1799 = vpop.f32.mrb[0].mxu0
      %1800 = vmatprep.mubr.bf16.mxu0 0
      %1801 = vmatmul.mubr.bf16.gmra.mrb[0].mxu0 %v1238
      %v1802 = vpop.f32.mrb[0].mxu0
      %v1803 = vadd.f32 %v491, %v1802
      %v1804 = vpop.f32.mrb[0].mxu0
      %v1805 = vpop.f32.mrb[0].mxu0
      %v1806 = vadd.f32 %v491, %v1805
      %v1807 = vpop.f32.mrb[0].mxu0
      %1808 = vmatprep.mubr.bf16.mxu0 0
      %1809 = vmatmul.mubr.bf16.gmra.mrb[0].mxu0 %v1241
      %v1810 = vpop.f32.mrb[0].mxu0
      %v1811 = vadd.f32 %v491, %v1810
      %v1812 = vpop.f32.mrb[0].mxu0
      %v1813 = vpop.f32.mrb[0].mxu0
      %v1814 = vadd.f32 %v491, %v1813
      %v1815 = vpop.f32.mrb[0].mxu0
      %1816 = vmatprep.mubr.bf16.mxu0 0
      %1817 = vmatmul.mubr.bf16.gmra.mrb[0].mxu0 %v1244
      %v1818 = vpop.f32.mrb[0].mxu0
      %v1819 = vadd.f32 %v491, %v1818
      %v1820 = vpop.f32.mrb[0].mxu0
      %v1821 = vpop.f32.mrb[0].mxu0
      %v1822 = vadd.f32 %v491, %v1821
      %v1823 = vpop.f32.mrb[0].mxu0
      %1824 = vmatprep.mubr.bf16.mxu0 0
      %1825 = vmatmul.mubr.bf16.gmra.mrb[0].mxu0 %v1247
      %v1826 = vpop.f32.mrb[0].mxu0
      %v1827 = vadd.f32 %v491, %v1826
      %v1828 = vpop.f32.mrb[0].mxu0
      %v1829 = vpop.f32.mrb[0].mxu0
      %v1830 = vadd.f32 %v491, %v1829
      %v1831 = vpop.f32.mrb[0].mxu0
      %1832 = vmatprep.mubr.bf16.mxu0 0
      %1833 = vmatmul.mubr.bf16.gmra.mrb[0].mxu0 %v1250
      %v1834 = vpop.f32.mrb[0].mxu0
      %v1835 = vadd.f32 %v491, %v1834
      %v1836 = vpop.f32.mrb[0].mxu0
      %v1837 = vpop.f32.mrb[0].mxu0
      %v1838 = vadd.f32 %v491, %v1837
      %v1839 = vpop.f32.mrb[0].mxu0
      %1840 = vmatprep.mubr.bf16.mxu0 0
      %1841 = vmatmul.mubr.bf16.gmra.mrb[0].mxu0 %v1253
      %v1842 = vpop.f32.mrb[0].mxu0
      %v1843 = vadd.f32 %v491, %v1842
      %v1844 = vpop.f32.mrb[0].mxu0
      %v1845 = vpop.f32.mrb[0].mxu0
      %v1846 = vadd.f32 %v491, %v1845
      %v1847 = vpop.f32.mrb[0].mxu0
      %1848 = vmatprep.mubr.bf16.mxu0 0
      %1849 = vmatmul.mubr.bf16.gmra.mrb[0].mxu0 %v1256
      %v1850 = vpop.f32.mrb[0].mxu0
      %v1851 = vadd.f32 %v491, %v1850
      %v1852 = vpop.f32.mrb[0].mxu0
      %v1853 = vpop.f32.mrb[0].mxu0
      %v1854 = vadd.f32 %v491, %v1853
      %v1855 = vpop.f32.mrb[0].mxu0
      %1856 = vmatprep.mubr.bf16.mxu0 0
      %1857 = vmatmul.mubr.bf16.gmra.mrb[0].mxu0 %v1259
      %v1858 = vpop.f32.mrb[0].mxu0
      %v1859 = vadd.f32 %v491, %v1858
      %v1860 = vpop.f32.mrb[0].mxu0
      %v1861 = vpop.f32.mrb[0].mxu0
      %v1862 = vadd.f32 %v491, %v1861
      %v1863 = vpop.f32.mrb[0].mxu0
      %1864 = vmatprep.mubr.bf16.mxu0 0
      %1865 = vmatmul.mubr.bf16.gmra.mrb[0].mxu0 %v1262
      %v1866 = vpop.f32.mrb[0].mxu0
      %v1867 = vadd.f32 %v491, %v1866
      %v1868 = vpop.f32.mrb[0].mxu0
      %v1869 = vpop.f32.mrb[0].mxu0
      %v1870 = vadd.f32 %v491, %v1869
      %v1871 = vpop.f32.mrb[0].mxu0
      %1872 = vmatprep.mubr.bf16.mxu0 0
      %1873 = vmatmul.mubr.bf16.gmra.mrb[0].mxu0 %v1265
      %v1874 = vpop.f32.mrb[0].mxu0
      %v1875 = vadd.f32 %v491, %v1874
      %v1876 = vpop.f32.mrb[0].mxu0
      %v1877 = vpop.f32.mrb[0].mxu0
      %v1878 = vadd.f32 %v491, %v1877
      %v1879 = vpop.f32.mrb[0].mxu0
      %1880 = vmatprep.mubr.bf16.mxu0 0
      %1881 = vmatmul.mubr.bf16.gmra.mrb[0].mxu0 %v1268
      %v1882 = vpop.f32.mrb[0].mxu0
      %v1883 = vadd.f32 %v491, %v1882
      %v1884 = vpop.f32.mrb[0].mxu0
      %v1885 = vpop.f32.mrb[0].mxu0
      %v1886 = vadd.f32 %v491, %v1885
      %v1887 = vpop.f32.mrb[0].mxu0
      %1888 = vmatprep.mubr.bf16.mxu0 0
      %1889 = vmatmul.mubr.bf16.gmra.mrb[0].mxu0 %v1271
      %v1890 = vpop.f32.mrb[0].mxu0
      %v1891 = vadd.f32 %v491, %v1890
      %v1892 = vpop.f32.mrb[0].mxu0
      %v1893 = vpop.f32.mrb[0].mxu0
      %v1894 = vadd.f32 %v491, %v1893
      %v1895 = vpop.f32.mrb[0].mxu0
      %1896 = vmatprep.mubr.bf16.mxu0 0
      %1897 = vmatmul.mubr.bf16.gmra.mrb[0].mxu0 %v1274
      %v1898 = vpop.f32.mrb[0].mxu0
      %v1899 = vadd.f32 %v491, %v1898
      %v1900 = vpop.f32.mrb[0].mxu0
      %v1901 = vpop.f32.mrb[0].mxu0
      %v1902 = vadd.f32 %v491, %v1901
      %v1903 = vpop.f32.mrb[0].mxu0
      %1904 = vmatprep.mubr.bf16.mxu0 0
      %1905 = vmatmul.mubr.bf16.gmra.mrb[0].mxu0 %v1277
      %v1906 = vpop.f32.mrb[0].mxu0
      %v1907 = vadd.f32 %v491, %v1906
      %v1908 = vpop.f32.mrb[0].mxu0
      %v1909 = vpop.f32.mrb[0].mxu0
      %v1910 = vadd.f32 %v491, %v1909
      %v1911 = vpop.f32.mrb[0].mxu0
      %1912 = vmatprep.mubr.bf16.mxu0 0
      %1913 = vmatmul.mubr.bf16.gmra.mrb[0].mxu0 %v1280
      %v1914 = vpop.f32.mrb[0].mxu0
      %v1915 = vadd.f32 %v491, %v1914
      %v1916 = vpop.f32.mrb[0].mxu0
      %v1917 = vpop.f32.mrb[0].mxu0
      %v1918 = vadd.f32 %v491, %v1917
      %v1919 = vpop.f32.mrb[0].mxu0
      %1920 = vmatprep.mubr.bf16.mxu0 0
      %1921 = vmatmul.mubr.bf16.gmra.mrb[0].mxu0 %v1283
      %v1922 = vpop.f32.mrb[0].mxu0
      %v1923 = vadd.f32 %v491, %v1922
      %v1924 = vpop.f32.mrb[0].mxu0
      %v1925 = vpop.f32.mrb[0].mxu0
      %v1926 = vadd.f32 %v491, %v1925
      %v1927 = vpop.f32.mrb[0].mxu0
      %1928 = vmatprep.mubr.bf16.mxu0 0
      %1929 = vmatmul.mubr.bf16.gmra.mrb[0].mxu0 %v1286
      %v1930 = vpop.f32.mrb[0].mxu0
      %v1931 = vadd.f32 %v491, %v1930
      %v1932 = vpop.f32.mrb[0].mxu0
      %v1933 = vpop.f32.mrb[0].mxu0
      %v1934 = vadd.f32 %v491, %v1933
      %v1935 = vpop.f32.mrb[0].mxu0
      %1936 = vmatprep.mubr.bf16.mxu0 0
      %1937 = vmatmul.mubr.bf16.gmra.mrb[0].mxu0 %v1289
      %v1938 = vpop.f32.mrb[0].mxu0
      %v1939 = vadd.f32 %v491, %v1938
      %v1940 = vpop.f32.mrb[0].mxu0
      %v1941 = vpop.f32.mrb[0].mxu0
      %v1942 = vadd.f32 %v491, %v1941
      %v1943 = vpop.f32.mrb[0].mxu0
      %1944 = vmatprep.mubr.bf16.mxu0 0
      %1945 = vmatmul.mubr.bf16.gmra.mrb[0].mxu0 %v1292
      %v1946 = vpop.f32.mrb[0].mxu0
      %v1947 = vadd.f32 %v491, %v1946
      %v1948 = vpop.f32.mrb[0].mxu0
      %v1949 = vpop.f32.mrb[0].mxu0
      %v1950 = vadd.f32 %v491, %v1949
      %v1951 = vpop.f32.mrb[0].mxu0
      %1952 = vmatprep.mubr.bf16.mxu0 0
      %1953 = vmatmul.mubr.bf16.gmra.mrb[0].mxu0 %v1295
      %v1954 = vpop.f32.mrb[0].mxu0
      %v1955 = vadd.f32 %v491, %v1954
      %v1956 = vpop.f32.mrb[0].mxu0
      %v1957 = vpop.f32.mrb[0].mxu0
      %v1958 = vadd.f32 %v491, %v1957
      %v1959 = vpop.f32.mrb[0].mxu0
      %1960 = vmatprep.mubr.bf16.mxu0 0
      %1961 = vmatmul.mubr.bf16.gmra.mrb[0].mxu0 %v1298
      %v1962 = vpop.f32.mrb[0].mxu0
      %v1963 = vadd.f32 %v491, %v1962
      %v1964 = vpop.f32.mrb[0].mxu0
      %v1965 = vpop.f32.mrb[0].mxu0
      %v1966 = vadd.f32 %v491, %v1965
      %v1967 = vpop.f32.mrb[0].mxu0
      %1968 = vmatprep.mubr.bf16.mxu0 0
      %1969 = vmatmul.mubr.bf16.gmra.mrb[0].mxu0 %v1301
      %v1970 = vpop.f32.mrb[0].mxu0
      %v1971 = vadd.f32 %v491, %v1970
      %v1972 = vpop.f32.mrb[0].mxu0
      %v1973 = vpop.f32.mrb[0].mxu0
      %v1974 = vadd.f32 %v491, %v1973
      %v1975 = vpop.f32.mrb[0].mxu0
      %1976 = vmatprep.mubr.bf16.mxu0 0
      %1977 = vmatmul.mubr.bf16.gmra.mrb[0].mxu0 %v1304
      %v1978 = vpop.f32.mrb[0].mxu0
      %v1979 = vadd.f32 %v491, %v1978
      %v1980 = vpop.f32.mrb[0].mxu0
      %v1981 = vpop.f32.mrb[0].mxu0
      %v1982 = vadd.f32 %v491, %v1981
      %v1983 = vpop.f32.mrb[0].mxu0
      %1984 = vmatprep.mubr.bf16.mxu0 0
      %1985 = vmatmul.mubr.bf16.gmra.mrb[0].mxu0 %v1307
      %v1986 = vpop.f32.mrb[0].mxu0
      %v1987 = vadd.f32 %v491, %v1986
      %v1988 = vpop.f32.mrb[0].mxu0
      %v1989 = vpop.f32.mrb[0].mxu0
      %v1990 = vadd.f32 %v491, %v1989
      %v1991 = vpop.f32.mrb[0].mxu0
      %1992 = vmatprep.mubr.bf16.mxu0 0
      %1993 = vmatmul.mubr.bf16.gmra.mrb[0].mxu0 %v1310
      %v1994 = vpop.f32.mrb[0].mxu0
      %v1995 = vadd.f32 %v491, %v1994
      %v1996 = vpop.f32.mrb[0].mxu0
      %v1997 = vpop.f32.mrb[0].mxu0
      %v1998 = vadd.f32 %v491, %v1997
      %v1999 = vpop.f32.mrb[0].mxu0
      %2000 = vmatprep.mubr.bf16.mxu0 0
      %2001 = vmatmul.mubr.bf16.gmra.mrb[0].mxu0 %v1313
      %v2002 = vpop.f32.mrb[0].mxu0
      %v2003 = vadd.f32 %v491, %v2002
      %v2004 = vpop.f32.mrb[0].mxu0
      %v2005 = vpop.f32.mrb[0].mxu0
      %v2006 = vadd.f32 %v491, %v2005
      %v2007 = vpop.f32.mrb[0].mxu0
      %2008 = vmatprep.mubr.bf16.mxu0 0
      %2009 = vmatmul.mubr.bf16.gmra.mrb[0].mxu0 %v1316
      %v2010 = vpop.f32.mrb[0].mxu0
      %v2011 = vadd.f32 %v491, %v2010
      %v2012 = vpop.f32.mrb[0].mxu0
      %v2013 = vpop.f32.mrb[0].mxu0
      %v2014 = vadd.f32 %v491, %v2013
      %v2015 = vpop.f32.mrb[0].mxu0
      %2016 = vmatprep.mubr.bf16.mxu0 0
      %2017 = vmatmul.mubr.bf16.gmra.mrb[0].mxu0 %v1319
      %v2018 = vpop.f32.mrb[0].mxu0
      %v2019 = vadd.f32 %v491, %v2018
      %v2020 = vpop.f32.mrb[0].mxu0
      %v2021 = vpop.f32.mrb[0].mxu0
      %v2022 = vadd.f32 %v491, %v2021
      %v2023 = vpop.f32.mrb[0].mxu0
      %2024 = vmatprep.mubr.bf16.mxu0 0
      %2025 = vmatmul.mubr.bf16.gmra.mrb[0].mxu0 %v1322
      %v2026 = vpop.f32.mrb[0].mxu0
      %v2027 = vadd.f32 %v491, %v2026
      %v2028 = vpop.f32.mrb[0].mxu0
      %v2029 = vpop.f32.mrb[0].mxu0
      %v2030 = vadd.f32 %v491, %v2029
      %v2031 = vpop.f32.mrb[0].mxu0
      %2032 = vmatprep.mubr.bf16.mxu0 0
      %2033 = vmatmul.mubr.bf16.gmra.mrb[0].mxu0 %v1325
      %v2034 = vpop.f32.mrb[0].mxu0
      %v2035 = vadd.f32 %v491, %v2034
      %v2036 = vpop.f32.mrb[0].mxu0
      %v2037 = vpop.f32.mrb[0].mxu0
      %v2038 = vadd.f32 %v491, %v2037
      %v2039 = vpop.f32.mrb[0].mxu0
      %2040 = vmatprep.mubr.bf16.mxu0 0
      %2041 = vmatmul.mubr.bf16.gmra.mrb[0].mxu0 %v1328
      %v2042 = vpop.f32.mrb[0].mxu0
      %v2043 = vadd.f32 %v491, %v2042
      %v2044 = vpop.f32.mrb[0].mxu0
      %v2045 = vpop.f32.mrb[0].mxu0
      %v2046 = vadd.f32 %v491, %v2045
      %v2047 = vpop.f32.mrb[0].mxu0
      %2048 = vmatprep.mubr.bf16.mxu0 0
      %2049 = vmatmul.mubr.bf16.gmra.mrb[0].mxu0 %v1331
      %v2050 = vpop.f32.mrb[0].mxu0
      %v2051 = vadd.f32 %v491, %v2050
      %v2052 = vpop.f32.mrb[0].mxu0
      %v2053 = vpop.f32.mrb[0].mxu0
      %v2054 = vadd.f32 %v491, %v2053
      %v2055 = vpop.f32.mrb[0].mxu0
      %2056 = vmatprep.mubr.bf16.mxu0 0
      %2057 = vmatmul.mubr.bf16.gmra.mrb[0].mxu0 %v1334
      %v2058 = vpop.f32.mrb[0].mxu0
      %v2059 = vadd.f32 %v491, %v2058
      %v2060 = vpop.f32.mrb[0].mxu0
      %v2061 = vpop.f32.mrb[0].mxu0
      %v2062 = vadd.f32 %v491, %v2061
      %v2063 = vpop.f32.mrb[0].mxu0
      %2064 = vmatprep.mubr.bf16.mxu0 0
      %2065 = vmatmul.mubr.bf16.gmra.mrb[0].mxu0 %v1337
      %v2066 = vpop.f32.mrb[0].mxu0
      %v2067 = vadd.f32 %v491, %v2066
      %v2068 = vpop.f32.mrb[0].mxu0
      %v2069 = vpop.f32.mrb[0].mxu0
      %v2070 = vadd.f32 %v491, %v2069
      %v2071 = vpop.f32.mrb[0].mxu0
      %2072 = vmatprep.mubr.bf16.mxu0 0
      %2073 = vmatmul.mubr.bf16.gmra.mrb[0].mxu0 %v1340
      %v2074 = vpop.f32.mrb[0].mxu0
      %v2075 = vadd.f32 %v491, %v2074
      %v2076 = vpop.f32.mrb[0].mxu0
      %v2077 = vpop.f32.mrb[0].mxu0
      %v2078 = vadd.f32 %v491, %v2077
      %v2079 = vpop.f32.mrb[0].mxu0
      %2080 = vmatprep.mubr.bf16.mxu0 0
      %2081 = vmatmul.mubr.bf16.gmra.mrb[0].mxu0 %v1343
      %v2082 = vpop.f32.mrb[0].mxu0
      %v2083 = vadd.f32 %v491, %v2082
      %v2084 = vpop.f32.mrb[0].mxu0
      %v2085 = vpop.f32.mrb[0].mxu0
      %v2086 = vadd.f32 %v491, %v2085
      %v2087 = vpop.f32.mrb[0].mxu0
      %2088 = vmatprep.mubr.bf16.mxu0 0
      %2089 = vmatmul.mubr.bf16.gmra.mrb[0].mxu0 %v1346
      %v2090 = vpop.f32.mrb[0].mxu0
      %v2091 = vadd.f32 %v491, %v2090
      %v2092 = vpop.f32.mrb[0].mxu0
      %v2093 = vpop.f32.mrb[0].mxu0
      %v2094 = vadd.f32 %v491, %v2093
      %v2095 = vpop.f32.mrb[0].mxu0
      %2096 = vmatprep.mubr.bf16.mxu0 0
      %2097 = vmatmul.mubr.bf16.gmra.mrb[0].mxu0 %v1349
      %v2098 = vpop.f32.mrb[0].mxu0
      %v2099 = vadd.f32 %v491, %v2098
      %v2100 = vpop.f32.mrb[0].mxu0
      %v2101 = vpop.f32.mrb[0].mxu0
      %v2102 = vadd.f32 %v491, %v2101
      %v2103 = vpop.f32.mrb[0].mxu0
      %2104 = vmatprep.mubr.bf16.mxu0 0
      %2105 = vmatmul.mubr.bf16.gmra.mrb[0].mxu0 %v1352
      %v2106 = vpop.f32.mrb[0].mxu0
      %v2107 = vadd.f32 %v491, %v2106
      %v2108 = vpop.f32.mrb[0].mxu0
      %v2109 = vpop.f32.mrb[0].mxu0
      %v2110 = vadd.f32 %v491, %v2109
      %v2111 = vpop.f32.mrb[0].mxu0
      %2112 = vmatprep.mubr.bf16.mxu0 0
      %2113 = vmatmul.mubr.bf16.gmra.mrb[0].mxu0 %v1355
      %v2114 = vpop.f32.mrb[0].mxu0
      %v2115 = vadd.f32 %v491, %v2114
      %v2116 = vpop.f32.mrb[0].mxu0
      %v2117 = vpop.f32.mrb[0].mxu0
      %v2118 = vadd.f32 %v491, %v2117
      %v2119 = vpop.f32.mrb[0].mxu0
      %2120 = vmatprep.mubr.bf16.mxu0 0
      %2121 = vmatmul.mubr.bf16.gmra.mrb[0].mxu0 %v1358
      %v2122 = vpop.f32.mrb[0].mxu0
      %v2123 = vadd.f32 %v491, %v2122
      %v2124 = vpop.f32.mrb[0].mxu0
      %v2125 = vpop.f32.mrb[0].mxu0
      %v2126 = vadd.f32 %v491, %v2125
      %v2127 = vpop.f32.mrb[0].mxu0
      %2128 = vmatprep.mubr.bf16.mxu0 0
      %2129 = vmatmul.mubr.bf16.gmra.mrb[0].mxu0 %v1361
      %v2130 = vpop.f32.mrb[0].mxu0
      %v2131 = vadd.f32 %v491, %v2130
      %v2132 = vpop.f32.mrb[0].mxu0
      %v2133 = vpop.f32.mrb[0].mxu0
      %v2134 = vadd.f32 %v491, %v2133
      %v2135 = vpop.f32.mrb[0].mxu0
      %2136 = vmatprep.mubr.bf16.mxu0 0
      %2137 = vmatmul.mubr.bf16.gmra.mrb[0].mxu0 %v1364
      %v2138 = vpop.f32.mrb[0].mxu0
      %v2139 = vadd.f32 %v491, %v2138
      %v2140 = vpop.f32.mrb[0].mxu0
      %v2141 = vpop.f32.mrb[0].mxu0
      %v2142 = vadd.f32 %v491, %v2141
      %v2143 = vpop.f32.mrb[0].mxu0
      %2144 = vmatprep.mubr.bf16.mxu0 0
      %2145 = vmatmul.mubr.bf16.gmra.mrb[0].mxu0 %v1367
      %v2146 = vpop.f32.mrb[0].mxu0
      %v2147 = vadd.f32 %v491, %v2146
      %v2148 = vpop.f32.mrb[0].mxu0
      %v2149 = vpop.f32.mrb[0].mxu0
      %v2150 = vadd.f32 %v491, %v2149
      %v2151 = vpop.f32.mrb[0].mxu0
      %2152 = vmatprep.mubr.bf16.mxu0 0
      %2153 = vmatmul.mubr.bf16.gmra.mrb[0].mxu0 %v1370
      %v2154 = vpop.f32.mrb[0].mxu0
      %v2155 = vadd.f32 %v491, %v2154
      %v2156 = vpop.f32.mrb[0].mxu0
      %v2157 = vpop.f32.mrb[0].mxu0
      %v2158 = vadd.f32 %v491, %v2157
      %v2159 = vpop.f32.mrb[0].mxu0
      %2160 = vmatprep.mubr.bf16.mxu0 0
      %2161 = vmatmul.mubr.bf16.gmra.mrb[0].mxu0 %v1373
      %v2162 = vpop.f32.mrb[0].mxu0
      %v2163 = vadd.f32 %v491, %v2162
      %v2164 = vpop.f32.mrb[0].mxu0
      %v2165 = vpop.f32.mrb[0].mxu0
      %v2166 = vadd.f32 %v491, %v2165
      %v2167 = vpop.f32.mrb[0].mxu0
      %2168 = vmatprep.mubr.bf16.mxu0 0
      %2169 = vmatmul.mubr.bf16.gmra.mrb[0].mxu0 %v1376
      %v2170 = vpop.f32.mrb[0].mxu0
      %v2171 = vadd.f32 %v491, %v2170
      %v2172 = vpop.f32.mrb[0].mxu0
      %v2173 = vpop.f32.mrb[0].mxu0
      %v2174 = vadd.f32 %v491, %v2173
      %v2175 = vpop.f32.mrb[0].mxu0
      %2176 = vmatprep.mubr.bf16.mxu0 0
      %2177 = vmatmul.mubr.bf16.gmra.mrb[0].mxu0 %v1379
      %v2178 = vpop.f32.mrb[0].mxu0
      %v2179 = vadd.f32 %v491, %v2178
      %v2180 = vpop.f32.mrb[0].mxu0
      %v2181 = vpop.f32.mrb[0].mxu0
      %v2182 = vadd.f32 %v491, %v2181
      %v2183 = vpop.f32.mrb[0].mxu0
      %2184 = vmatprep.mubr.bf16.mxu0 0
      %2185 = vmatmul.mubr.bf16.gmra.mrb[0].mxu0 %v1382
      %v2186 = vpop.f32.mrb[0].mxu0
      %v2187 = vadd.f32 %v491, %v2186
      %v2188 = vpop.f32.mrb[0].mxu0
      %v2189 = vpop.f32.mrb[0].mxu0
      %v2190 = vadd.f32 %v491, %v2189
      %v2191 = vpop.f32.mrb[0].mxu0
      %2192 = vmatprep.mubr.bf16.mxu0 0
      %2193 = vmatmul.mubr.bf16.gmra.mrb[0].mxu0 %v1385
      %v2194 = vpop.f32.mrb[0].mxu0
      %v2195 = vadd.f32 %v491, %v2194
      %v2196 = vpop.f32.mrb[0].mxu0
      %v2197 = vpop.f32.mrb[0].mxu0
      %v2198 = vadd.f32 %v491, %v2197
      %v2199 = vpop.f32.mrb[0].mxu0
      %2200 = vmatprep.mubr.bf16.mxu0 0
      %2201 = vmatmul.mubr.bf16.gmra.mrb[0].mxu0 %v1388
      %v2202 = vpop.f32.mrb[0].mxu0
      %v2203 = vadd.f32 %v491, %v2202
      %v2204 = vpop.f32.mrb[0].mxu0
      %v2205 = vpop.f32.mrb[0].mxu0
      %v2206 = vadd.f32 %v491, %v2205
      %v2207 = vpop.f32.mrb[0].mxu0
      %2208 = vmatprep.mubr.bf16.mxu0 0
      %2209 = vmatmul.mubr.bf16.gmra.mrb[0].mxu0 %v1391
      %v2210 = vpop.f32.mrb[0].mxu0
      %v2211 = vadd.f32 %v491, %v2210
      %v2212 = vpop.f32.mrb[0].mxu0
      %v2213 = vpop.f32.mrb[0].mxu0
      %v2214 = vadd.f32 %v491, %v2213
      %v2215 = vpop.f32.mrb[0].mxu0
      %2216 = vmatprep.mubr.bf16.mxu0 0
      %2217 = vmatmul.mubr.bf16.gmra.mrb[0].mxu0 %v1394
      %v2218 = vpop.f32.mrb[0].mxu0
      %v2219 = vadd.f32 %v491, %v2218
      %v2220 = vpop.f32.mrb[0].mxu0
      %v2221 = vpop.f32.mrb[0].mxu0
      %v2222 = vadd.f32 %v491, %v2221
      %v2223 = vpop.f32.mrb[0].mxu0
      %2224 = vmatprep.mubr.bf16.mxu0 0
      %2225 = vmatmul.mubr.bf16.gmra.mrb[0].mxu0 %v1397
      %v2226 = vpop.f32.mrb[0].mxu0
      %v2227 = vadd.f32 %v491, %v2226
      %v2228 = vpop.f32.mrb[0].mxu0
      %v2229 = vpop.f32.mrb[0].mxu0
      %v2230 = vadd.f32 %v491, %v2229
      %v2231 = vpop.f32.mrb[0].mxu0
      %2232 = vmatprep.mubr.bf16.mxu0 0
      %2233 = vmatmul.mubr.bf16.gmra.mrb[0].mxu0 %v1400
      %v2234 = vpop.f32.mrb[0].mxu0
      %v2235 = vadd.f32 %v491, %v2234
      %v2236 = vpop.f32.mrb[0].mxu0
      %v2237 = vpop.f32.mrb[0].mxu0
      %v2238 = vadd.f32 %v491, %v2237
      %v2239 = vpop.f32.mrb[0].mxu0
      %2240 = vmatprep.mubr.bf16.mxu0 0
      %2241 = vmatmul.mubr.bf16.gmra.mrb[0].mxu0 %v1403
      %v2242 = vpop.f32.mrb[0].mxu0
      %v2243 = vadd.f32 %v491, %v2242
      %v2244 = vpop.f32.mrb[0].mxu0
      %v2245 = vpop.f32.mrb[0].mxu0
      %v2246 = vadd.f32 %v491, %v2245
      %v2247 = vpop.f32.mrb[0].mxu0
      %2248 = vmatprep.mubr.bf16.mxu0 0
      %2249 = vmatmul.mubr.bf16.gmra.mrb[0].mxu0 %v1406
      %v2250 = vpop.f32.mrb[0].mxu0
      %v2251 = vadd.f32 %v491, %v2250
      %v2252 = vpop.f32.mrb[0].mxu0
      %v2253 = vpop.f32.mrb[0].mxu0
      %v2254 = vadd.f32 %v491, %v2253
      %v2255 = vpop.f32.mrb[0].mxu0
      %2256 = vmatprep.mubr.bf16.mxu0 0
      %2257 = vmatmul.mubr.bf16.gmra.mrb[0].mxu0 %v1409
      %v2258 = vpop.f32.mrb[0].mxu0
      %v2259 = vadd.f32 %v491, %v2258
      %v2260 = vpop.f32.mrb[0].mxu0
      %v2261 = vpop.f32.mrb[0].mxu0
      %v2262 = vadd.f32 %v491, %v2261
      %v2263 = vpop.f32.mrb[0].mxu0
      %2264 = vmatprep.mubr.bf16.mxu0 0
      %2265 = vmatmul.mubr.bf16.gmra.mrb[0].mxu0 %v1412
      %v2266 = vpop.f32.mrb[0].mxu0
      %v2267 = vadd.f32 %v491, %v2266
      %v2268 = vpop.f32.mrb[0].mxu0
      %v2269 = vpop.f32.mrb[0].mxu0
      %v2270 = vadd.f32 %v491, %v2269
      %v2271 = vpop.f32.mrb[0].mxu0
      %2272 = vmatprep.mubr.bf16.mxu0 0
      %2273 = vmatmul.mubr.bf16.gmra.mrb[0].mxu0 %v1415
      %v2274 = vpop.f32.mrb[0].mxu0
      %v2275 = vadd.f32 %v491, %v2274
      %v2276 = vpop.f32.mrb[0].mxu0
      %v2277 = vpop.f32.mrb[0].mxu0
      %v2278 = vadd.f32 %v491, %v2277
      %v2279 = vpop.f32.mrb[0].mxu0
      %2280 = vmatprep.mubr.bf16.mxu0 0
      %2281 = vmatmul.mubr.bf16.gmra.mrb[0].mxu0 %v1418
      %v2282 = vpop.f32.mrb[0].mxu0
      %v2283 = vadd.f32 %v491, %v2282
      %v2284 = vpop.f32.mrb[0].mxu0
      %v2285 = vpop.f32.mrb[0].mxu0
      %v2286 = vadd.f32 %v491, %v2285
      %v2287 = vpop.f32.mrb[0].mxu0
      %2288 = vmatprep.mubr.bf16.mxu0 0
      %2289 = vmatmul.mubr.bf16.gmra.mrb[0].mxu0 %v1421
      %v2290 = vpop.f32.mrb[0].mxu0
      %v2291 = vadd.f32 %v491, %v2290
      %v2292 = vpop.f32.mrb[0].mxu0
      %v2293 = vpop.f32.mrb[0].mxu0
      %v2294 = vadd.f32 %v491, %v2293
      %v2295 = vpop.f32.mrb[0].mxu0
      %2296 = vmatprep.mubr.bf16.mxu0 0
      %2297 = vmatmul.mubr.bf16.gmra.mrb[0].mxu0 %v1424
      %v2298 = vpop.f32.mrb[0].mxu0
      %v2299 = vadd.f32 %v491, %v2298
      %v2300 = vpop.f32.mrb[0].mxu0
      %v2301 = vpop.f32.mrb[0].mxu0
      %v2302 = vadd.f32 %v491, %v2301
      %v2303 = vpop.f32.mrb[0].mxu0
      %2304 = vmatprep.mubr.bf16.mxu0 0
      %2305 = vmatmul.mubr.bf16.gmra.mrb[0].mxu0 %v1427
      %v2306 = vpop.f32.mrb[0].mxu0
      %v2307 = vadd.f32 %v491, %v2306
      %v2308 = vpop.f32.mrb[0].mxu0
      %v2309 = vpop.f32.mrb[0].mxu0
      %v2310 = vadd.f32 %v491, %v2309
      %v2311 = vpop.f32.mrb[0].mxu0
      %2312 = vmatprep.mubr.bf16.mxu0 0
      %2313 = vmatmul.mubr.bf16.gmra.mrb[0].mxu0 %v1430
      %v2314 = vpop.f32.mrb[0].mxu0
      %v2315 = vadd.f32 %v491, %v2314
      %v2316 = vpop.f32.mrb[0].mxu0
      %v2317 = vpop.f32.mrb[0].mxu0
      %v2318 = vadd.f32 %v491, %v2317
      %v2319 = vpop.f32.mrb[0].mxu0
      %2320 = vmatprep.mubr.bf16.mxu0 0
      %2321 = vmatmul.mubr.bf16.gmra.mrb[0].mxu0 %v1433
      %v2322 = vpop.f32.mrb[0].mxu0
      %v2323 = vadd.f32 %v491, %v2322
      %v2324 = vpop.f32.mrb[0].mxu0
      %v2325 = vpop.f32.mrb[0].mxu0
      %v2326 = vadd.f32 %v491, %v2325
      %v2327 = vpop.f32.mrb[0].mxu0
      %2328 = vmatprep.mubr.bf16.mxu0 0
      %2329 = vmatmul.mubr.bf16.gmra.mrb[0].mxu0 %v1436
      %v2330 = vpop.f32.mrb[0].mxu0
      %v2331 = vadd.f32 %v491, %v2330
      %v2332 = vpop.f32.mrb[0].mxu0
      %v2333 = vpop.f32.mrb[0].mxu0
      %v2334 = vadd.f32 %v491, %v2333
      %v2335 = vpop.f32.mrb[0].mxu0
      %2336 = vmatprep.mubr.bf16.mxu0 0
      %2337 = vmatmul.mubr.bf16.gmra.mrb[0].mxu0 %v1439
      %v2338 = vpop.f32.mrb[0].mxu0
      %v2339 = vadd.f32 %v491, %v2338
      %v2340 = vpop.f32.mrb[0].mxu0
      %v2341 = vpop.f32.mrb[0].mxu0
      %v2342 = vadd.f32 %v491, %v2341
      %v2343 = vpop.f32.mrb[0].mxu0
      %2344 = vmatprep.mubr.bf16.mxu0 0
      %2345 = vmatmul.mubr.bf16.gmra.mrb[0].mxu0 %v1442
      %v2346 = vpop.f32.mrb[0].mxu0
      %v2347 = vadd.f32 %v491, %v2346
      %v2348 = vpop.f32.mrb[0].mxu0
      %v2349 = vpop.f32.mrb[0].mxu0
      %v2350 = vadd.f32 %v491, %v2349
      %v2351 = vpop.f32.mrb[0].mxu0
      %2352 = vmatprep.mubr.bf16.mxu0 0
      %2353 = vmatmul.mubr.bf16.gmra.mrb[0].mxu0 %v1445
      %v2354 = vpop.f32.mrb[0].mxu0
      %v2355 = vadd.f32 %v491, %v2354
      %v2356 = vpop.f32.mrb[0].mxu0
      %v2357 = vpop.f32.mrb[0].mxu0
      %v2358 = vadd.f32 %v491, %v2357
      %v2359 = vpop.f32.mrb[0].mxu0
      %2360 = vmatprep.mubr.bf16.mxu0 0
      %2361 = vmatmul.mubr.bf16.gmra.mrb[0].mxu0 %v1448
      %v2362 = vpop.f32.mrb[0].mxu0
      %v2363 = vadd.f32 %v491, %v2362
      %v2364 = vpop.f32.mrb[0].mxu0
      %v2365 = vpop.f32.mrb[0].mxu0
      %v2366 = vadd.f32 %v491, %v2365
      %v2367 = vpop.f32.mrb[0].mxu0
      %2368 = vmatprep.mubr.bf16.mxu0 0
      %2369 = vmatmul.mubr.bf16.gmra.mrb[0].mxu0 %v1451
      %v2370 = vpop.f32.mrb[0].mxu0
      %v2371 = vadd.f32 %v491, %v2370
      %v2372 = vpop.f32.mrb[0].mxu0
      %v2373 = vpop.f32.mrb[0].mxu0
      %v2374 = vadd.f32 %v491, %v2373
      %v2375 = vpop.f32.mrb[0].mxu0
      %2376 = vmatprep.mubr.bf16.mxu0 0
      %2377 = vmatmul.mubr.bf16.gmra.mrb[0].mxu0 %v1454
      %v2378 = vpop.f32.mrb[0].mxu0
      %v2379 = vadd.f32 %v491, %v2378
      %v2380 = vpop.f32.mrb[0].mxu0
      %v2381 = vpop.f32.mrb[0].mxu0
      %v2382 = vadd.f32 %v491, %v2381
      %v2383 = vpop.f32.mrb[0].mxu0
      %2384 = vmatprep.mubr.bf16.mxu0 0
      %2385 = vmatmul.mubr.bf16.gmra.mrb[0].mxu0 %v1457
      %v2386 = vpop.f32.mrb[0].mxu0
      %v2387 = vadd.f32 %v491, %v2386
      %v2388 = vpop.f32.mrb[0].mxu0
      %v2389 = vpop.f32.mrb[0].mxu0
      %v2390 = vadd.f32 %v491, %v2389
      %v2391 = vpop.f32.mrb[0].mxu0
      %2392 = vmatprep.mubr.bf16.mxu0 0
      %2393 = vmatmul.mubr.bf16.gmra.mrb[0].mxu0 %v1460
      %v2394 = vpop.f32.mrb[0].mxu0
      %v2395 = vadd.f32 %v491, %v2394
      %v2396 = vpop.f32.mrb[0].mxu0
      %v2397 = vpop.f32.mrb[0].mxu0
      %v2398 = vadd.f32 %v491, %v2397
      %v2399 = vpop.f32.mrb[0].mxu0
      %2400 = vmatprep.mubr.bf16.mxu0 0
      %2401 = vmatmul.mubr.bf16.gmra.mrb[0].mxu0 %v1463
      %v2402 = vpop.f32.mrb[0].mxu0
      %v2403 = vadd.f32 %v491, %v2402
      %v2404 = vpop.f32.mrb[0].mxu0
      %v2405 = vpop.f32.mrb[0].mxu0
      %v2406 = vadd.f32 %v491, %v2405
      %v2407 = vpop.f32.mrb[0].mxu0
      %2408 = vmatprep.mubr.bf16.mxu0 0
      %2409 = vmatmul.mubr.bf16.gmra.mrb[0].mxu0 %v1466
      %v2410 = vpop.f32.mrb[0].mxu0
      %v2411 = vadd.f32 %v491, %v2410
      %v2412 = vpop.f32.mrb[0].mxu0
      %v2413 = vpop.f32.mrb[0].mxu0
      %v2414 = vadd.f32 %v491, %v2413
      %v2415 = vpop.f32.mrb[0].mxu0
      %2416 = vmatprep.mubr.bf16.mxu0 0
      %2417 = vmatmul.mubr.bf16.gmra.mrb[0].mxu0 %v1469
      %v2418 = vpop.f32.mrb[0].mxu0
      %v2419 = vadd.f32 %v491, %v2418
      %v2420 = vpop.f32.mrb[0].mxu0
      %v2421 = vpop.f32.mrb[0].mxu0
      %v2422 = vadd.f32 %v491, %v2421
      %v2423 = vpop.f32.mrb[0].mxu0
      %2424 = vmatprep.mubr.bf16.mxu0 0
      %2425 = vmatmul.mubr.bf16.gmra.mrb[0].mxu0 %v1472
      %v2426 = vpop.f32.mrb[0].mxu0
      %v2427 = vadd.f32 %v491, %v2426
      %v2428 = vpop.f32.mrb[0].mxu0
      %v2429 = vpop.f32.mrb[0].mxu0
      %v2430 = vadd.f32 %v491, %v2429
      %v2431 = vpop.f32.mrb[0].mxu0
      %2432 = vmatprep.mubr.bf16.mxu0 0
      %2433 = vmatmul.mubr.bf16.gmra.mrb[0].mxu0 %v1475
      %v2434 = vpop.f32.mrb[0].mxu0
      %v2435 = vadd.f32 %v491, %v2434
      %v2436 = vpop.f32.mrb[0].mxu0
      %v2437 = vpop.f32.mrb[0].mxu0
      %v2438 = vadd.f32 %v491, %v2437
      %v2439 = vpop.f32.mrb[0].mxu0
      %2440 = vmatprep.mubr.bf16.mxu0 0
      %2441 = vmatmul.mubr.bf16.gmra.mrb[0].mxu0 %v1478
      %v2442 = vpop.f32.mrb[0].mxu0
      %v2443 = vadd.f32 %v491, %v2442
      %v2444 = vpop.f32.mrb[0].mxu0
      %v2445 = vpop.f32.mrb[0].mxu0
      %v2446 = vadd.f32 %v491, %v2445
      %v2447 = vpop.f32.mrb[0].mxu0
      %2448 = vmatprep.mubr.bf16.mxu0 0
      %2449 = vmatmul.mubr.bf16.gmra.mrb[0].mxu0 %v1481
      %v2450 = vpop.f32.mrb[0].mxu0
      %v2451 = vadd.f32 %v491, %v2450
      %v2452 = vpop.f32.mrb[0].mxu0
      %v2453 = vpop.f32.mrb[0].mxu0
      %v2454 = vadd.f32 %v491, %v2453
      %v2455 = vpop.f32.mrb[0].mxu0
      %2456 = vmatprep.mubr.bf16.mxu0 0
      %2457 = vmatmul.mubr.bf16.gmra.mrb[0].mxu0 %v1484
      %v2458 = vpop.f32.mrb[0].mxu0
      %v2459 = vadd.f32 %v491, %v2458
      %v2460 = vpop.f32.mrb[0].mxu0
      %v2461 = vpop.f32.mrb[0].mxu0
      %v2462 = vadd.f32 %v491, %v2461
      %v2463 = vpop.f32.mrb[0].mxu0
      %2464 = vmatprep.mubr.bf16.mxu0 0
      %2465 = vmatmul.mubr.bf16.gmra.mrb[0].mxu0 %v1487
      %v2466 = vpop.f32.mrb[0].mxu0
      %v2467 = vadd.f32 %v491, %v2466
      %v2468 = vpop.f32.mrb[0].mxu0
      %v2469 = vpop.f32.mrb[0].mxu0
      %v2470 = vadd.f32 %v491, %v2469
      %v2471 = vpop.f32.mrb[0].mxu0
      %2472 = vmatprep.mubr.bf16.mxu0 0
      %2473 = vmatmul.mubr.bf16.gmra.mrb[0].mxu0 %v1490
      %v2474 = vpop.f32.mrb[0].mxu0
      %v2475 = vadd.f32 %v491, %v2474
      %v2476 = vpop.f32.mrb[0].mxu0
      %v2477 = vpop.f32.mrb[0].mxu0
      %v2478 = vadd.f32 %v491, %v2477
      %v2479 = vpop.f32.mrb[0].mxu0
      %2480 = vmatprep.mubr.bf16.mxu0 0
      %2481 = vmatmul.mubr.bf16.gmra.mrb[0].mxu0 %v1493
      %v2482 = vpop.f32.mrb[0].mxu0
      %v2483 = vadd.f32 %v491, %v2482
      %v2484 = vpop.f32.mrb[0].mxu0
      %v2485 = vpop.f32.mrb[0].mxu0
      %v2486 = vadd.f32 %v491, %v2485
      %v2487 = vpop.f32.mrb[0].mxu0
      %2488 = vmatprep.mubr.bf16.mxu0 0
      %2489 = vmatmul.mubr.bf16.gmra.mrb[0].mxu0 %v1496
      %v2490 = vpop.f32.mrb[0].mxu0
      %v2491 = vadd.f32 %v491, %v2490
      %v2492 = vpop.f32.mrb[0].mxu0
      %v2493 = vpop.f32.mrb[0].mxu0
      %v2494 = vadd.f32 %v491, %v2493
      %v2495 = vpop.f32.mrb[0].mxu0
      %2496 = vmatprep.mubr.bf16.mxu0 0
      %2497 = vmatmul.mubr.bf16.gmra.mrb[0].mxu0 %v1499
      %v2498 = vpop.f32.mrb[0].mxu0
      %v2499 = vadd.f32 %v491, %v2498
      %v2500 = vpop.f32.mrb[0].mxu0
      %v2501 = vpop.f32.mrb[0].mxu0
      %v2502 = vadd.f32 %v491, %v2501
      %v2503 = vpop.f32.mrb[0].mxu0
      %2504 = vmatprep.mubr.bf16.mxu0 0
      %2505 = vmatmul.mubr.bf16.gmra.mrb[0].mxu0 %v1502
      %v2506 = vpop.f32.mrb[0].mxu0
      %v2507 = vadd.f32 %v491, %v2506
      %v2508 = vpop.f32.mrb[0].mxu0
      %v2509 = vpop.f32.mrb[0].mxu0
      %v2510 = vadd.f32 %v491, %v2509
      %v2511 = vpop.f32.mrb[0].mxu0
      %2512 = vmatprep.mubr.bf16.mxu0 0
      %2513 = vmatmul.mubr.bf16.gmra.mrb[0].mxu0 %v1505
      %v2514 = vpop.f32.mrb[0].mxu0
      %v2515 = vadd.f32 %v491, %v2514
      %v2516 = vpop.f32.mrb[0].mxu0
      %v2517 = vpop.f32.mrb[0].mxu0
      %v2518 = vadd.f32 %v491, %v2517
      %v2519 = vpop.f32.mrb[0].mxu0
      %2520 = vmatprep.mubr.bf16.mxu0 0
      %2521 = vmatmul.mubr.bf16.gmra.mrb[0].mxu0 %v1508
      %v2522 = vpop.f32.mrb[0].mxu0
      %v2523 = vadd.f32 %v491, %v2522
      %v2524 = vpop.f32.mrb[0].mxu0
      %v2525 = vpop.f32.mrb[0].mxu0
      %v2526 = vadd.f32 %v491, %v2525
      %v2527 = vpop.f32.mrb[0].mxu0
      %2528 = vmatprep.mubr.bf16.mxu0 0
      %2529 = vmatmul.mubr.bf16.gmra.mrb[0].mxu0 %v1511
      %v2530 = vpop.f32.mrb[0].mxu0
      %v2531 = vadd.f32 %v491, %v2530
      %v2532 = vpop.f32.mrb[0].mxu0
      %v2533 = vpop.f32.mrb[0].mxu0
      %v2534 = vadd.f32 %v491, %v2533
      %v2535 = vpop.f32.mrb[0].mxu0
      %2536 = vmatprep.mubr.bf16.mxu0 0
      %2537 = vmatmul.mubr.bf16.gmra.mrb[0].mxu0 %v1514
      %v2538 = vpop.f32.mrb[0].mxu0
      %v2539 = vadd.f32 %v491, %v2538
      %v2540 = vpop.f32.mrb[0].mxu0
      %v2541 = vpop.f32.mrb[0].mxu0
      %v2542 = vadd.f32 %v491, %v2541
      %v2543 = vpop.f32.mrb[0].mxu0
      %2544 = vmatprep.mubr.bf16.mxu0 0
      %2545 = vmatmul.mubr.bf16.gmra.mrb[0].mxu0 %v1517
      %v2546 = vpop.f32.mrb[0].mxu0
      %v2547 = vadd.f32 %v491, %v2546
      %v2548 = vpop.f32.mrb[0].mxu0
      %v2549 = vpop.f32.mrb[0].mxu0
      %v2550 = vadd.f32 %v491, %v2549
      %v2551 = vpop.f32.mrb[0].mxu0
      %2552 = vmatprep.mubr.bf16.mxu0 0
      %2553 = vmatmul.mubr.bf16.gmra.mrb[0].mxu0 %v1520
      %v2554 = vpop.f32.mrb[0].mxu0
      %v2555 = vadd.f32 %v491, %v2554
      %v2556 = vpop.f32.mrb[0].mxu0
      %v2557 = vpop.f32.mrb[0].mxu0
      %v2558 = vadd.f32 %v491, %v2557
      %v2559 = vpop.f32.mrb[0].mxu0
      %2560 = vmatprep.mubr.bf16.mxu0 0
      %2561 = vmatmul.mubr.bf16.gmra.mrb[0].mxu0 %v1523
      %v2562 = vpop.f32.mrb[0].mxu0
      %v2563 = vadd.f32 %v491, %v2562
      %v2564 = vpop.f32.mrb[0].mxu0
      %v2565 = vpop.f32.mrb[0].mxu0
      %v2566 = vadd.f32 %v491, %v2565
      %v2567 = vpop.f32.mrb[0].mxu0
      %2568 = vmatprep.mubr.bf16.mxu0 0
      %2569 = vmatmul.mubr.bf16.gmra.mrb[0].mxu0 %v1526
      %v2570 = vpop.f32.mrb[0].mxu0
      %v2571 = vadd.f32 %v491, %v2570
      %v2572 = vpop.f32.mrb[0].mxu0
      %v2573 = vpop.f32.mrb[0].mxu0
      %v2574 = vadd.f32 %v491, %v2573
      %v2575 = vpop.f32.mrb[0].mxu0
      %2576 = vdwg.mxu0
      %v2577 = vmax.f32 %v1563, 0.0
      %v2578 = vmax.f32 %v1566, 0.0
      %v2579 = vmax.f32 %v1571, 0.0
      %v2580 = vmax.f32 %v1574, 0.0
      %v2581 = vmax.f32 %v1579, 0.0
      %v2582 = vmax.f32 %v1582, 0.0
      %v2583 = vmax.f32 %v1587, 0.0
      %v2584 = vmax.f32 %v1590, 0.0
      %v2585 = vmax.f32 %v1595, 0.0
      %v2586 = vmax.f32 %v1598, 0.0
      %v2587 = vmax.f32 %v1603, 0.0
      %v2588 = vmax.f32 %v1606, 0.0
      %v2589 = vmax.f32 %v1611, 0.0
      %v2590 = vmax.f32 %v1614, 0.0
      %v2591 = vmax.f32 %v1619, 0.0
      %v2592 = vmax.f32 %v1622, 0.0
      %v2593 = vmax.f32 %v1627, 0.0
      %v2594 = vmax.f32 %v1630, 0.0
      %v2595 = vmax.f32 %v1635, 0.0
      %v2596 = vmax.f32 %v1638, 0.0
      %v2597 = vmax.f32 %v1643, 0.0
      %v2598 = vmax.f32 %v1646, 0.0
      %v2599 = vmax.f32 %v1651, 0.0
      %v2600 = vmax.f32 %v1654, 0.0
      %v2601 = vmax.f32 %v1659, 0.0
      %v2602 = vmax.f32 %v1662, 0.0
      %v2603 = vmax.f32 %v1667, 0.0
      %v2604 = vmax.f32 %v1670, 0.0
      %v2605 = vmax.f32 %v1675, 0.0
      %v2606 = vmax.f32 %v1678, 0.0
      %v2607 = vmax.f32 %v1683, 0.0
      %v2608 = vmax.f32 %v1686, 0.0
      %v2609 = vmax.f32 %v1691, 0.0
      %v2610 = vmax.f32 %v1694, 0.0
      %v2611 = vmax.f32 %v1699, 0.0
      %v2612 = vmax.f32 %v1702, 0.0
      %v2613 = vmax.f32 %v1707, 0.0
      %v2614 = vmax.f32 %v1710, 0.0
      %v2615 = vmax.f32 %v1715, 0.0
      %v2616 = vmax.f32 %v1718, 0.0
      %v2617 = vmax.f32 %v1723, 0.0
      %v2618 = vmax.f32 %v1726, 0.0
      %v2619 = vmax.f32 %v1731, 0.0
      %v2620 = vmax.f32 %v1734, 0.0
      %v2621 = vmax.f32 %v1739, 0.0
      %v2622 = vmax.f32 %v1742, 0.0
      %v2623 = vmax.f32 %v1747, 0.0
      %v2624 = vmax.f32 %v1750, 0.0
      %v2625 = vmax.f32 %v1755, 0.0
      %v2626 = vmax.f32 %v1758, 0.0
      %v2627 = vmax.f32 %v1763, 0.0
      %v2628 = vmax.f32 %v1766, 0.0
      %v2629 = vmax.f32 %v1771, 0.0
      %v2630 = vmax.f32 %v1774, 0.0
      %v2631 = vmax.f32 %v1779, 0.0
      %v2632 = vmax.f32 %v1782, 0.0
      %v2633 = vmax.f32 %v1787, 0.0
      %v2634 = vmax.f32 %v1790, 0.0
      %v2635 = vmax.f32 %v1795, 0.0
      %v2636 = vmax.f32 %v1798, 0.0
      %v2637 = vmax.f32 %v1803, 0.0
      %v2638 = vmax.f32 %v1806, 0.0
      %v2639 = vmax.f32 %v1811, 0.0
      %v2640 = vmax.f32 %v1814, 0.0
      %v2641 = vmax.f32 %v1819, 0.0
      %v2642 = vmax.f32 %v1822, 0.0
      %v2643 = vmax.f32 %v1827, 0.0
      %v2644 = vmax.f32 %v1830, 0.0
      %v2645 = vmax.f32 %v1835, 0.0
      %v2646 = vmax.f32 %v1838, 0.0
      %v2647 = vmax.f32 %v1843, 0.0
      %v2648 = vmax.f32 %v1846, 0.0
      %v2649 = vmax.f32 %v1851, 0.0
      %v2650 = vmax.f32 %v1854, 0.0
      %v2651 = vmax.f32 %v1859, 0.0
      %v2652 = vmax.f32 %v1862, 0.0
      %v2653 = vmax.f32 %v1867, 0.0
      %v2654 = vmax.f32 %v1870, 0.0
      %v2655 = vmax.f32 %v1875, 0.0
      %v2656 = vmax.f32 %v1878, 0.0
      %v2657 = vmax.f32 %v1883, 0.0
      %v2658 = vmax.f32 %v1886, 0.0
      %v2659 = vmax.f32 %v1891, 0.0
      %v2660 = vmax.f32 %v1894, 0.0
      %v2661 = vmax.f32 %v1899, 0.0
      %v2662 = vmax.f32 %v1902, 0.0
      %v2663 = vmax.f32 %v1907, 0.0
      %v2664 = vmax.f32 %v1910, 0.0
      %v2665 = vmax.f32 %v1915, 0.0
      %v2666 = vmax.f32 %v1918, 0.0
      %v2667 = vmax.f32 %v1923, 0.0
      %v2668 = vmax.f32 %v1926, 0.0
      %v2669 = vmax.f32 %v1931, 0.0
      %v2670 = vmax.f32 %v1934, 0.0
      %v2671 = vmax.f32 %v1939, 0.0
      %v2672 = vmax.f32 %v1942, 0.0
      %v2673 = vmax.f32 %v1947, 0.0
      %v2674 = vmax.f32 %v1950, 0.0
      %v2675 = vmax.f32 %v1955, 0.0
      %v2676 = vmax.f32 %v1958, 0.0
      %v2677 = vmax.f32 %v1963, 0.0
      %v2678 = vmax.f32 %v1966, 0.0
      %v2679 = vmax.f32 %v1971, 0.0
      %v2680 = vmax.f32 %v1974, 0.0
      %v2681 = vmax.f32 %v1979, 0.0
      %v2682 = vmax.f32 %v1982, 0.0
      %v2683 = vmax.f32 %v1987, 0.0
      %v2684 = vmax.f32 %v1990, 0.0
      %v2685 = vmax.f32 %v1995, 0.0
      %v2686 = vmax.f32 %v1998, 0.0
      %v2687 = vmax.f32 %v2003, 0.0
      %v2688 = vmax.f32 %v2006, 0.0
      %v2689 = vmax.f32 %v2011, 0.0
      %v2690 = vmax.f32 %v2014, 0.0
      %v2691 = vmax.f32 %v2019, 0.0
      %v2692 = vmax.f32 %v2022, 0.0
      %v2693 = vmax.f32 %v2027, 0.0
      %v2694 = vmax.f32 %v2030, 0.0
      %v2695 = vmax.f32 %v2035, 0.0
      %v2696 = vmax.f32 %v2038, 0.0
      %v2697 = vmax.f32 %v2043, 0.0
      %v2698 = vmax.f32 %v2046, 0.0
      %v2699 = vmax.f32 %v2051, 0.0
      %v2700 = vmax.f32 %v2054, 0.0
      %v2701 = vmax.f32 %v2059, 0.0
      %v2702 = vmax.f32 %v2062, 0.0
      %v2703 = vmax.f32 %v2067, 0.0
      %v2704 = vmax.f32 %v2070, 0.0
      %v2705 = vmax.f32 %v2075, 0.0
      %v2706 = vmax.f32 %v2078, 0.0
      %v2707 = vmax.f32 %v2083, 0.0
      %v2708 = vmax.f32 %v2086, 0.0
      %v2709 = vmax.f32 %v2091, 0.0
      %v2710 = vmax.f32 %v2094, 0.0
      %v2711 = vmax.f32 %v2099, 0.0
      %v2712 = vmax.f32 %v2102, 0.0
      %v2713 = vmax.f32 %v2107, 0.0
      %v2714 = vmax.f32 %v2110, 0.0
      %v2715 = vmax.f32 %v2115, 0.0
      %v2716 = vmax.f32 %v2118, 0.0
      %v2717 = vmax.f32 %v2123, 0.0
      %v2718 = vmax.f32 %v2126, 0.0
      %v2719 = vmax.f32 %v2131, 0.0
      %v2720 = vmax.f32 %v2134, 0.0
      %v2721 = vmax.f32 %v2139, 0.0
      %v2722 = vmax.f32 %v2142, 0.0
      %v2723 = vmax.f32 %v2147, 0.0
      %v2724 = vmax.f32 %v2150, 0.0
      %v2725 = vmax.f32 %v2155, 0.0
      %v2726 = vmax.f32 %v2158, 0.0
      %v2727 = vmax.f32 %v2163, 0.0
      %v2728 = vmax.f32 %v2166, 0.0
      %v2729 = vmax.f32 %v2171, 0.0
      %v2730 = vmax.f32 %v2174, 0.0
      %v2731 = vmax.f32 %v2179, 0.0
      %v2732 = vmax.f32 %v2182, 0.0
      %v2733 = vmax.f32 %v2187, 0.0
      %v2734 = vmax.f32 %v2190, 0.0
      %v2735 = vmax.f32 %v2195, 0.0
      %v2736 = vmax.f32 %v2198, 0.0
      %v2737 = vmax.f32 %v2203, 0.0
      %v2738 = vmax.f32 %v2206, 0.0
      %v2739 = vmax.f32 %v2211, 0.0
      %v2740 = vmax.f32 %v2214, 0.0
      %v2741 = vmax.f32 %v2219, 0.0
      %v2742 = vmax.f32 %v2222, 0.0
      %v2743 = vmax.f32 %v2227, 0.0
      %v2744 = vmax.f32 %v2230, 0.0
      %v2745 = vmax.f32 %v2235, 0.0
      %v2746 = vmax.f32 %v2238, 0.0
      %v2747 = vmax.f32 %v2243, 0.0
      %v2748 = vmax.f32 %v2246, 0.0
      %v2749 = vmax.f32 %v2251, 0.0
      %v2750 = vmax.f32 %v2254, 0.0
      %v2751 = vmax.f32 %v2259, 0.0
      %v2752 = vmax.f32 %v2262, 0.0
      %v2753 = vmax.f32 %v2267, 0.0
      %v2754 = vmax.f32 %v2270, 0.0
      %v2755 = vmax.f32 %v2275, 0.0
      %v2756 = vmax.f32 %v2278, 0.0
      %v2757 = vmax.f32 %v2283, 0.0
      %v2758 = vmax.f32 %v2286, 0.0
      %v2759 = vmax.f32 %v2291, 0.0
      %v2760 = vmax.f32 %v2294, 0.0
      %v2761 = vmax.f32 %v2299, 0.0
      %v2762 = vmax.f32 %v2302, 0.0
      %v2763 = vmax.f32 %v2307, 0.0
      %v2764 = vmax.f32 %v2310, 0.0
      %v2765 = vmax.f32 %v2315, 0.0
      %v2766 = vmax.f32 %v2318, 0.0
      %v2767 = vmax.f32 %v2323, 0.0
      %v2768 = vmax.f32 %v2326, 0.0
      %v2769 = vmax.f32 %v2331, 0.0
      %v2770 = vmax.f32 %v2334, 0.0
      %v2771 = vmax.f32 %v2339, 0.0
      %v2772 = vmax.f32 %v2342, 0.0
      %v2773 = vmax.f32 %v2347, 0.0
      %v2774 = vmax.f32 %v2350, 0.0
      %v2775 = vmax.f32 %v2355, 0.0
      %v2776 = vmax.f32 %v2358, 0.0
      %v2777 = vmax.f32 %v2363, 0.0
      %v2778 = vmax.f32 %v2366, 0.0
      %v2779 = vmax.f32 %v2371, 0.0
      %v2780 = vmax.f32 %v2374, 0.0
      %v2781 = vmax.f32 %v2379, 0.0
      %v2782 = vmax.f32 %v2382, 0.0
      %v2783 = vmax.f32 %v2387, 0.0
      %v2784 = vmax.f32 %v2390, 0.0
      %v2785 = vmax.f32 %v2395, 0.0
      %v2786 = vmax.f32 %v2398, 0.0
      %v2787 = vmax.f32 %v2403, 0.0
      %v2788 = vmax.f32 %v2406, 0.0
      %v2789 = vmax.f32 %v2411, 0.0
      %v2790 = vmax.f32 %v2414, 0.0
      %v2791 = vmax.f32 %v2419, 0.0
      %v2792 = vmax.f32 %v2422, 0.0
      %v2793 = vmax.f32 %v2427, 0.0
      %v2794 = vmax.f32 %v2430, 0.0
      %v2795 = vmax.f32 %v2435, 0.0
      %v2796 = vmax.f32 %v2438, 0.0
      %v2797 = vmax.f32 %v2443, 0.0
      %v2798 = vmax.f32 %v2446, 0.0
      %v2799 = vmax.f32 %v2451, 0.0
      %v2800 = vmax.f32 %v2454, 0.0
      %v2801 = vmax.f32 %v2459, 0.0
      %v2802 = vmax.f32 %v2462, 0.0
      %v2803 = vmax.f32 %v2467, 0.0
      %v2804 = vmax.f32 %v2470, 0.0
      %v2805 = vmax.f32 %v2475, 0.0
      %v2806 = vmax.f32 %v2478, 0.0
      %v2807 = vmax.f32 %v2483, 0.0
      %v2808 = vmax.f32 %v2486, 0.0
      %v2809 = vmax.f32 %v2491, 0.0
      %v2810 = vmax.f32 %v2494, 0.0
      %v2811 = vmax.f32 %v2499, 0.0
      %v2812 = vmax.f32 %v2502, 0.0
      %v2813 = vmax.f32 %v2507, 0.0
      %v2814 = vmax.f32 %v2510, 0.0
      %v2815 = vmax.f32 %v2515, 0.0
      %v2816 = vmax.f32 %v2518, 0.0
      %v2817 = vmax.f32 %v2523, 0.0
      %v2818 = vmax.f32 %v2526, 0.0
      %v2819 = vmax.f32 %v2531, 0.0
      %v2820 = vmax.f32 %v2534, 0.0
      %v2821 = vmax.f32 %v2539, 0.0
      %v2822 = vmax.f32 %v2542, 0.0
      %v2823 = vmax.f32 %v2547, 0.0
      %v2824 = vmax.f32 %v2550, 0.0
      %v2825 = vmax.f32 %v2555, 0.0
      %v2826 = vmax.f32 %v2558, 0.0
      %v2827 = vmax.f32 %v2563, 0.0
      %v2828 = vmax.f32 %v2566, 0.0
      %v2829 = vmax.f32 %v2571, 0.0
      %v2830 = vmax.f32 %v2574, 0.0
      %v2831 = vpack.c.bf16 %v2578, %v2577
      %v2832 = vpack.c.bf16 %v2580, %v2579
      %v2833 = vpack.c.bf16 %v2582, %v2581
      %v2834 = vpack.c.bf16 %v2584, %v2583
      %v2835 = vpack.c.bf16 %v2586, %v2585
      %v2836 = vpack.c.bf16 %v2588, %v2587
      %v2837 = vpack.c.bf16 %v2590, %v2589
      %v2838 = vpack.c.bf16 %v2592, %v2591
      %v2839 = vpack.c.bf16 %v2594, %v2593
      %v2840 = vpack.c.bf16 %v2596, %v2595
      %v2841 = vpack.c.bf16 %v2598, %v2597
      %v2842 = vpack.c.bf16 %v2600, %v2599
      %v2843 = vpack.c.bf16 %v2602, %v2601
      %v2844 = vpack.c.bf16 %v2604, %v2603
      %v2845 = vpack.c.bf16 %v2606, %v2605
      %v2846 = vpack.c.bf16 %v2608, %v2607
      %v2847 = vpack.c.bf16 %v2610, %v2609
      %v2848 = vpack.c.bf16 %v2612, %v2611
      %v2849 = vpack.c.bf16 %v2614, %v2613
      %v2850 = vpack.c.bf16 %v2616, %v2615
      %v2851 = vpack.c.bf16 %v2618, %v2617
      %v2852 = vpack.c.bf16 %v2620, %v2619
      %v2853 = vpack.c.bf16 %v2622, %v2621
      %v2854 = vpack.c.bf16 %v2624, %v2623
      %v2855 = vpack.c.bf16 %v2626, %v2625
      %v2856 = vpack.c.bf16 %v2628, %v2627
      %v2857 = vpack.c.bf16 %v2630, %v2629
      %v2858 = vpack.c.bf16 %v2632, %v2631
      %v2859 = vpack.c.bf16 %v2634, %v2633
      %v2860 = vpack.c.bf16 %v2636, %v2635
      %v2861 = vpack.c.bf16 %v2638, %v2637
      %v2862 = vpack.c.bf16 %v2640, %v2639
      %v2863 = vpack.c.bf16 %v2642, %v2641
      %v2864 = vpack.c.bf16 %v2644, %v2643
      %v2865 = vpack.c.bf16 %v2646, %v2645
      %v2866 = vpack.c.bf16 %v2648, %v2647
      %v2867 = vpack.c.bf16 %v2650, %v2649
      %v2868 = vpack.c.bf16 %v2652, %v2651
      %v2869 = vpack.c.bf16 %v2654, %v2653
      %v2870 = vpack.c.bf16 %v2656, %v2655
      %v2871 = vpack.c.bf16 %v2658, %v2657
      %v2872 = vpack.c.bf16 %v2660, %v2659
      %v2873 = vpack.c.bf16 %v2662, %v2661
      %v2874 = vpack.c.bf16 %v2664, %v2663
      %v2875 = vpack.c.bf16 %v2666, %v2665
      %v2876 = vpack.c.bf16 %v2668, %v2667
      %v2877 = vpack.c.bf16 %v2670, %v2669
      %v2878 = vpack.c.bf16 %v2672, %v2671
      %v2879 = vpack.c.bf16 %v2674, %v2673
      %v2880 = vpack.c.bf16 %v2676, %v2675
      %v2881 = vpack.c.bf16 %v2678, %v2677
      %v2882 = vpack.c.bf16 %v2680, %v2679
      %v2883 = vpack.c.bf16 %v2682, %v2681
      %v2884 = vpack.c.bf16 %v2684, %v2683
      %v2885 = vpack.c.bf16 %v2686, %v2685
      %v2886 = vpack.c.bf16 %v2688, %v2687
      %v2887 = vpack.c.bf16 %v2690, %v2689
      %v2888 = vpack.c.bf16 %v2692, %v2691
      %v2889 = vpack.c.bf16 %v2694, %v2693
      %v2890 = vpack.c.bf16 %v2696, %v2695
      %v2891 = vpack.c.bf16 %v2698, %v2697
      %v2892 = vpack.c.bf16 %v2700, %v2699
      %v2893 = vpack.c.bf16 %v2702, %v2701
      %v2894 = vpack.c.bf16 %v2704, %v2703
      %v2895 = vpack.c.bf16 %v2706, %v2705
      %v2896 = vpack.c.bf16 %v2708, %v2707
      %v2897 = vpack.c.bf16 %v2710, %v2709
      %v2898 = vpack.c.bf16 %v2712, %v2711
      %v2899 = vpack.c.bf16 %v2714, %v2713
      %v2900 = vpack.c.bf16 %v2716, %v2715
      %v2901 = vpack.c.bf16 %v2718, %v2717
      %v2902 = vpack.c.bf16 %v2720, %v2719
      %v2903 = vpack.c.bf16 %v2722, %v2721
      %v2904 = vpack.c.bf16 %v2724, %v2723
      %v2905 = vpack.c.bf16 %v2726, %v2725
      %v2906 = vpack.c.bf16 %v2728, %v2727
      %v2907 = vpack.c.bf16 %v2730, %v2729
      %v2908 = vpack.c.bf16 %v2732, %v2731
      %v2909 = vpack.c.bf16 %v2734, %v2733
      %v2910 = vpack.c.bf16 %v2736, %v2735
      %v2911 = vpack.c.bf16 %v2738, %v2737
      %v2912 = vpack.c.bf16 %v2740, %v2739
      %v2913 = vpack.c.bf16 %v2742, %v2741
      %v2914 = vpack.c.bf16 %v2744, %v2743
      %v2915 = vpack.c.bf16 %v2746, %v2745
      %v2916 = vpack.c.bf16 %v2748, %v2747
      %v2917 = vpack.c.bf16 %v2750, %v2749
      %v2918 = vpack.c.bf16 %v2752, %v2751
      %v2919 = vpack.c.bf16 %v2754, %v2753
      %v2920 = vpack.c.bf16 %v2756, %v2755
      %v2921 = vpack.c.bf16 %v2758, %v2757
      %v2922 = vpack.c.bf16 %v2760, %v2759
      %v2923 = vpack.c.bf16 %v2762, %v2761
      %v2924 = vpack.c.bf16 %v2764, %v2763
      %v2925 = vpack.c.bf16 %v2766, %v2765
      %v2926 = vpack.c.bf16 %v2768, %v2767
      %v2927 = vpack.c.bf16 %v2770, %v2769
      %v2928 = vpack.c.bf16 %v2772, %v2771
      %v2929 = vpack.c.bf16 %v2774, %v2773
      %v2930 = vpack.c.bf16 %v2776, %v2775
      %v2931 = vpack.c.bf16 %v2778, %v2777
      %v2932 = vpack.c.bf16 %v2780, %v2779
      %v2933 = vpack.c.bf16 %v2782, %v2781
      %v2934 = vpack.c.bf16 %v2784, %v2783
      %v2935 = vpack.c.bf16 %v2786, %v2785
      %v2936 = vpack.c.bf16 %v2788, %v2787
      %v2937 = vpack.c.bf16 %v2790, %v2789
      %v2938 = vpack.c.bf16 %v2792, %v2791
      %v2939 = vpack.c.bf16 %v2794, %v2793
      %v2940 = vpack.c.bf16 %v2796, %v2795
      %v2941 = vpack.c.bf16 %v2798, %v2797
      %v2942 = vpack.c.bf16 %v2800, %v2799
      %v2943 = vpack.c.bf16 %v2802, %v2801
      %v2944 = vpack.c.bf16 %v2804, %v2803
      %v2945 = vpack.c.bf16 %v2806, %v2805
      %v2946 = vpack.c.bf16 %v2808, %v2807
      %v2947 = vpack.c.bf16 %v2810, %v2809
      %v2948 = vpack.c.bf16 %v2812, %v2811
      %v2949 = vpack.c.bf16 %v2814, %v2813
      %v2950 = vpack.c.bf16 %v2816, %v2815
      %v2951 = vpack.c.bf16 %v2818, %v2817
      %v2952 = vpack.c.bf16 %v2820, %v2819
      %v2953 = vpack.c.bf16 %v2822, %v2821
      %v2954 = vpack.c.bf16 %v2824, %v2823
      %v2955 = vpack.c.bf16 %v2826, %v2825
      %v2956 = vpack.c.bf16 %v2828, %v2827
      %v2957 = vpack.c.bf16 %v2830, %v2829
      %v3085 = vunpack.c.l.b16 %v2831
      %v3086 = vunpack.c.h.b16 %v2831
      %v3087 = vunpack.c.l.b16 %v2832
      %v3088 = vunpack.c.h.b16 %v2832
      %v3089 = vunpack.c.l.b16 %v2833
      %v3090 = vunpack.c.h.b16 %v2833
      %v3091 = vunpack.c.l.b16 %v2834
      %v3092 = vunpack.c.h.b16 %v2834
      %v3093 = vunpack.c.l.b16 %v2835
      %v3094 = vunpack.c.h.b16 %v2835
      %v3095 = vunpack.c.l.b16 %v2836
      %v3096 = vunpack.c.h.b16 %v2836
      %v3097 = vunpack.c.l.b16 %v2837
      %v3098 = vunpack.c.h.b16 %v2837
      %v3099 = vunpack.c.l.b16 %v2838
      %v3100 = vunpack.c.h.b16 %v2838
      %v3101 = vunpack.c.l.b16 %v2839
      %v3102 = vunpack.c.h.b16 %v2839
      %v3103 = vunpack.c.l.b16 %v2840
      %v3104 = vunpack.c.h.b16 %v2840
      %v3105 = vunpack.c.l.b16 %v2841
      %v3106 = vunpack.c.h.b16 %v2841
      %v3107 = vunpack.c.l.b16 %v2842
      %v3108 = vunpack.c.h.b16 %v2842
      %v3109 = vunpack.c.l.b16 %v2843
      %v3110 = vunpack.c.h.b16 %v2843
      %v3111 = vunpack.c.l.b16 %v2844
      %v3112 = vunpack.c.h.b16 %v2844
      %v3113 = vunpack.c.l.b16 %v2845
      %v3114 = vunpack.c.h.b16 %v2845
      %v3115 = vunpack.c.l.b16 %v2846
      %v3116 = vunpack.c.h.b16 %v2846
      %v3117 = vunpack.c.l.b16 %v2847
      %v3118 = vunpack.c.h.b16 %v2847
      %v3119 = vunpack.c.l.b16 %v2848
      %v3120 = vunpack.c.h.b16 %v2848
      %v3121 = vunpack.c.l.b16 %v2849
      %v3122 = vunpack.c.h.b16 %v2849
      %v3123 = vunpack.c.l.b16 %v2850
      %v3124 = vunpack.c.h.b16 %v2850
      %v3125 = vunpack.c.l.b16 %v2851
      %v3126 = vunpack.c.h.b16 %v2851
      %v3127 = vunpack.c.l.b16 %v2852
      %v3128 = vunpack.c.h.b16 %v2852
      %v3129 = vunpack.c.l.b16 %v2853
      %v3130 = vunpack.c.h.b16 %v2853
      %v3131 = vunpack.c.l.b16 %v2854
      %v3132 = vunpack.c.h.b16 %v2854
      %v3133 = vunpack.c.l.b16 %v2855
      %v3134 = vunpack.c.h.b16 %v2855
      %v3135 = vunpack.c.l.b16 %v2856
      %v3136 = vunpack.c.h.b16 %v2856
      %v3137 = vunpack.c.l.b16 %v2857
      %v3138 = vunpack.c.h.b16 %v2857
      %v3139 = vunpack.c.l.b16 %v2858
      %v3140 = vunpack.c.h.b16 %v2858
      %v3141 = vunpack.c.l.b16 %v2859
      %v3142 = vunpack.c.h.b16 %v2859
      %v3143 = vunpack.c.l.b16 %v2860
      %v3144 = vunpack.c.h.b16 %v2860
      %v3145 = vunpack.c.l.b16 %v2861
      %v3146 = vunpack.c.h.b16 %v2861
      %v3147 = vunpack.c.l.b16 %v2862
      %v3148 = vunpack.c.h.b16 %v2862
      %v3149 = vunpack.c.l.b16 %v2863
      %v3150 = vunpack.c.h.b16 %v2863
      %v3151 = vunpack.c.l.b16 %v2864
      %v3152 = vunpack.c.h.b16 %v2864
      %v3153 = vunpack.c.l.b16 %v2865
      %v3154 = vunpack.c.h.b16 %v2865
      %v3155 = vunpack.c.l.b16 %v2866
      %v3156 = vunpack.c.h.b16 %v2866
      %v3157 = vunpack.c.l.b16 %v2867
      %v3158 = vunpack.c.h.b16 %v2867
      %v3159 = vunpack.c.l.b16 %v2868
      %v3160 = vunpack.c.h.b16 %v2868
      %v3161 = vunpack.c.l.b16 %v2869
      %v3162 = vunpack.c.h.b16 %v2869
      %v3163 = vunpack.c.l.b16 %v2870
      %v3164 = vunpack.c.h.b16 %v2870
      %v3165 = vunpack.c.l.b16 %v2871
      %v3166 = vunpack.c.h.b16 %v2871
      %v3167 = vunpack.c.l.b16 %v2872
      %v3168 = vunpack.c.h.b16 %v2872
      %v3169 = vunpack.c.l.b16 %v2873
      %v3170 = vunpack.c.h.b16 %v2873
      %v3171 = vunpack.c.l.b16 %v2874
      %v3172 = vunpack.c.h.b16 %v2874
      %v3173 = vunpack.c.l.b16 %v2875
      %v3174 = vunpack.c.h.b16 %v2875
      %v3175 = vunpack.c.l.b16 %v2876
      %v3176 = vunpack.c.h.b16 %v2876
      %v3177 = vunpack.c.l.b16 %v2877
      %v3178 = vunpack.c.h.b16 %v2877
      %v3179 = vunpack.c.l.b16 %v2878
      %v3180 = vunpack.c.h.b16 %v2878
      %v3181 = vunpack.c.l.b16 %v2879
      %v3182 = vunpack.c.h.b16 %v2879
      %v3183 = vunpack.c.l.b16 %v2880
      %v3184 = vunpack.c.h.b16 %v2880
      %v3185 = vunpack.c.l.b16 %v2881
      %v3186 = vunpack.c.h.b16 %v2881
      %v3187 = vunpack.c.l.b16 %v2882
      %v3188 = vunpack.c.h.b16 %v2882
      %v3189 = vunpack.c.l.b16 %v2883
      %v3190 = vunpack.c.h.b16 %v2883
      %v3191 = vunpack.c.l.b16 %v2884
      %v3192 = vunpack.c.h.b16 %v2884
      %v3193 = vunpack.c.l.b16 %v2885
      %v3194 = vunpack.c.h.b16 %v2885
      %v3195 = vunpack.c.l.b16 %v2886
      %v3196 = vunpack.c.h.b16 %v2886
      %v3197 = vunpack.c.l.b16 %v2887
      %v3198 = vunpack.c.h.b16 %v2887
      %v3199 = vunpack.c.l.b16 %v2888
      %v3200 = vunpack.c.h.b16 %v2888
      %v3201 = vunpack.c.l.b16 %v2889
      %v3202 = vunpack.c.h.b16 %v2889
      %v3203 = vunpack.c.l.b16 %v2890
      %v3204 = vunpack.c.h.b16 %v2890
      %v3205 = vunpack.c.l.b16 %v2891
      %v3206 = vunpack.c.h.b16 %v2891
      %v3207 = vunpack.c.l.b16 %v2892
      %v3208 = vunpack.c.h.b16 %v2892
      %v3209 = vunpack.c.l.b16 %v2893
      %v3210 = vunpack.c.h.b16 %v2893
      %v3211 = vunpack.c.l.b16 %v2894
      %v3212 = vunpack.c.h.b16 %v2894
      %v3213 = vunpack.c.l.b16 %v2895
      %v3214 = vunpack.c.h.b16 %v2895
      %v3215 = vunpack.c.l.b16 %v2896
      %v3216 = vunpack.c.h.b16 %v2896
      %v3217 = vunpack.c.l.b16 %v2897
      %v3218 = vunpack.c.h.b16 %v2897
      %v3219 = vunpack.c.l.b16 %v2898
      %v3220 = vunpack.c.h.b16 %v2898
      %v3221 = vunpack.c.l.b16 %v2899
      %v3222 = vunpack.c.h.b16 %v2899
      %v3223 = vunpack.c.l.b16 %v2900
      %v3224 = vunpack.c.h.b16 %v2900
      %v3225 = vunpack.c.l.b16 %v2901
      %v3226 = vunpack.c.h.b16 %v2901
      %v3227 = vunpack.c.l.b16 %v2902
      %v3228 = vunpack.c.h.b16 %v2902
      %v3229 = vunpack.c.l.b16 %v2903
      %v3230 = vunpack.c.h.b16 %v2903
      %v3231 = vunpack.c.l.b16 %v2904
      %v3232 = vunpack.c.h.b16 %v2904
      %v3233 = vunpack.c.l.b16 %v2905
      %v3234 = vunpack.c.h.b16 %v2905
      %v3235 = vunpack.c.l.b16 %v2906
      %v3236 = vunpack.c.h.b16 %v2906
      %v3237 = vunpack.c.l.b16 %v2907
      %v3238 = vunpack.c.h.b16 %v2907
      %v3239 = vunpack.c.l.b16 %v2908
      %v3240 = vunpack.c.h.b16 %v2908
      %v3241 = vunpack.c.l.b16 %v2909
      %v3242 = vunpack.c.h.b16 %v2909
      %v3243 = vunpack.c.l.b16 %v2910
      %v3244 = vunpack.c.h.b16 %v2910
      %v3245 = vunpack.c.l.b16 %v2911
      %v3246 = vunpack.c.h.b16 %v2911
      %v3247 = vunpack.c.l.b16 %v2912
      %v3248 = vunpack.c.h.b16 %v2912
      %v3249 = vunpack.c.l.b16 %v2913
      %v3250 = vunpack.c.h.b16 %v2913
      %v3251 = vunpack.c.l.b16 %v2914
      %v3252 = vunpack.c.h.b16 %v2914
      %v3253 = vunpack.c.l.b16 %v2915
      %v3254 = vunpack.c.h.b16 %v2915
      %v3255 = vunpack.c.l.b16 %v2916
      %v3256 = vunpack.c.h.b16 %v2916
      %v3257 = vunpack.c.l.b16 %v2917
      %v3258 = vunpack.c.h.b16 %v2917
      %v3259 = vunpack.c.l.b16 %v2918
      %v3260 = vunpack.c.h.b16 %v2918
      %v3261 = vunpack.c.l.b16 %v2919
      %v3262 = vunpack.c.h.b16 %v2919
      %v3263 = vunpack.c.l.b16 %v2920
      %v3264 = vunpack.c.h.b16 %v2920
      %v3265 = vunpack.c.l.b16 %v2921
      %v3266 = vunpack.c.h.b16 %v2921
      %v3267 = vunpack.c.l.b16 %v2922
      %v3268 = vunpack.c.h.b16 %v2922
      %v3269 = vunpack.c.l.b16 %v2923
      %v3270 = vunpack.c.h.b16 %v2923
      %v3271 = vunpack.c.l.b16 %v2924
      %v3272 = vunpack.c.h.b16 %v2924
      %v3273 = vunpack.c.l.b16 %v2925
      %v3274 = vunpack.c.h.b16 %v2925
      %v3275 = vunpack.c.l.b16 %v2926
      %v3276 = vunpack.c.h.b16 %v2926
      %v3277 = vunpack.c.l.b16 %v2927
      %v3278 = vunpack.c.h.b16 %v2927
      %v3279 = vunpack.c.l.b16 %v2928
      %v3280 = vunpack.c.h.b16 %v2928
      %v3281 = vunpack.c.l.b16 %v2929
      %v3282 = vunpack.c.h.b16 %v2929
      %v3283 = vunpack.c.l.b16 %v2930
      %v3284 = vunpack.c.h.b16 %v2930
      %v3285 = vunpack.c.l.b16 %v2931
      %v3286 = vunpack.c.h.b16 %v2931
      %v3287 = vunpack.c.l.b16 %v2932
      %v3288 = vunpack.c.h.b16 %v2932
      %v3289 = vunpack.c.l.b16 %v2933
      %v3290 = vunpack.c.h.b16 %v2933
      %v3291 = vunpack.c.l.b16 %v2934
      %v3292 = vunpack.c.h.b16 %v2934
      %v3293 = vunpack.c.l.b16 %v2935
      %v3294 = vunpack.c.h.b16 %v2935
      %v3295 = vunpack.c.l.b16 %v2936
      %v3296 = vunpack.c.h.b16 %v2936
      %v3297 = vunpack.c.l.b16 %v2937
      %v3298 = vunpack.c.h.b16 %v2937
      %v3299 = vunpack.c.l.b16 %v2938
      %v3300 = vunpack.c.h.b16 %v2938
      %v3301 = vunpack.c.l.b16 %v2939
      %v3302 = vunpack.c.h.b16 %v2939
      %v3303 = vunpack.c.l.b16 %v2940
      %v3304 = vunpack.c.h.b16 %v2940
      %v3305 = vunpack.c.l.b16 %v2941
      %v3306 = vunpack.c.h.b16 %v2941
      %v3307 = vunpack.c.l.b16 %v2942
      %v3308 = vunpack.c.h.b16 %v2942
      %v3309 = vunpack.c.l.b16 %v2943
      %v3310 = vunpack.c.h.b16 %v2943
      %v3311 = vunpack.c.l.b16 %v2944
      %v3312 = vunpack.c.h.b16 %v2944
      %v3313 = vunpack.c.l.b16 %v2945
      %v3314 = vunpack.c.h.b16 %v2945
      %v3315 = vunpack.c.l.b16 %v2946
      %v3316 = vunpack.c.h.b16 %v2946
      %v3317 = vunpack.c.l.b16 %v2947
      %v3318 = vunpack.c.h.b16 %v2947
      %v3319 = vunpack.c.l.b16 %v2948
      %v3320 = vunpack.c.h.b16 %v2948
      %v3321 = vunpack.c.l.b16 %v2949
      %v3322 = vunpack.c.h.b16 %v2949
      %v3323 = vunpack.c.l.b16 %v2950
      %v3324 = vunpack.c.h.b16 %v2950
      %v3325 = vunpack.c.l.b16 %v2951
      %v3326 = vunpack.c.h.b16 %v2951
      %v3327 = vunpack.c.l.b16 %v2952
      %v3328 = vunpack.c.h.b16 %v2952
      %v3329 = vunpack.c.l.b16 %v2953
      %v3330 = vunpack.c.h.b16 %v2953
      %v3331 = vunpack.c.l.b16 %v2954
      %v3332 = vunpack.c.h.b16 %v2954
      %v3333 = vunpack.c.l.b16 %v2955
      %v3334 = vunpack.c.h.b16 %v2955
      %v3335 = vunpack.c.l.b16 %v2956
      %v3336 = vunpack.c.h.b16 %v2956
      %v3337 = vunpack.c.l.b16 %v2957
      %v3338 = vunpack.c.h.b16 %v2957
      %v3339 = vpack.c.b16 %v3085, %v3085
      %v3340 = vpack.c.b16 %v3086, %v3086
      %v3341 = vpack.c.b16 %v3087, %v3087
      %v3342 = vpack.c.b16 %v3088, %v3088
      %v3343 = vpack.c.b16 %v3089, %v3089
      %v3344 = vpack.c.b16 %v3090, %v3090
      %v3345 = vpack.c.b16 %v3091, %v3091
      %v3346 = vpack.c.b16 %v3092, %v3092
      %v3347 = vpack.c.b16 %v3093, %v3093
      %v3348 = vpack.c.b16 %v3094, %v3094
      %v3349 = vpack.c.b16 %v3095, %v3095
      %v3350 = vpack.c.b16 %v3096, %v3096
      %v3351 = vpack.c.b16 %v3097, %v3097
      %v3352 = vpack.c.b16 %v3098, %v3098
      %v3353 = vpack.c.b16 %v3099, %v3099
      %v3354 = vpack.c.b16 %v3100, %v3100
      %v3355 = vpack.c.b16 %v3101, %v3101
      %v3356 = vpack.c.b16 %v3102, %v3102
      %v3357 = vpack.c.b16 %v3103, %v3103
      %v3358 = vpack.c.b16 %v3104, %v3104
      %v3359 = vpack.c.b16 %v3105, %v3105
      %v3360 = vpack.c.b16 %v3106, %v3106
      %v3361 = vpack.c.b16 %v3107, %v3107
      %v3362 = vpack.c.b16 %v3108, %v3108
      %v3363 = vpack.c.b16 %v3109, %v3109
      %v3364 = vpack.c.b16 %v3110, %v3110
      %v3365 = vpack.c.b16 %v3111, %v3111
      %v3366 = vpack.c.b16 %v3112, %v3112
      %v3367 = vpack.c.b16 %v3113, %v3113
      %v3368 = vpack.c.b16 %v3114, %v3114
      %v3369 = vpack.c.b16 %v3115, %v3115
      %v3370 = vpack.c.b16 %v3116, %v3116
      %v3371 = vpack.c.b16 %v3117, %v3117
      %v3372 = vpack.c.b16 %v3118, %v3118
      %v3373 = vpack.c.b16 %v3119, %v3119
      %v3374 = vpack.c.b16 %v3120, %v3120
      %v3375 = vpack.c.b16 %v3121, %v3121
      %v3376 = vpack.c.b16 %v3122, %v3122
      %v3377 = vpack.c.b16 %v3123, %v3123
      %v3378 = vpack.c.b16 %v3124, %v3124
      %v3379 = vpack.c.b16 %v3125, %v3125
      %v3380 = vpack.c.b16 %v3126, %v3126
      %v3381 = vpack.c.b16 %v3127, %v3127
      %v3382 = vpack.c.b16 %v3128, %v3128
      %v3383 = vpack.c.b16 %v3129, %v3129
      %v3384 = vpack.c.b16 %v3130, %v3130
      %v3385 = vpack.c.b16 %v3131, %v3131
      %v3386 = vpack.c.b16 %v3132, %v3132
      %v3387 = vpack.c.b16 %v3133, %v3133
      %v3388 = vpack.c.b16 %v3134, %v3134
      %v3389 = vpack.c.b16 %v3135, %v3135
      %v3390 = vpack.c.b16 %v3136, %v3136
      %v3391 = vpack.c.b16 %v3137, %v3137
      %v3392 = vpack.c.b16 %v3138, %v3138
      %v3393 = vpack.c.b16 %v3139, %v3139
      %v3394 = vpack.c.b16 %v3140, %v3140
      %v3395 = vpack.c.b16 %v3141, %v3141
      %v3396 = vpack.c.b16 %v3142, %v3142
      %v3397 = vpack.c.b16 %v3143, %v3143
      %v3398 = vpack.c.b16 %v3144, %v3144
      %v3399 = vpack.c.b16 %v3145, %v3145
      %v3400 = vpack.c.b16 %v3146, %v3146
      %v3401 = vpack.c.b16 %v3147, %v3147
      %v3402 = vpack.c.b16 %v3148, %v3148
      %v3403 = vpack.c.b16 %v3149, %v3149
      %v3404 = vpack.c.b16 %v3150, %v3150
      %v3405 = vpack.c.b16 %v3151, %v3151
      %v3406 = vpack.c.b16 %v3152, %v3152
      %v3407 = vpack.c.b16 %v3153, %v3153
      %v3408 = vpack.c.b16 %v3154, %v3154
      %v3409 = vpack.c.b16 %v3155, %v3155
      %v3410 = vpack.c.b16 %v3156, %v3156
      %v3411 = vpack.c.b16 %v3157, %v3157
      %v3412 = vpack.c.b16 %v3158, %v3158
      %v3413 = vpack.c.b16 %v3159, %v3159
      %v3414 = vpack.c.b16 %v3160, %v3160
      %v3415 = vpack.c.b16 %v3161, %v3161
      %v3416 = vpack.c.b16 %v3162, %v3162
      %v3417 = vpack.c.b16 %v3163, %v3163
      %v3418 = vpack.c.b16 %v3164, %v3164
      %v3419 = vpack.c.b16 %v3165, %v3165
      %v3420 = vpack.c.b16 %v3166, %v3166
      %v3421 = vpack.c.b16 %v3167, %v3167
      %v3422 = vpack.c.b16 %v3168, %v3168
      %v3423 = vpack.c.b16 %v3169, %v3169
      %v3424 = vpack.c.b16 %v3170, %v3170
      %v3425 = vpack.c.b16 %v3171, %v3171
      %v3426 = vpack.c.b16 %v3172, %v3172
      %v3427 = vpack.c.b16 %v3173, %v3173
      %v3428 = vpack.c.b16 %v3174, %v3174
      %v3429 = vpack.c.b16 %v3175, %v3175
      %v3430 = vpack.c.b16 %v3176, %v3176
      %v3431 = vpack.c.b16 %v3177, %v3177
      %v3432 = vpack.c.b16 %v3178, %v3178
      %v3433 = vpack.c.b16 %v3179, %v3179
      %v3434 = vpack.c.b16 %v3180, %v3180
      %v3435 = vpack.c.b16 %v3181, %v3181
      %v3436 = vpack.c.b16 %v3182, %v3182
      %v3437 = vpack.c.b16 %v3183, %v3183
      %v3438 = vpack.c.b16 %v3184, %v3184
      %v3439 = vpack.c.b16 %v3185, %v3185
      %v3440 = vpack.c.b16 %v3186, %v3186
      %v3441 = vpack.c.b16 %v3187, %v3187
      %v3442 = vpack.c.b16 %v3188, %v3188
      %v3443 = vpack.c.b16 %v3189, %v3189
      %v3444 = vpack.c.b16 %v3190, %v3190
      %v3445 = vpack.c.b16 %v3191, %v3191
      %v3446 = vpack.c.b16 %v3192, %v3192
      %v3447 = vpack.c.b16 %v3193, %v3193
      %v3448 = vpack.c.b16 %v3194, %v3194
      %v3449 = vpack.c.b16 %v3195, %v3195
      %v3450 = vpack.c.b16 %v3196, %v3196
      %v3451 = vpack.c.b16 %v3197, %v3197
      %v3452 = vpack.c.b16 %v3198, %v3198
      %v3453 = vpack.c.b16 %v3199, %v3199
      %v3454 = vpack.c.b16 %v3200, %v3200
      %v3455 = vpack.c.b16 %v3201, %v3201
      %v3456 = vpack.c.b16 %v3202, %v3202
      %v3457 = vpack.c.b16 %v3203, %v3203
      %v3458 = vpack.c.b16 %v3204, %v3204
      %v3459 = vpack.c.b16 %v3205, %v3205
      %v3460 = vpack.c.b16 %v3206, %v3206
      %v3461 = vpack.c.b16 %v3207, %v3207
      %v3462 = vpack.c.b16 %v3208, %v3208
      %v3463 = vpack.c.b16 %v3209, %v3209
      %v3464 = vpack.c.b16 %v3210, %v3210
      %v3465 = vpack.c.b16 %v3211, %v3211
      %v3466 = vpack.c.b16 %v3212, %v3212
      %v3467 = vpack.c.b16 %v3213, %v3213
      %v3468 = vpack.c.b16 %v3214, %v3214
      %v3469 = vpack.c.b16 %v3215, %v3215
      %v3470 = vpack.c.b16 %v3216, %v3216
      %v3471 = vpack.c.b16 %v3217, %v3217
      %v3472 = vpack.c.b16 %v3218, %v3218
      %v3473 = vpack.c.b16 %v3219, %v3219
      %v3474 = vpack.c.b16 %v3220, %v3220
      %v3475 = vpack.c.b16 %v3221, %v3221
      %v3476 = vpack.c.b16 %v3222, %v3222
      %v3477 = vpack.c.b16 %v3223, %v3223
      %v3478 = vpack.c.b16 %v3224, %v3224
      %v3479 = vpack.c.b16 %v3225, %v3225
      %v3480 = vpack.c.b16 %v3226, %v3226
      %v3481 = vpack.c.b16 %v3227, %v3227
      %v3482 = vpack.c.b16 %v3228, %v3228
      %v3483 = vpack.c.b16 %v3229, %v3229
      %v3484 = vpack.c.b16 %v3230, %v3230
      %v3485 = vpack.c.b16 %v3231, %v3231
      %v3486 = vpack.c.b16 %v3232, %v3232
      %v3487 = vpack.c.b16 %v3233, %v3233
      %v3488 = vpack.c.b16 %v3234, %v3234
      %v3489 = vpack.c.b16 %v3235, %v3235
      %v3490 = vpack.c.b16 %v3236, %v3236
      %v3491 = vpack.c.b16 %v3237, %v3237
      %v3492 = vpack.c.b16 %v3238, %v3238
      %v3493 = vpack.c.b16 %v3239, %v3239
      %v3494 = vpack.c.b16 %v3240, %v3240
      %v3495 = vpack.c.b16 %v3241, %v3241
      %v3496 = vpack.c.b16 %v3242, %v3242
      %v3497 = vpack.c.b16 %v3243, %v3243
      %v3498 = vpack.c.b16 %v3244, %v3244
      %v3499 = vpack.c.b16 %v3245, %v3245
      %v3500 = vpack.c.b16 %v3246, %v3246
      %v3501 = vpack.c.b16 %v3247, %v3247
      %v3502 = vpack.c.b16 %v3248, %v3248
      %v3503 = vpack.c.b16 %v3249, %v3249
      %v3504 = vpack.c.b16 %v3250, %v3250
      %v3505 = vpack.c.b16 %v3251, %v3251
      %v3506 = vpack.c.b16 %v3252, %v3252
      %v3507 = vpack.c.b16 %v3253, %v3253
      %v3508 = vpack.c.b16 %v3254, %v3254
      %v3509 = vpack.c.b16 %v3255, %v3255
      %v3510 = vpack.c.b16 %v3256, %v3256
      %v3511 = vpack.c.b16 %v3257, %v3257
      %v3512 = vpack.c.b16 %v3258, %v3258
      %v3513 = vpack.c.b16 %v3259, %v3259
      %v3514 = vpack.c.b16 %v3260, %v3260
      %v3515 = vpack.c.b16 %v3261, %v3261
      %v3516 = vpack.c.b16 %v3262, %v3262
      %v3517 = vpack.c.b16 %v3263, %v3263
      %v3518 = vpack.c.b16 %v3264, %v3264
      %v3519 = vpack.c.b16 %v3265, %v3265
      %v3520 = vpack.c.b16 %v3266, %v3266
      %v3521 = vpack.c.b16 %v3267, %v3267
      %v3522 = vpack.c.b16 %v3268, %v3268
      %v3523 = vpack.c.b16 %v3269, %v3269
      %v3524 = vpack.c.b16 %v3270, %v3270
      %v3525 = vpack.c.b16 %v3271, %v3271
      %v3526 = vpack.c.b16 %v3272, %v3272
      %v3527 = vpack.c.b16 %v3273, %v3273
      %v3528 = vpack.c.b16 %v3274, %v3274
      %v3529 = vpack.c.b16 %v3275, %v3275
      %v3530 = vpack.c.b16 %v3276, %v3276
      %v3531 = vpack.c.b16 %v3277, %v3277
      %v3532 = vpack.c.b16 %v3278, %v3278
      %v3533 = vpack.c.b16 %v3279, %v3279
      %v3534 = vpack.c.b16 %v3280, %v3280
      %v3535 = vpack.c.b16 %v3281, %v3281
      %v3536 = vpack.c.b16 %v3282, %v3282
      %v3537 = vpack.c.b16 %v3283, %v3283
      %v3538 = vpack.c.b16 %v3284, %v3284
      %v3539 = vpack.c.b16 %v3285, %v3285
      %v3540 = vpack.c.b16 %v3286, %v3286
      %v3541 = vpack.c.b16 %v3287, %v3287
      %v3542 = vpack.c.b16 %v3288, %v3288
      %v3543 = vpack.c.b16 %v3289, %v3289
      %v3544 = vpack.c.b16 %v3290, %v3290
      %v3545 = vpack.c.b16 %v3291, %v3291
      %v3546 = vpack.c.b16 %v3292, %v3292
      %v3547 = vpack.c.b16 %v3293, %v3293
      %v3548 = vpack.c.b16 %v3294, %v3294
      %v3549 = vpack.c.b16 %v3295, %v3295
      %v3550 = vpack.c.b16 %v3296, %v3296
      %v3551 = vpack.c.b16 %v3297, %v3297
      %v3552 = vpack.c.b16 %v3298, %v3298
      %v3553 = vpack.c.b16 %v3299, %v3299
      %v3554 = vpack.c.b16 %v3300, %v3300
      %v3555 = vpack.c.b16 %v3301, %v3301
      %v3556 = vpack.c.b16 %v3302, %v3302
      %v3557 = vpack.c.b16 %v3303, %v3303
      %v3558 = vpack.c.b16 %v3304, %v3304
      %v3559 = vpack.c.b16 %v3305, %v3305
      %v3560 = vpack.c.b16 %v3306, %v3306
      %v3561 = vpack.c.b16 %v3307, %v3307
      %v3562 = vpack.c.b16 %v3308, %v3308
      %v3563 = vpack.c.b16 %v3309, %v3309
      %v3564 = vpack.c.b16 %v3310, %v3310
      %v3565 = vpack.c.b16 %v3311, %v3311
      %v3566 = vpack.c.b16 %v3312, %v3312
      %v3567 = vpack.c.b16 %v3313, %v3313
      %v3568 = vpack.c.b16 %v3314, %v3314
      %v3569 = vpack.c.b16 %v3315, %v3315
      %v3570 = vpack.c.b16 %v3316, %v3316
      %v3571 = vpack.c.b16 %v3317, %v3317
      %v3572 = vpack.c.b16 %v3318, %v3318
      %v3573 = vpack.c.b16 %v3319, %v3319
      %v3574 = vpack.c.b16 %v3320, %v3320
      %v3575 = vpack.c.b16 %v3321, %v3321
      %v3576 = vpack.c.b16 %v3322, %v3322
      %v3577 = vpack.c.b16 %v3323, %v3323
      %v3578 = vpack.c.b16 %v3324, %v3324
      %v3579 = vpack.c.b16 %v3325, %v3325
      %v3580 = vpack.c.b16 %v3326, %v3326
      %v3581 = vpack.c.b16 %v3327, %v3327
      %v3582 = vpack.c.b16 %v3328, %v3328
      %v3583 = vpack.c.b16 %v3329, %v3329
      %v3584 = vpack.c.b16 %v3330, %v3330
      %v3585 = vpack.c.b16 %v3331, %v3331
      %v3586 = vpack.c.b16 %v3332, %v3332
      %v3587 = vpack.c.b16 %v3333, %v3333
      %v3588 = vpack.c.b16 %v3334, %v3334
      %v3589 = vpack.c.b16 %v3335, %v3335
      %v3590 = vpack.c.b16 %v3336, %v3336
      %v3591 = vpack.c.b16 %v3337, %v3337
      %v3592 = vpack.c.b16 %v3338, %v3338
      %3847 = vst [vmem:[%s223] sm:$0xf] %v3339
      %3848 = vst [vmem:[%s223 + $0x4] sm:$0xf] %v3340
      %3849 = vst [vmem:[%s223 + $0x8] sm:$0xf] %v3341
      %3850 = vst [vmem:[%s223 + $0xc] sm:$0xf] %v3342
      %3851 = vst [vmem:[%s223 + $0x10] sm:$0xf] %v3343
      %3852 = vst [vmem:[%s223 + $0x14] sm:$0xf] %v3344
      %3853 = vst [vmem:[%s223 + $0x18] sm:$0xf] %v3345
      %3854 = vst [vmem:[%s223 + $0x1c] sm:$0xf] %v3346
      %3855 = vst [vmem:[%s223 + $0x20] sm:$0xf] %v3347
      %3856 = vst [vmem:[%s223 + $0x24] sm:$0xf] %v3348
      %3857 = vst [vmem:[%s223 + $0x28] sm:$0xf] %v3349
      %3858 = vst [vmem:[%s223 + $0x2c] sm:$0xf] %v3350
      %3859 = vst [vmem:[%s223 + $0x30] sm:$0xf] %v3351
      %3860 = vst [vmem:[%s223 + $0x34] sm:$0xf] %v3352
      %3861 = vst [vmem:[%s223 + $0x38] sm:$0xf] %v3353
      %3862 = vst [vmem:[%s223 + $0x3c] sm:$0xf] %v3354
      %3863 = vst [vmem:[%s223 + $0x40] sm:$0xf] %v3355
      %3864 = vst [vmem:[%s223 + $0x44] sm:$0xf] %v3356
      %3865 = vst [vmem:[%s223 + $0x48] sm:$0xf] %v3357
      %3866 = vst [vmem:[%s223 + $0x4c] sm:$0xf] %v3358
      %3867 = vst [vmem:[%s223 + $0x50] sm:$0xf] %v3359
      %3868 = vst [vmem:[%s223 + $0x54] sm:$0xf] %v3360
      %3869 = vst [vmem:[%s223 + $0x58] sm:$0xf] %v3361
      %3870 = vst [vmem:[%s223 + $0x5c] sm:$0xf] %v3362
      %3871 = vst [vmem:[%s223 + $0x60] sm:$0xf] %v3363
      %3872 = vst [vmem:[%s223 + $0x64] sm:$0xf] %v3364
      %3873 = vst [vmem:[%s223 + $0x68] sm:$0xf] %v3365
      %3874 = vst [vmem:[%s223 + $0x6c] sm:$0xf] %v3366
      %3875 = vst [vmem:[%s223 + $0x70] sm:$0xf] %v3367
      %3876 = vst [vmem:[%s223 + $0x74] sm:$0xf] %v3368
      %3877 = vst [vmem:[%s223 + $0x78] sm:$0xf] %v3369
      %3878 = vst [vmem:[%s223 + $0x7c] sm:$0xf] %v3370
      %3879 = vst [vmem:[%s223 + $0x80] sm:$0xf] %v3371
      %3880 = vst [vmem:[%s223 + $0x84] sm:$0xf] %v3372
      %3881 = vst [vmem:[%s223 + $0x88] sm:$0xf] %v3373
      %3882 = vst [vmem:[%s223 + $0x8c] sm:$0xf] %v3374
      %3883 = vst [vmem:[%s223 + $0x90] sm:$0xf] %v3375
      %3884 = vst [vmem:[%s223 + $0x94] sm:$0xf] %v3376
      %3885 = vst [vmem:[%s223 + $0x98] sm:$0xf] %v3377
      %3886 = vst [vmem:[%s223 + $0x9c] sm:$0xf] %v3378
      %3887 = vst [vmem:[%s223 + $0xa0] sm:$0xf] %v3379
      %3888 = vst [vmem:[%s223 + $0xa4] sm:$0xf] %v3380
      %3889 = vst [vmem:[%s223 + $0xa8] sm:$0xf] %v3381
      %3890 = vst [vmem:[%s223 + $0xac] sm:$0xf] %v3382
      %3891 = vst [vmem:[%s223 + $0xb0] sm:$0xf] %v3383
      %3892 = vst [vmem:[%s223 + $0xb4] sm:$0xf] %v3384
      %3893 = vst [vmem:[%s223 + $0xb8] sm:$0xf] %v3385
      %3894 = vst [vmem:[%s223 + $0xbc] sm:$0xf] %v3386
      %3895 = vst [vmem:[%s223 + $0xc0] sm:$0xf] %v3387
      %3896 = vst [vmem:[%s223 + $0xc4] sm:$0xf] %v3388
      %3897 = vst [vmem:[%s223 + $0xc8] sm:$0xf] %v3389
      %3898 = vst [vmem:[%s223 + $0xcc] sm:$0xf] %v3390
      %3899 = vst [vmem:[%s223 + $0xd0] sm:$0xf] %v3391
      %3900 = vst [vmem:[%s223 + $0xd4] sm:$0xf] %v3392
      %3901 = vst [vmem:[%s223 + $0xd8] sm:$0xf] %v3393
      %3902 = vst [vmem:[%s223 + $0xdc] sm:$0xf] %v3394
      %3903 = vst [vmem:[%s223 + $0xe0] sm:$0xf] %v3395
      %3904 = vst [vmem:[%s223 + $0xe4] sm:$0xf] %v3396
      %3905 = vst [vmem:[%s223 + $0xe8] sm:$0xf] %v3397
      %3906 = vst [vmem:[%s223 + $0xec] sm:$0xf] %v3398
      %3907 = vst [vmem:[%s223 + $0xf0] sm:$0xf] %v3399
      %3908 = vst [vmem:[%s223 + $0xf4] sm:$0xf] %v3400
      %3909 = vst [vmem:[%s223 + $0xf8] sm:$0xf] %v3401
      %3910 = vst [vmem:[%s223 + $0xfc] sm:$0xf] %v3402
      %3911 = vst [vmem:[%s223 + $0x100] sm:$0xf] %v3403
      %3912 = vst [vmem:[%s223 + $0x104] sm:$0xf] %v3404
      %3913 = vst [vmem:[%s223 + $0x108] sm:$0xf] %v3405
      %3914 = vst [vmem:[%s223 + $0x10c] sm:$0xf] %v3406
      %3915 = vst [vmem:[%s223 + $0x110] sm:$0xf] %v3407
      %3916 = vst [vmem:[%s223 + $0x114] sm:$0xf] %v3408
      %3917 = vst [vmem:[%s223 + $0x118] sm:$0xf] %v3409
      %3918 = vst [vmem:[%s223 + $0x11c] sm:$0xf] %v3410
      %3919 = vst [vmem:[%s223 + $0x120] sm:$0xf] %v3411
      %3920 = vst [vmem:[%s223 + $0x124] sm:$0xf] %v3412
      %3921 = vst [vmem:[%s223 + $0x128] sm:$0xf] %v3413
      %3922 = vst [vmem:[%s223 + $0x12c] sm:$0xf] %v3414
      %3923 = vst [vmem:[%s223 + $0x130] sm:$0xf] %v3415
      %3924 = vst [vmem:[%s223 + $0x134] sm:$0xf] %v3416
      %3925 = vst [vmem:[%s223 + $0x138] sm:$0xf] %v3417
      %3926 = vst [vmem:[%s223 + $0x13c] sm:$0xf] %v3418
      %3927 = vst [vmem:[%s223 + $0x140] sm:$0xf] %v3419
      %3928 = vst [vmem:[%s223 + $0x144] sm:$0xf] %v3420
      %3929 = vst [vmem:[%s223 + $0x148] sm:$0xf] %v3421
      %3930 = vst [vmem:[%s223 + $0x14c] sm:$0xf] %v3422
      %3931 = vst [vmem:[%s223 + $0x150] sm:$0xf] %v3423
      %3932 = vst [vmem:[%s223 + $0x154] sm:$0xf] %v3424
      %3933 = vst [vmem:[%s223 + $0x158] sm:$0xf] %v3425
      %3934 = vst [vmem:[%s223 + $0x15c] sm:$0xf] %v3426
      %3935 = vst [vmem:[%s223 + $0x160] sm:$0xf] %v3427
      %3936 = vst [vmem:[%s223 + $0x164] sm:$0xf] %v3428
      %3937 = vst [vmem:[%s223 + $0x168] sm:$0xf] %v3429
      %3938 = vst [vmem:[%s223 + $0x16c] sm:$0xf] %v3430
      %3939 = vst [vmem:[%s223 + $0x170] sm:$0xf] %v3431
      %3940 = vst [vmem:[%s223 + $0x174] sm:$0xf] %v3432
      %3941 = vst [vmem:[%s223 + $0x178] sm:$0xf] %v3433
      %3942 = vst [vmem:[%s223 + $0x17c] sm:$0xf] %v3434
      %3943 = vst [vmem:[%s223 + $0x180] sm:$0xf] %v3435
      %3944 = vst [vmem:[%s223 + $0x184] sm:$0xf] %v3436
      %3945 = vst [vmem:[%s223 + $0x188] sm:$0xf] %v3437
      %3946 = vst [vmem:[%s223 + $0x18c] sm:$0xf] %v3438
      %3947 = vst [vmem:[%s223 + $0x190] sm:$0xf] %v3439
      %3948 = vst [vmem:[%s223 + $0x194] sm:$0xf] %v3440
      %3949 = vst [vmem:[%s223 + $0x198] sm:$0xf] %v3441
      %3950 = vst [vmem:[%s223 + $0x19c] sm:$0xf] %v3442
      %3951 = vst [vmem:[%s223 + $0x1a0] sm:$0xf] %v3443
      %3952 = vst [vmem:[%s223 + $0x1a4] sm:$0xf] %v3444
      %3953 = vst [vmem:[%s223 + $0x1a8] sm:$0xf] %v3445
      %3954 = vst [vmem:[%s223 + $0x1ac] sm:$0xf] %v3446
      %3955 = vst [vmem:[%s223 + $0x1b0] sm:$0xf] %v3447
      %3956 = vst [vmem:[%s223 + $0x1b4] sm:$0xf] %v3448
      %3957 = vst [vmem:[%s223 + $0x1b8] sm:$0xf] %v3449
      %3958 = vst [vmem:[%s223 + $0x1bc] sm:$0xf] %v3450
      %3959 = vst [vmem:[%s223 + $0x1c0] sm:$0xf] %v3451
      %3960 = vst [vmem:[%s223 + $0x1c4] sm:$0xf] %v3452
      %3961 = vst [vmem:[%s223 + $0x1c8] sm:$0xf] %v3453
      %3962 = vst [vmem:[%s223 + $0x1cc] sm:$0xf] %v3454
      %3963 = vst [vmem:[%s223 + $0x1d0] sm:$0xf] %v3455
      %3964 = vst [vmem:[%s223 + $0x1d4] sm:$0xf] %v3456
      %3965 = vst [vmem:[%s223 + $0x1d8] sm:$0xf] %v3457
      %3966 = vst [vmem:[%s223 + $0x1dc] sm:$0xf] %v3458
      %3967 = vst [vmem:[%s223 + $0x1e0] sm:$0xf] %v3459
      %3968 = vst [vmem:[%s223 + $0x1e4] sm:$0xf] %v3460
      %3969 = vst [vmem:[%s223 + $0x1e8] sm:$0xf] %v3461
      %3970 = vst [vmem:[%s223 + $0x1ec] sm:$0xf] %v3462
      %3971 = vst [vmem:[%s223 + $0x1f0] sm:$0xf] %v3463
      %3972 = vst [vmem:[%s223 + $0x1f4] sm:$0xf] %v3464
      %3973 = vst [vmem:[%s223 + $0x1f8] sm:$0xf] %v3465
      %3974 = vst [vmem:[%s223 + $0x1fc] sm:$0xf] %v3466
      %3975 = vst [vmem:[%s223 + $0x200] sm:$0xf] %v3467
      %3976 = vst [vmem:[%s223 + $0x204] sm:$0xf] %v3468
      %3977 = vst [vmem:[%s223 + $0x208] sm:$0xf] %v3469
      %3978 = vst [vmem:[%s223 + $0x20c] sm:$0xf] %v3470
      %3979 = vst [vmem:[%s223 + $0x210] sm:$0xf] %v3471
      %3980 = vst [vmem:[%s223 + $0x214] sm:$0xf] %v3472
      %3981 = vst [vmem:[%s223 + $0x218] sm:$0xf] %v3473
      %3982 = vst [vmem:[%s223 + $0x21c] sm:$0xf] %v3474
      %3983 = vst [vmem:[%s223 + $0x220] sm:$0xf] %v3475
      %3984 = vst [vmem:[%s223 + $0x224] sm:$0xf] %v3476
      %3985 = vst [vmem:[%s223 + $0x228] sm:$0xf] %v3477
      %3986 = vst [vmem:[%s223 + $0x22c] sm:$0xf] %v3478
      %3987 = vst [vmem:[%s223 + $0x230] sm:$0xf] %v3479
      %3988 = vst [vmem:[%s223 + $0x234] sm:$0xf] %v3480
      %3989 = vst [vmem:[%s223 + $0x238] sm:$0xf] %v3481
      %3990 = vst [vmem:[%s223 + $0x23c] sm:$0xf] %v3482
      %3991 = vst [vmem:[%s223 + $0x240] sm:$0xf] %v3483
      %3992 = vst [vmem:[%s223 + $0x244] sm:$0xf] %v3484
      %3993 = vst [vmem:[%s223 + $0x248] sm:$0xf] %v3485
      %3994 = vst [vmem:[%s223 + $0x24c] sm:$0xf] %v3486
      %3995 = vst [vmem:[%s223 + $0x250] sm:$0xf] %v3487
      %3996 = vst [vmem:[%s223 + $0x254] sm:$0xf] %v3488
      %3997 = vst [vmem:[%s223 + $0x258] sm:$0xf] %v3489
      %3998 = vst [vmem:[%s223 + $0x25c] sm:$0xf] %v3490
      %3999 = vst [vmem:[%s223 + $0x260] sm:$0xf] %v3491
      %4000 = vst [vmem:[%s223 + $0x264] sm:$0xf] %v3492
      %4001 = vst [vmem:[%s223 + $0x268] sm:$0xf] %v3493
      %4002 = vst [vmem:[%s223 + $0x26c] sm:$0xf] %v3494
      %4003 = vst [vmem:[%s223 + $0x270] sm:$0xf] %v3495
      %4004 = vst [vmem:[%s223 + $0x274] sm:$0xf] %v3496
      %4005 = vst [vmem:[%s223 + $0x278] sm:$0xf] %v3497
      %4006 = vst [vmem:[%s223 + $0x27c] sm:$0xf] %v3498
      %4007 = vst [vmem:[%s223 + $0x280] sm:$0xf] %v3499
      %4008 = vst [vmem:[%s223 + $0x284] sm:$0xf] %v3500
      %4009 = vst [vmem:[%s223 + $0x288] sm:$0xf] %v3501
      %4010 = vst [vmem:[%s223 + $0x28c] sm:$0xf] %v3502
      %4011 = vst [vmem:[%s223 + $0x290] sm:$0xf] %v3503
      %4012 = vst [vmem:[%s223 + $0x294] sm:$0xf] %v3504
      %4013 = vst [vmem:[%s223 + $0x298] sm:$0xf] %v3505
      %4014 = vst [vmem:[%s223 + $0x29c] sm:$0xf] %v3506
      %4015 = vst [vmem:[%s223 + $0x2a0] sm:$0xf] %v3507
      %4016 = vst [vmem:[%s223 + $0x2a4] sm:$0xf] %v3508
      %4017 = vst [vmem:[%s223 + $0x2a8] sm:$0xf] %v3509
      %4018 = vst [vmem:[%s223 + $0x2ac] sm:$0xf] %v3510
      %4019 = vst [vmem:[%s223 + $0x2b0] sm:$0xf] %v3511
      %4020 = vst [vmem:[%s223 + $0x2b4] sm:$0xf] %v3512
      %4021 = vst [vmem:[%s223 + $0x2b8] sm:$0xf] %v3513
      %4022 = vst [vmem:[%s223 + $0x2bc] sm:$0xf] %v3514
      %4023 = vst [vmem:[%s223 + $0x2c0] sm:$0xf] %v3515
      %4024 = vst [vmem:[%s223 + $0x2c4] sm:$0xf] %v3516
      %4025 = vst [vmem:[%s223 + $0x2c8] sm:$0xf] %v3517
      %4026 = vst [vmem:[%s223 + $0x2cc] sm:$0xf] %v3518
      %4027 = vst [vmem:[%s223 + $0x2d0] sm:$0xf] %v3519
      %4028 = vst [vmem:[%s223 + $0x2d4] sm:$0xf] %v3520
      %4029 = vst [vmem:[%s223 + $0x2d8] sm:$0xf] %v3521
      %4030 = vst [vmem:[%s223 + $0x2dc] sm:$0xf] %v3522
      %4031 = vst [vmem:[%s223 + $0x2e0] sm:$0xf] %v3523
      %4032 = vst [vmem:[%s223 + $0x2e4] sm:$0xf] %v3524
      %4033 = vst [vmem:[%s223 + $0x2e8] sm:$0xf] %v3525
      %4034 = vst [vmem:[%s223 + $0x2ec] sm:$0xf] %v3526
      %4035 = vst [vmem:[%s223 + $0x2f0] sm:$0xf] %v3527
      %4036 = vst [vmem:[%s223 + $0x2f4] sm:$0xf] %v3528
      %4037 = vst [vmem:[%s223 + $0x2f8] sm:$0xf] %v3529
      %4038 = vst [vmem:[%s223 + $0x2fc] sm:$0xf] %v3530
      %4039 = vst [vmem:[%s223 + $0x300] sm:$0xf] %v3531
      %4040 = vst [vmem:[%s223 + $0x304] sm:$0xf] %v3532
      %4041 = vst [vmem:[%s223 + $0x308] sm:$0xf] %v3533
      %4042 = vst [vmem:[%s223 + $0x30c] sm:$0xf] %v3534
      %4043 = vst [vmem:[%s223 + $0x310] sm:$0xf] %v3535
      %4044 = vst [vmem:[%s223 + $0x314] sm:$0xf] %v3536
      %4045 = vst [vmem:[%s223 + $0x318] sm:$0xf] %v3537
      %4046 = vst [vmem:[%s223 + $0x31c] sm:$0xf] %v3538
      %4047 = vst [vmem:[%s223 + $0x320] sm:$0xf] %v3539
      %4048 = vst [vmem:[%s223 + $0x324] sm:$0xf] %v3540
      %4049 = vst [vmem:[%s223 + $0x328] sm:$0xf] %v3541
      %4050 = vst [vmem:[%s223 + $0x32c] sm:$0xf] %v3542
      %4051 = vst [vmem:[%s223 + $0x330] sm:$0xf] %v3543
      %4052 = vst [vmem:[%s223 + $0x334] sm:$0xf] %v3544
      %4053 = vst [vmem:[%s223 + $0x338] sm:$0xf] %v3545
      %4054 = vst [vmem:[%s223 + $0x33c] sm:$0xf] %v3546
      %4055 = vst [vmem:[%s223 + $0x340] sm:$0xf] %v3547
      %4056 = vst [vmem:[%s223 + $0x344] sm:$0xf] %v3548
      %4057 = vst [vmem:[%s223 + $0x348] sm:$0xf] %v3549
      %4058 = vst [vmem:[%s223 + $0x34c] sm:$0xf] %v3550
      %4059 = vst [vmem:[%s223 + $0x350] sm:$0xf] %v3551
      %4060 = vst [vmem:[%s223 + $0x354] sm:$0xf] %v3552
      %4061 = vst [vmem:[%s223 + $0x358] sm:$0xf] %v3553
      %4062 = vst [vmem:[%s223 + $0x35c] sm:$0xf] %v3554
      %4063 = vst [vmem:[%s223 + $0x360] sm:$0xf] %v3555
      %4064 = vst [vmem:[%s223 + $0x364] sm:$0xf] %v3556
      %4065 = vst [vmem:[%s223 + $0x368] sm:$0xf] %v3557
      %4066 = vst [vmem:[%s223 + $0x36c] sm:$0xf] %v3558
      %4067 = vst [vmem:[%s223 + $0x370] sm:$0xf] %v3559
      %4068 = vst [vmem:[%s223 + $0x374] sm:$0xf] %v3560
      %4069 = vst [vmem:[%s223 + $0x378] sm:$0xf] %v3561
      %4070 = vst [vmem:[%s223 + $0x37c] sm:$0xf] %v3562
      %4071 = vst [vmem:[%s223 + $0x380] sm:$0xf] %v3563
      %4072 = vst [vmem:[%s223 + $0x384] sm:$0xf] %v3564
      %4073 = vst [vmem:[%s223 + $0x388] sm:$0xf] %v3565
      %4074 = vst [vmem:[%s223 + $0x38c] sm:$0xf] %v3566
      %4075 = vst [vmem:[%s223 + $0x390] sm:$0xf] %v3567
      %4076 = vst [vmem:[%s223 + $0x394] sm:$0xf] %v3568
      %4077 = vst [vmem:[%s223 + $0x398] sm:$0xf] %v3569
      %4078 = vst [vmem:[%s223 + $0x39c] sm:$0xf] %v3570
      %4079 = vst [vmem:[%s223 + $0x3a0] sm:$0xf] %v3571
      %4080 = vst [vmem:[%s223 + $0x3a4] sm:$0xf] %v3572
      %4081 = vst [vmem:[%s223 + $0x3a8] sm:$0xf] %v3573
      %4082 = vst [vmem:[%s223 + $0x3ac] sm:$0xf] %v3574
      %4083 = vst [vmem:[%s223 + $0x3b0] sm:$0xf] %v3575
      %4084 = vst [vmem:[%s223 + $0x3b4] sm:$0xf] %v3576
      %4085 = vst [vmem:[%s223 + $0x3b8] sm:$0xf] %v3577
      %4086 = vst [vmem:[%s223 + $0x3bc] sm:$0xf] %v3578
      %4087 = vst [vmem:[%s223 + $0x3c0] sm:$0xf] %v3579
      %4088 = vst [vmem:[%s223 + $0x3c4] sm:$0xf] %v3580
      %4089 = vst [vmem:[%s223 + $0x3c8] sm:$0xf] %v3581
      %4090 = vst [vmem:[%s223 + $0x3cc] sm:$0xf] %v3582
      %4091 = vst [vmem:[%s223 + $0x3d0] sm:$0xf] %v3583
      %4092 = vst [vmem:[%s223 + $0x3d4] sm:$0xf] %v3584
      %4093 = vst [vmem:[%s223 + $0x3d8] sm:$0xf] %v3585
      %4094 = vst [vmem:[%s223 + $0x3dc] sm:$0xf] %v3586
      %4095 = vst [vmem:[%s223 + $0x3e0] sm:$0xf] %v3587
      %4096 = vst [vmem:[%s223 + $0x3e4] sm:$0xf] %v3588
      %4097 = vst [vmem:[%s223 + $0x3e8] sm:$0xf] %v3589
      %4098 = vst [vmem:[%s223 + $0x3ec] sm:$0xf] %v3590
      %4099 = vst [vmem:[%s223 + $0x3f0] sm:$0xf] %v3591
      %4100 = vst [vmem:[%s223 + $0x3f4] sm:$0xf] %v3592
      %s4101 = smul.u32 254, %s18
      %p4102 = scmp.lt.s32.totalorder %s4101, 761
      %s4103 = scalar_select %p4102, %s4101, 761
      %p4104 = scmp.lt.s32.totalorder %s19, 0
      %s4105 = scalar_select %p4104, %s19, 0
      %s4106 = sadd.s32 %s4105, %s4103
      %s4107 = smul.addr %s4106, 4
      %s4108 = scalar_lea.vmem %s3, %s4107
      // Predicated region
      $region33: #{_lambda_.4} parent=31 // pred_check
        %p4109 = pneg %p124
      $region34: #{_lambda_.4} parent=31 // pred_check_branch
        %4111 = sbr.rel (%p4109) target = $region36
      $region35: #{_lambda_.4} parent=31 // pred_region
        %s4112 = smul.u32 254, %s18
      $region36: #{_lambda_.4} parent=31 // pred_fallthru
        _
    $region32: #{_lambda_.4} parent=5 // pred_fallthru
      _
    %p4113 = scmp.le.s32.totalorder 2, %s9
    // Predicated region
    $region37: #{_lambda_.4} parent=5 // pred_check
      %p4114 = pneg %p4113
    $region38: #{_lambda_.4} parent=5 // pred_check_branch
      %4116 = sbr.rel (%p4114) target = $region40
    $region39: #{_lambda_.4} parent=5 // pred_region
      %s4117 = ssub.s32 %s9, 2
      // Predicated region
      $region41: #{_lambda_.4} parent=39 // pred_check
        %p4118 = pneg %p130
      $region42: #{_lambda_.4} parent=39 // pred_check_branch
        %4120 = sbr.rel (%p4118) target = $region44
      $region43: #{_lambda_.4} parent=39 // pred_region
        %s4121 = smul.u32 254, %s20
        %p4122 = scmp.lt.s32.totalorder %s4121, 761
        %s4123 = scalar_select %p4122, %s4121, 761
        %p4124 = scmp.lt.s32.totalorder %s21, 0
        %s4125 = scalar_select %p4124, %s21, 0
        %s4126 = sadd.s32 %s4125, %s4123
        %s4127 = smul.addr %s4126, 4
        %s4128 = scalar_lea.vmem %s3, %s4127
      $region44: #{_lambda_.4} parent=39 // pred_fallthru
        _
    $region40: #{_lambda_.4} parent=5 // pred_fallthru
      _
  $region6: #{_lambda_.4} parent=0 // loop_footer
    %s13 = sadd.s32 1, %s9
  $region7: #{_lambda_.4} parent=0 // loop_footer_branch
    %8 = sbr.rel target = $region3
  $region8: #{_lambda_.4} parent=0 // loop_exit
    _

// kernel: _lambda_.5
$region0: #{_lambda_.5}
  #allocation0 [shape = 'u32[]', space=smem, size = 0x4, offset = 0x4, fixed_abs, tag = 'smem constant byte address 0x4 - core index']
  #allocation1 [shape = 'u32[144,128]{1,0:T(1,128)}', space=vmem, size = 0x12000, scoped, tag = 'internal scratch']
  %s0 = inlined_call_operand.vmem [shape: bf16[1296,128], index: 0, kind: input, shape index: {}]
  %s1 = inlined_call_operand.vmem [shape: bf16[128,128], index: 1, kind: input, shape index: {}]
  %s2 = inlined_call_operand.vmem [shape: f32[1,128], index: 2, kind: input, shape index: {}]
  %s3 = inlined_call_operand.vmem [shape: bf16[1296,128], index: 3, kind: output, shape index: {}]
  %s4 = sld [smem:[#allocation0]]
  $region45: #{_lambda_.5} parent=0
    _
  %s6 = ssub.s32 1, %s4
  %s7 = scalar_select 0, %s6, %s4
  loop: start=0, step=1, limit=4
  $region2: #{_lambda_.5} parent=0 // loop_pre_header
    _
  $region3: #{_lambda_.5} parent=0 // loop_header
    %s9 = sphi 0, %s13
    %p10 = scmp.ge.s32.totalorder %s9, 4
    %s16 = sphi 0, %s28
    %s17 = sphi 0, %s24
    %s18 = sphi 0, %s16
    %s19 = sphi 0, %s17
    %s20 = sphi 0, %s18
    %s21 = sphi 0, %s19
    %s31 = sphi 0, %s33
    %s34 = sphi 0, %s31
    %s35 = sphi 0, %s34
    %s51 = sphi 0, %s35
    %s57 = sphi 0, %s59
    %s60 = sphi 0, %s57
    %s61 = sphi 0, %s60
    %s77 = sphi 0, %s61
    %s83 = sphi 0, %s85
    %s86 = sphi 0, %s83
    %s87 = sphi 0, %s86
    %s103 = sphi 0, %s87
    %s111 = sphi 0, %s113
    %s114 = sphi 0, %s111
    %s115 = sphi 0, %s114
    %s131 = sphi 0, %s115
  $region4: #{_lambda_.5} parent=0 // loop_header_branch
    %12 = sbr.rel (%p10) target = $region8
  $region5: #{_lambda_.5} parent=0 // loop_body
    %s14 = ssub.s32 %s9, 1
    %s15 = ssub.s32 %s9, 2
    %s22 = sadd.s32 1, %s17
    %p23 = scmp.ge.s32.totalorder %s22, 1
    %s24 = scalar_select %p23, 0, %s22
    %s25 = sadd.s32 1, %s16
    %s26 = scalar_select %p23, %s25, %s16
    %p27 = scmp.ge.s32.totalorder %s26, 2
    %s28 = scalar_select %p27, 0, %s26
    %s29 = ssub.s32 %s16, %s28
    %p30 = scmp.eq.s32.totalorder %s29, 0
    %s32 = sadd.s32 %s31, 1
    %s33 = scalar_select %p30, %s31, %s32
    %p36 = pneg %p30
    %p37 = scmp.eq.s32.totalorder %s9, 1
    %p38 = por %p36, %p37
    %p39 = scmp.ne.s32.totalorder %s31, %s34
    %p40 = scmp.eq.s32.totalorder %s9, 0
    %p41 = por %p39, %p40
    %p42 = scmp.ne.s32.totalorder %s31, %s34
    %p43 = scmp.eq.s32.totalorder %s14, 1
    %p44 = por %p42, %p43
    %p45 = scmp.ne.s32.totalorder %s34, %s35
    %p46 = scmp.eq.s32.totalorder %s14, 0
    %p47 = por %p45, %p46
    %p48 = scmp.ne.s32.totalorder %s34, %s35
    %p49 = scmp.eq.s32.totalorder %s15, 1
    %p50 = por %p48, %p49
    %p52 = scmp.ne.s32.totalorder %s35, %s51
    %p53 = scmp.eq.s32.totalorder %s15, 0
    %p54 = por %p52, %p53
    %s55 = ssub.s32 %s17, %s24
    %p56 = scmp.eq.s32.totalorder %s55, 0
    %s58 = sadd.s32 %s57, 1
    %s59 = scalar_select %p56, %s57, %s58
    %p62 = pneg %p56
    %p63 = scmp.eq.s32.totalorder %s9, 1
    %p64 = por %p62, %p63
    %p65 = scmp.ne.s32.totalorder %s57, %s60
    %p66 = scmp.eq.s32.totalorder %s9, 0
    %p67 = por %p65, %p66
    %p68 = scmp.ne.s32.totalorder %s57, %s60
    %p69 = scmp.eq.s32.totalorder %s14, 1
    %p70 = por %p68, %p69
    %p71 = scmp.ne.s32.totalorder %s60, %s61
    %p72 = scmp.eq.s32.totalorder %s14, 0
    %p73 = por %p71, %p72
    %p74 = scmp.ne.s32.totalorder %s60, %s61
    %p75 = scmp.eq.s32.totalorder %s15, 1
    %p76 = por %p74, %p75
    %p78 = scmp.ne.s32.totalorder %s61, %s77
    %p79 = scmp.eq.s32.totalorder %s15, 0
    %p80 = por %p78, %p79
    %s81 = ssub.s32 %s17, %s24
    %p82 = scmp.eq.s32.totalorder %s81, 0
    %s84 = sadd.s32 %s83, 1
    %s85 = scalar_select %p82, %s83, %s84
    %p88 = pneg %p82
    %p89 = scmp.eq.s32.totalorder %s9, 1
    %p90 = por %p88, %p89
    %p91 = scmp.ne.s32.totalorder %s83, %s86
    %p92 = scmp.eq.s32.totalorder %s9, 0
    %p93 = por %p91, %p92
    %p94 = scmp.ne.s32.totalorder %s83, %s86
    %p95 = scmp.eq.s32.totalorder %s14, 1
    %p96 = por %p94, %p95
    %p97 = scmp.ne.s32.totalorder %s86, %s87
    %p98 = scmp.eq.s32.totalorder %s14, 0
    %p99 = por %p97, %p98
    %p100 = scmp.ne.s32.totalorder %s86, %s87
    %p101 = scmp.eq.s32.totalorder %s15, 1
    %p102 = por %p100, %p101
    %p104 = scmp.ne.s32.totalorder %s87, %s103
    %p105 = scmp.eq.s32.totalorder %s15, 0
    %p106 = por %p104, %p105
    %s107 = ssub.s32 %s16, %s28
    %s108 = ssub.s32 %s17, %s24
    %s109 = sor.u32 %s107, %s108
    %p110 = scmp.eq.s32.totalorder %s109, 0
    %s112 = sadd.s32 %s111, 1
    %s113 = scalar_select %p110, %s111, %s112
    %p116 = pneg %p110
    %p117 = scmp.eq.s32.totalorder %s9, 1
    %p118 = por %p116, %p117
    %p119 = scmp.ne.s32.totalorder %s111, %s114
    %p120 = scmp.eq.s32.totalorder %s9, 0
    %p121 = por %p119, %p120
    %p122 = scmp.ne.s32.totalorder %s111, %s114
    %p123 = scmp.eq.s32.totalorder %s14, 1
    %p124 = por %p122, %p123
    %p125 = scmp.ne.s32.totalorder %s114, %s115
    %p126 = scmp.eq.s32.totalorder %s14, 0
    %p127 = por %p125, %p126
    %p128 = scmp.ne.s32.totalorder %s114, %s115
    %p129 = scmp.eq.s32.totalorder %s15, 1
    %p130 = por %p128, %p129
    %p132 = scmp.ne.s32.totalorder %s115, %s131
    %p133 = scmp.eq.s32.totalorder %s15, 0
    %p134 = por %p132, %p133
    %p135 = scmp.le.s32.totalorder 1, %s9
    %p136 = scmp.lt.s32.totalorder %s9, 3
    %p137 = pnand %p135, %p136
    %p138 = pneg %p137
    // Predicated region
    $region9: #{_lambda_.5} parent=5 // pred_check
      _
    $region10: #{_lambda_.5} parent=5 // pred_check_branch
      %140 = sbr.rel (%p137) target = $region12
    $region11: #{_lambda_.5} parent=5 // pred_region
      %s141 = ssub.s32 %s9, 1
      // Predicated region
      $region13: #{_lambda_.5} parent=11 // pred_check
        %p142 = pneg %p73
      $region14: #{_lambda_.5} parent=11 // pred_check_branch
        %144 = sbr.rel (%p142) target = $region16
      $region15: #{_lambda_.5} parent=11 // pred_region
        %p145 = scmp.lt.s32.totalorder %s19, 0
        %s146 = scalar_select %p145, %s19, 0
        %s147 = smul.addr %s146, 4
        %s148 = scalar_lea.vmem %s1, %s147
      $region16: #{_lambda_.5} parent=11 // pred_fallthru
        _
      // Predicated region
      $region17: #{_lambda_.5} parent=11 // pred_check
        %p149 = pneg %p99
      $region18: #{_lambda_.5} parent=11 // pred_check_branch
        %151 = sbr.rel (%p149) target = $region20
      $region19: #{_lambda_.5} parent=11 // pred_region
        %p152 = scmp.lt.s32.totalorder %s19, 0
        %s153 = scalar_select %p152, %s19, 0
        %s154 = scalar_lea.vmem %s2, %s153
      $region20: #{_lambda_.5} parent=11 // pred_fallthru
        _
    $region12: #{_lambda_.5} parent=5 // pred_fallthru
      _
    %p155 = scmp.lt.s32.totalorder %s9, 2
    // Predicated region
    $region21: #{_lambda_.5} parent=5 // pred_check
      %p156 = pneg %p155
    $region22: #{_lambda_.5} parent=5 // pred_check_branch
      %158 = sbr.rel (%p156) target = $region24
    $region23: #{_lambda_.5} parent=5 // pred_region
      // Predicated region
      $region25: #{_lambda_.5} parent=23 // pred_check
        %p159 = pneg %p41
      $region26: #{_lambda_.5} parent=23 // pred_check_branch
        %161 = sbr.rel (%p159) target = $region28
      $region27: #{_lambda_.5} parent=23 // pred_region
        %s162 = smul.u32 81, %s16
        %p163 = scmp.lt.s32.totalorder %s162, 161
        %s164 = scalar_select %p163, %s162, 161
        %s165 = smul.addr %s164, 4
        %s166 = scalar_lea.vmem %s0, %s165
        %s167 = smul.u32 81, %s16
      $region28: #{_lambda_.5} parent=23 // pred_fallthru
        _
    $region24: #{_lambda_.5} parent=5 // pred_fallthru
      _
    %p168 = scmp.le.s32.totalorder 1, %s9
    %p169 = scmp.lt.s32.totalorder %s9, 3
    %p170 = pnand %p168, %p169
    %p171 = pneg %p170
    // Predicated region
    $region29: #{_lambda_.5} parent=5 // pred_check
      _
    $region30: #{_lambda_.5} parent=5 // pred_check_branch
      %173 = sbr.rel (%p170) target = $region32
    $region31: #{_lambda_.5} parent=5 // pred_region
      %s174 = ssub.s32 %s9, 1
      %s175 = smul.u32 81, %s18
      %p176 = scmp.lt.s32.totalorder %s175, 161
      %s177 = scalar_select %p176, %s175, 161
      %s178 = smul.addr %s177, 4
      %s179 = scalar_lea.vmem %s0, %s178
      %p180 = pneg %p47
      %p181 = pneg %p44
      %p182 = scmp.lt.s32.totalorder %s19, 0
      %s183 = scalar_select %p182, %s19, 0
      %s184 = smul.addr %s183, 4
      %s185 = scalar_lea.vmem %s1, %s184
      %p186 = pneg %p73
      %p187 = pneg %p70
      %p188 = scmp.lt.s32.totalorder %s19, 0
      %s189 = scalar_select %p188, %s19, 0
      %s190 = scalar_lea.vmem %s2, %s189
      %p191 = pneg %p99
      %p192 = pneg %p96
      %p193 = pneg %p127
      %p194 = pneg %p124
      %s195 = smul.u32 81, %s18
      %p196 = scmp.lt.s32.totalorder %s195, 161
      %s197 = scalar_select %p196, %s195, 161
      %p198 = scmp.lt.s32.totalorder %s19, 0
      %s199 = scalar_select %p198, %s19, 0
      %s200 = sadd.s32 %s199, %s197
      %s201 = smul.addr %s200, 4
      %s202 = scalar_lea.vmem %s3, %s201
      %s203 = smul.u32 81, %s18
      %p204 = scmp.lt.s32.totalorder %s203, 161
      %s205 = scalar_select %p204, %s203, 161
      %s206 = smul.addr %s205, 4
      %s207 = scalar_lea.vmem %s0, %s206
      %s208 = smul.u32 81, %s18
      %p209 = scmp.lt.s32.totalorder %s19, 0
      %s210 = scalar_select %p209, %s19, 0
      %s211 = smul.addr %s210, 4
      %s212 = scalar_lea.vmem %s1, %s211
      %p213 = scmp.lt.s32.totalorder %s19, 0
      %s214 = scalar_select %p213, %s19, 0
      %s215 = scalar_lea.vmem %s2, %s214
      %s216 = smul.u32 81, %s18
      %p217 = scmp.lt.s32.totalorder %s216, 161
      %s218 = scalar_select %p217, %s216, 161
      %p219 = scmp.lt.s32.totalorder %s19, 0
      %s220 = scalar_select %p219, %s19, 0
      %s221 = sadd.s32 %s220, %s218
      %s222 = smul.addr %s221, 4
      %s223 = scalar_lea.vmem %s3, %s222
      %s224 = smul.u32 81, %s18
      %v226 = vld [vmem:[%s207] sm:$0xf]
      %v227 = vld [vmem:[%s207 + $0x4] sm:$0xf]
      %v228 = vld [vmem:[%s207 + $0x8] sm:$0xf]
      %v229 = vld [vmem:[%s207 + $0xc] sm:$0xf]
      %v230 = vld [vmem:[%s207 + $0x10] sm:$0xf]
      %v231 = vld [vmem:[%s207 + $0x14] sm:$0xf]
      %v232 = vld [vmem:[%s207 + $0x18] sm:$0xf]
      %v233 = vld [vmem:[%s207 + $0x1c] sm:$0xf]
      %v234 = vld [vmem:[%s207 + $0x20] sm:$0xf]
      %v235 = vld [vmem:[%s207 + $0x24] sm:$0xf]
      %v236 = vld [vmem:[%s207 + $0x28] sm:$0xf]
      %v237 = vld [vmem:[%s207 + $0x2c] sm:$0xf]
      %v238 = vld [vmem:[%s207 + $0x30] sm:$0xf]
      %v239 = vld [vmem:[%s207 + $0x34] sm:$0xf]
      %v240 = vld [vmem:[%s207 + $0x38] sm:$0xf]
      %v241 = vld [vmem:[%s207 + $0x3c] sm:$0xf]
      %v242 = vld [vmem:[%s207 + $0x40] sm:$0xf]
      %v243 = vld [vmem:[%s207 + $0x44] sm:$0xf]
      %v244 = vld [vmem:[%s207 + $0x48] sm:$0xf]
      %v245 = vld [vmem:[%s207 + $0x4c] sm:$0xf]
      %v246 = vld [vmem:[%s207 + $0x50] sm:$0xf]
      %v247 = vld [vmem:[%s207 + $0x54] sm:$0xf]
      %v248 = vld [vmem:[%s207 + $0x58] sm:$0xf]
      %v249 = vld [vmem:[%s207 + $0x5c] sm:$0xf]
      %v250 = vld [vmem:[%s207 + $0x60] sm:$0xf]
      %v251 = vld [vmem:[%s207 + $0x64] sm:$0xf]
      %v252 = vld [vmem:[%s207 + $0x68] sm:$0xf]
      %v253 = vld [vmem:[%s207 + $0x6c] sm:$0xf]
      %v254 = vld [vmem:[%s207 + $0x70] sm:$0xf]
      %v255 = vld [vmem:[%s207 + $0x74] sm:$0xf]
      %v256 = vld [vmem:[%s207 + $0x78] sm:$0xf]
      %v257 = vld [vmem:[%s207 + $0x7c] sm:$0xf]
      %v258 = vld [vmem:[%s207 + $0x80] sm:$0xf]
      %v259 = vld [vmem:[%s207 + $0x84] sm:$0xf]
      %v260 = vld [vmem:[%s207 + $0x88] sm:$0xf]
      %v261 = vld [vmem:[%s207 + $0x8c] sm:$0xf]
      %v262 = vld [vmem:[%s207 + $0x90] sm:$0xf]
      %v263 = vld [vmem:[%s207 + $0x94] sm:$0xf]
      %v264 = vld [vmem:[%s207 + $0x98] sm:$0xf]
      %v265 = vld [vmem:[%s207 + $0x9c] sm:$0xf]
      %v266 = vld [vmem:[%s207 + $0xa0] sm:$0xf]
      %v267 = vld [vmem:[%s207 + $0xa4] sm:$0xf]
      %v268 = vld [vmem:[%s207 + $0xa8] sm:$0xf]
      %v269 = vld [vmem:[%s207 + $0xac] sm:$0xf]
      %v270 = vld [vmem:[%s207 + $0xb0] sm:$0xf]
      %v271 = vld [vmem:[%s207 + $0xb4] sm:$0xf]
      %v272 = vld [vmem:[%s207 + $0xb8] sm:$0xf]
      %v273 = vld [vmem:[%s207 + $0xbc] sm:$0xf]
      %v274 = vld [vmem:[%s207 + $0xc0] sm:$0xf]
      %v275 = vld [vmem:[%s207 + $0xc4] sm:$0xf]
      %v276 = vld [vmem:[%s207 + $0xc8] sm:$0xf]
      %v277 = vld [vmem:[%s207 + $0xcc] sm:$0xf]
      %v278 = vld [vmem:[%s207 + $0xd0] sm:$0xf]
      %v279 = vld [vmem:[%s207 + $0xd4] sm:$0xf]
      %v280 = vld [vmem:[%s207 + $0xd8] sm:$0xf]
      %v281 = vld [vmem:[%s207 + $0xdc] sm:$0xf]
      %v282 = vld [vmem:[%s207 + $0xe0] sm:$0xf]
      %v283 = vld [vmem:[%s207 + $0xe4] sm:$0xf]
      %v284 = vld [vmem:[%s207 + $0xe8] sm:$0xf]
      %v285 = vld [vmem:[%s207 + $0xec] sm:$0xf]
      %v286 = vld [vmem:[%s207 + $0xf0] sm:$0xf]
      %v287 = vld [vmem:[%s207 + $0xf4] sm:$0xf]
      %v288 = vld [vmem:[%s207 + $0xf8] sm:$0xf]
      %v289 = vld [vmem:[%s207 + $0xfc] sm:$0xf]
      %v290 = vld [vmem:[%s207 + $0x100] sm:$0xf]
      %v291 = vld [vmem:[%s207 + $0x104] sm:$0xf]
      %v292 = vld [vmem:[%s207 + $0x108] sm:$0xf]
      %v293 = vld [vmem:[%s207 + $0x10c] sm:$0xf]
      %v294 = vld [vmem:[%s207 + $0x110] sm:$0xf]
      %v295 = vld [vmem:[%s207 + $0x114] sm:$0xf]
      %v296 = vld [vmem:[%s207 + $0x118] sm:$0xf]
      %v297 = vld [vmem:[%s207 + $0x11c] sm:$0xf]
      %v298 = vld [vmem:[%s207 + $0x120] sm:$0xf]
      %v299 = vld [vmem:[%s207 + $0x124] sm:$0xf]
      %v300 = vld [vmem:[%s207 + $0x128] sm:$0xf]
      %v301 = vld [vmem:[%s207 + $0x12c] sm:$0xf]
      %v302 = vld [vmem:[%s207 + $0x130] sm:$0xf]
      %v303 = vld [vmem:[%s207 + $0x134] sm:$0xf]
      %v304 = vld [vmem:[%s207 + $0x138] sm:$0xf]
      %v305 = vld [vmem:[%s207 + $0x13c] sm:$0xf]
      %v306 = vld [vmem:[%s207 + $0x140] sm:$0xf]
      %v307 = vld [vmem:[%s212] sm:$0xf]
      %v308 = vld [vmem:[%s212 + $0x4] sm:$0xf]
      %v309 = vld [vmem:[%s212 + $0x8] sm:$0xf]
      %v310 = vld [vmem:[%s212 + $0xc] sm:$0xf]
      %v311 = vld [vmem:[%s212 + $0x10] sm:$0xf]
      %v312 = vld [vmem:[%s212 + $0x14] sm:$0xf]
      %v313 = vld [vmem:[%s212 + $0x18] sm:$0xf]
      %v314 = vld [vmem:[%s212 + $0x1c] sm:$0xf]
      %v315 = vld [vmem:[%s212 + $0x20] sm:$0xf]
      %v316 = vld [vmem:[%s212 + $0x24] sm:$0xf]
      %v317 = vld [vmem:[%s212 + $0x28] sm:$0xf]
      %v318 = vld [vmem:[%s212 + $0x2c] sm:$0xf]
      %v319 = vld [vmem:[%s212 + $0x30] sm:$0xf]
      %v320 = vld [vmem:[%s212 + $0x34] sm:$0xf]
      %v321 = vld [vmem:[%s212 + $0x38] sm:$0xf]
      %v322 = vld [vmem:[%s212 + $0x3c] sm:$0xf]
      %v323 = vld [vmem:[%s215] sm:$0x1]
      %v325 = vlaneseq
      %v326 = vshrl.u32 %v325, 7
      %v327 = vsub.s32 0, %v326
      %v328 = vrot.slane %v323, %v327
      %v411 = vunpack.c.l.b16 %v226
      %v412 = vunpack.c.l.b16 %v227
      %v413 = vunpack.c.l.b16 %v228
      %v414 = vunpack.c.l.b16 %v229
      %v415 = vunpack.c.l.b16 %v230
      %v416 = vunpack.c.l.b16 %v231
      %v417 = vunpack.c.l.b16 %v232
      %v418 = vunpack.c.l.b16 %v233
      %v419 = vunpack.c.l.b16 %v234
      %v420 = vunpack.c.l.b16 %v235
      %v421 = vunpack.c.l.b16 %v236
      %v422 = vunpack.c.l.b16 %v237
      %v423 = vunpack.c.l.b16 %v238
      %v424 = vunpack.c.l.b16 %v239
      %v425 = vunpack.c.l.b16 %v240
      %v426 = vunpack.c.l.b16 %v241
      %v427 = vunpack.c.l.b16 %v242
      %v428 = vunpack.c.l.b16 %v243
      %v429 = vunpack.c.l.b16 %v244
      %v430 = vunpack.c.l.b16 %v245
      %v431 = vunpack.c.l.b16 %v246
      %v432 = vunpack.c.l.b16 %v247
      %v433 = vunpack.c.l.b16 %v248
      %v434 = vunpack.c.l.b16 %v249
      %v435 = vunpack.c.l.b16 %v250
      %v436 = vunpack.c.l.b16 %v251
      %v437 = vunpack.c.l.b16 %v252
      %v438 = vunpack.c.l.b16 %v253
      %v439 = vunpack.c.l.b16 %v254
      %v440 = vunpack.c.l.b16 %v255
      %v441 = vunpack.c.l.b16 %v256
      %v442 = vunpack.c.l.b16 %v257
      %v443 = vunpack.c.l.b16 %v258
      %v444 = vunpack.c.l.b16 %v259
      %v445 = vunpack.c.l.b16 %v260
      %v446 = vunpack.c.l.b16 %v261
      %v447 = vunpack.c.l.b16 %v262
      %v448 = vunpack.c.l.b16 %v263
      %v449 = vunpack.c.l.b16 %v264
      %v450 = vunpack.c.l.b16 %v265
      %v451 = vunpack.c.l.b16 %v266
      %v452 = vunpack.c.l.b16 %v267
      %v453 = vunpack.c.l.b16 %v268
      %v454 = vunpack.c.l.b16 %v269
      %v455 = vunpack.c.l.b16 %v270
      %v456 = vunpack.c.l.b16 %v271
      %v457 = vunpack.c.l.b16 %v272
      %v458 = vunpack.c.l.b16 %v273
      %v459 = vunpack.c.l.b16 %v274
      %v460 = vunpack.c.l.b16 %v275
      %v461 = vunpack.c.l.b16 %v276
      %v462 = vunpack.c.l.b16 %v277
      %v463 = vunpack.c.l.b16 %v278
      %v464 = vunpack.c.l.b16 %v279
      %v465 = vunpack.c.l.b16 %v280
      %v466 = vunpack.c.l.b16 %v281
      %v467 = vunpack.c.l.b16 %v282
      %v468 = vunpack.c.l.b16 %v283
      %v469 = vunpack.c.l.b16 %v284
      %v470 = vunpack.c.l.b16 %v285
      %v471 = vunpack.c.l.b16 %v286
      %v472 = vunpack.c.l.b16 %v287
      %v473 = vunpack.c.l.b16 %v288
      %v474 = vunpack.c.l.b16 %v289
      %v475 = vunpack.c.l.b16 %v290
      %v476 = vunpack.c.l.b16 %v291
      %v477 = vunpack.c.l.b16 %v292
      %v478 = vunpack.c.l.b16 %v293
      %v479 = vunpack.c.l.b16 %v294
      %v480 = vunpack.c.l.b16 %v295
      %v481 = vunpack.c.l.b16 %v296
      %v482 = vunpack.c.l.b16 %v297
      %v483 = vunpack.c.l.b16 %v298
      %v484 = vunpack.c.l.b16 %v299
      %v485 = vunpack.c.l.b16 %v300
      %v486 = vunpack.c.l.b16 %v301
      %v487 = vunpack.c.l.b16 %v302
      %v488 = vunpack.c.l.b16 %v303
      %v489 = vunpack.c.l.b16 %v304
      %v490 = vunpack.c.l.b16 %v305
      %v491 = vunpack.c.l.b16 %v306
      %v492 = vpack.c.b16 %v412, %v411
      %v493 = vpack.c.b16 %v414, %v413
      %v494 = vpack.c.b16 %v416, %v415
      %v495 = vpack.c.b16 %v418, %v417
      %v496 = vpack.c.b16 %v420, %v419
      %v497 = vpack.c.b16 %v422, %v421
      %v498 = vpack.c.b16 %v424, %v423
      %v499 = vpack.c.b16 %v426, %v425
      %v500 = vpack.c.b16 %v428, %v427
      %v501 = vpack.c.b16 %v430, %v429
      %v502 = vpack.c.b16 %v432, %v431
      %v503 = vpack.c.b16 %v434, %v433
      %v504 = vpack.c.b16 %v436, %v435
      %v505 = vpack.c.b16 %v438, %v437
      %v506 = vpack.c.b16 %v440, %v439
      %v507 = vpack.c.b16 %v442, %v441
      %v508 = vpack.c.b16 %v444, %v443
      %v509 = vpack.c.b16 %v446, %v445
      %v510 = vpack.c.b16 %v448, %v447
      %v511 = vpack.c.b16 %v450, %v449
      %v512 = vpack.c.b16 %v452, %v451
      %v513 = vpack.c.b16 %v454, %v453
      %v514 = vpack.c.b16 %v456, %v455
      %v515 = vpack.c.b16 %v458, %v457
      %v516 = vpack.c.b16 %v460, %v459
      %v517 = vpack.c.b16 %v462, %v461
      %v518 = vpack.c.b16 %v464, %v463
      %v519 = vpack.c.b16 %v466, %v465
      %v520 = vpack.c.b16 %v468, %v467
      %v521 = vpack.c.b16 %v470, %v469
      %v522 = vpack.c.b16 %v472, %v471
      %v523 = vpack.c.b16 %v474, %v473
      %v524 = vpack.c.b16 %v476, %v475
      %v525 = vpack.c.b16 %v478, %v477
      %v526 = vpack.c.b16 %v480, %v479
      %v527 = vpack.c.b16 %v482, %v481
      %v528 = vpack.c.b16 %v484, %v483
      %v529 = vpack.c.b16 %v486, %v485
      %v530 = vpack.c.b16 %v488, %v487
      %v531 = vpack.c.b16 %v490, %v489
      %v532 = vpack.c.b16 %v491, %v491
      %v590 = vunpack.c.l.b16 %v307
      %v591 = vunpack.c.l.b16 %v308
      %v592 = vunpack.c.l.b16 %v309
      %v593 = vunpack.c.l.b16 %v310
      %v594 = vunpack.c.l.b16 %v311
      %v595 = vunpack.c.l.b16 %v312
      %v596 = vunpack.c.l.b16 %v313
      %v597 = vunpack.c.l.b16 %v314
      %v598 = vunpack.c.l.b16 %v315
      %v599 = vunpack.c.l.b16 %v316
      %v600 = vunpack.c.l.b16 %v317
      %v601 = vunpack.c.l.b16 %v318
      %v602 = vunpack.c.l.b16 %v319
      %v603 = vunpack.c.l.b16 %v320
      %v604 = vunpack.c.l.b16 %v321
      %v605 = vunpack.c.l.b16 %v322
      %v606 = vpack.c.b16 %v591, %v590
      %v607 = vpack.c.b16 %v593, %v592
      %v608 = vpack.c.b16 %v595, %v594
      %v609 = vpack.c.b16 %v597, %v596
      %v610 = vpack.c.b16 %v599, %v598
      %v611 = vpack.c.b16 %v601, %v600
      %v612 = vpack.c.b16 %v603, %v602
      %v613 = vpack.c.b16 %v605, %v604
      %622 = vmatprep.subr.bf16.mxu0 0
      %623 = vmatpush1.bf16.msra.mxu0 %v606
      %624 = vmatprep.subr.bf16.mxu0 0
      %625 = vmatpush1.bf16.msra.mxu0 %v607
      %626 = vmatprep.subr.bf16.mxu0 0
      %627 = vmatpush1.bf16.msra.mxu0 %v608
      %628 = vmatprep.subr.bf16.mxu0 0
      %629 = vmatpush1.bf16.msra.mxu0 %v609
      %630 = vmatprep.subr.bf16.mxu0 0
      %631 = vmatpush1.bf16.msra.mxu0 %v610
      %632 = vmatprep.subr.bf16.mxu0 0
      %633 = vmatpush1.bf16.msra.mxu0 %v611
      %634 = vmatprep.subr.bf16.mxu0 0
      %635 = vmatpush1.bf16.msra.mxu0 %v612
      %636 = vmatprep.subr.bf16.mxu0 0
      %637 = vmatpush1.bf16.msra.mxu0 %v613
      %638 = vmatprep.subr.bf16.mxu0 0
      %639 = vmatpush1.bf16.msra.mxu0 0
      %640 = vmatprep.subr.bf16.mxu0 0
      %641 = vmatpush1.bf16.msra.mxu0 0
      %642 = vmatprep.subr.bf16.mxu0 0
      %643 = vmatpush1.bf16.msra.mxu0 0
      %644 = vmatprep.subr.bf16.mxu0 0
      %645 = vmatpush1.bf16.msra.mxu0 0
      %646 = vmatprep.subr.bf16.mxu0 0
      %647 = vmatpush1.bf16.msra.mxu0 0
      %648 = vmatprep.subr.bf16.mxu0 0
      %649 = vmatpush1.bf16.msra.mxu0 0
      %650 = vmatprep.subr.bf16.mxu0 0
      %651 = vmatpush1.bf16.msra.mxu0 0
      %652 = vmatprep.subr.bf16.mxu0 0
      %653 = vmatpush1.bf16.msra.mxu0 0
      %654 = vmatprep.mubr.bf16.mxu0 0
      %655 = vmatmul.mubr.bf16.gmra.mrb[0].mxu0 %v492
      %v656 = vpop.f32.mrb[0].mxu0
      %v657 = vadd.f32 %v328, %v656
      %v658 = vpop.f32.mrb[0].mxu0
      %v659 = vpop.f32.mrb[0].mxu0
      %v660 = vadd.f32 %v328, %v659
      %v661 = vpop.f32.mrb[0].mxu0
      %662 = vmatprep.mubr.bf16.mxu0 0
      %663 = vmatmul.mubr.bf16.gmra.mrb[0].mxu0 %v493
      %v664 = vpop.f32.mrb[0].mxu0
      %v665 = vadd.f32 %v328, %v664
      %v666 = vpop.f32.mrb[0].mxu0
      %v667 = vpop.f32.mrb[0].mxu0
      %v668 = vadd.f32 %v328, %v667
      %v669 = vpop.f32.mrb[0].mxu0
      %670 = vmatprep.mubr.bf16.mxu0 0
      %671 = vmatmul.mubr.bf16.gmra.mrb[0].mxu0 %v494
      %v672 = vpop.f32.mrb[0].mxu0
      %v673 = vadd.f32 %v328, %v672
      %v674 = vpop.f32.mrb[0].mxu0
      %v675 = vpop.f32.mrb[0].mxu0
      %v676 = vadd.f32 %v328, %v675
      %v677 = vpop.f32.mrb[0].mxu0
      %678 = vmatprep.mubr.bf16.mxu0 0
      %679 = vmatmul.mubr.bf16.gmra.mrb[0].mxu0 %v495
      %v680 = vpop.f32.mrb[0].mxu0
      %v681 = vadd.f32 %v328, %v680
      %v682 = vpop.f32.mrb[0].mxu0
      %v683 = vpop.f32.mrb[0].mxu0
      %v684 = vadd.f32 %v328, %v683
      %v685 = vpop.f32.mrb[0].mxu0
      %686 = vmatprep.mubr.bf16.mxu0 0
      %687 = vmatmul.mubr.bf16.gmra.mrb[0].mxu0 %v496
      %v688 = vpop.f32.mrb[0].mxu0
      %v689 = vadd.f32 %v328, %v688
      %v690 = vpop.f32.mrb[0].mxu0
      %v691 = vpop.f32.mrb[0].mxu0
      %v692 = vadd.f32 %v328, %v691
      %v693 = vpop.f32.mrb[0].mxu0
      %694 = vmatprep.mubr.bf16.mxu0 0
      %695 = vmatmul.mubr.bf16.gmra.mrb[0].mxu0 %v497
      %v696 = vpop.f32.mrb[0].mxu0
      %v697 = vadd.f32 %v328, %v696
      %v698 = vpop.f32.mrb[0].mxu0
      %v699 = vpop.f32.mrb[0].mxu0
      %v700 = vadd.f32 %v328, %v699
      %v701 = vpop.f32.mrb[0].mxu0
      %702 = vmatprep.mubr.bf16.mxu0 0
      %703 = vmatmul.mubr.bf16.gmra.mrb[0].mxu0 %v498
      %v704 = vpop.f32.mrb[0].mxu0
      %v705 = vadd.f32 %v328, %v704
      %v706 = vpop.f32.mrb[0].mxu0
      %v707 = vpop.f32.mrb[0].mxu0
      %v708 = vadd.f32 %v328, %v707
      %v709 = vpop.f32.mrb[0].mxu0
      %710 = vmatprep.mubr.bf16.mxu0 0
      %711 = vmatmul.mubr.bf16.gmra.mrb[0].mxu0 %v499
      %v712 = vpop.f32.mrb[0].mxu0
      %v713 = vadd.f32 %v328, %v712
      %v714 = vpop.f32.mrb[0].mxu0
      %v715 = vpop.f32.mrb[0].mxu0
      %v716 = vadd.f32 %v328, %v715
      %v717 = vpop.f32.mrb[0].mxu0
      %718 = vmatprep.mubr.bf16.mxu0 0
      %719 = vmatmul.mubr.bf16.gmra.mrb[0].mxu0 %v500
      %v720 = vpop.f32.mrb[0].mxu0
      %v721 = vadd.f32 %v328, %v720
      %v722 = vpop.f32.mrb[0].mxu0
      %v723 = vpop.f32.mrb[0].mxu0
      %v724 = vadd.f32 %v328, %v723
      %v725 = vpop.f32.mrb[0].mxu0
      %726 = vmatprep.mubr.bf16.mxu0 0
      %727 = vmatmul.mubr.bf16.gmra.mrb[0].mxu0 %v501
      %v728 = vpop.f32.mrb[0].mxu0
      %v729 = vadd.f32 %v328, %v728
      %v730 = vpop.f32.mrb[0].mxu0
      %v731 = vpop.f32.mrb[0].mxu0
      %v732 = vadd.f32 %v328, %v731
      %v733 = vpop.f32.mrb[0].mxu0
      %734 = vmatprep.mubr.bf16.mxu0 0
      %735 = vmatmul.mubr.bf16.gmra.mrb[0].mxu0 %v502
      %v736 = vpop.f32.mrb[0].mxu0
      %v737 = vadd.f32 %v328, %v736
      %v738 = vpop.f32.mrb[0].mxu0
      %v739 = vpop.f32.mrb[0].mxu0
      %v740 = vadd.f32 %v328, %v739
      %v741 = vpop.f32.mrb[0].mxu0
      %742 = vmatprep.mubr.bf16.mxu0 0
      %743 = vmatmul.mubr.bf16.gmra.mrb[0].mxu0 %v503
      %v744 = vpop.f32.mrb[0].mxu0
      %v745 = vadd.f32 %v328, %v744
      %v746 = vpop.f32.mrb[0].mxu0
      %v747 = vpop.f32.mrb[0].mxu0
      %v748 = vadd.f32 %v328, %v747
      %v749 = vpop.f32.mrb[0].mxu0
      %750 = vmatprep.mubr.bf16.mxu0 0
      %751 = vmatmul.mubr.bf16.gmra.mrb[0].mxu0 %v504
      %v752 = vpop.f32.mrb[0].mxu0
      %v753 = vadd.f32 %v328, %v752
      %v754 = vpop.f32.mrb[0].mxu0
      %v755 = vpop.f32.mrb[0].mxu0
      %v756 = vadd.f32 %v328, %v755
      %v757 = vpop.f32.mrb[0].mxu0
      %758 = vmatprep.mubr.bf16.mxu0 0
      %759 = vmatmul.mubr.bf16.gmra.mrb[0].mxu0 %v505
      %v760 = vpop.f32.mrb[0].mxu0
      %v761 = vadd.f32 %v328, %v760
      %v762 = vpop.f32.mrb[0].mxu0
      %v763 = vpop.f32.mrb[0].mxu0
      %v764 = vadd.f32 %v328, %v763
      %v765 = vpop.f32.mrb[0].mxu0
      %766 = vmatprep.mubr.bf16.mxu0 0
      %767 = vmatmul.mubr.bf16.gmra.mrb[0].mxu0 %v506
      %v768 = vpop.f32.mrb[0].mxu0
      %v769 = vadd.f32 %v328, %v768
      %v770 = vpop.f32.mrb[0].mxu0
      %v771 = vpop.f32.mrb[0].mxu0
      %v772 = vadd.f32 %v328, %v771
      %v773 = vpop.f32.mrb[0].mxu0
      %774 = vmatprep.mubr.bf16.mxu0 0
      %775 = vmatmul.mubr.bf16.gmra.mrb[0].mxu0 %v507
      %v776 = vpop.f32.mrb[0].mxu0
      %v777 = vadd.f32 %v328, %v776
      %v778 = vpop.f32.mrb[0].mxu0
      %v779 = vpop.f32.mrb[0].mxu0
      %v780 = vadd.f32 %v328, %v779
      %v781 = vpop.f32.mrb[0].mxu0
      %782 = vmatprep.mubr.bf16.mxu0 0
      %783 = vmatmul.mubr.bf16.gmra.mrb[0].mxu0 %v508
      %v784 = vpop.f32.mrb[0].mxu0
      %v785 = vadd.f32 %v328, %v784
      %v786 = vpop.f32.mrb[0].mxu0
      %v787 = vpop.f32.mrb[0].mxu0
      %v788 = vadd.f32 %v328, %v787
      %v789 = vpop.f32.mrb[0].mxu0
      %790 = vmatprep.mubr.bf16.mxu0 0
      %791 = vmatmul.mubr.bf16.gmra.mrb[0].mxu0 %v509
      %v792 = vpop.f32.mrb[0].mxu0
      %v793 = vadd.f32 %v328, %v792
      %v794 = vpop.f32.mrb[0].mxu0
      %v795 = vpop.f32.mrb[0].mxu0
      %v796 = vadd.f32 %v328, %v795
      %v797 = vpop.f32.mrb[0].mxu0
      %798 = vmatprep.mubr.bf16.mxu0 0
      %799 = vmatmul.mubr.bf16.gmra.mrb[0].mxu0 %v510
      %v800 = vpop.f32.mrb[0].mxu0
      %v801 = vadd.f32 %v328, %v800
      %v802 = vpop.f32.mrb[0].mxu0
      %v803 = vpop.f32.mrb[0].mxu0
      %v804 = vadd.f32 %v328, %v803
      %v805 = vpop.f32.mrb[0].mxu0
      %806 = vmatprep.mubr.bf16.mxu0 0
      %807 = vmatmul.mubr.bf16.gmra.mrb[0].mxu0 %v511
      %v808 = vpop.f32.mrb[0].mxu0
      %v809 = vadd.f32 %v328, %v808
      %v810 = vpop.f32.mrb[0].mxu0
      %v811 = vpop.f32.mrb[0].mxu0
      %v812 = vadd.f32 %v328, %v811
      %v813 = vpop.f32.mrb[0].mxu0
      %814 = vmatprep.mubr.bf16.mxu0 0
      %815 = vmatmul.mubr.bf16.gmra.mrb[0].mxu0 %v512
      %v816 = vpop.f32.mrb[0].mxu0
      %v817 = vadd.f32 %v328, %v816
      %v818 = vpop.f32.mrb[0].mxu0
      %v819 = vpop.f32.mrb[0].mxu0
      %v820 = vadd.f32 %v328, %v819
      %v821 = vpop.f32.mrb[0].mxu0
      %822 = vmatprep.mubr.bf16.mxu0 0
      %823 = vmatmul.mubr.bf16.gmra.mrb[0].mxu0 %v513
      %v824 = vpop.f32.mrb[0].mxu0
      %v825 = vadd.f32 %v328, %v824
      %v826 = vpop.f32.mrb[0].mxu0
      %v827 = vpop.f32.mrb[0].mxu0
      %v828 = vadd.f32 %v328, %v827
      %v829 = vpop.f32.mrb[0].mxu0
      %830 = vmatprep.mubr.bf16.mxu0 0
      %831 = vmatmul.mubr.bf16.gmra.mrb[0].mxu0 %v514
      %v832 = vpop.f32.mrb[0].mxu0
      %v833 = vadd.f32 %v328, %v832
      %v834 = vpop.f32.mrb[0].mxu0
      %v835 = vpop.f32.mrb[0].mxu0
      %v836 = vadd.f32 %v328, %v835
      %v837 = vpop.f32.mrb[0].mxu0
      %838 = vmatprep.mubr.bf16.mxu0 0
      %839 = vmatmul.mubr.bf16.gmra.mrb[0].mxu0 %v515
      %v840 = vpop.f32.mrb[0].mxu0
      %v841 = vadd.f32 %v328, %v840
      %v842 = vpop.f32.mrb[0].mxu0
      %v843 = vpop.f32.mrb[0].mxu0
      %v844 = vadd.f32 %v328, %v843
      %v845 = vpop.f32.mrb[0].mxu0
      %846 = vmatprep.mubr.bf16.mxu0 0
      %847 = vmatmul.mubr.bf16.gmra.mrb[0].mxu0 %v516
      %v848 = vpop.f32.mrb[0].mxu0
      %v849 = vadd.f32 %v328, %v848
      %v850 = vpop.f32.mrb[0].mxu0
      %v851 = vpop.f32.mrb[0].mxu0
      %v852 = vadd.f32 %v328, %v851
      %v853 = vpop.f32.mrb[0].mxu0
      %854 = vmatprep.mubr.bf16.mxu0 0
      %855 = vmatmul.mubr.bf16.gmra.mrb[0].mxu0 %v517
      %v856 = vpop.f32.mrb[0].mxu0
      %v857 = vadd.f32 %v328, %v856
      %v858 = vpop.f32.mrb[0].mxu0
      %v859 = vpop.f32.mrb[0].mxu0
      %v860 = vadd.f32 %v328, %v859
      %v861 = vpop.f32.mrb[0].mxu0
      %862 = vmatprep.mubr.bf16.mxu0 0
      %863 = vmatmul.mubr.bf16.gmra.mrb[0].mxu0 %v518
      %v864 = vpop.f32.mrb[0].mxu0
      %v865 = vadd.f32 %v328, %v864
      %v866 = vpop.f32.mrb[0].mxu0
      %v867 = vpop.f32.mrb[0].mxu0
      %v868 = vadd.f32 %v328, %v867
      %v869 = vpop.f32.mrb[0].mxu0
      %870 = vmatprep.mubr.bf16.mxu0 0
      %871 = vmatmul.mubr.bf16.gmra.mrb[0].mxu0 %v519
      %v872 = vpop.f32.mrb[0].mxu0
      %v873 = vadd.f32 %v328, %v872
      %v874 = vpop.f32.mrb[0].mxu0
      %v875 = vpop.f32.mrb[0].mxu0
      %v876 = vadd.f32 %v328, %v875
      %v877 = vpop.f32.mrb[0].mxu0
      %878 = vmatprep.mubr.bf16.mxu0 0
      %879 = vmatmul.mubr.bf16.gmra.mrb[0].mxu0 %v520
      %v880 = vpop.f32.mrb[0].mxu0
      %v881 = vadd.f32 %v328, %v880
      %v882 = vpop.f32.mrb[0].mxu0
      %v883 = vpop.f32.mrb[0].mxu0
      %v884 = vadd.f32 %v328, %v883
      %v885 = vpop.f32.mrb[0].mxu0
      %886 = vmatprep.mubr.bf16.mxu0 0
      %887 = vmatmul.mubr.bf16.gmra.mrb[0].mxu0 %v521
      %v888 = vpop.f32.mrb[0].mxu0
      %v889 = vadd.f32 %v328, %v888
      %v890 = vpop.f32.mrb[0].mxu0
      %v891 = vpop.f32.mrb[0].mxu0
      %v892 = vadd.f32 %v328, %v891
      %v893 = vpop.f32.mrb[0].mxu0
      %894 = vmatprep.mubr.bf16.mxu0 0
      %895 = vmatmul.mubr.bf16.gmra.mrb[0].mxu0 %v522
      %v896 = vpop.f32.mrb[0].mxu0
      %v897 = vadd.f32 %v328, %v896
      %v898 = vpop.f32.mrb[0].mxu0
      %v899 = vpop.f32.mrb[0].mxu0
      %v900 = vadd.f32 %v328, %v899
      %v901 = vpop.f32.mrb[0].mxu0
      %902 = vmatprep.mubr.bf16.mxu0 0
      %903 = vmatmul.mubr.bf16.gmra.mrb[0].mxu0 %v523
      %v904 = vpop.f32.mrb[0].mxu0
      %v905 = vadd.f32 %v328, %v904
      %v906 = vpop.f32.mrb[0].mxu0
      %v907 = vpop.f32.mrb[0].mxu0
      %v908 = vadd.f32 %v328, %v907
      %v909 = vpop.f32.mrb[0].mxu0
      %910 = vmatprep.mubr.bf16.mxu0 0
      %911 = vmatmul.mubr.bf16.gmra.mrb[0].mxu0 %v524
      %v912 = vpop.f32.mrb[0].mxu0
      %v913 = vadd.f32 %v328, %v912
      %v914 = vpop.f32.mrb[0].mxu0
      %v915 = vpop.f32.mrb[0].mxu0
      %v916 = vadd.f32 %v328, %v915
      %v917 = vpop.f32.mrb[0].mxu0
      %918 = vmatprep.mubr.bf16.mxu0 0
      %919 = vmatmul.mubr.bf16.gmra.mrb[0].mxu0 %v525
      %v920 = vpop.f32.mrb[0].mxu0
      %v921 = vadd.f32 %v328, %v920
      %v922 = vpop.f32.mrb[0].mxu0
      %v923 = vpop.f32.mrb[0].mxu0
      %v924 = vadd.f32 %v328, %v923
      %v925 = vpop.f32.mrb[0].mxu0
      %926 = vmatprep.mubr.bf16.mxu0 0
      %927 = vmatmul.mubr.bf16.gmra.mrb[0].mxu0 %v526
      %v928 = vpop.f32.mrb[0].mxu0
      %v929 = vadd.f32 %v328, %v928
      %v930 = vpop.f32.mrb[0].mxu0
      %v931 = vpop.f32.mrb[0].mxu0
      %v932 = vadd.f32 %v328, %v931
      %v933 = vpop.f32.mrb[0].mxu0
      %934 = vmatprep.mubr.bf16.mxu0 0
      %935 = vmatmul.mubr.bf16.gmra.mrb[0].mxu0 %v527
      %v936 = vpop.f32.mrb[0].mxu0
      %v937 = vadd.f32 %v328, %v936
      %v938 = vpop.f32.mrb[0].mxu0
      %v939 = vpop.f32.mrb[0].mxu0
      %v940 = vadd.f32 %v328, %v939
      %v941 = vpop.f32.mrb[0].mxu0
      %942 = vmatprep.mubr.bf16.mxu0 0
      %943 = vmatmul.mubr.bf16.gmra.mrb[0].mxu0 %v528
      %v944 = vpop.f32.mrb[0].mxu0
      %v945 = vadd.f32 %v328, %v944
      %v946 = vpop.f32.mrb[0].mxu0
      %v947 = vpop.f32.mrb[0].mxu0
      %v948 = vadd.f32 %v328, %v947
      %v949 = vpop.f32.mrb[0].mxu0
      %950 = vmatprep.mubr.bf16.mxu0 0
      %951 = vmatmul.mubr.bf16.gmra.mrb[0].mxu0 %v529
      %v952 = vpop.f32.mrb[0].mxu0
      %v953 = vadd.f32 %v328, %v952
      %v954 = vpop.f32.mrb[0].mxu0
      %v955 = vpop.f32.mrb[0].mxu0
      %v956 = vadd.f32 %v328, %v955
      %v957 = vpop.f32.mrb[0].mxu0
      %958 = vmatprep.mubr.bf16.mxu0 0
      %959 = vmatmul.mubr.bf16.gmra.mrb[0].mxu0 %v530
      %v960 = vpop.f32.mrb[0].mxu0
      %v961 = vadd.f32 %v328, %v960
      %v962 = vpop.f32.mrb[0].mxu0
      %v963 = vpop.f32.mrb[0].mxu0
      %v964 = vadd.f32 %v328, %v963
      %v965 = vpop.f32.mrb[0].mxu0
      %966 = vmatprep.mubr.bf16.mxu0 0
      %967 = vmatmul.mubr.bf16.gmra.mrb[0].mxu0 %v531
      %v968 = vpop.f32.mrb[0].mxu0
      %v969 = vadd.f32 %v328, %v968
      %v970 = vpop.f32.mrb[0].mxu0
      %v971 = vpop.f32.mrb[0].mxu0
      %v972 = vadd.f32 %v328, %v971
      %v973 = vpop.f32.mrb[0].mxu0
      %974 = vmatprep.mubr.bf16.mxu0 0
      %975 = vmatmul.mubr.bf16.gmra.mrb[0].mxu0 %v532
      %v976 = vpop.f32.mrb[0].mxu0
      %v977 = vadd.f32 %v328, %v976
      %v978 = vpop.f32.mrb[0].mxu0
      %v979 = vpop.f32.mrb[0].mxu0
      %v980 = vpop.f32.mrb[0].mxu0
      %981 = vdwg.mxu0
      %v982 = vpack.c.bf16 %v660, %v657
      %v983 = vpack.c.bf16 %v668, %v665
      %v984 = vpack.c.bf16 %v676, %v673
      %v985 = vpack.c.bf16 %v684, %v681
      %v986 = vpack.c.bf16 %v692, %v689
      %v987 = vpack.c.bf16 %v700, %v697
      %v988 = vpack.c.bf16 %v708, %v705
      %v989 = vpack.c.bf16 %v716, %v713
      %v990 = vpack.c.bf16 %v724, %v721
      %v991 = vpack.c.bf16 %v732, %v729
      %v992 = vpack.c.bf16 %v740, %v737
      %v993 = vpack.c.bf16 %v748, %v745
      %v994 = vpack.c.bf16 %v756, %v753
      %v995 = vpack.c.bf16 %v764, %v761
      %v996 = vpack.c.bf16 %v772, %v769
      %v997 = vpack.c.bf16 %v780, %v777
      %v998 = vpack.c.bf16 %v788, %v785
      %v999 = vpack.c.bf16 %v796, %v793
      %v1000 = vpack.c.bf16 %v804, %v801
      %v1001 = vpack.c.bf16 %v812, %v809
      %v1002 = vpack.c.bf16 %v820, %v817
      %v1003 = vpack.c.bf16 %v828, %v825
      %v1004 = vpack.c.bf16 %v836, %v833
      %v1005 = vpack.c.bf16 %v844, %v841
      %v1006 = vpack.c.bf16 %v852, %v849
      %v1007 = vpack.c.bf16 %v860, %v857
      %v1008 = vpack.c.bf16 %v868, %v865
      %v1009 = vpack.c.bf16 %v876, %v873
      %v1010 = vpack.c.bf16 %v884, %v881
      %v1011 = vpack.c.bf16 %v892, %v889
      %v1012 = vpack.c.bf16 %v900, %v897
      %v1013 = vpack.c.bf16 %v908, %v905
      %v1014 = vpack.c.bf16 %v916, %v913
      %v1015 = vpack.c.bf16 %v924, %v921
      %v1016 = vpack.c.bf16 %v932, %v929
      %v1017 = vpack.c.bf16 %v940, %v937
      %v1018 = vpack.c.bf16 %v948, %v945
      %v1019 = vpack.c.bf16 %v956, %v953
      %v1020 = vpack.c.bf16 %v964, %v961
      %v1021 = vpack.c.bf16 %v972, %v969
      %v1022 = vpack.c.bf16 %v977, %v977
      %v1064 = vunpack.c.l.b16 %v982
      %v1065 = vunpack.c.h.b16 %v982
      %v1066 = vunpack.c.l.b16 %v983
      %v1067 = vunpack.c.h.b16 %v983
      %v1068 = vunpack.c.l.b16 %v984
      %v1069 = vunpack.c.h.b16 %v984
      %v1070 = vunpack.c.l.b16 %v985
      %v1071 = vunpack.c.h.b16 %v985
      %v1072 = vunpack.c.l.b16 %v986
      %v1073 = vunpack.c.h.b16 %v986
      %v1074 = vunpack.c.l.b16 %v987
      %v1075 = vunpack.c.h.b16 %v987
      %v1076 = vunpack.c.l.b16 %v988
      %v1077 = vunpack.c.h.b16 %v988
      %v1078 = vunpack.c.l.b16 %v989
      %v1079 = vunpack.c.h.b16 %v989
      %v1080 = vunpack.c.l.b16 %v990
      %v1081 = vunpack.c.h.b16 %v990
      %v1082 = vunpack.c.l.b16 %v991
      %v1083 = vunpack.c.h.b16 %v991
      %v1084 = vunpack.c.l.b16 %v992
      %v1085 = vunpack.c.h.b16 %v992
      %v1086 = vunpack.c.l.b16 %v993
      %v1087 = vunpack.c.h.b16 %v993
      %v1088 = vunpack.c.l.b16 %v994
      %v1089 = vunpack.c.h.b16 %v994
      %v1090 = vunpack.c.l.b16 %v995
      %v1091 = vunpack.c.h.b16 %v995
      %v1092 = vunpack.c.l.b16 %v996
      %v1093 = vunpack.c.h.b16 %v996
      %v1094 = vunpack.c.l.b16 %v997
      %v1095 = vunpack.c.h.b16 %v997
      %v1096 = vunpack.c.l.b16 %v998
      %v1097 = vunpack.c.h.b16 %v998
      %v1098 = vunpack.c.l.b16 %v999
      %v1099 = vunpack.c.h.b16 %v999
      %v1100 = vunpack.c.l.b16 %v1000
      %v1101 = vunpack.c.h.b16 %v1000
      %v1102 = vunpack.c.l.b16 %v1001
      %v1103 = vunpack.c.h.b16 %v1001
      %v1104 = vunpack.c.l.b16 %v1002
      %v1105 = vunpack.c.h.b16 %v1002
      %v1106 = vunpack.c.l.b16 %v1003
      %v1107 = vunpack.c.h.b16 %v1003
      %v1108 = vunpack.c.l.b16 %v1004
      %v1109 = vunpack.c.h.b16 %v1004
      %v1110 = vunpack.c.l.b16 %v1005
      %v1111 = vunpack.c.h.b16 %v1005
      %v1112 = vunpack.c.l.b16 %v1006
      %v1113 = vunpack.c.h.b16 %v1006
      %v1114 = vunpack.c.l.b16 %v1007
      %v1115 = vunpack.c.h.b16 %v1007
      %v1116 = vunpack.c.l.b16 %v1008
      %v1117 = vunpack.c.h.b16 %v1008
      %v1118 = vunpack.c.l.b16 %v1009
      %v1119 = vunpack.c.h.b16 %v1009
      %v1120 = vunpack.c.l.b16 %v1010
      %v1121 = vunpack.c.h.b16 %v1010
      %v1122 = vunpack.c.l.b16 %v1011
      %v1123 = vunpack.c.h.b16 %v1011
      %v1124 = vunpack.c.l.b16 %v1012
      %v1125 = vunpack.c.h.b16 %v1012
      %v1126 = vunpack.c.l.b16 %v1013
      %v1127 = vunpack.c.h.b16 %v1013
      %v1128 = vunpack.c.l.b16 %v1014
      %v1129 = vunpack.c.h.b16 %v1014
      %v1130 = vunpack.c.l.b16 %v1015
      %v1131 = vunpack.c.h.b16 %v1015
      %v1132 = vunpack.c.l.b16 %v1016
      %v1133 = vunpack.c.h.b16 %v1016
      %v1134 = vunpack.c.l.b16 %v1017
      %v1135 = vunpack.c.h.b16 %v1017
      %v1136 = vunpack.c.l.b16 %v1018
      %v1137 = vunpack.c.h.b16 %v1018
      %v1138 = vunpack.c.l.b16 %v1019
      %v1139 = vunpack.c.h.b16 %v1019
      %v1140 = vunpack.c.l.b16 %v1020
      %v1141 = vunpack.c.h.b16 %v1020
      %v1142 = vunpack.c.l.b16 %v1021
      %v1143 = vunpack.c.h.b16 %v1021
      %v1144 = vunpack.c.l.b16 %v1022
      %v1145 = vpack.c.b16 %v1064, %v1064
      %v1146 = vpack.c.b16 %v1065, %v1065
      %v1147 = vpack.c.b16 %v1066, %v1066
      %v1148 = vpack.c.b16 %v1067, %v1067
      %v1149 = vpack.c.b16 %v1068, %v1068
      %v1150 = vpack.c.b16 %v1069, %v1069
      %v1151 = vpack.c.b16 %v1070, %v1070
      %v1152 = vpack.c.b16 %v1071, %v1071
      %v1153 = vpack.c.b16 %v1072, %v1072
      %v1154 = vpack.c.b16 %v1073, %v1073
      %v1155 = vpack.c.b16 %v1074, %v1074
      %v1156 = vpack.c.b16 %v1075, %v1075
      %v1157 = vpack.c.b16 %v1076, %v1076
      %v1158 = vpack.c.b16 %v1077, %v1077
      %v1159 = vpack.c.b16 %v1078, %v1078
      %v1160 = vpack.c.b16 %v1079, %v1079
      %v1161 = vpack.c.b16 %v1080, %v1080
      %v1162 = vpack.c.b16 %v1081, %v1081
      %v1163 = vpack.c.b16 %v1082, %v1082
      %v1164 = vpack.c.b16 %v1083, %v1083
      %v1165 = vpack.c.b16 %v1084, %v1084
      %v1166 = vpack.c.b16 %v1085, %v1085
      %v1167 = vpack.c.b16 %v1086, %v1086
      %v1168 = vpack.c.b16 %v1087, %v1087
      %v1169 = vpack.c.b16 %v1088, %v1088
      %v1170 = vpack.c.b16 %v1089, %v1089
      %v1171 = vpack.c.b16 %v1090, %v1090
      %v1172 = vpack.c.b16 %v1091, %v1091
      %v1173 = vpack.c.b16 %v1092, %v1092
      %v1174 = vpack.c.b16 %v1093, %v1093
      %v1175 = vpack.c.b16 %v1094, %v1094
      %v1176 = vpack.c.b16 %v1095, %v1095
      %v1177 = vpack.c.b16 %v1096, %v1096
      %v1178 = vpack.c.b16 %v1097, %v1097
      %v1179 = vpack.c.b16 %v1098, %v1098
      %v1180 = vpack.c.b16 %v1099, %v1099
      %v1181 = vpack.c.b16 %v1100, %v1100
      %v1182 = vpack.c.b16 %v1101, %v1101
      %v1183 = vpack.c.b16 %v1102, %v1102
      %v1184 = vpack.c.b16 %v1103, %v1103
      %v1185 = vpack.c.b16 %v1104, %v1104
      %v1186 = vpack.c.b16 %v1105, %v1105
      %v1187 = vpack.c.b16 %v1106, %v1106
      %v1188 = vpack.c.b16 %v1107, %v1107
      %v1189 = vpack.c.b16 %v1108, %v1108
      %v1190 = vpack.c.b16 %v1109, %v1109
      %v1191 = vpack.c.b16 %v1110, %v1110
      %v1192 = vpack.c.b16 %v1111, %v1111
      %v1193 = vpack.c.b16 %v1112, %v1112
      %v1194 = vpack.c.b16 %v1113, %v1113
      %v1195 = vpack.c.b16 %v1114, %v1114
      %v1196 = vpack.c.b16 %v1115, %v1115
      %v1197 = vpack.c.b16 %v1116, %v1116
      %v1198 = vpack.c.b16 %v1117, %v1117
      %v1199 = vpack.c.b16 %v1118, %v1118
      %v1200 = vpack.c.b16 %v1119, %v1119
      %v1201 = vpack.c.b16 %v1120, %v1120
      %v1202 = vpack.c.b16 %v1121, %v1121
      %v1203 = vpack.c.b16 %v1122, %v1122
      %v1204 = vpack.c.b16 %v1123, %v1123
      %v1205 = vpack.c.b16 %v1124, %v1124
      %v1206 = vpack.c.b16 %v1125, %v1125
      %v1207 = vpack.c.b16 %v1126, %v1126
      %v1208 = vpack.c.b16 %v1127, %v1127
      %v1209 = vpack.c.b16 %v1128, %v1128
      %v1210 = vpack.c.b16 %v1129, %v1129
      %v1211 = vpack.c.b16 %v1130, %v1130
      %v1212 = vpack.c.b16 %v1131, %v1131
      %v1213 = vpack.c.b16 %v1132, %v1132
      %v1214 = vpack.c.b16 %v1133, %v1133
      %v1215 = vpack.c.b16 %v1134, %v1134
      %v1216 = vpack.c.b16 %v1135, %v1135
      %v1217 = vpack.c.b16 %v1136, %v1136
      %v1218 = vpack.c.b16 %v1137, %v1137
      %v1219 = vpack.c.b16 %v1138, %v1138
      %v1220 = vpack.c.b16 %v1139, %v1139
      %v1221 = vpack.c.b16 %v1140, %v1140
      %v1222 = vpack.c.b16 %v1141, %v1141
      %v1223 = vpack.c.b16 %v1142, %v1142
      %v1224 = vpack.c.b16 %v1143, %v1143
      %v1225 = vpack.c.b16 %v1144, %v1144
      %1307 = vst [vmem:[%s223] sm:$0xf] %v1145
      %1308 = vst [vmem:[%s223 + $0x4] sm:$0xf] %v1146
      %1309 = vst [vmem:[%s223 + $0x8] sm:$0xf] %v1147
      %1310 = vst [vmem:[%s223 + $0xc] sm:$0xf] %v1148
      %1311 = vst [vmem:[%s223 + $0x10] sm:$0xf] %v1149
      %1312 = vst [vmem:[%s223 + $0x14] sm:$0xf] %v1150
      %1313 = vst [vmem:[%s223 + $0x18] sm:$0xf] %v1151
      %1314 = vst [vmem:[%s223 + $0x1c] sm:$0xf] %v1152
      %1315 = vst [vmem:[%s223 + $0x20] sm:$0xf] %v1153
      %1316 = vst [vmem:[%s223 + $0x24] sm:$0xf] %v1154
      %1317 = vst [vmem:[%s223 + $0x28] sm:$0xf] %v1155
      %1318 = vst [vmem:[%s223 + $0x2c] sm:$0xf] %v1156
      %1319 = vst [vmem:[%s223 + $0x30] sm:$0xf] %v1157
      %1320 = vst [vmem:[%s223 + $0x34] sm:$0xf] %v1158
      %1321 = vst [vmem:[%s223 + $0x38] sm:$0xf] %v1159
      %1322 = vst [vmem:[%s223 + $0x3c] sm:$0xf] %v1160
      %1323 = vst [vmem:[%s223 + $0x40] sm:$0xf] %v1161
      %1324 = vst [vmem:[%s223 + $0x44] sm:$0xf] %v1162
      %1325 = vst [vmem:[%s223 + $0x48] sm:$0xf] %v1163
      %1326 = vst [vmem:[%s223 + $0x4c] sm:$0xf] %v1164
      %1327 = vst [vmem:[%s223 + $0x50] sm:$0xf] %v1165
      %1328 = vst [vmem:[%s223 + $0x54] sm:$0xf] %v1166
      %1329 = vst [vmem:[%s223 + $0x58] sm:$0xf] %v1167
      %1330 = vst [vmem:[%s223 + $0x5c] sm:$0xf] %v1168
      %1331 = vst [vmem:[%s223 + $0x60] sm:$0xf] %v1169
      %1332 = vst [vmem:[%s223 + $0x64] sm:$0xf] %v1170
      %1333 = vst [vmem:[%s223 + $0x68] sm:$0xf] %v1171
      %1334 = vst [vmem:[%s223 + $0x6c] sm:$0xf] %v1172
      %1335 = vst [vmem:[%s223 + $0x70] sm:$0xf] %v1173
      %1336 = vst [vmem:[%s223 + $0x74] sm:$0xf] %v1174
      %1337 = vst [vmem:[%s223 + $0x78] sm:$0xf] %v1175
      %1338 = vst [vmem:[%s223 + $0x7c] sm:$0xf] %v1176
      %1339 = vst [vmem:[%s223 + $0x80] sm:$0xf] %v1177
      %1340 = vst [vmem:[%s223 + $0x84] sm:$0xf] %v1178
      %1341 = vst [vmem:[%s223 + $0x88] sm:$0xf] %v1179
      %1342 = vst [vmem:[%s223 + $0x8c] sm:$0xf] %v1180
      %1343 = vst [vmem:[%s223 + $0x90] sm:$0xf] %v1181
      %1344 = vst [vmem:[%s223 + $0x94] sm:$0xf] %v1182
      %1345 = vst [vmem:[%s223 + $0x98] sm:$0xf] %v1183
      %1346 = vst [vmem:[%s223 + $0x9c] sm:$0xf] %v1184
      %1347 = vst [vmem:[%s223 + $0xa0] sm:$0xf] %v1185
      %1348 = vst [vmem:[%s223 + $0xa4] sm:$0xf] %v1186
      %1349 = vst [vmem:[%s223 + $0xa8] sm:$0xf] %v1187
      %1350 = vst [vmem:[%s223 + $0xac] sm:$0xf] %v1188
      %1351 = vst [vmem:[%s223 + $0xb0] sm:$0xf] %v1189
      %1352 = vst [vmem:[%s223 + $0xb4] sm:$0xf] %v1190
      %1353 = vst [vmem:[%s223 + $0xb8] sm:$0xf] %v1191
      %1354 = vst [vmem:[%s223 + $0xbc] sm:$0xf] %v1192
      %1355 = vst [vmem:[%s223 + $0xc0] sm:$0xf] %v1193
      %1356 = vst [vmem:[%s223 + $0xc4] sm:$0xf] %v1194
      %1357 = vst [vmem:[%s223 + $0xc8] sm:$0xf] %v1195
      %1358 = vst [vmem:[%s223 + $0xcc] sm:$0xf] %v1196
      %1359 = vst [vmem:[%s223 + $0xd0] sm:$0xf] %v1197
      %1360 = vst [vmem:[%s223 + $0xd4] sm:$0xf] %v1198
      %1361 = vst [vmem:[%s223 + $0xd8] sm:$0xf] %v1199
      %1362 = vst [vmem:[%s223 + $0xdc] sm:$0xf] %v1200
      %1363 = vst [vmem:[%s223 + $0xe0] sm:$0xf] %v1201
      %1364 = vst [vmem:[%s223 + $0xe4] sm:$0xf] %v1202
      %1365 = vst [vmem:[%s223 + $0xe8] sm:$0xf] %v1203
      %1366 = vst [vmem:[%s223 + $0xec] sm:$0xf] %v1204
      %1367 = vst [vmem:[%s223 + $0xf0] sm:$0xf] %v1205
      %1368 = vst [vmem:[%s223 + $0xf4] sm:$0xf] %v1206
      %1369 = vst [vmem:[%s223 + $0xf8] sm:$0xf] %v1207
      %1370 = vst [vmem:[%s223 + $0xfc] sm:$0xf] %v1208
      %1371 = vst [vmem:[%s223 + $0x100] sm:$0xf] %v1209
      %1372 = vst [vmem:[%s223 + $0x104] sm:$0xf] %v1210
      %1373 = vst [vmem:[%s223 + $0x108] sm:$0xf] %v1211
      %1374 = vst [vmem:[%s223 + $0x10c] sm:$0xf] %v1212
      %1375 = vst [vmem:[%s223 + $0x110] sm:$0xf] %v1213
      %1376 = vst [vmem:[%s223 + $0x114] sm:$0xf] %v1214
      %1377 = vst [vmem:[%s223 + $0x118] sm:$0xf] %v1215
      %1378 = vst [vmem:[%s223 + $0x11c] sm:$0xf] %v1216
      %1379 = vst [vmem:[%s223 + $0x120] sm:$0xf] %v1217
      %1380 = vst [vmem:[%s223 + $0x124] sm:$0xf] %v1218
      %1381 = vst [vmem:[%s223 + $0x128] sm:$0xf] %v1219
      %1382 = vst [vmem:[%s223 + $0x12c] sm:$0xf] %v1220
      %1383 = vst [vmem:[%s223 + $0x130] sm:$0xf] %v1221
      %1384 = vst [vmem:[%s223 + $0x134] sm:$0xf] %v1222
      %1385 = vst [vmem:[%s223 + $0x138] sm:$0xf] %v1223
      %1386 = vst [vmem:[%s223 + $0x13c] sm:$0xf] %v1224
      %1387 = vst [vmem:[%s223 + $0x140] sm:$0xf] %v1225
      %s1388 = smul.u32 81, %s18
      %p1389 = scmp.lt.s32.totalorder %s1388, 161
      %s1390 = scalar_select %p1389, %s1388, 161
      %p1391 = scmp.lt.s32.totalorder %s19, 0
      %s1392 = scalar_select %p1391, %s19, 0
      %s1393 = sadd.s32 %s1392, %s1390
      %s1394 = smul.addr %s1393, 4
      %s1395 = scalar_lea.vmem %s3, %s1394
      // Predicated region
      $region33: #{_lambda_.5} parent=31 // pred_check
        %p1396 = pneg %p124
      $region34: #{_lambda_.5} parent=31 // pred_check_branch
        %1398 = sbr.rel (%p1396) target = $region36
      $region35: #{_lambda_.5} parent=31 // pred_region
        %s1399 = smul.u32 81, %s18
      $region36: #{_lambda_.5} parent=31 // pred_fallthru
        _
    $region32: #{_lambda_.5} parent=5 // pred_fallthru
      _
    %p1400 = scmp.le.s32.totalorder 2, %s9
    // Predicated region
    $region37: #{_lambda_.5} parent=5 // pred_check
      %p1401 = pneg %p1400
    $region38: #{_lambda_.5} parent=5 // pred_check_branch
      %1403 = sbr.rel (%p1401) target = $region40
    $region39: #{_lambda_.5} parent=5 // pred_region
      %s1404 = ssub.s32 %s9, 2
      // Predicated region
      $region41: #{_lambda_.5} parent=39 // pred_check
        %p1405 = pneg %p130
      $region42: #{_lambda_.5} parent=39 // pred_check_branch
        %1407 = sbr.rel (%p1405) target = $region44
      $region43: #{_lambda_.5} parent=39 // pred_region
        %s1408 = smul.u32 81, %s20
        %p1409 = scmp.lt.s32.totalorder %s1408, 161
        %s1410 = scalar_select %p1409, %s1408, 161
        %p1411 = scmp.lt.s32.totalorder %s21, 0
        %s1412 = scalar_select %p1411, %s21, 0
        %s1413 = sadd.s32 %s1412, %s1410
        %s1414 = smul.addr %s1413, 4
        %s1415 = scalar_lea.vmem %s3, %s1414
      $region44: #{_lambda_.5} parent=39 // pred_fallthru
        _
    $region40: #{_lambda_.5} parent=5 // pred_fallthru
      _
  $region6: #{_lambda_.5} parent=0 // loop_footer
    %s13 = sadd.s32 1, %s9
  $region7: #{_lambda_.5} parent=0 // loop_footer_branch
    %8 = sbr.rel target = $region3
  $region8: #{_lambda_.5} parent=0 // loop_exit
    _

// kernel: _lambda_.6
$region0: #{_lambda_.6}
  #allocation0 [shape = 'u32[]', space=smem, size = 0x4, offset = 0x4, fixed_abs, tag = 'smem constant byte address 0x4 - core index']
  #allocation1 [shape = 'u32[144,128]{1,0:T(1,128)}', space=vmem, size = 0x12000, scoped, tag = 'internal scratch']
  %s0 = inlined_call_operand.vmem [shape: bf16[256,256], index: 0, kind: input, shape index: {}]
  %s1 = inlined_call_operand.vmem [shape: bf16[256,128], index: 1, kind: input, shape index: {}]
  %s2 = inlined_call_operand.vmem [shape: f32[1,128], index: 2, kind: input, shape index: {}]
  %s3 = inlined_call_operand.vmem [shape: bf16[256,128], index: 3, kind: output, shape index: {}]
  %s4 = sld [smem:[#allocation0]]
  $region22: #{_lambda_.6} parent=0
    _
  %s6 = ssub.s32 1, %s4
  %s7 = scalar_select 0, %s6, %s4
  // Predicated region
  $region2: #{_lambda_.6} parent=0 // pred_check
    _
  $region3: #{_lambda_.6} parent=0 // pred_check_branch
    %9 = sbr.rel (0) target = $region5
  $region4: #{_lambda_.6} parent=0 // pred_region
    _
  $region5: #{_lambda_.6} parent=0 // pred_fallthru
    _
  // Predicated region
  $region6: #{_lambda_.6} parent=0 // pred_check
    _
  $region7: #{_lambda_.6} parent=0 // pred_check_branch
    %11 = sbr.rel (0) target = $region9
  $region8: #{_lambda_.6} parent=0 // pred_region
    _
  $region9: #{_lambda_.6} parent=0 // pred_fallthru
    _
  // Predicated region
  $region10: #{_lambda_.6} parent=0 // pred_check
    _
  $region11: #{_lambda_.6} parent=0 // pred_check_branch
    %13 = sbr.rel (0) target = $region13
  $region12: #{_lambda_.6} parent=0 // pred_region
    _
  $region13: #{_lambda_.6} parent=0 // pred_fallthru
    _
  %v15 = vld [vmem:[%s0] sm:$0xff]
  %v16 = vld [vmem:[%s0 + $0x8] sm:$0xff]
  %v17 = vld [vmem:[%s0 + $0x10] sm:$0xff]
  %v18 = vld [vmem:[%s0 + $0x18] sm:$0xff]
  %v19 = vld [vmem:[%s0 + $0x20] sm:$0xff]
  %v20 = vld [vmem:[%s0 + $0x28] sm:$0xff]
  %v21 = vld [vmem:[%s0 + $0x30] sm:$0xff]
  %v22 = vld [vmem:[%s0 + $0x38] sm:$0xff]
  %v23 = vld [vmem:[%s0 + $0x40] sm:$0xff]
  %v24 = vld [vmem:[%s0 + $0x48] sm:$0xff]
  %v25 = vld [vmem:[%s0 + $0x50] sm:$0xff]
  %v26 = vld [vmem:[%s0 + $0x58] sm:$0xff]
  %v27 = vld [vmem:[%s0 + $0x60] sm:$0xff]
  %v28 = vld [vmem:[%s0 + $0x68] sm:$0xff]
  %v29 = vld [vmem:[%s0 + $0x70] sm:$0xff]
  %v30 = vld [vmem:[%s0 + $0x78] sm:$0xff]
  %v31 = vld [vmem:[%s0 + $0x80] sm:$0xff]
  %v32 = vld [vmem:[%s0 + $0x88] sm:$0xff]
  %v33 = vld [vmem:[%s0 + $0x90] sm:$0xff]
  %v34 = vld [vmem:[%s0 + $0x98] sm:$0xff]
  %v35 = vld [vmem:[%s0 + $0xa0] sm:$0xff]
  %v36 = vld [vmem:[%s0 + $0xa8] sm:$0xff]
  %v37 = vld [vmem:[%s0 + $0xb0] sm:$0xff]
  %v38 = vld [vmem:[%s0 + $0xb8] sm:$0xff]
  %v39 = vld [vmem:[%s0 + $0xc0] sm:$0xff]
  %v40 = vld [vmem:[%s0 + $0xc8] sm:$0xff]
  %v41 = vld [vmem:[%s0 + $0xd0] sm:$0xff]
  %v42 = vld [vmem:[%s0 + $0xd8] sm:$0xff]
  %v43 = vld [vmem:[%s0 + $0xe0] sm:$0xff]
  %v44 = vld [vmem:[%s0 + $0xe8] sm:$0xff]
  %v45 = vld [vmem:[%s0 + $0xf0] sm:$0xff]
  %v46 = vld [vmem:[%s0 + $0xf8] sm:$0xff]
  %v47 = vld [vmem:[%s1] sm:$0xf]
  %v48 = vld [vmem:[%s1 + $0x4] sm:$0xf]
  %v49 = vld [vmem:[%s1 + $0x8] sm:$0xf]
  %v50 = vld [vmem:[%s1 + $0xc] sm:$0xf]
  %v51 = vld [vmem:[%s1 + $0x10] sm:$0xf]
  %v52 = vld [vmem:[%s1 + $0x14] sm:$0xf]
  %v53 = vld [vmem:[%s1 + $0x18] sm:$0xf]
  %v54 = vld [vmem:[%s1 + $0x1c] sm:$0xf]
  %v55 = vld [vmem:[%s1 + $0x20] sm:$0xf]
  %v56 = vld [vmem:[%s1 + $0x24] sm:$0xf]
  %v57 = vld [vmem:[%s1 + $0x28] sm:$0xf]
  %v58 = vld [vmem:[%s1 + $0x2c] sm:$0xf]
  %v59 = vld [vmem:[%s1 + $0x30] sm:$0xf]
  %v60 = vld [vmem:[%s1 + $0x34] sm:$0xf]
  %v61 = vld [vmem:[%s1 + $0x38] sm:$0xf]
  %v62 = vld [vmem:[%s1 + $0x3c] sm:$0xf]
  %v63 = vld [vmem:[%s1 + $0x40] sm:$0xf]
  %v64 = vld [vmem:[%s1 + $0x44] sm:$0xf]
  %v65 = vld [vmem:[%s1 + $0x48] sm:$0xf]
  %v66 = vld [vmem:[%s1 + $0x4c] sm:$0xf]
  %v67 = vld [vmem:[%s1 + $0x50] sm:$0xf]
  %v68 = vld [vmem:[%s1 + $0x54] sm:$0xf]
  %v69 = vld [vmem:[%s1 + $0x58] sm:$0xf]
  %v70 = vld [vmem:[%s1 + $0x5c] sm:$0xf]
  %v71 = vld [vmem:[%s1 + $0x60] sm:$0xf]
  %v72 = vld [vmem:[%s1 + $0x64] sm:$0xf]
  %v73 = vld [vmem:[%s1 + $0x68] sm:$0xf]
  %v74 = vld [vmem:[%s1 + $0x6c] sm:$0xf]
  %v75 = vld [vmem:[%s1 + $0x70] sm:$0xf]
  %v76 = vld [vmem:[%s1 + $0x74] sm:$0xf]
  %v77 = vld [vmem:[%s1 + $0x78] sm:$0xf]
  %v78 = vld [vmem:[%s1 + $0x7c] sm:$0xf]
  %v79 = vld [vmem:[%s2] sm:$0x1]
  %v81 = vlaneseq
  %v82 = vshrl.u32 %v81, 7
  %v83 = vsub.s32 0, %v82
  %v84 = vrot.slane %v79, %v83
  %v118 = vunpack.c.l.b16 %v15
  %v119 = vunpack.c.h.b16 %v15
  %v120 = vunpack.c.l.b16 %v16
  %v121 = vunpack.c.h.b16 %v16
  %v122 = vunpack.c.l.b16 %v17
  %v123 = vunpack.c.h.b16 %v17
  %v124 = vunpack.c.l.b16 %v18
  %v125 = vunpack.c.h.b16 %v18
  %v126 = vunpack.c.l.b16 %v19
  %v127 = vunpack.c.h.b16 %v19
  %v128 = vunpack.c.l.b16 %v20
  %v129 = vunpack.c.h.b16 %v20
  %v130 = vunpack.c.l.b16 %v21
  %v131 = vunpack.c.h.b16 %v21
  %v132 = vunpack.c.l.b16 %v22
  %v133 = vunpack.c.h.b16 %v22
  %v134 = vunpack.c.l.b16 %v23
  %v135 = vunpack.c.h.b16 %v23
  %v136 = vunpack.c.l.b16 %v24
  %v137 = vunpack.c.h.b16 %v24
  %v138 = vunpack.c.l.b16 %v25
  %v139 = vunpack.c.h.b16 %v25
  %v140 = vunpack.c.l.b16 %v26
  %v141 = vunpack.c.h.b16 %v26
  %v142 = vunpack.c.l.b16 %v27
  %v143 = vunpack.c.h.b16 %v27
  %v144 = vunpack.c.l.b16 %v28
  %v145 = vunpack.c.h.b16 %v28
  %v146 = vunpack.c.l.b16 %v29
  %v147 = vunpack.c.h.b16 %v29
  %v148 = vunpack.c.l.b16 %v30
  %v149 = vunpack.c.h.b16 %v30
  %v150 = vunpack.c.l.b16 %v31
  %v151 = vunpack.c.h.b16 %v31
  %v152 = vunpack.c.l.b16 %v32
  %v153 = vunpack.c.h.b16 %v32
  %v154 = vunpack.c.l.b16 %v33
  %v155 = vunpack.c.h.b16 %v33
  %v156 = vunpack.c.l.b16 %v34
  %v157 = vunpack.c.h.b16 %v34
  %v158 = vunpack.c.l.b16 %v35
  %v159 = vunpack.c.h.b16 %v35
  %v160 = vunpack.c.l.b16 %v36
  %v161 = vunpack.c.h.b16 %v36
  %v162 = vunpack.c.l.b16 %v37
  %v163 = vunpack.c.h.b16 %v37
  %v164 = vunpack.c.l.b16 %v38
  %v165 = vunpack.c.h.b16 %v38
  %v166 = vunpack.c.l.b16 %v39
  %v167 = vunpack.c.h.b16 %v39
  %v168 = vunpack.c.l.b16 %v40
  %v169 = vunpack.c.h.b16 %v40
  %v170 = vunpack.c.l.b16 %v41
  %v171 = vunpack.c.h.b16 %v41
  %v172 = vunpack.c.l.b16 %v42
  %v173 = vunpack.c.h.b16 %v42
  %v174 = vunpack.c.l.b16 %v43
  %v175 = vunpack.c.h.b16 %v43
  %v176 = vunpack.c.l.b16 %v44
  %v177 = vunpack.c.h.b16 %v44
  %v178 = vunpack.c.l.b16 %v45
  %v179 = vunpack.c.h.b16 %v45
  %v180 = vunpack.c.l.b16 %v46
  %v181 = vunpack.c.h.b16 %v46
  %v182 = vpack.c.b16 %v120, %v118
  %v183 = vpack.c.b16 %v121, %v119
  %v184 = vpack.c.b16 %v124, %v122
  %v185 = vpack.c.b16 %v125, %v123
  %v186 = vpack.c.b16 %v128, %v126
  %v187 = vpack.c.b16 %v129, %v127
  %v188 = vpack.c.b16 %v132, %v130
  %v189 = vpack.c.b16 %v133, %v131
  %v190 = vpack.c.b16 %v136, %v134
  %v191 = vpack.c.b16 %v137, %v135
  %v192 = vpack.c.b16 %v140, %v138
  %v193 = vpack.c.b16 %v141, %v139
  %v194 = vpack.c.b16 %v144, %v142
  %v195 = vpack.c.b16 %v145, %v143
  %v196 = vpack.c.b16 %v148, %v146
  %v197 = vpack.c.b16 %v149, %v147
  %v198 = vpack.c.b16 %v152, %v150
  %v199 = vpack.c.b16 %v153, %v151
  %v200 = vpack.c.b16 %v156, %v154
  %v201 = vpack.c.b16 %v157, %v155
  %v202 = vpack.c.b16 %v160, %v158
  %v203 = vpack.c.b16 %v161, %v159
  %v204 = vpack.c.b16 %v164, %v162
  %v205 = vpack.c.b16 %v165, %v163
  %v206 = vpack.c.b16 %v168, %v166
  %v207 = vpack.c.b16 %v169, %v167
  %v208 = vpack.c.b16 %v172, %v170
  %v209 = vpack.c.b16 %v173, %v171
  %v210 = vpack.c.b16 %v176, %v174
  %v211 = vpack.c.b16 %v177, %v175
  %v212 = vpack.c.b16 %v180, %v178
  %v213 = vpack.c.b16 %v181, %v179
  %v278 = vunpack.c.l.b16 %v47
  %v279 = vunpack.c.l.b16 %v48
  %v280 = vunpack.c.l.b16 %v49
  %v281 = vunpack.c.l.b16 %v50
  %v282 = vunpack.c.l.b16 %v51
  %v283 = vunpack.c.l.b16 %v52
  %v284 = vunpack.c.l.b16 %v53
  %v285 = vunpack.c.l.b16 %v54
  %v286 = vunpack.c.l.b16 %v55
  %v287 = vunpack.c.l.b16 %v56
  %v288 = vunpack.c.l.b16 %v57
  %v289 = vunpack.c.l.b16 %v58
  %v290 = vunpack.c.l.b16 %v59
  %v291 = vunpack.c.l.b16 %v60
  %v292 = vunpack.c.l.b16 %v61
  %v293 = vunpack.c.l.b16 %v62
  %v294 = vunpack.c.l.b16 %v63
  %v295 = vunpack.c.l.b16 %v64
  %v296 = vunpack.c.l.b16 %v65
  %v297 = vunpack.c.l.b16 %v66
  %v298 = vunpack.c.l.b16 %v67
  %v299 = vunpack.c.l.b16 %v68
  %v300 = vunpack.c.l.b16 %v69
  %v301 = vunpack.c.l.b16 %v70
  %v302 = vunpack.c.l.b16 %v71
  %v303 = vunpack.c.l.b16 %v72
  %v304 = vunpack.c.l.b16 %v73
  %v305 = vunpack.c.l.b16 %v74
  %v306 = vunpack.c.l.b16 %v75
  %v307 = vunpack.c.l.b16 %v76
  %v308 = vunpack.c.l.b16 %v77
  %v309 = vunpack.c.l.b16 %v78
  %v310 = vpack.c.b16 %v279, %v278
  %v311 = vpack.c.b16 %v281, %v280
  %v312 = vpack.c.b16 %v283, %v282
  %v313 = vpack.c.b16 %v285, %v284
  %v314 = vpack.c.b16 %v287, %v286
  %v315 = vpack.c.b16 %v289, %v288
  %v316 = vpack.c.b16 %v291, %v290
  %v317 = vpack.c.b16 %v293, %v292
  %v318 = vpack.c.b16 %v295, %v294
  %v319 = vpack.c.b16 %v297, %v296
  %v320 = vpack.c.b16 %v299, %v298
  %v321 = vpack.c.b16 %v301, %v300
  %v322 = vpack.c.b16 %v303, %v302
  %v323 = vpack.c.b16 %v305, %v304
  %v324 = vpack.c.b16 %v307, %v306
  %v325 = vpack.c.b16 %v309, %v308
  %342 = vmatprep.subr.bf16.mxu0 0
  %343 = vmatpush1.bf16.msra.mxu0 %v310
  %344 = vmatprep.subr.bf16.mxu0 0
  %345 = vmatpush1.bf16.msra.mxu0 %v311
  %346 = vmatprep.subr.bf16.mxu0 0
  %347 = vmatpush1.bf16.msra.mxu0 %v312
  %348 = vmatprep.subr.bf16.mxu0 0
  %349 = vmatpush1.bf16.msra.mxu0 %v313
  %350 = vmatprep.subr.bf16.mxu0 0
  %351 = vmatpush1.bf16.msra.mxu0 %v314
  %352 = vmatprep.subr.bf16.mxu0 0
  %353 = vmatpush1.bf16.msra.mxu0 %v315
  %354 = vmatprep.subr.bf16.mxu0 0
  %355 = vmatpush1.bf16.msra.mxu0 %v316
  %356 = vmatprep.subr.bf16.mxu0 0
  %357 = vmatpush1.bf16.msra.mxu0 %v317
  %358 = vmatprep.subr.bf16.mxu0 0
  %359 = vmatpush1.bf16.msra.mxu0 %v318
  %360 = vmatprep.subr.bf16.mxu0 0
  %361 = vmatpush1.bf16.msra.mxu0 %v319
  %362 = vmatprep.subr.bf16.mxu0 0
  %363 = vmatpush1.bf16.msra.mxu0 %v320
  %364 = vmatprep.subr.bf16.mxu0 0
  %365 = vmatpush1.bf16.msra.mxu0 %v321
  %366 = vmatprep.subr.bf16.mxu0 0
  %367 = vmatpush1.bf16.msra.mxu0 %v322
  %368 = vmatprep.subr.bf16.mxu0 0
  %369 = vmatpush1.bf16.msra.mxu0 %v323
  %370 = vmatprep.subr.bf16.mxu0 0
  %371 = vmatpush1.bf16.msra.mxu0 %v324
  %372 = vmatprep.subr.bf16.mxu0 0
  %373 = vmatpush1.bf16.msra.mxu0 %v325
  %374 = vmatprep.mubr.bf16.mxu0 %v183
  %375 = vmatmul.mubr.bf16.gmra.mrb[0].mxu0 %v182
  %v376 = vpop.f32.mrb[0].mxu0
  %v377 = vadd.f32 %v84, %v376
  %v378 = vpop.f32.mrb[0].mxu0
  %v379 = vpop.f32.mrb[0].mxu0
  %v380 = vadd.f32 %v84, %v379
  %v381 = vpop.f32.mrb[0].mxu0
  %382 = vmatprep.mubr.bf16.mxu0 %v185
  %383 = vmatmul.mubr.bf16.gmra.mrb[0].mxu0 %v184
  %v384 = vpop.f32.mrb[0].mxu0
  %v385 = vadd.f32 %v84, %v384
  %v386 = vpop.f32.mrb[0].mxu0
  %v387 = vpop.f32.mrb[0].mxu0
  %v388 = vadd.f32 %v84, %v387
  %v389 = vpop.f32.mrb[0].mxu0
  %390 = vmatprep.mubr.bf16.mxu0 %v187
  %391 = vmatmul.mubr.bf16.gmra.mrb[0].mxu0 %v186
  %v392 = vpop.f32.mrb[0].mxu0
  %v393 = vadd.f32 %v84, %v392
  %v394 = vpop.f32.mrb[0].mxu0
  %v395 = vpop.f32.mrb[0].mxu0
  %v396 = vadd.f32 %v84, %v395
  %v397 = vpop.f32.mrb[0].mxu0
  %398 = vmatprep.mubr.bf16.mxu0 %v189
  %399 = vmatmul.mubr.bf16.gmra.mrb[0].mxu0 %v188
  %v400 = vpop.f32.mrb[0].mxu0
  %v401 = vadd.f32 %v84, %v400
  %v402 = vpop.f32.mrb[0].mxu0
  %v403 = vpop.f32.mrb[0].mxu0
  %v404 = vadd.f32 %v84, %v403
  %v405 = vpop.f32.mrb[0].mxu0
  %406 = vmatprep.mubr.bf16.mxu0 %v191
  %407 = vmatmul.mubr.bf16.gmra.mrb[0].mxu0 %v190
  %v408 = vpop.f32.mrb[0].mxu0
  %v409 = vadd.f32 %v84, %v408
  %v410 = vpop.f32.mrb[0].mxu0
  %v411 = vpop.f32.mrb[0].mxu0
  %v412 = vadd.f32 %v84, %v411
  %v413 = vpop.f32.mrb[0].mxu0
  %414 = vmatprep.mubr.bf16.mxu0 %v193
  %415 = vmatmul.mubr.bf16.gmra.mrb[0].mxu0 %v192
  %v416 = vpop.f32.mrb[0].mxu0
  %v417 = vadd.f32 %v84, %v416
  %v418 = vpop.f32.mrb[0].mxu0
  %v419 = vpop.f32.mrb[0].mxu0
  %v420 = vadd.f32 %v84, %v419
  %v421 = vpop.f32.mrb[0].mxu0
  %422 = vmatprep.mubr.bf16.mxu0 %v195
  %423 = vmatmul.mubr.bf16.gmra.mrb[0].mxu0 %v194
  %v424 = vpop.f32.mrb[0].mxu0
  %v425 = vadd.f32 %v84, %v424
  %v426 = vpop.f32.mrb[0].mxu0
  %v427 = vpop.f32.mrb[0].mxu0
  %v428 = vadd.f32 %v84, %v427
  %v429 = vpop.f32.mrb[0].mxu0
  %430 = vmatprep.mubr.bf16.mxu0 %v197
  %431 = vmatmul.mubr.bf16.gmra.mrb[0].mxu0 %v196
  %v432 = vpop.f32.mrb[0].mxu0
  %v433 = vadd.f32 %v84, %v432
  %v434 = vpop.f32.mrb[0].mxu0
  %v435 = vpop.f32.mrb[0].mxu0
  %v436 = vadd.f32 %v84, %v435
  %v437 = vpop.f32.mrb[0].mxu0
  %438 = vmatprep.mubr.bf16.mxu0 %v199
  %439 = vmatmul.mubr.bf16.gmra.mrb[0].mxu0 %v198
  %v440 = vpop.f32.mrb[0].mxu0
  %v441 = vadd.f32 %v84, %v440
  %v442 = vpop.f32.mrb[0].mxu0
  %v443 = vpop.f32.mrb[0].mxu0
  %v444 = vadd.f32 %v84, %v443
  %v445 = vpop.f32.mrb[0].mxu0
  %446 = vmatprep.mubr.bf16.mxu0 %v201
  %447 = vmatmul.mubr.bf16.gmra.mrb[0].mxu0 %v200
  %v448 = vpop.f32.mrb[0].mxu0
  %v449 = vadd.f32 %v84, %v448
  %v450 = vpop.f32.mrb[0].mxu0
  %v451 = vpop.f32.mrb[0].mxu0
  %v452 = vadd.f32 %v84, %v451
  %v453 = vpop.f32.mrb[0].mxu0
  %454 = vmatprep.mubr.bf16.mxu0 %v203
  %455 = vmatmul.mubr.bf16.gmra.mrb[0].mxu0 %v202
  %v456 = vpop.f32.mrb[0].mxu0
  %v457 = vadd.f32 %v84, %v456
  %v458 = vpop.f32.mrb[0].mxu0
  %v459 = vpop.f32.mrb[0].mxu0
  %v460 = vadd.f32 %v84, %v459
  %v461 = vpop.f32.mrb[0].mxu0
  %462 = vmatprep.mubr.bf16.mxu0 %v205
  %463 = vmatmul.mubr.bf16.gmra.mrb[0].mxu0 %v204
  %v464 = vpop.f32.mrb[0].mxu0
  %v465 = vadd.f32 %v84, %v464
  %v466 = vpop.f32.mrb[0].mxu0
  %v467 = vpop.f32.mrb[0].mxu0
  %v468 = vadd.f32 %v84, %v467
  %v469 = vpop.f32.mrb[0].mxu0
  %470 = vmatprep.mubr.bf16.mxu0 %v207
  %471 = vmatmul.mubr.bf16.gmra.mrb[0].mxu0 %v206
  %v472 = vpop.f32.mrb[0].mxu0
  %v473 = vadd.f32 %v84, %v472
  %v474 = vpop.f32.mrb[0].mxu0
  %v475 = vpop.f32.mrb[0].mxu0
  %v476 = vadd.f32 %v84, %v475
  %v477 = vpop.f32.mrb[0].mxu0
  %478 = vmatprep.mubr.bf16.mxu0 %v209
  %479 = vmatmul.mubr.bf16.gmra.mrb[0].mxu0 %v208
  %v480 = vpop.f32.mrb[0].mxu0
  %v481 = vadd.f32 %v84, %v480
  %v482 = vpop.f32.mrb[0].mxu0
  %v483 = vpop.f32.mrb[0].mxu0
  %v484 = vadd.f32 %v84, %v483
  %v485 = vpop.f32.mrb[0].mxu0
  %486 = vmatprep.mubr.bf16.mxu0 %v211
  %487 = vmatmul.mubr.bf16.gmra.mrb[0].mxu0 %v210
  %v488 = vpop.f32.mrb[0].mxu0
  %v489 = vadd.f32 %v84, %v488
  %v490 = vpop.f32.mrb[0].mxu0
  %v491 = vpop.f32.mrb[0].mxu0
  %v492 = vadd.f32 %v84, %v491
  %v493 = vpop.f32.mrb[0].mxu0
  %494 = vmatprep.mubr.bf16.mxu0 %v213
  %495 = vmatmul.mubr.bf16.gmra.mrb[0].mxu0 %v212
  %v496 = vpop.f32.mrb[0].mxu0
  %v497 = vadd.f32 %v84, %v496
  %v498 = vpop.f32.mrb[0].mxu0
  %v499 = vpop.f32.mrb[0].mxu0
  %v500 = vadd.f32 %v84, %v499
  %v501 = vpop.f32.mrb[0].mxu0
  %502 = vdwg.mxu0
  %v503 = vmax.f32 %v377, 0.0
  %v504 = vmax.f32 %v380, 0.0
  %v505 = vmax.f32 %v385, 0.0
  %v506 = vmax.f32 %v388, 0.0
  %v507 = vmax.f32 %v393, 0.0
  %v508 = vmax.f32 %v396, 0.0
  %v509 = vmax.f32 %v401, 0.0
  %v510 = vmax.f32 %v404, 0.0
  %v511 = vmax.f32 %v409, 0.0
  %v512 = vmax.f32 %v412, 0.0
  %v513 = vmax.f32 %v417, 0.0
  %v514 = vmax.f32 %v420, 0.0
  %v515 = vmax.f32 %v425, 0.0
  %v516 = vmax.f32 %v428, 0.0
  %v517 = vmax.f32 %v433, 0.0
  %v518 = vmax.f32 %v436, 0.0
  %v519 = vmax.f32 %v441, 0.0
  %v520 = vmax.f32 %v444, 0.0
  %v521 = vmax.f32 %v449, 0.0
  %v522 = vmax.f32 %v452, 0.0
  %v523 = vmax.f32 %v457, 0.0
  %v524 = vmax.f32 %v460, 0.0
  %v525 = vmax.f32 %v465, 0.0
  %v526 = vmax.f32 %v468, 0.0
  %v527 = vmax.f32 %v473, 0.0
  %v528 = vmax.f32 %v476, 0.0
  %v529 = vmax.f32 %v481, 0.0
  %v530 = vmax.f32 %v484, 0.0
  %v531 = vmax.f32 %v489, 0.0
  %v532 = vmax.f32 %v492, 0.0
  %v533 = vmax.f32 %v497, 0.0
  %v534 = vmax.f32 %v500, 0.0
  %v535 = vpack.c.bf16 %v504, %v503
  %v536 = vpack.c.bf16 %v506, %v505
  %v537 = vpack.c.bf16 %v508, %v507
  %v538 = vpack.c.bf16 %v510, %v509
  %v539 = vpack.c.bf16 %v512, %v511
  %v540 = vpack.c.bf16 %v514, %v513
  %v541 = vpack.c.bf16 %v516, %v515
  %v542 = vpack.c.bf16 %v518, %v517
  %v543 = vpack.c.bf16 %v520, %v519
  %v544 = vpack.c.bf16 %v522, %v521
  %v545 = vpack.c.bf16 %v524, %v523
  %v546 = vpack.c.bf16 %v526, %v525
  %v547 = vpack.c.bf16 %v528, %v527
  %v548 = vpack.c.bf16 %v530, %v529
  %v549 = vpack.c.bf16 %v532, %v531
  %v550 = vpack.c.bf16 %v534, %v533
  %v567 = vunpack.c.l.b16 %v535
  %v568 = vunpack.c.h.b16 %v535
  %v569 = vunpack.c.l.b16 %v536
  %v570 = vunpack.c.h.b16 %v536
  %v571 = vunpack.c.l.b16 %v537
  %v572 = vunpack.c.h.b16 %v537
  %v573 = vunpack.c.l.b16 %v538
  %v574 = vunpack.c.h.b16 %v538
  %v575 = vunpack.c.l.b16 %v539
  %v576 = vunpack.c.h.b16 %v539
  %v577 = vunpack.c.l.b16 %v540
  %v578 = vunpack.c.h.b16 %v540
  %v579 = vunpack.c.l.b16 %v541
  %v580 = vunpack.c.h.b16 %v541
  %v581 = vunpack.c.l.b16 %v542
  %v582 = vunpack.c.h.b16 %v542
  %v583 = vunpack.c.l.b16 %v543
  %v584 = vunpack.c.h.b16 %v543
  %v585 = vunpack.c.l.b16 %v544
  %v586 = vunpack.c.h.b16 %v544
  %v587 = vunpack.c.l.b16 %v545
  %v588 = vunpack.c.h.b16 %v545
  %v589 = vunpack.c.l.b16 %v546
  %v590 = vunpack.c.h.b16 %v546
  %v591 = vunpack.c.l.b16 %v547
  %v592 = vunpack.c.h.b16 %v547
  %v593 = vunpack.c.l.b16 %v548
  %v594 = vunpack.c.h.b16 %v548
  %v595 = vunpack.c.l.b16 %v549
  %v596 = vunpack.c.h.b16 %v549
  %v597 = vunpack.c.l.b16 %v550
  %v598 = vunpack.c.h.b16 %v550
  %v599 = vpack.c.b16 %v567, %v567
  %v600 = vpack.c.b16 %v568, %v568
  %v601 = vpack.c.b16 %v569, %v569
  %v602 = vpack.c.b16 %v570, %v570
  %v603 = vpack.c.b16 %v571, %v571
  %v604 = vpack.c.b16 %v572, %v572
  %v605 = vpack.c.b16 %v573, %v573
  %v606 = vpack.c.b16 %v574, %v574
  %v607 = vpack.c.b16 %v575, %v575
  %v608 = vpack.c.b16 %v576, %v576
  %v609 = vpack.c.b16 %v577, %v577
  %v610 = vpack.c.b16 %v578, %v578
  %v611 = vpack.c.b16 %v579, %v579
  %v612 = vpack.c.b16 %v580, %v580
  %v613 = vpack.c.b16 %v581, %v581
  %v614 = vpack.c.b16 %v582, %v582
  %v615 = vpack.c.b16 %v583, %v583
  %v616 = vpack.c.b16 %v584, %v584
  %v617 = vpack.c.b16 %v585, %v585
  %v618 = vpack.c.b16 %v586, %v586
  %v619 = vpack.c.b16 %v587, %v587
  %v620 = vpack.c.b16 %v588, %v588
  %v621 = vpack.c.b16 %v589, %v589
  %v622 = vpack.c.b16 %v590, %v590
  %v623 = vpack.c.b16 %v591, %v591
  %v624 = vpack.c.b16 %v592, %v592
  %v625 = vpack.c.b16 %v593, %v593
  %v626 = vpack.c.b16 %v594, %v594
  %v627 = vpack.c.b16 %v595, %v595
  %v628 = vpack.c.b16 %v596, %v596
  %v629 = vpack.c.b16 %v597, %v597
  %v630 = vpack.c.b16 %v598, %v598
  %663 = vst [vmem:[%s3] sm:$0xf] %v599
  %664 = vst [vmem:[%s3 + $0x4] sm:$0xf] %v600
  %665 = vst [vmem:[%s3 + $0x8] sm:$0xf] %v601
  %666 = vst [vmem:[%s3 + $0xc] sm:$0xf] %v602
  %667 = vst [vmem:[%s3 + $0x10] sm:$0xf] %v603
  %668 = vst [vmem:[%s3 + $0x14] sm:$0xf] %v604
  %669 = vst [vmem:[%s3 + $0x18] sm:$0xf] %v605
  %670 = vst [vmem:[%s3 + $0x1c] sm:$0xf] %v606
  %671 = vst [vmem:[%s3 + $0x20] sm:$0xf] %v607
  %672 = vst [vmem:[%s3 + $0x24] sm:$0xf] %v608
  %673 = vst [vmem:[%s3 + $0x28] sm:$0xf] %v609
  %674 = vst [vmem:[%s3 + $0x2c] sm:$0xf] %v610
  %675 = vst [vmem:[%s3 + $0x30] sm:$0xf] %v611
  %676 = vst [vmem:[%s3 + $0x34] sm:$0xf] %v612
  %677 = vst [vmem:[%s3 + $0x38] sm:$0xf] %v613
  %678 = vst [vmem:[%s3 + $0x3c] sm:$0xf] %v614
  %679 = vst [vmem:[%s3 + $0x40] sm:$0xf] %v615
  %680 = vst [vmem:[%s3 + $0x44] sm:$0xf] %v616
  %681 = vst [vmem:[%s3 + $0x48] sm:$0xf] %v617
  %682 = vst [vmem:[%s3 + $0x4c] sm:$0xf] %v618
  %683 = vst [vmem:[%s3 + $0x50] sm:$0xf] %v619
  %684 = vst [vmem:[%s3 + $0x54] sm:$0xf] %v620
  %685 = vst [vmem:[%s3 + $0x58] sm:$0xf] %v621
  %686 = vst [vmem:[%s3 + $0x5c] sm:$0xf] %v622
  %687 = vst [vmem:[%s3 + $0x60] sm:$0xf] %v623
  %688 = vst [vmem:[%s3 + $0x64] sm:$0xf] %v624
  %689 = vst [vmem:[%s3 + $0x68] sm:$0xf] %v625
  %690 = vst [vmem:[%s3 + $0x6c] sm:$0xf] %v626
  %691 = vst [vmem:[%s3 + $0x70] sm:$0xf] %v627
  %692 = vst [vmem:[%s3 + $0x74] sm:$0xf] %v628
  %693 = vst [vmem:[%s3 + $0x78] sm:$0xf] %v629
  %694 = vst [vmem:[%s3 + $0x7c] sm:$0xf] %v630
  // Predicated region
  $region14: #{_lambda_.6} parent=0 // pred_check
    _
  $region15: #{_lambda_.6} parent=0 // pred_check_branch
    %696 = sbr.rel (0) target = $region17
  $region16: #{_lambda_.6} parent=0 // pred_region
    _
  $region17: #{_lambda_.6} parent=0 // pred_fallthru
    _
  // Predicated region
  $region18: #{_lambda_.6} parent=0 // pred_check
    _
  $region19: #{_lambda_.6} parent=0 // pred_check_branch
    %698 = sbr.rel (0) target = $region21
  $region20: #{_lambda_.6} parent=0 // pred_region
    _
  $region21: #{_lambda_.6} parent=0 // pred_fallthru
    _

// kernel: _lambda_.7
$region0: #{_lambda_.7}
  #allocation0 [shape = 'u32[]', space=smem, size = 0x4, offset = 0x4, fixed_abs, tag = 'smem constant byte address 0x4 - core index']
  #allocation1 [shape = 'u32[144,128]{1,0:T(1,128)}', space=vmem, size = 0x12000, scoped, tag = 'internal scratch']
  %s0 = inlined_call_operand.vmem [shape: bf16[72,512], index: 0, kind: input, shape index: {}]
  %s1 = inlined_call_operand.vmem [shape: bf16[512,128], index: 1, kind: input, shape index: {}]
  %s2 = inlined_call_operand.vmem [shape: f32[1,128], index: 2, kind: input, shape index: {}]
  %s3 = inlined_call_operand.vmem [shape: bf16[9,128,128], index: 3, kind: input, shape index: {}]
  %s4 = inlined_call_operand.vmem [shape: f32[1,128], index: 4, kind: input, shape index: {}]
  %s5 = inlined_call_operand.vmem [shape: f32[1,128], index: 5, kind: input, shape index: {}]
  %s6 = inlined_call_operand.vmem [shape: f32[1,128], index: 6, kind: input, shape index: {}]
  %s7 = inlined_call_operand.vmem [shape: bf16[128,128], index: 7, kind: input, shape index: {}]
  %s8 = inlined_call_operand.vmem [shape: bf16[128,128], index: 8, kind: input, shape index: {}]
  %s9 = inlined_call_operand.vmem [shape: f32[1,128], index: 9, kind: input, shape index: {}]
  %s10 = inlined_call_operand.vmem [shape: bf16[128,128], index: 10, kind: input, shape index: {}]
  %s11 = inlined_call_operand.vmem [shape: f32[1,128], index: 11, kind: input, shape index: {}]
  %s12 = inlined_call_operand.vmem [shape: bf16[128,128], index: 12, kind: input, shape index: {}]
  %s13 = inlined_call_operand.vmem [shape: f32[1,128], index: 13, kind: input, shape index: {}]
  %s14 = inlined_call_operand.vmem [shape: f32[8,128], index: 14, kind: output, shape index: {}]
  %s15 = sld [smem:[#allocation0]]
  $region66: #{_lambda_.7} parent=0
    _
  %s17 = ssub.s32 1, %s15
  %s18 = scalar_select 0, %s17, %s15
  // Predicated region
  $region2: #{_lambda_.7} parent=0 // pred_check
    _
  $region3: #{_lambda_.7} parent=0 // pred_check_branch
    %20 = sbr.rel (0) target = $region5
  $region4: #{_lambda_.7} parent=0 // pred_region
    _
  $region5: #{_lambda_.7} parent=0 // pred_fallthru
    _
  // Predicated region
  $region6: #{_lambda_.7} parent=0 // pred_check
    _
  $region7: #{_lambda_.7} parent=0 // pred_check_branch
    %22 = sbr.rel (0) target = $region9
  $region8: #{_lambda_.7} parent=0 // pred_region
    _
  $region9: #{_lambda_.7} parent=0 // pred_fallthru
    _
  // Predicated region
  $region10: #{_lambda_.7} parent=0 // pred_check
    _
  $region11: #{_lambda_.7} parent=0 // pred_check_branch
    %24 = sbr.rel (0) target = $region13
  $region12: #{_lambda_.7} parent=0 // pred_region
    _
  $region13: #{_lambda_.7} parent=0 // pred_fallthru
    _
  // Predicated region
  $region14: #{_lambda_.7} parent=0 // pred_check
    _
  $region15: #{_lambda_.7} parent=0 // pred_check_branch
    %26 = sbr.rel (0) target = $region17
  $region16: #{_lambda_.7} parent=0 // pred_region
    _
  $region17: #{_lambda_.7} parent=0 // pred_fallthru
    _
  // Predicated region
  $region18: #{_lambda_.7} parent=0 // pred_check
    _
  $region19: #{_lambda_.7} parent=0 // pred_check_branch
    %28 = sbr.rel (0) target = $region21
  $region20: #{_lambda_.7} parent=0 // pred_region
    _
  $region21: #{_lambda_.7} parent=0 // pred_fallthru
    _
  // Predicated region
  $region22: #{_lambda_.7} parent=0 // pred_check
    _
  $region23: #{_lambda_.7} parent=0 // pred_check_branch
    %30 = sbr.rel (0) target = $region25
  $region24: #{_lambda_.7} parent=0 // pred_region
    _
  $region25: #{_lambda_.7} parent=0 // pred_fallthru
    _
  // Predicated region
  $region26: #{_lambda_.7} parent=0 // pred_check
    _
  $region27: #{_lambda_.7} parent=0 // pred_check_branch
    %32 = sbr.rel (0) target = $region29
  $region28: #{_lambda_.7} parent=0 // pred_region
    _
  $region29: #{_lambda_.7} parent=0 // pred_fallthru
    _
  // Predicated region
  $region30: #{_lambda_.7} parent=0 // pred_check
    _
  $region31: #{_lambda_.7} parent=0 // pred_check_branch
    %34 = sbr.rel (0) target = $region33
  $region32: #{_lambda_.7} parent=0 // pred_region
    _
  $region33: #{_lambda_.7} parent=0 // pred_fallthru
    _
  // Predicated region
  $region34: #{_lambda_.7} parent=0 // pred_check
    _
  $region35: #{_lambda_.7} parent=0 // pred_check_branch
    %36 = sbr.rel (0) target = $region37
  $region36: #{_lambda_.7} parent=0 // pred_region
    _
  $region37: #{_lambda_.7} parent=0 // pred_fallthru
    _
  // Predicated region
  $region38: #{_lambda_.7} parent=0 // pred_check
    _
  $region39: #{_lambda_.7} parent=0 // pred_check_branch
    %38 = sbr.rel (0) target = $region41
  $region40: #{_lambda_.7} parent=0 // pred_region
    _
  $region41: #{_lambda_.7} parent=0 // pred_fallthru
    _
  // Predicated region
  $region42: #{_lambda_.7} parent=0 // pred_check
    _
  $region43: #{_lambda_.7} parent=0 // pred_check_branch
    %40 = sbr.rel (0) target = $region45
  $region44: #{_lambda_.7} parent=0 // pred_region
    _
  $region45: #{_lambda_.7} parent=0 // pred_fallthru
    _
  // Predicated region
  $region46: #{_lambda_.7} parent=0 // pred_check
    _
  $region47: #{_lambda_.7} parent=0 // pred_check_branch
    %42 = sbr.rel (0) target = $region49
  $region48: #{_lambda_.7} parent=0 // pred_region
    _
  $region49: #{_lambda_.7} parent=0 // pred_fallthru
    _
  // Predicated region
  $region50: #{_lambda_.7} parent=0 // pred_check
    _
  $region51: #{_lambda_.7} parent=0 // pred_check_branch
    %44 = sbr.rel (0) target = $region53
  $region52: #{_lambda_.7} parent=0 // pred_region
    _
  $region53: #{_lambda_.7} parent=0 // pred_fallthru
    _
  // Predicated region
  $region54: #{_lambda_.7} parent=0 // pred_check
    _
  $region55: #{_lambda_.7} parent=0 // pred_check_branch
    %46 = sbr.rel (0) target = $region57
  $region56: #{_lambda_.7} parent=0 // pred_region
    _
  $region57: #{_lambda_.7} parent=0 // pred_fallthru
    _
  %v48 = vld [vmem:[%s0] sm:$0xff]
  %v49 = vld [vmem:[%s0 + $0x8] sm:$0xff]
  %v50 = vld [vmem:[%s0 + $0x10] sm:$0xff]
  %v51 = vld [vmem:[%s0 + $0x18] sm:$0xff]
  %v52 = vld [vmem:[%s0 + $0x20] sm:$0xff]
  %v53 = vld [vmem:[%s0 + $0x28] sm:$0xff]
  %v54 = vld [vmem:[%s0 + $0x30] sm:$0xff]
  %v55 = vld [vmem:[%s0 + $0x38] sm:$0xff]
  %v56 = vld [vmem:[%s0 + $0x40] sm:$0xff]
  %v57 = vld [vmem:[%s0 + $0x48] sm:$0xff]
  %v58 = vld [vmem:[%s0 + $0x50] sm:$0xff]
  %v59 = vld [vmem:[%s0 + $0x58] sm:$0xff]
  %v60 = vld [vmem:[%s0 + $0x60] sm:$0xff]
  %v61 = vld [vmem:[%s0 + $0x68] sm:$0xff]
  %v62 = vld [vmem:[%s0 + $0x70] sm:$0xff]
  %v63 = vld [vmem:[%s0 + $0x78] sm:$0xff]
  %v64 = vld [vmem:[%s0 + $0x80] sm:$0xff]
  %v65 = vld [vmem:[%s0 + $0x88] sm:$0xff]
  %v66 = vld [vmem:[%s1] sm:$0xf]
  %v67 = vld [vmem:[%s1 + $0x4] sm:$0xf]
  %v68 = vld [vmem:[%s1 + $0x8] sm:$0xf]
  %v69 = vld [vmem:[%s1 + $0xc] sm:$0xf]
  %v70 = vld [vmem:[%s1 + $0x10] sm:$0xf]
  %v71 = vld [vmem:[%s1 + $0x14] sm:$0xf]
  %v72 = vld [vmem:[%s1 + $0x18] sm:$0xf]
  %v73 = vld [vmem:[%s1 + $0x1c] sm:$0xf]
  %v74 = vld [vmem:[%s1 + $0x20] sm:$0xf]
  %v75 = vld [vmem:[%s1 + $0x24] sm:$0xf]
  %v76 = vld [vmem:[%s1 + $0x28] sm:$0xf]
  %v77 = vld [vmem:[%s1 + $0x2c] sm:$0xf]
  %v78 = vld [vmem:[%s1 + $0x30] sm:$0xf]
  %v79 = vld [vmem:[%s1 + $0x34] sm:$0xf]
  %v80 = vld [vmem:[%s1 + $0x38] sm:$0xf]
  %v81 = vld [vmem:[%s1 + $0x3c] sm:$0xf]
  %v82 = vld [vmem:[%s1 + $0x40] sm:$0xf]
  %v83 = vld [vmem:[%s1 + $0x44] sm:$0xf]
  %v84 = vld [vmem:[%s1 + $0x48] sm:$0xf]
  %v85 = vld [vmem:[%s1 + $0x4c] sm:$0xf]
  %v86 = vld [vmem:[%s1 + $0x50] sm:$0xf]
  %v87 = vld [vmem:[%s1 + $0x54] sm:$0xf]
  %v88 = vld [vmem:[%s1 + $0x58] sm:$0xf]
  %v89 = vld [vmem:[%s1 + $0x5c] sm:$0xf]
  %v90 = vld [vmem:[%s1 + $0x60] sm:$0xf]
  %v91 = vld [vmem:[%s1 + $0x64] sm:$0xf]
  %v92 = vld [vmem:[%s1 + $0x68] sm:$0xf]
  %v93 = vld [vmem:[%s1 + $0x6c] sm:$0xf]
  %v94 = vld [vmem:[%s1 + $0x70] sm:$0xf]
  %v95 = vld [vmem:[%s1 + $0x74] sm:$0xf]
  %v96 = vld [vmem:[%s1 + $0x78] sm:$0xf]
  %v97 = vld [vmem:[%s1 + $0x7c] sm:$0xf]
  %v98 = vld [vmem:[%s1 + $0x80] sm:$0xf]
  %v99 = vld [vmem:[%s1 + $0x84] sm:$0xf]
  %v100 = vld [vmem:[%s1 + $0x88] sm:$0xf]
  %v101 = vld [vmem:[%s1 + $0x8c] sm:$0xf]
  %v102 = vld [vmem:[%s1 + $0x90] sm:$0xf]
  %v103 = vld [vmem:[%s1 + $0x94] sm:$0xf]
  %v104 = vld [vmem:[%s1 + $0x98] sm:$0xf]
  %v105 = vld [vmem:[%s1 + $0x9c] sm:$0xf]
  %v106 = vld [vmem:[%s1 + $0xa0] sm:$0xf]
  %v107 = vld [vmem:[%s1 + $0xa4] sm:$0xf]
  %v108 = vld [vmem:[%s1 + $0xa8] sm:$0xf]
  %v109 = vld [vmem:[%s1 + $0xac] sm:$0xf]
  %v110 = vld [vmem:[%s1 + $0xb0] sm:$0xf]
  %v111 = vld [vmem:[%s1 + $0xb4] sm:$0xf]
  %v112 = vld [vmem:[%s1 + $0xb8] sm:$0xf]
  %v113 = vld [vmem:[%s1 + $0xbc] sm:$0xf]
  %v114 = vld [vmem:[%s1 + $0xc0] sm:$0xf]
  %v115 = vld [vmem:[%s1 + $0xc4] sm:$0xf]
  %v116 = vld [vmem:[%s1 + $0xc8] sm:$0xf]
  %v117 = vld [vmem:[%s1 + $0xcc] sm:$0xf]
  %v118 = vld [vmem:[%s1 + $0xd0] sm:$0xf]
  %v119 = vld [vmem:[%s1 + $0xd4] sm:$0xf]
  %v120 = vld [vmem:[%s1 + $0xd8] sm:$0xf]
  %v121 = vld [vmem:[%s1 + $0xdc] sm:$0xf]
  %v122 = vld [vmem:[%s1 + $0xe0] sm:$0xf]
  %v123 = vld [vmem:[%s1 + $0xe4] sm:$0xf]
  %v124 = vld [vmem:[%s1 + $0xe8] sm:$0xf]
  %v125 = vld [vmem:[%s1 + $0xec] sm:$0xf]
  %v126 = vld [vmem:[%s1 + $0xf0] sm:$0xf]
  %v127 = vld [vmem:[%s1 + $0xf4] sm:$0xf]
  %v128 = vld [vmem:[%s1 + $0xf8] sm:$0xf]
  %v129 = vld [vmem:[%s1 + $0xfc] sm:$0xf]
  %v130 = vld [vmem:[%s2] sm:$0x1]
  %v132 = vlaneseq
  %v133 = vshrl.u32 %v132, 7
  %v134 = vsub.s32 0, %v133
  %v135 = vrot.slane %v130, %v134
  %v155 = vunpack.c.l.b16 %v48
  %v156 = vunpack.c.h.b16 %v48
  %v157 = vunpack.c.l.b16 %v49
  %v158 = vunpack.c.h.b16 %v49
  %v159 = vunpack.c.l.b16 %v50
  %v160 = vunpack.c.h.b16 %v50
  %v161 = vunpack.c.l.b16 %v51
  %v162 = vunpack.c.h.b16 %v51
  %v163 = vunpack.c.l.b16 %v52
  %v164 = vunpack.c.h.b16 %v52
  %v165 = vunpack.c.l.b16 %v53
  %v166 = vunpack.c.h.b16 %v53
  %v167 = vunpack.c.l.b16 %v54
  %v168 = vunpack.c.h.b16 %v54
  %v169 = vunpack.c.l.b16 %v55
  %v170 = vunpack.c.h.b16 %v55
  %v171 = vunpack.c.l.b16 %v56
  %v172 = vunpack.c.h.b16 %v56
  %v173 = vunpack.c.l.b16 %v57
  %v174 = vunpack.c.h.b16 %v57
  %v175 = vunpack.c.l.b16 %v58
  %v176 = vunpack.c.h.b16 %v58
  %v177 = vunpack.c.l.b16 %v59
  %v178 = vunpack.c.h.b16 %v59
  %v179 = vunpack.c.l.b16 %v60
  %v180 = vunpack.c.h.b16 %v60
  %v181 = vunpack.c.l.b16 %v61
  %v182 = vunpack.c.h.b16 %v61
  %v183 = vunpack.c.l.b16 %v62
  %v184 = vunpack.c.h.b16 %v62
  %v185 = vunpack.c.l.b16 %v63
  %v186 = vunpack.c.h.b16 %v63
  %v187 = vunpack.c.l.b16 %v64
  %v188 = vunpack.c.h.b16 %v64
  %v189 = vunpack.c.l.b16 %v65
  %v190 = vunpack.c.h.b16 %v65
  %v191 = vpack.c.b16 %v159, %v155
  %v192 = vpack.c.b16 %v160, %v156
  %v193 = vpack.c.b16 %v161, %v157
  %v194 = vpack.c.b16 %v162, %v158
  %v195 = vpack.c.b16 %v167, %v163
  %v196 = vpack.c.b16 %v168, %v164
  %v197 = vpack.c.b16 %v169, %v165
  %v198 = vpack.c.b16 %v170, %v166
  %v199 = vpack.c.b16 %v175, %v171
  %v200 = vpack.c.b16 %v176, %v172
  %v201 = vpack.c.b16 %v177, %v173
  %v202 = vpack.c.b16 %v178, %v174
  %v203 = vpack.c.b16 %v183, %v179
  %v204 = vpack.c.b16 %v184, %v180
  %v205 = vpack.c.b16 %v185, %v181
  %v206 = vpack.c.b16 %v186, %v182
  %v207 = vpack.c.b16 %v187, %v187
  %v208 = vpack.c.b16 %v188, %v188
  %v209 = vpack.c.b16 %v189, %v189
  %v210 = vpack.c.b16 %v190, %v190
  %v295 = vunpack.c.l.b16 %v66
  %v296 = vunpack.c.l.b16 %v67
  %v297 = vunpack.c.l.b16 %v68
  %v298 = vunpack.c.l.b16 %v69
  %v299 = vunpack.c.l.b16 %v70
  %v300 = vunpack.c.l.b16 %v71
  %v301 = vunpack.c.l.b16 %v72
  %v302 = vunpack.c.l.b16 %v73
  %v303 = vunpack.c.l.b16 %v74
  %v304 = vunpack.c.l.b16 %v75
  %v305 = vunpack.c.l.b16 %v76
  %v306 = vunpack.c.l.b16 %v77
  %v307 = vunpack.c.l.b16 %v78
  %v308 = vunpack.c.l.b16 %v79
  %v309 = vunpack.c.l.b16 %v80
  %v310 = vunpack.c.l.b16 %v81
  %v311 = vunpack.c.l.b16 %v82
  %v312 = vunpack.c.l.b16 %v83
  %v313 = vunpack.c.l.b16 %v84
  %v314 = vunpack.c.l.b16 %v85
  %v315 = vunpack.c.l.b16 %v86
  %v316 = vunpack.c.l.b16 %v87
  %v317 = vunpack.c.l.b16 %v88
  %v318 = vunpack.c.l.b16 %v89
  %v319 = vunpack.c.l.b16 %v90
  %v320 = vunpack.c.l.b16 %v91
  %v321 = vunpack.c.l.b16 %v92
  %v322 = vunpack.c.l.b16 %v93
  %v323 = vunpack.c.l.b16 %v94
  %v324 = vunpack.c.l.b16 %v95
  %v325 = vunpack.c.l.b16 %v96
  %v326 = vunpack.c.l.b16 %v97
  %v327 = vunpack.c.l.b16 %v98
  %v328 = vunpack.c.l.b16 %v99
  %v329 = vunpack.c.l.b16 %v100
  %v330 = vunpack.c.l.b16 %v101
  %v331 = vunpack.c.l.b16 %v102
  %v332 = vunpack.c.l.b16 %v103
  %v333 = vunpack.c.l.b16 %v104
  %v334 = vunpack.c.l.b16 %v105
  %v335 = vunpack.c.l.b16 %v106
  %v336 = vunpack.c.l.b16 %v107
  %v337 = vunpack.c.l.b16 %v108
  %v338 = vunpack.c.l.b16 %v109
  %v339 = vunpack.c.l.b16 %v110
  %v340 = vunpack.c.l.b16 %v111
  %v341 = vunpack.c.l.b16 %v112
  %v342 = vunpack.c.l.b16 %v113
  %v343 = vunpack.c.l.b16 %v114
  %v344 = vunpack.c.l.b16 %v115
  %v345 = vunpack.c.l.b16 %v116
  %v346 = vunpack.c.l.b16 %v117
  %v347 = vunpack.c.l.b16 %v118
  %v348 = vunpack.c.l.b16 %v119
  %v349 = vunpack.c.l.b16 %v120
  %v350 = vunpack.c.l.b16 %v121
  %v351 = vunpack.c.l.b16 %v122
  %v352 = vunpack.c.l.b16 %v123
  %v353 = vunpack.c.l.b16 %v124
  %v354 = vunpack.c.l.b16 %v125
  %v355 = vunpack.c.l.b16 %v126
  %v356 = vunpack.c.l.b16 %v127
  %v357 = vunpack.c.l.b16 %v128
  %v358 = vunpack.c.l.b16 %v129
  %v359 = vpack.c.b16 %v296, %v295
  %v360 = vpack.c.b16 %v298, %v297
  %v361 = vpack.c.b16 %v300, %v299
  %v362 = vpack.c.b16 %v302, %v301
  %v363 = vpack.c.b16 %v304, %v303
  %v364 = vpack.c.b16 %v306, %v305
  %v365 = vpack.c.b16 %v308, %v307
  %v366 = vpack.c.b16 %v310, %v309
  %v367 = vpack.c.b16 %v312, %v311
  %v368 = vpack.c.b16 %v314, %v313
  %v369 = vpack.c.b16 %v316, %v315
  %v370 = vpack.c.b16 %v318, %v317
  %v371 = vpack.c.b16 %v320, %v319
  %v372 = vpack.c.b16 %v322, %v321
  %v373 = vpack.c.b16 %v324, %v323
  %v374 = vpack.c.b16 %v326, %v325
  %v375 = vpack.c.b16 %v328, %v327
  %v376 = vpack.c.b16 %v330, %v329
  %v377 = vpack.c.b16 %v332, %v331
  %v378 = vpack.c.b16 %v334, %v333
  %v379 = vpack.c.b16 %v336, %v335
  %v380 = vpack.c.b16 %v338, %v337
  %v381 = vpack.c.b16 %v340, %v339
  %v382 = vpack.c.b16 %v342, %v341
  %v383 = vpack.c.b16 %v344, %v343
  %v384 = vpack.c.b16 %v346, %v345
  %v385 = vpack.c.b16 %v348, %v347
  %v386 = vpack.c.b16 %v350, %v349
  %v387 = vpack.c.b16 %v352, %v351
  %v388 = vpack.c.b16 %v354, %v353
  %v389 = vpack.c.b16 %v356, %v355
  %v390 = vpack.c.b16 %v358, %v357
  %423 = vmatprep.subr.bf16.mxu0 0
  %424 = vmatpush1.bf16.msra.mxu0 %v359
  %425 = vmatprep.subr.bf16.mxu0 0
  %426 = vmatpush1.bf16.msra.mxu0 %v360
  %427 = vmatprep.subr.bf16.mxu0 0
  %428 = vmatpush1.bf16.msra.mxu0 %v361
  %429 = vmatprep.subr.bf16.mxu0 0
  %430 = vmatpush1.bf16.msra.mxu0 %v362
  %431 = vmatprep.subr.bf16.mxu0 0
  %432 = vmatpush1.bf16.msra.mxu0 %v363
  %433 = vmatprep.subr.bf16.mxu0 0
  %434 = vmatpush1.bf16.msra.mxu0 %v364
  %435 = vmatprep.subr.bf16.mxu0 0
  %436 = vmatpush1.bf16.msra.mxu0 %v365
  %437 = vmatprep.subr.bf16.mxu0 0
  %438 = vmatpush1.bf16.msra.mxu0 %v366
  %439 = vmatprep.subr.bf16.mxu0 0
  %440 = vmatpush1.bf16.msra.mxu0 %v367
  %441 = vmatprep.subr.bf16.mxu0 0
  %442 = vmatpush1.bf16.msra.mxu0 %v368
  %443 = vmatprep.subr.bf16.mxu0 0
  %444 = vmatpush1.bf16.msra.mxu0 %v369
  %445 = vmatprep.subr.bf16.mxu0 0
  %446 = vmatpush1.bf16.msra.mxu0 %v370
  %447 = vmatprep.subr.bf16.mxu0 0
  %448 = vmatpush1.bf16.msra.mxu0 %v371
  %449 = vmatprep.subr.bf16.mxu0 0
  %450 = vmatpush1.bf16.msra.mxu0 %v372
  %451 = vmatprep.subr.bf16.mxu0 0
  %452 = vmatpush1.bf16.msra.mxu0 %v373
  %453 = vmatprep.subr.bf16.mxu0 0
  %454 = vmatpush1.bf16.msra.mxu0 %v374
  %455 = vmatprep.mubr.bf16.mxu0 %v192
  %456 = vmatmul.mubr.bf16.gmra.mrb[0].mxu0 %v191
  %v457 = vpop.f32.mrb[0].mxu0
  %v458 = vadd.f32 %v135, %v457
  %v459 = vpop.f32.mrb[0].mxu0
  %v460 = vpop.f32.mrb[0].mxu0
  %v461 = vadd.f32 %v135, %v460
  %v462 = vpop.f32.mrb[0].mxu0
  %463 = vmatprep.mubr.bf16.mxu0 %v196
  %464 = vmatmul.mubr.bf16.gmra.mrb[0].mxu0 %v195
  %v465 = vpop.f32.mrb[0].mxu0
  %v466 = vadd.f32 %v135, %v465
  %v467 = vpop.f32.mrb[0].mxu0
  %v468 = vpop.f32.mrb[0].mxu0
  %v469 = vadd.f32 %v135, %v468
  %v470 = vpop.f32.mrb[0].mxu0
  %471 = vmatprep.mubr.bf16.mxu0 %v200
  %472 = vmatmul.mubr.bf16.gmra.mrb[0].mxu0 %v199
  %v473 = vpop.f32.mrb[0].mxu0
  %v474 = vadd.f32 %v135, %v473
  %v475 = vpop.f32.mrb[0].mxu0
  %v476 = vpop.f32.mrb[0].mxu0
  %v477 = vadd.f32 %v135, %v476
  %v478 = vpop.f32.mrb[0].mxu0
  %479 = vmatprep.mubr.bf16.mxu0 %v204
  %480 = vmatmul.mubr.bf16.gmra.mrb[0].mxu0 %v203
  %v481 = vpop.f32.mrb[0].mxu0
  %v482 = vadd.f32 %v135, %v481
  %v483 = vpop.f32.mrb[0].mxu0
  %v484 = vpop.f32.mrb[0].mxu0
  %v485 = vadd.f32 %v135, %v484
  %v486 = vpop.f32.mrb[0].mxu0
  %487 = vmatprep.mubr.bf16.mxu0 %v208
  %488 = vmatmul.mubr.bf16.gmra.mrb[0].mxu0 %v207
  %v489 = vpop.f32.mrb[0].mxu0
  %v490 = vadd.f32 %v135, %v489
  %v491 = vpop.f32.mrb[0].mxu0
  %v492 = vpop.f32.mrb[0].mxu0
  %v493 = vpop.f32.mrb[0].mxu0
  %494 = vdwg.mxu0
  %495 = vmatprep.subr.bf16.mxu0 0
  %496 = vmatpush1.bf16.msra.mxu0 %v375
  %497 = vmatprep.subr.bf16.mxu0 0
  %498 = vmatpush1.bf16.msra.mxu0 %v376
  %499 = vmatprep.subr.bf16.mxu0 0
  %500 = vmatpush1.bf16.msra.mxu0 %v377
  %501 = vmatprep.subr.bf16.mxu0 0
  %502 = vmatpush1.bf16.msra.mxu0 %v378
  %503 = vmatprep.subr.bf16.mxu0 0
  %504 = vmatpush1.bf16.msra.mxu0 %v379
  %505 = vmatprep.subr.bf16.mxu0 0
  %506 = vmatpush1.bf16.msra.mxu0 %v380
  %507 = vmatprep.subr.bf16.mxu0 0
  %508 = vmatpush1.bf16.msra.mxu0 %v381
  %509 = vmatprep.subr.bf16.mxu0 0
  %510 = vmatpush1.bf16.msra.mxu0 %v382
  %511 = vmatprep.subr.bf16.mxu0 0
  %512 = vmatpush1.bf16.msra.mxu0 %v383
  %513 = vmatprep.subr.bf16.mxu0 0
  %514 = vmatpush1.bf16.msra.mxu0 %v384
  %515 = vmatprep.subr.bf16.mxu0 0
  %516 = vmatpush1.bf16.msra.mxu0 %v385
  %517 = vmatprep.subr.bf16.mxu0 0
  %518 = vmatpush1.bf16.msra.mxu0 %v386
  %519 = vmatprep.subr.bf16.mxu0 0
  %520 = vmatpush1.bf16.msra.mxu0 %v387
  %521 = vmatprep.subr.bf16.mxu0 0
  %522 = vmatpush1.bf16.msra.mxu0 %v388
  %523 = vmatprep.subr.bf16.mxu0 0
  %524 = vmatpush1.bf16.msra.mxu0 %v389
  %525 = vmatprep.subr.bf16.mxu0 0
  %526 = vmatpush1.bf16.msra.mxu0 %v390
  %527 = vmatprep.mubr.bf16.mxu0 %v194
  %528 = vmatmul.mubr.bf16.gmra.mrb[0].mxu0 %v193
  %v529 = vpop.f32.mrb[0].mxu0
  %v530 = vadd.f32 %v458, %v529
  %v531 = vpop.f32.mrb[0].mxu0
  %v532 = vpop.f32.mrb[0].mxu0
  %v533 = vadd.f32 %v461, %v532
  %v534 = vpop.f32.mrb[0].mxu0
  %535 = vmatprep.mubr.bf16.mxu0 %v198
  %536 = vmatmul.mubr.bf16.gmra.mrb[0].mxu0 %v197
  %v537 = vpop.f32.mrb[0].mxu0
  %v538 = vadd.f32 %v466, %v537
  %v539 = vpop.f32.mrb[0].mxu0
  %v540 = vpop.f32.mrb[0].mxu0
  %v541 = vadd.f32 %v469, %v540
  %v542 = vpop.f32.mrb[0].mxu0
  %543 = vmatprep.mubr.bf16.mxu0 %v202
  %544 = vmatmul.mubr.bf16.gmra.mrb[0].mxu0 %v201
  %v545 = vpop.f32.mrb[0].mxu0
  %v546 = vadd.f32 %v474, %v545
  %v547 = vpop.f32.mrb[0].mxu0
  %v548 = vpop.f32.mrb[0].mxu0
  %v549 = vadd.f32 %v477, %v548
  %v550 = vpop.f32.mrb[0].mxu0
  %551 = vmatprep.mubr.bf16.mxu0 %v206
  %552 = vmatmul.mubr.bf16.gmra.mrb[0].mxu0 %v205
  %v553 = vpop.f32.mrb[0].mxu0
  %v554 = vadd.f32 %v482, %v553
  %v555 = vpop.f32.mrb[0].mxu0
  %v556 = vpop.f32.mrb[0].mxu0
  %v557 = vadd.f32 %v485, %v556
  %v558 = vpop.f32.mrb[0].mxu0
  %559 = vmatprep.mubr.bf16.mxu0 %v210
  %560 = vmatmul.mubr.bf16.gmra.mrb[0].mxu0 %v209
  %v561 = vpop.f32.mrb[0].mxu0
  %v562 = vadd.f32 %v490, %v561
  %v563 = vpop.f32.mrb[0].mxu0
  %v564 = vpop.f32.mrb[0].mxu0
  %v565 = vpop.f32.mrb[0].mxu0
  %566 = vdwg.mxu0
  %v567 = vmax.f32 %v530, 0.0
  %v568 = vmax.f32 %v533, 0.0
  %v569 = vmax.f32 %v538, 0.0
  %v570 = vmax.f32 %v541, 0.0
  %v571 = vmax.f32 %v546, 0.0
  %v572 = vmax.f32 %v549, 0.0
  %v573 = vmax.f32 %v554, 0.0
  %v574 = vmax.f32 %v557, 0.0
  %v575 = vmax.f32 %v562, 0.0
  %v576 = vpack.c.bf16 %v567, %v567
  %v577 = vld [vmem:[%s3] sm:$0xf]
  %v578 = vld [vmem:[%s3 + $0x4] sm:$0xf]
  %v579 = vld [vmem:[%s3 + $0x8] sm:$0xf]
  %v580 = vld [vmem:[%s3 + $0xc] sm:$0xf]
  %v581 = vld [vmem:[%s3 + $0x10] sm:$0xf]
  %v582 = vld [vmem:[%s3 + $0x14] sm:$0xf]
  %v583 = vld [vmem:[%s3 + $0x18] sm:$0xf]
  %v584 = vld [vmem:[%s3 + $0x1c] sm:$0xf]
  %v585 = vld [vmem:[%s3 + $0x20] sm:$0xf]
  %v586 = vld [vmem:[%s3 + $0x24] sm:$0xf]
  %v587 = vld [vmem:[%s3 + $0x28] sm:$0xf]
  %v588 = vld [vmem:[%s3 + $0x2c] sm:$0xf]
  %v589 = vld [vmem:[%s3 + $0x30] sm:$0xf]
  %v590 = vld [vmem:[%s3 + $0x34] sm:$0xf]
  %v591 = vld [vmem:[%s3 + $0x38] sm:$0xf]
  %v592 = vld [vmem:[%s3 + $0x3c] sm:$0xf]
  %v593 = vpack.c.bf16 %v568, %v568
  %s594 = scalar_lea.vmem %s3, 64
  %v595 = vld [vmem:[%s594] sm:$0xf]
  %v596 = vld [vmem:[%s594 + $0x4] sm:$0xf]
  %v597 = vld [vmem:[%s594 + $0x8] sm:$0xf]
  %v598 = vld [vmem:[%s594 + $0xc] sm:$0xf]
  %v599 = vld [vmem:[%s594 + $0x10] sm:$0xf]
  %v600 = vld [vmem:[%s594 + $0x14] sm:$0xf]
  %v601 = vld [vmem:[%s594 + $0x18] sm:$0xf]
  %v602 = vld [vmem:[%s594 + $0x1c] sm:$0xf]
  %v603 = vld [vmem:[%s594 + $0x20] sm:$0xf]
  %v604 = vld [vmem:[%s594 + $0x24] sm:$0xf]
  %v605 = vld [vmem:[%s594 + $0x28] sm:$0xf]
  %v606 = vld [vmem:[%s594 + $0x2c] sm:$0xf]
  %v607 = vld [vmem:[%s594 + $0x30] sm:$0xf]
  %v608 = vld [vmem:[%s594 + $0x34] sm:$0xf]
  %v609 = vld [vmem:[%s594 + $0x38] sm:$0xf]
  %v610 = vld [vmem:[%s594 + $0x3c] sm:$0xf]
  %v627 = vunpack.c.l.b16 %v595
  %v628 = vunpack.c.l.b16 %v596
  %v629 = vunpack.c.l.b16 %v597
  %v630 = vunpack.c.l.b16 %v598
  %v631 = vunpack.c.l.b16 %v599
  %v632 = vunpack.c.l.b16 %v600
  %v633 = vunpack.c.l.b16 %v601
  %v634 = vunpack.c.l.b16 %v602
  %v635 = vunpack.c.l.b16 %v603
  %v636 = vunpack.c.l.b16 %v604
  %v637 = vunpack.c.l.b16 %v605
  %v638 = vunpack.c.l.b16 %v606
  %v639 = vunpack.c.l.b16 %v607
  %v640 = vunpack.c.l.b16 %v608
  %v641 = vunpack.c.l.b16 %v609
  %v642 = vunpack.c.l.b16 %v610
  %v643 = vpack.c.b16 %v628, %v627
  %v644 = vpack.c.b16 %v630, %v629
  %v645 = vpack.c.b16 %v632, %v631
  %v646 = vpack.c.b16 %v634, %v633
  %v647 = vpack.c.b16 %v636, %v635
  %v648 = vpack.c.b16 %v638, %v637
  %v649 = vpack.c.b16 %v640, %v639
  %v650 = vpack.c.b16 %v642, %v641
  %659 = vmatprep.subr.bf16.mxu0 0
  %660 = vmatpush1.bf16.msra.mxu0 %v643
  %661 = vmatprep.subr.bf16.mxu0 0
  %662 = vmatpush1.bf16.msra.mxu0 %v644
  %663 = vmatprep.subr.bf16.mxu0 0
  %664 = vmatpush1.bf16.msra.mxu0 %v645
  %665 = vmatprep.subr.bf16.mxu0 0
  %666 = vmatpush1.bf16.msra.mxu0 %v646
  %667 = vmatprep.subr.bf16.mxu0 0
  %668 = vmatpush1.bf16.msra.mxu0 %v647
  %669 = vmatprep.subr.bf16.mxu0 0
  %670 = vmatpush1.bf16.msra.mxu0 %v648
  %671 = vmatprep.subr.bf16.mxu0 0
  %672 = vmatpush1.bf16.msra.mxu0 %v649
  %673 = vmatprep.subr.bf16.mxu0 0
  %674 = vmatpush1.bf16.msra.mxu0 %v650
  %675 = vmatprep.subr.bf16.mxu0 0
  %676 = vmatpush1.bf16.msra.mxu0 0
  %677 = vmatprep.subr.bf16.mxu0 0
  %678 = vmatpush1.bf16.msra.mxu0 0
  %679 = vmatprep.subr.bf16.mxu0 0
  %680 = vmatpush1.bf16.msra.mxu0 0
  %681 = vmatprep.subr.bf16.mxu0 0
  %682 = vmatpush1.bf16.msra.mxu0 0
  %683 = vmatprep.subr.bf16.mxu0 0
  %684 = vmatpush1.bf16.msra.mxu0 0
  %685 = vmatprep.subr.bf16.mxu0 0
  %686 = vmatpush1.bf16.msra.mxu0 0
  %687 = vmatprep.subr.bf16.mxu0 0
  %688 = vmatpush1.bf16.msra.mxu0 0
  %689 = vmatprep.subr.bf16.mxu0 0
  %690 = vmatpush1.bf16.msra.mxu0 0
  %691 = vmatprep.mubr.bf16.mxu0 0
  %692 = vmatmul.mubr.bf16.gmra.mrb[0].mxu0 %v593
  %v693 = vpop.f32.mrb[0].mxu0
  %v694 = vadd.f32 0.0, %v693
  %v695 = vpop.f32.mrb[0].mxu0
  %v696 = vpop.f32.mrb[0].mxu0
  %v697 = vpop.f32.mrb[0].mxu0
  %698 = vdwg.mxu0
  %v715 = vunpack.c.l.b16 %v577
  %v716 = vunpack.c.l.b16 %v578
  %v717 = vunpack.c.l.b16 %v579
  %v718 = vunpack.c.l.b16 %v580
  %v719 = vunpack.c.l.b16 %v581
  %v720 = vunpack.c.l.b16 %v582
  %v721 = vunpack.c.l.b16 %v583
  %v722 = vunpack.c.l.b16 %v584
  %v723 = vunpack.c.l.b16 %v585
  %v724 = vunpack.c.l.b16 %v586
  %v725 = vunpack.c.l.b16 %v587
  %v726 = vunpack.c.l.b16 %v588
  %v727 = vunpack.c.l.b16 %v589
  %v728 = vunpack.c.l.b16 %v590
  %v729 = vunpack.c.l.b16 %v591
  %v730 = vunpack.c.l.b16 %v592
  %v731 = vpack.c.b16 %v716, %v715
  %v732 = vpack.c.b16 %v718, %v717
  %v733 = vpack.c.b16 %v720, %v719
  %v734 = vpack.c.b16 %v722, %v721
  %v735 = vpack.c.b16 %v724, %v723
  %v736 = vpack.c.b16 %v726, %v725
  %v737 = vpack.c.b16 %v728, %v727
  %v738 = vpack.c.b16 %v730, %v729
  %747 = vmatprep.subr.bf16.mxu0 0
  %748 = vmatpush1.bf16.msra.mxu0 %v731
  %749 = vmatprep.subr.bf16.mxu0 0
  %750 = vmatpush1.bf16.msra.mxu0 %v732
  %751 = vmatprep.subr.bf16.mxu0 0
  %752 = vmatpush1.bf16.msra.mxu0 %v733
  %753 = vmatprep.subr.bf16.mxu0 0
  %754 = vmatpush1.bf16.msra.mxu0 %v734
  %755 = vmatprep.subr.bf16.mxu0 0
  %756 = vmatpush1.bf16.msra.mxu0 %v735
  %757 = vmatprep.subr.bf16.mxu0 0
  %758 = vmatpush1.bf16.msra.mxu0 %v736
  %759 = vmatprep.subr.bf16.mxu0 0
  %760 = vmatpush1.bf16.msra.mxu0 %v737
  %761 = vmatprep.subr.bf16.mxu0 0
  %762 = vmatpush1.bf16.msra.mxu0 %v738
  %763 = vmatprep.subr.bf16.mxu0 0
  %764 = vmatpush1.bf16.msra.mxu0 0
  %765 = vmatprep.subr.bf16.mxu0 0
  %766 = vmatpush1.bf16.msra.mxu0 0
  %767 = vmatprep.subr.bf16.mxu0 0
  %768 = vmatpush1.bf16.msra.mxu0 0
  %769 = vmatprep.subr.bf16.mxu0 0
  %770 = vmatpush1.bf16.msra.mxu0 0
  %771 = vmatprep.subr.bf16.mxu0 0
  %772 = vmatpush1.bf16.msra.mxu0 0
  %773 = vmatprep.subr.bf16.mxu0 0
  %774 = vmatpush1.bf16.msra.mxu0 0
  %775 = vmatprep.subr.bf16.mxu0 0
  %776 = vmatpush1.bf16.msra.mxu0 0
  %777 = vmatprep.subr.bf16.mxu0 0
  %778 = vmatpush1.bf16.msra.mxu0 0
  %779 = vmatprep.mubr.bf16.mxu0 0
  %780 = vmatmul.mubr.bf16.gmra.mrb[0].mxu0 %v576
  %v781 = vpop.f32.mrb[0].mxu0
  %v782 = vadd.f32 %v694, %v781
  %v783 = vpop.f32.mrb[0].mxu0
  %v784 = vpop.f32.mrb[0].mxu0
  %v785 = vpop.f32.mrb[0].mxu0
  %786 = vdwg.mxu0
  %v787 = vpack.c.bf16 %v569, %v569
  %s788 = scalar_lea.vmem %s3, 128
  %v789 = vld [vmem:[%s788] sm:$0xf]
  %v790 = vld [vmem:[%s788 + $0x4] sm:$0xf]
  %v791 = vld [vmem:[%s788 + $0x8] sm:$0xf]
  %v792 = vld [vmem:[%s788 + $0xc] sm:$0xf]
  %v793 = vld [vmem:[%s788 + $0x10] sm:$0xf]
  %v794 = vld [vmem:[%s788 + $0x14] sm:$0xf]
  %v795 = vld [vmem:[%s788 + $0x18] sm:$0xf]
  %v796 = vld [vmem:[%s788 + $0x1c] sm:$0xf]
  %v797 = vld [vmem:[%s788 + $0x20] sm:$0xf]
  %v798 = vld [vmem:[%s788 + $0x24] sm:$0xf]
  %v799 = vld [vmem:[%s788 + $0x28] sm:$0xf]
  %v800 = vld [vmem:[%s788 + $0x2c] sm:$0xf]
  %v801 = vld [vmem:[%s788 + $0x30] sm:$0xf]
  %v802 = vld [vmem:[%s788 + $0x34] sm:$0xf]
  %v803 = vld [vmem:[%s788 + $0x38] sm:$0xf]
  %v804 = vld [vmem:[%s788 + $0x3c] sm:$0xf]
  %v821 = vunpack.c.l.b16 %v789
  %v822 = vunpack.c.l.b16 %v790
  %v823 = vunpack.c.l.b16 %v791
  %v824 = vunpack.c.l.b16 %v792
  %v825 = vunpack.c.l.b16 %v793
  %v826 = vunpack.c.l.b16 %v794
  %v827 = vunpack.c.l.b16 %v795
  %v828 = vunpack.c.l.b16 %v796
  %v829 = vunpack.c.l.b16 %v797
  %v830 = vunpack.c.l.b16 %v798
  %v831 = vunpack.c.l.b16 %v799
  %v832 = vunpack.c.l.b16 %v800
  %v833 = vunpack.c.l.b16 %v801
  %v834 = vunpack.c.l.b16 %v802
  %v835 = vunpack.c.l.b16 %v803
  %v836 = vunpack.c.l.b16 %v804
  %v837 = vpack.c.b16 %v822, %v821
  %v838 = vpack.c.b16 %v824, %v823
  %v839 = vpack.c.b16 %v826, %v825
  %v840 = vpack.c.b16 %v828, %v827
  %v841 = vpack.c.b16 %v830, %v829
  %v842 = vpack.c.b16 %v832, %v831
  %v843 = vpack.c.b16 %v834, %v833
  %v844 = vpack.c.b16 %v836, %v835
  %853 = vmatprep.subr.bf16.mxu0 0
  %854 = vmatpush1.bf16.msra.mxu0 %v837
  %855 = vmatprep.subr.bf16.mxu0 0
  %856 = vmatpush1.bf16.msra.mxu0 %v838
  %857 = vmatprep.subr.bf16.mxu0 0
  %858 = vmatpush1.bf16.msra.mxu0 %v839
  %859 = vmatprep.subr.bf16.mxu0 0
  %860 = vmatpush1.bf16.msra.mxu0 %v840
  %861 = vmatprep.subr.bf16.mxu0 0
  %862 = vmatpush1.bf16.msra.mxu0 %v841
  %863 = vmatprep.subr.bf16.mxu0 0
  %864 = vmatpush1.bf16.msra.mxu0 %v842
  %865 = vmatprep.subr.bf16.mxu0 0
  %866 = vmatpush1.bf16.msra.mxu0 %v843
  %867 = vmatprep.subr.bf16.mxu0 0
  %868 = vmatpush1.bf16.msra.mxu0 %v844
  %869 = vmatprep.subr.bf16.mxu0 0
  %870 = vmatpush1.bf16.msra.mxu0 0
  %871 = vmatprep.subr.bf16.mxu0 0
  %872 = vmatpush1.bf16.msra.mxu0 0
  %873 = vmatprep.subr.bf16.mxu0 0
  %874 = vmatpush1.bf16.msra.mxu0 0
  %875 = vmatprep.subr.bf16.mxu0 0
  %876 = vmatpush1.bf16.msra.mxu0 0
  %877 = vmatprep.subr.bf16.mxu0 0
  %878 = vmatpush1.bf16.msra.mxu0 0
  %879 = vmatprep.subr.bf16.mxu0 0
  %880 = vmatpush1.bf16.msra.mxu0 0
  %881 = vmatprep.subr.bf16.mxu0 0
  %882 = vmatpush1.bf16.msra.mxu0 0
  %883 = vmatprep.subr.bf16.mxu0 0
  %884 = vmatpush1.bf16.msra.mxu0 0
  %885 = vmatprep.mubr.bf16.mxu0 0
  %886 = vmatmul.mubr.bf16.gmra.mrb[0].mxu0 %v787
  %v887 = vpop.f32.mrb[0].mxu0
  %v888 = vadd.f32 0.0, %v887
  %v889 = vpop.f32.mrb[0].mxu0
  %v890 = vpop.f32.mrb[0].mxu0
  %v891 = vpop.f32.mrb[0].mxu0
  %892 = vdwg.mxu0
  %v893 = vadd.f32 %v782, %v888
  %v894 = vpack.c.bf16 %v570, %v570
  %s895 = scalar_lea.vmem %s3, 192
  %v896 = vld [vmem:[%s895] sm:$0xf]
  %v897 = vld [vmem:[%s895 + $0x4] sm:$0xf]
  %v898 = vld [vmem:[%s895 + $0x8] sm:$0xf]
  %v899 = vld [vmem:[%s895 + $0xc] sm:$0xf]
  %v900 = vld [vmem:[%s895 + $0x10] sm:$0xf]
  %v901 = vld [vmem:[%s895 + $0x14] sm:$0xf]
  %v902 = vld [vmem:[%s895 + $0x18] sm:$0xf]
  %v903 = vld [vmem:[%s895 + $0x1c] sm:$0xf]
  %v904 = vld [vmem:[%s895 + $0x20] sm:$0xf]
  %v905 = vld [vmem:[%s895 + $0x24] sm:$0xf]
  %v906 = vld [vmem:[%s895 + $0x28] sm:$0xf]
  %v907 = vld [vmem:[%s895 + $0x2c] sm:$0xf]
  %v908 = vld [vmem:[%s895 + $0x30] sm:$0xf]
  %v909 = vld [vmem:[%s895 + $0x34] sm:$0xf]
  %v910 = vld [vmem:[%s895 + $0x38] sm:$0xf]
  %v911 = vld [vmem:[%s895 + $0x3c] sm:$0xf]
  %v928 = vunpack.c.l.b16 %v896
  %v929 = vunpack.c.l.b16 %v897
  %v930 = vunpack.c.l.b16 %v898
  %v931 = vunpack.c.l.b16 %v899
  %v932 = vunpack.c.l.b16 %v900
  %v933 = vunpack.c.l.b16 %v901
  %v934 = vunpack.c.l.b16 %v902
  %v935 = vunpack.c.l.b16 %v903
  %v936 = vunpack.c.l.b16 %v904
  %v937 = vunpack.c.l.b16 %v905
  %v938 = vunpack.c.l.b16 %v906
  %v939 = vunpack.c.l.b16 %v907
  %v940 = vunpack.c.l.b16 %v908
  %v941 = vunpack.c.l.b16 %v909
  %v942 = vunpack.c.l.b16 %v910
  %v943 = vunpack.c.l.b16 %v911
  %v944 = vpack.c.b16 %v929, %v928
  %v945 = vpack.c.b16 %v931, %v930
  %v946 = vpack.c.b16 %v933, %v932
  %v947 = vpack.c.b16 %v935, %v934
  %v948 = vpack.c.b16 %v937, %v936
  %v949 = vpack.c.b16 %v939, %v938
  %v950 = vpack.c.b16 %v941, %v940
  %v951 = vpack.c.b16 %v943, %v942
  %960 = vmatprep.subr.bf16.mxu0 0
  %961 = vmatpush1.bf16.msra.mxu0 %v944
  %962 = vmatprep.subr.bf16.mxu0 0
  %963 = vmatpush1.bf16.msra.mxu0 %v945
  %964 = vmatprep.subr.bf16.mxu0 0
  %965 = vmatpush1.bf16.msra.mxu0 %v946
  %966 = vmatprep.subr.bf16.mxu0 0
  %967 = vmatpush1.bf16.msra.mxu0 %v947
  %968 = vmatprep.subr.bf16.mxu0 0
  %969 = vmatpush1.bf16.msra.mxu0 %v948
  %970 = vmatprep.subr.bf16.mxu0 0
  %971 = vmatpush1.bf16.msra.mxu0 %v949
  %972 = vmatprep.subr.bf16.mxu0 0
  %973 = vmatpush1.bf16.msra.mxu0 %v950
  %974 = vmatprep.subr.bf16.mxu0 0
  %975 = vmatpush1.bf16.msra.mxu0 %v951
  %976 = vmatprep.subr.bf16.mxu0 0
  %977 = vmatpush1.bf16.msra.mxu0 0
  %978 = vmatprep.subr.bf16.mxu0 0
  %979 = vmatpush1.bf16.msra.mxu0 0
  %980 = vmatprep.subr.bf16.mxu0 0
  %981 = vmatpush1.bf16.msra.mxu0 0
  %982 = vmatprep.subr.bf16.mxu0 0
  %983 = vmatpush1.bf16.msra.mxu0 0
  %984 = vmatprep.subr.bf16.mxu0 0
  %985 = vmatpush1.bf16.msra.mxu0 0
  %986 = vmatprep.subr.bf16.mxu0 0
  %987 = vmatpush1.bf16.msra.mxu0 0
  %988 = vmatprep.subr.bf16.mxu0 0
  %989 = vmatpush1.bf16.msra.mxu0 0
  %990 = vmatprep.subr.bf16.mxu0 0
  %991 = vmatpush1.bf16.msra.mxu0 0
  %992 = vmatprep.mubr.bf16.mxu0 0
  %993 = vmatmul.mubr.bf16.gmra.mrb[0].mxu0 %v894
  %v994 = vpop.f32.mrb[0].mxu0
  %v995 = vadd.f32 0.0, %v994
  %v996 = vpop.f32.mrb[0].mxu0
  %v997 = vpop.f32.mrb[0].mxu0
  %v998 = vpop.f32.mrb[0].mxu0
  %999 = vdwg.mxu0
  %v1000 = vadd.f32 %v893, %v995
  %v1001 = vpack.c.bf16 %v571, %v571
  %s1002 = scalar_lea.vmem %s3, 256
  %v1003 = vld [vmem:[%s1002] sm:$0xf]
  %v1004 = vld [vmem:[%s1002 + $0x4] sm:$0xf]
  %v1005 = vld [vmem:[%s1002 + $0x8] sm:$0xf]
  %v1006 = vld [vmem:[%s1002 + $0xc] sm:$0xf]
  %v1007 = vld [vmem:[%s1002 + $0x10] sm:$0xf]
  %v1008 = vld [vmem:[%s1002 + $0x14] sm:$0xf]
  %v1009 = vld [vmem:[%s1002 + $0x18] sm:$0xf]
  %v1010 = vld [vmem:[%s1002 + $0x1c] sm:$0xf]
  %v1011 = vld [vmem:[%s1002 + $0x20] sm:$0xf]
  %v1012 = vld [vmem:[%s1002 + $0x24] sm:$0xf]
  %v1013 = vld [vmem:[%s1002 + $0x28] sm:$0xf]
  %v1014 = vld [vmem:[%s1002 + $0x2c] sm:$0xf]
  %v1015 = vld [vmem:[%s1002 + $0x30] sm:$0xf]
  %v1016 = vld [vmem:[%s1002 + $0x34] sm:$0xf]
  %v1017 = vld [vmem:[%s1002 + $0x38] sm:$0xf]
  %v1018 = vld [vmem:[%s1002 + $0x3c] sm:$0xf]
  %v1035 = vunpack.c.l.b16 %v1003
  %v1036 = vunpack.c.l.b16 %v1004
  %v1037 = vunpack.c.l.b16 %v1005
  %v1038 = vunpack.c.l.b16 %v1006
  %v1039 = vunpack.c.l.b16 %v1007
  %v1040 = vunpack.c.l.b16 %v1008
  %v1041 = vunpack.c.l.b16 %v1009
  %v1042 = vunpack.c.l.b16 %v1010
  %v1043 = vunpack.c.l.b16 %v1011
  %v1044 = vunpack.c.l.b16 %v1012
  %v1045 = vunpack.c.l.b16 %v1013
  %v1046 = vunpack.c.l.b16 %v1014
  %v1047 = vunpack.c.l.b16 %v1015
  %v1048 = vunpack.c.l.b16 %v1016
  %v1049 = vunpack.c.l.b16 %v1017
  %v1050 = vunpack.c.l.b16 %v1018
  %v1051 = vpack.c.b16 %v1036, %v1035
  %v1052 = vpack.c.b16 %v1038, %v1037
  %v1053 = vpack.c.b16 %v1040, %v1039
  %v1054 = vpack.c.b16 %v1042, %v1041
  %v1055 = vpack.c.b16 %v1044, %v1043
  %v1056 = vpack.c.b16 %v1046, %v1045
  %v1057 = vpack.c.b16 %v1048, %v1047
  %v1058 = vpack.c.b16 %v1050, %v1049
  %1067 = vmatprep.subr.bf16.mxu0 0
  %1068 = vmatpush1.bf16.msra.mxu0 %v1051
  %1069 = vmatprep.subr.bf16.mxu0 0
  %1070 = vmatpush1.bf16.msra.mxu0 %v1052
  %1071 = vmatprep.subr.bf16.mxu0 0
  %1072 = vmatpush1.bf16.msra.mxu0 %v1053
  %1073 = vmatprep.subr.bf16.mxu0 0
  %1074 = vmatpush1.bf16.msra.mxu0 %v1054
  %1075 = vmatprep.subr.bf16.mxu0 0
  %1076 = vmatpush1.bf16.msra.mxu0 %v1055
  %1077 = vmatprep.subr.bf16.mxu0 0
  %1078 = vmatpush1.bf16.msra.mxu0 %v1056
  %1079 = vmatprep.subr.bf16.mxu0 0
  %1080 = vmatpush1.bf16.msra.mxu0 %v1057
  %1081 = vmatprep.subr.bf16.mxu0 0
  %1082 = vmatpush1.bf16.msra.mxu0 %v1058
  %1083 = vmatprep.subr.bf16.mxu0 0
  %1084 = vmatpush1.bf16.msra.mxu0 0
  %1085 = vmatprep.subr.bf16.mxu0 0
  %1086 = vmatpush1.bf16.msra.mxu0 0
  %1087 = vmatprep.subr.bf16.mxu0 0
  %1088 = vmatpush1.bf16.msra.mxu0 0
  %1089 = vmatprep.subr.bf16.mxu0 0
  %1090 = vmatpush1.bf16.msra.mxu0 0
  %1091 = vmatprep.subr.bf16.mxu0 0
  %1092 = vmatpush1.bf16.msra.mxu0 0
  %1093 = vmatprep.subr.bf16.mxu0 0
  %1094 = vmatpush1.bf16.msra.mxu0 0
  %1095 = vmatprep.subr.bf16.mxu0 0
  %1096 = vmatpush1.bf16.msra.mxu0 0
  %1097 = vmatprep.subr.bf16.mxu0 0
  %1098 = vmatpush1.bf16.msra.mxu0 0
  %1099 = vmatprep.mubr.bf16.mxu0 0
  %1100 = vmatmul.mubr.bf16.gmra.mrb[0].mxu0 %v1001
  %v1101 = vpop.f32.mrb[0].mxu0
  %v1102 = vadd.f32 0.0, %v1101
  %v1103 = vpop.f32.mrb[0].mxu0
  %v1104 = vpop.f32.mrb[0].mxu0
  %v1105 = vpop.f32.mrb[0].mxu0
  %1106 = vdwg.mxu0
  %v1107 = vadd.f32 %v1000, %v1102
  %v1108 = vpack.c.bf16 %v572, %v572
  %s1109 = scalar_lea.vmem %s3, 320
  %v1110 = vld [vmem:[%s1109] sm:$0xf]
  %v1111 = vld [vmem:[%s1109 + $0x4] sm:$0xf]
  %v1112 = vld [vmem:[%s1109 + $0x8] sm:$0xf]
  %v1113 = vld [vmem:[%s1109 + $0xc] sm:$0xf]
  %v1114 = vld [vmem:[%s1109 + $0x10] sm:$0xf]
  %v1115 = vld [vmem:[%s1109 + $0x14] sm:$0xf]
  %v1116 = vld [vmem:[%s1109 + $0x18] sm:$0xf]
  %v1117 = vld [vmem:[%s1109 + $0x1c] sm:$0xf]
  %v1118 = vld [vmem:[%s1109 + $0x20] sm:$0xf]
  %v1119 = vld [vmem:[%s1109 + $0x24] sm:$0xf]
  %v1120 = vld [vmem:[%s1109 + $0x28] sm:$0xf]
  %v1121 = vld [vmem:[%s1109 + $0x2c] sm:$0xf]
  %v1122 = vld [vmem:[%s1109 + $0x30] sm:$0xf]
  %v1123 = vld [vmem:[%s1109 + $0x34] sm:$0xf]
  %v1124 = vld [vmem:[%s1109 + $0x38] sm:$0xf]
  %v1125 = vld [vmem:[%s1109 + $0x3c] sm:$0xf]
  %v1142 = vunpack.c.l.b16 %v1110
  %v1143 = vunpack.c.l.b16 %v1111
  %v1144 = vunpack.c.l.b16 %v1112
  %v1145 = vunpack.c.l.b16 %v1113
  %v1146 = vunpack.c.l.b16 %v1114
  %v1147 = vunpack.c.l.b16 %v1115
  %v1148 = vunpack.c.l.b16 %v1116
  %v1149 = vunpack.c.l.b16 %v1117
  %v1150 = vunpack.c.l.b16 %v1118
  %v1151 = vunpack.c.l.b16 %v1119
  %v1152 = vunpack.c.l.b16 %v1120
  %v1153 = vunpack.c.l.b16 %v1121
  %v1154 = vunpack.c.l.b16 %v1122
  %v1155 = vunpack.c.l.b16 %v1123
  %v1156 = vunpack.c.l.b16 %v1124
  %v1157 = vunpack.c.l.b16 %v1125
  %v1158 = vpack.c.b16 %v1143, %v1142
  %v1159 = vpack.c.b16 %v1145, %v1144
  %v1160 = vpack.c.b16 %v1147, %v1146
  %v1161 = vpack.c.b16 %v1149, %v1148
  %v1162 = vpack.c.b16 %v1151, %v1150
  %v1163 = vpack.c.b16 %v1153, %v1152
  %v1164 = vpack.c.b16 %v1155, %v1154
  %v1165 = vpack.c.b16 %v1157, %v1156
  %1174 = vmatprep.subr.bf16.mxu0 0
  %1175 = vmatpush1.bf16.msra.mxu0 %v1158
  %1176 = vmatprep.subr.bf16.mxu0 0
  %1177 = vmatpush1.bf16.msra.mxu0 %v1159
  %1178 = vmatprep.subr.bf16.mxu0 0
  %1179 = vmatpush1.bf16.msra.mxu0 %v1160
  %1180 = vmatprep.subr.bf16.mxu0 0
  %1181 = vmatpush1.bf16.msra.mxu0 %v1161
  %1182 = vmatprep.subr.bf16.mxu0 0
  %1183 = vmatpush1.bf16.msra.mxu0 %v1162
  %1184 = vmatprep.subr.bf16.mxu0 0
  %1185 = vmatpush1.bf16.msra.mxu0 %v1163
  %1186 = vmatprep.subr.bf16.mxu0 0
  %1187 = vmatpush1.bf16.msra.mxu0 %v1164
  %1188 = vmatprep.subr.bf16.mxu0 0
  %1189 = vmatpush1.bf16.msra.mxu0 %v1165
  %1190 = vmatprep.subr.bf16.mxu0 0
  %1191 = vmatpush1.bf16.msra.mxu0 0
  %1192 = vmatprep.subr.bf16.mxu0 0
  %1193 = vmatpush1.bf16.msra.mxu0 0
  %1194 = vmatprep.subr.bf16.mxu0 0
  %1195 = vmatpush1.bf16.msra.mxu0 0
  %1196 = vmatprep.subr.bf16.mxu0 0
  %1197 = vmatpush1.bf16.msra.mxu0 0
  %1198 = vmatprep.subr.bf16.mxu0 0
  %1199 = vmatpush1.bf16.msra.mxu0 0
  %1200 = vmatprep.subr.bf16.mxu0 0
  %1201 = vmatpush1.bf16.msra.mxu0 0
  %1202 = vmatprep.subr.bf16.mxu0 0
  %1203 = vmatpush1.bf16.msra.mxu0 0
  %1204 = vmatprep.subr.bf16.mxu0 0
  %1205 = vmatpush1.bf16.msra.mxu0 0
  %1206 = vmatprep.mubr.bf16.mxu0 0
  %1207 = vmatmul.mubr.bf16.gmra.mrb[0].mxu0 %v1108
  %v1208 = vpop.f32.mrb[0].mxu0
  %v1209 = vadd.f32 0.0, %v1208
  %v1210 = vpop.f32.mrb[0].mxu0
  %v1211 = vpop.f32.mrb[0].mxu0
  %v1212 = vpop.f32.mrb[0].mxu0
  %1213 = vdwg.mxu0
  %v1214 = vadd.f32 %v1107, %v1209
  %v1215 = vpack.c.bf16 %v573, %v573
  %s1216 = scalar_lea.vmem %s3, 384
  %v1217 = vld [vmem:[%s1216] sm:$0xf]
  %v1218 = vld [vmem:[%s1216 + $0x4] sm:$0xf]
  %v1219 = vld [vmem:[%s1216 + $0x8] sm:$0xf]
  %v1220 = vld [vmem:[%s1216 + $0xc] sm:$0xf]
  %v1221 = vld [vmem:[%s1216 + $0x10] sm:$0xf]
  %v1222 = vld [vmem:[%s1216 + $0x14] sm:$0xf]
  %v1223 = vld [vmem:[%s1216 + $0x18] sm:$0xf]
  %v1224 = vld [vmem:[%s1216 + $0x1c] sm:$0xf]
  %v1225 = vld [vmem:[%s1216 + $0x20] sm:$0xf]
  %v1226 = vld [vmem:[%s1216 + $0x24] sm:$0xf]
  %v1227 = vld [vmem:[%s1216 + $0x28] sm:$0xf]
  %v1228 = vld [vmem:[%s1216 + $0x2c] sm:$0xf]
  %v1229 = vld [vmem:[%s1216 + $0x30] sm:$0xf]
  %v1230 = vld [vmem:[%s1216 + $0x34] sm:$0xf]
  %v1231 = vld [vmem:[%s1216 + $0x38] sm:$0xf]
  %v1232 = vld [vmem:[%s1216 + $0x3c] sm:$0xf]
  %v1249 = vunpack.c.l.b16 %v1217
  %v1250 = vunpack.c.l.b16 %v1218
  %v1251 = vunpack.c.l.b16 %v1219
  %v1252 = vunpack.c.l.b16 %v1220
  %v1253 = vunpack.c.l.b16 %v1221
  %v1254 = vunpack.c.l.b16 %v1222
  %v1255 = vunpack.c.l.b16 %v1223
  %v1256 = vunpack.c.l.b16 %v1224
  %v1257 = vunpack.c.l.b16 %v1225
  %v1258 = vunpack.c.l.b16 %v1226
  %v1259 = vunpack.c.l.b16 %v1227
  %v1260 = vunpack.c.l.b16 %v1228
  %v1261 = vunpack.c.l.b16 %v1229
  %v1262 = vunpack.c.l.b16 %v1230
  %v1263 = vunpack.c.l.b16 %v1231
  %v1264 = vunpack.c.l.b16 %v1232
  %v1265 = vpack.c.b16 %v1250, %v1249
  %v1266 = vpack.c.b16 %v1252, %v1251
  %v1267 = vpack.c.b16 %v1254, %v1253
  %v1268 = vpack.c.b16 %v1256, %v1255
  %v1269 = vpack.c.b16 %v1258, %v1257
  %v1270 = vpack.c.b16 %v1260, %v1259
  %v1271 = vpack.c.b16 %v1262, %v1261
  %v1272 = vpack.c.b16 %v1264, %v1263
  %1281 = vmatprep.subr.bf16.mxu0 0
  %1282 = vmatpush1.bf16.msra.mxu0 %v1265
  %1283 = vmatprep.subr.bf16.mxu0 0
  %1284 = vmatpush1.bf16.msra.mxu0 %v1266
  %1285 = vmatprep.subr.bf16.mxu0 0
  %1286 = vmatpush1.bf16.msra.mxu0 %v1267
  %1287 = vmatprep.subr.bf16.mxu0 0
  %1288 = vmatpush1.bf16.msra.mxu0 %v1268
  %1289 = vmatprep.subr.bf16.mxu0 0
  %1290 = vmatpush1.bf16.msra.mxu0 %v1269
  %1291 = vmatprep.subr.bf16.mxu0 0
  %1292 = vmatpush1.bf16.msra.mxu0 %v1270
  %1293 = vmatprep.subr.bf16.mxu0 0
  %1294 = vmatpush1.bf16.msra.mxu0 %v1271
  %1295 = vmatprep.subr.bf16.mxu0 0
  %1296 = vmatpush1.bf16.msra.mxu0 %v1272
  %1297 = vmatprep.subr.bf16.mxu0 0
  %1298 = vmatpush1.bf16.msra.mxu0 0
  %1299 = vmatprep.subr.bf16.mxu0 0
  %1300 = vmatpush1.bf16.msra.mxu0 0
  %1301 = vmatprep.subr.bf16.mxu0 0
  %1302 = vmatpush1.bf16.msra.mxu0 0
  %1303 = vmatprep.subr.bf16.mxu0 0
  %1304 = vmatpush1.bf16.msra.mxu0 0
  %1305 = vmatprep.subr.bf16.mxu0 0
  %1306 = vmatpush1.bf16.msra.mxu0 0
  %1307 = vmatprep.subr.bf16.mxu0 0
  %1308 = vmatpush1.bf16.msra.mxu0 0
  %1309 = vmatprep.subr.bf16.mxu0 0
  %1310 = vmatpush1.bf16.msra.mxu0 0
  %1311 = vmatprep.subr.bf16.mxu0 0
  %1312 = vmatpush1.bf16.msra.mxu0 0
  %1313 = vmatprep.mubr.bf16.mxu0 0
  %1314 = vmatmul.mubr.bf16.gmra.mrb[0].mxu0 %v1215
  %v1315 = vpop.f32.mrb[0].mxu0
  %v1316 = vadd.f32 0.0, %v1315
  %v1317 = vpop.f32.mrb[0].mxu0
  %v1318 = vpop.f32.mrb[0].mxu0
  %v1319 = vpop.f32.mrb[0].mxu0
  %1320 = vdwg.mxu0
  %v1321 = vadd.f32 %v1214, %v1316
  %v1322 = vpack.c.bf16 %v574, %v574
  %s1323 = scalar_lea.vmem %s3, 448
  %v1324 = vld [vmem:[%s1323] sm:$0xf]
  %v1325 = vld [vmem:[%s1323 + $0x4] sm:$0xf]
  %v1326 = vld [vmem:[%s1323 + $0x8] sm:$0xf]
  %v1327 = vld [vmem:[%s1323 + $0xc] sm:$0xf]
  %v1328 = vld [vmem:[%s1323 + $0x10] sm:$0xf]
  %v1329 = vld [vmem:[%s1323 + $0x14] sm:$0xf]
  %v1330 = vld [vmem:[%s1323 + $0x18] sm:$0xf]
  %v1331 = vld [vmem:[%s1323 + $0x1c] sm:$0xf]
  %v1332 = vld [vmem:[%s1323 + $0x20] sm:$0xf]
  %v1333 = vld [vmem:[%s1323 + $0x24] sm:$0xf]
  %v1334 = vld [vmem:[%s1323 + $0x28] sm:$0xf]
  %v1335 = vld [vmem:[%s1323 + $0x2c] sm:$0xf]
  %v1336 = vld [vmem:[%s1323 + $0x30] sm:$0xf]
  %v1337 = vld [vmem:[%s1323 + $0x34] sm:$0xf]
  %v1338 = vld [vmem:[%s1323 + $0x38] sm:$0xf]
  %v1339 = vld [vmem:[%s1323 + $0x3c] sm:$0xf]
  %v1356 = vunpack.c.l.b16 %v1324
  %v1357 = vunpack.c.l.b16 %v1325
  %v1358 = vunpack.c.l.b16 %v1326
  %v1359 = vunpack.c.l.b16 %v1327
  %v1360 = vunpack.c.l.b16 %v1328
  %v1361 = vunpack.c.l.b16 %v1329
  %v1362 = vunpack.c.l.b16 %v1330
  %v1363 = vunpack.c.l.b16 %v1331
  %v1364 = vunpack.c.l.b16 %v1332
  %v1365 = vunpack.c.l.b16 %v1333
  %v1366 = vunpack.c.l.b16 %v1334
  %v1367 = vunpack.c.l.b16 %v1335
  %v1368 = vunpack.c.l.b16 %v1336
  %v1369 = vunpack.c.l.b16 %v1337
  %v1370 = vunpack.c.l.b16 %v1338
  %v1371 = vunpack.c.l.b16 %v1339
  %v1372 = vpack.c.b16 %v1357, %v1356
  %v1373 = vpack.c.b16 %v1359, %v1358
  %v1374 = vpack.c.b16 %v1361, %v1360
  %v1375 = vpack.c.b16 %v1363, %v1362
  %v1376 = vpack.c.b16 %v1365, %v1364
  %v1377 = vpack.c.b16 %v1367, %v1366
  %v1378 = vpack.c.b16 %v1369, %v1368
  %v1379 = vpack.c.b16 %v1371, %v1370
  %1388 = vmatprep.subr.bf16.mxu0 0
  %1389 = vmatpush1.bf16.msra.mxu0 %v1372
  %1390 = vmatprep.subr.bf16.mxu0 0
  %1391 = vmatpush1.bf16.msra.mxu0 %v1373
  %1392 = vmatprep.subr.bf16.mxu0 0
  %1393 = vmatpush1.bf16.msra.mxu0 %v1374
  %1394 = vmatprep.subr.bf16.mxu0 0
  %1395 = vmatpush1.bf16.msra.mxu0 %v1375
  %1396 = vmatprep.subr.bf16.mxu0 0
  %1397 = vmatpush1.bf16.msra.mxu0 %v1376
  %1398 = vmatprep.subr.bf16.mxu0 0
  %1399 = vmatpush1.bf16.msra.mxu0 %v1377
  %1400 = vmatprep.subr.bf16.mxu0 0
  %1401 = vmatpush1.bf16.msra.mxu0 %v1378
  %1402 = vmatprep.subr.bf16.mxu0 0
  %1403 = vmatpush1.bf16.msra.mxu0 %v1379
  %1404 = vmatprep.subr.bf16.mxu0 0
  %1405 = vmatpush1.bf16.msra.mxu0 0
  %1406 = vmatprep.subr.bf16.mxu0 0
  %1407 = vmatpush1.bf16.msra.mxu0 0
  %1408 = vmatprep.subr.bf16.mxu0 0
  %1409 = vmatpush1.bf16.msra.mxu0 0
  %1410 = vmatprep.subr.bf16.mxu0 0
  %1411 = vmatpush1.bf16.msra.mxu0 0
  %1412 = vmatprep.subr.bf16.mxu0 0
  %1413 = vmatpush1.bf16.msra.mxu0 0
  %1414 = vmatprep.subr.bf16.mxu0 0
  %1415 = vmatpush1.bf16.msra.mxu0 0
  %1416 = vmatprep.subr.bf16.mxu0 0
  %1417 = vmatpush1.bf16.msra.mxu0 0
  %1418 = vmatprep.subr.bf16.mxu0 0
  %1419 = vmatpush1.bf16.msra.mxu0 0
  %1420 = vmatprep.mubr.bf16.mxu0 0
  %1421 = vmatmul.mubr.bf16.gmra.mrb[0].mxu0 %v1322
  %v1422 = vpop.f32.mrb[0].mxu0
  %v1423 = vadd.f32 0.0, %v1422
  %v1424 = vpop.f32.mrb[0].mxu0
  %v1425 = vpop.f32.mrb[0].mxu0
  %v1426 = vpop.f32.mrb[0].mxu0
  %1427 = vdwg.mxu0
  %v1428 = vadd.f32 %v1321, %v1423
  %v1429 = vpack.c.bf16 %v575, %v575
  %s1430 = scalar_lea.vmem %s3, 512
  %v1431 = vld [vmem:[%s1430] sm:$0xf]
  %v1432 = vld [vmem:[%s1430 + $0x4] sm:$0xf]
  %v1433 = vld [vmem:[%s1430 + $0x8] sm:$0xf]
  %v1434 = vld [vmem:[%s1430 + $0xc] sm:$0xf]
  %v1435 = vld [vmem:[%s1430 + $0x10] sm:$0xf]
  %v1436 = vld [vmem:[%s1430 + $0x14] sm:$0xf]
  %v1437 = vld [vmem:[%s1430 + $0x18] sm:$0xf]
  %v1438 = vld [vmem:[%s1430 + $0x1c] sm:$0xf]
  %v1439 = vld [vmem:[%s1430 + $0x20] sm:$0xf]
  %v1440 = vld [vmem:[%s1430 + $0x24] sm:$0xf]
  %v1441 = vld [vmem:[%s1430 + $0x28] sm:$0xf]
  %v1442 = vld [vmem:[%s1430 + $0x2c] sm:$0xf]
  %v1443 = vld [vmem:[%s1430 + $0x30] sm:$0xf]
  %v1444 = vld [vmem:[%s1430 + $0x34] sm:$0xf]
  %v1445 = vld [vmem:[%s1430 + $0x38] sm:$0xf]
  %v1446 = vld [vmem:[%s1430 + $0x3c] sm:$0xf]
  %v1463 = vunpack.c.l.b16 %v1431
  %v1464 = vunpack.c.l.b16 %v1432
  %v1465 = vunpack.c.l.b16 %v1433
  %v1466 = vunpack.c.l.b16 %v1434
  %v1467 = vunpack.c.l.b16 %v1435
  %v1468 = vunpack.c.l.b16 %v1436
  %v1469 = vunpack.c.l.b16 %v1437
  %v1470 = vunpack.c.l.b16 %v1438
  %v1471 = vunpack.c.l.b16 %v1439
  %v1472 = vunpack.c.l.b16 %v1440
  %v1473 = vunpack.c.l.b16 %v1441
  %v1474 = vunpack.c.l.b16 %v1442
  %v1475 = vunpack.c.l.b16 %v1443
  %v1476 = vunpack.c.l.b16 %v1444
  %v1477 = vunpack.c.l.b16 %v1445
  %v1478 = vunpack.c.l.b16 %v1446
  %v1479 = vpack.c.b16 %v1464, %v1463
  %v1480 = vpack.c.b16 %v1466, %v1465
  %v1481 = vpack.c.b16 %v1468, %v1467
  %v1482 = vpack.c.b16 %v1470, %v1469
  %v1483 = vpack.c.b16 %v1472, %v1471
  %v1484 = vpack.c.b16 %v1474, %v1473
  %v1485 = vpack.c.b16 %v1476, %v1475
  %v1486 = vpack.c.b16 %v1478, %v1477
  %1495 = vmatprep.subr.bf16.mxu0 0
  %1496 = vmatpush1.bf16.msra.mxu0 %v1479
  %1497 = vmatprep.subr.bf16.mxu0 0
  %1498 = vmatpush1.bf16.msra.mxu0 %v1480
  %1499 = vmatprep.subr.bf16.mxu0 0
  %1500 = vmatpush1.bf16.msra.mxu0 %v1481
  %1501 = vmatprep.subr.bf16.mxu0 0
  %1502 = vmatpush1.bf16.msra.mxu0 %v1482
  %1503 = vmatprep.subr.bf16.mxu0 0
  %1504 = vmatpush1.bf16.msra.mxu0 %v1483
  %1505 = vmatprep.subr.bf16.mxu0 0
  %1506 = vmatpush1.bf16.msra.mxu0 %v1484
  %1507 = vmatprep.subr.bf16.mxu0 0
  %1508 = vmatpush1.bf16.msra.mxu0 %v1485
  %1509 = vmatprep.subr.bf16.mxu0 0
  %1510 = vmatpush1.bf16.msra.mxu0 %v1486
  %1511 = vmatprep.subr.bf16.mxu0 0
  %1512 = vmatpush1.bf16.msra.mxu0 0
  %1513 = vmatprep.subr.bf16.mxu0 0
  %1514 = vmatpush1.bf16.msra.mxu0 0
  %1515 = vmatprep.subr.bf16.mxu0 0
  %1516 = vmatpush1.bf16.msra.mxu0 0
  %1517 = vmatprep.subr.bf16.mxu0 0
  %1518 = vmatpush1.bf16.msra.mxu0 0
  %1519 = vmatprep.subr.bf16.mxu0 0
  %1520 = vmatpush1.bf16.msra.mxu0 0
  %1521 = vmatprep.subr.bf16.mxu0 0
  %1522 = vmatpush1.bf16.msra.mxu0 0
  %1523 = vmatprep.subr.bf16.mxu0 0
  %1524 = vmatpush1.bf16.msra.mxu0 0
  %1525 = vmatprep.subr.bf16.mxu0 0
  %1526 = vmatpush1.bf16.msra.mxu0 0
  %1527 = vmatprep.mubr.bf16.mxu0 0
  %1528 = vmatmul.mubr.bf16.gmra.mrb[0].mxu0 %v1429
  %v1529 = vpop.f32.mrb[0].mxu0
  %v1530 = vadd.f32 0.0, %v1529
  %v1531 = vpop.f32.mrb[0].mxu0
  %v1532 = vpop.f32.mrb[0].mxu0
  %v1533 = vpop.f32.mrb[0].mxu0
  %1534 = vdwg.mxu0
  %v1535 = vadd.f32 %v1428, %v1530
  %v1536 = vld [vmem:[%s4] sm:$0x1]
  %v1538 = vlaneseq
  %v1539 = vshrl.u32 %v1538, 7
  %v1540 = vsub.s32 0, %v1539
  %v1541 = vrot.slane %v1536, %v1540
  %v1543 = vadd.f32 %v1535, %v1541
  %v1544 = vlaneseq
  %v1545 = vshrl.u32 %v1544, 7
  %vm1546 = vcmp.lt.s32.totalorder %v1545, 2
  %v1547 = vsel %vm1546, 1, 0
  %v1548 = vcvt.s32.f32 %v1547
  %vm1549 = vcmp.ge.s32.totalorder %v1545, 2
  %vm1550 = vcmp.lt.s32.totalorder %v1545, 4
  %vm1551 = vmand %vm1549, %vm1550
  %v1552 = vsel %vm1551, 1, 0
  %v1553 = vcvt.s32.f32 %v1552
  %v1554 = vmul.f32 %v1543, %v1548
  %v1555 = vrot.slane %v1554, 4
  %v1556 = vadd.f32 %v1554, %v1555
  %v1557 = vrot.slane %v1556, 2
  %v1558 = vadd.f32 %v1556, %v1557
  %v1559 = vrot.slane %v1558, 1
  %v1560 = vadd.f32 %v1558, %v1559
  %v1561 = vmul.f32 %v1560, 0.5
  %v1562 = vmul.f32 %v1543, %v1553
  %v1563 = vrot.slane %v1562, 4
  %v1564 = vadd.f32 %v1562, %v1563
  %v1565 = vrot.slane %v1564, 2
  %v1566 = vadd.f32 %v1564, %v1565
  %v1567 = vrot.slane %v1566, 1
  %v1568 = vadd.f32 %v1566, %v1567
  %v1569 = vmul.f32 %v1568, 0.5
  %v1570 = vsub.f32 %v1543, %v1561
  %v1571 = vmul.f32 %v1570, %v1548
  %v1572 = vmul.f32 %v1571, %v1571
  %v1573 = vrot.slane %v1572, 4
  %v1574 = vadd.f32 %v1572, %v1573
  %v1575 = vrot.slane %v1574, 2
  %v1576 = vadd.f32 %v1574, %v1575
  %v1577 = vrot.slane %v1576, 1
  %v1578 = vadd.f32 %v1576, %v1577
  %v1579 = vmul.f32 %v1578, 0.5
  %v1580 = vsub.f32 %v1543, %v1569
  %v1581 = vmul.f32 %v1580, %v1553
  %v1582 = vmul.f32 %v1581, %v1581
  %v1583 = vrot.slane %v1582, 4
  %v1584 = vadd.f32 %v1582, %v1583
  %v1585 = vrot.slane %v1584, 2
  %v1586 = vadd.f32 %v1584, %v1585
  %v1587 = vrot.slane %v1586, 1
  %v1588 = vadd.f32 %v1586, %v1587
  %v1589 = vmul.f32 %v1588, 0.5
  %vm1590 = vcmp.eq.s32.totalorder %v1547, 1
  %v1591 = vsel %vm1590, %v1561, %v1569
  %v1592 = vsel %vm1590, %v1579, %v1589
  %v1593 = vld [vmem:[%s5] sm:$0x1]
  %v1594 = vsub.f32 %v1543, %v1591
  %v1596 = vlaneseq
  %v1597 = vshrl.u32 %v1596, 7
  %v1598 = vsub.s32 0, %v1597
  %v1599 = vrot.slane %v1593, %v1598
  %v1601 = vmul.f32 %v1599, %v1594
  %v1602 = vadd.f32 %v1592, 1e-05
  %v1603 = vrsqrt.pop %v1602
  %v1604 = vmul.f32 %v1601, %v1603
  %v1605 = vld [vmem:[%s6] sm:$0x1]
  %v1607 = vlaneseq
  %v1608 = vshrl.u32 %v1607, 7
  %v1609 = vsub.s32 0, %v1608
  %v1610 = vrot.slane %v1605, %v1609
  %v1612 = vadd.f32 %v1604, %v1610
  %v1613 = vmax.f32 %v1612, 0.0
  %v1614 = vlaneseq
  %v1615 = vand.u32 %v1614, 127
  %v1616 = vadd.s32 %v1545, 2
  %vm1617 = vcmp.eq.s32.totalorder %v1615, %v1616
  %v1618 = vsel %vm1617, 1, 0
  %v1619 = vcvt.s32.f32 %v1618
  %v1620 = vpack.c.bf16 %v1619, %v1619
  %v1621 = vpack.c.bf16 %v1613, %v1613
  %vm1622 = vcmask 64512
  %v1624 = vsel %vm1622, %v1620, 0
  %vm1626 = vcmask 1043456
  %v1628 = vsel %vm1626, %v1621, 0
  %1630 = vmatprep.subr.bf16.mxu0 0
  %1631 = vmatpush1.bf16.msra.mxu0 %v1628
  %1632 = vmatprep.subr.bf16.mxu0 0
  %1633 = vmatpush1.bf16.msra.mxu0 0
  %1634 = vmatprep.subr.bf16.mxu0 0
  %1635 = vmatpush1.bf16.msra.mxu0 0
  %1636 = vmatprep.subr.bf16.mxu0 0
  %1637 = vmatpush1.bf16.msra.mxu0 0
  %1638 = vmatprep.subr.bf16.mxu0 0
  %1639 = vmatpush1.bf16.msra.mxu0 0
  %1640 = vmatprep.subr.bf16.mxu0 0
  %1641 = vmatpush1.bf16.msra.mxu0 0
  %1642 = vmatprep.subr.bf16.mxu0 0
  %1643 = vmatpush1.bf16.msra.mxu0 0
  %1644 = vmatprep.subr.bf16.mxu0 0
  %1645 = vmatpush1.bf16.msra.mxu0 0
  %1646 = vmatprep.subr.bf16.mxu0 0
  %1647 = vmatpush1.bf16.msra.mxu0 0
  %1648 = vmatprep.subr.bf16.mxu0 0
  %1649 = vmatpush1.bf16.msra.mxu0 0
  %1650 = vmatprep.subr.bf16.mxu0 0
  %1651 = vmatpush1.bf16.msra.mxu0 0
  %1652 = vmatprep.subr.bf16.mxu0 0
  %1653 = vmatpush1.bf16.msra.mxu0 0
  %1654 = vmatprep.subr.bf16.mxu0 0
  %1655 = vmatpush1.bf16.msra.mxu0 0
  %1656 = vmatprep.subr.bf16.mxu0 0
  %1657 = vmatpush1.bf16.msra.mxu0 0
  %1658 = vmatprep.subr.bf16.mxu0 0
  %1659 = vmatpush1.bf16.msra.mxu0 0
  %1660 = vmatprep.subr.bf16.mxu0 0
  %1661 = vmatpush1.bf16.msra.mxu0 0
  %1662 = vmatprep.mubr.bf16.mxu0 0
  %1663 = vmatmul.mubr.bf16.gmra.mrb[0].mxu0 %v1624
  %v1664 = vpop.f32.mrb[0].mxu0
  %v1665 = vadd.f32 0.0, %v1664
  %v1666 = vpop.f32.mrb[0].mxu0
  %v1667 = vpop.f32.mrb[0].mxu0
  %v1668 = vpop.f32.mrb[0].mxu0
  %1669 = vdwg.mxu0
  %v1670 = vpack.c.bf16 %v1665, %v1665
  %v1671 = vld [vmem:[%s7] sm:$0xf]
  %v1672 = vld [vmem:[%s7 + $0x4] sm:$0xf]
  %v1673 = vld [vmem:[%s7 + $0x8] sm:$0xf]
  %v1674 = vld [vmem:[%s7 + $0xc] sm:$0xf]
  %v1675 = vld [vmem:[%s7 + $0x10] sm:$0xf]
  %v1676 = vld [vmem:[%s7 + $0x14] sm:$0xf]
  %v1677 = vld [vmem:[%s7 + $0x18] sm:$0xf]
  %v1678 = vld [vmem:[%s7 + $0x1c] sm:$0xf]
  %v1679 = vld [vmem:[%s7 + $0x20] sm:$0xf]
  %v1680 = vld [vmem:[%s7 + $0x24] sm:$0xf]
  %v1681 = vld [vmem:[%s7 + $0x28] sm:$0xf]
  %v1682 = vld [vmem:[%s7 + $0x2c] sm:$0xf]
  %v1683 = vld [vmem:[%s7 + $0x30] sm:$0xf]
  %v1684 = vld [vmem:[%s7 + $0x34] sm:$0xf]
  %v1685 = vld [vmem:[%s7 + $0x38] sm:$0xf]
  %v1686 = vld [vmem:[%s7 + $0x3c] sm:$0xf]
  %v1687 = vld [vmem:[%s8] sm:$0xf]
  %v1688 = vld [vmem:[%s8 + $0x4] sm:$0xf]
  %v1689 = vld [vmem:[%s8 + $0x8] sm:$0xf]
  %v1690 = vld [vmem:[%s8 + $0xc] sm:$0xf]
  %v1691 = vld [vmem:[%s8 + $0x10] sm:$0xf]
  %v1692 = vld [vmem:[%s8 + $0x14] sm:$0xf]
  %v1693 = vld [vmem:[%s8 + $0x18] sm:$0xf]
  %v1694 = vld [vmem:[%s8 + $0x1c] sm:$0xf]
  %v1695 = vld [vmem:[%s8 + $0x20] sm:$0xf]
  %v1696 = vld [vmem:[%s8 + $0x24] sm:$0xf]
  %v1697 = vld [vmem:[%s8 + $0x28] sm:$0xf]
  %v1698 = vld [vmem:[%s8 + $0x2c] sm:$0xf]
  %v1699 = vld [vmem:[%s8 + $0x30] sm:$0xf]
  %v1700 = vld [vmem:[%s8 + $0x34] sm:$0xf]
  %v1701 = vld [vmem:[%s8 + $0x38] sm:$0xf]
  %v1702 = vld [vmem:[%s8 + $0x3c] sm:$0xf]
  %v1719 = vunpack.c.l.b16 %v1687
  %v1720 = vunpack.c.l.b16 %v1688
  %v1721 = vunpack.c.l.b16 %v1689
  %v1722 = vunpack.c.l.b16 %v1690
  %v1723 = vunpack.c.l.b16 %v1691
  %v1724 = vunpack.c.l.b16 %v1692
  %v1725 = vunpack.c.l.b16 %v1693
  %v1726 = vunpack.c.l.b16 %v1694
  %v1727 = vunpack.c.l.b16 %v1695
  %v1728 = vunpack.c.l.b16 %v1696
  %v1729 = vunpack.c.l.b16 %v1697
  %v1730 = vunpack.c.l.b16 %v1698
  %v1731 = vunpack.c.l.b16 %v1699
  %v1732 = vunpack.c.l.b16 %v1700
  %v1733 = vunpack.c.l.b16 %v1701
  %v1734 = vunpack.c.l.b16 %v1702
  %v1735 = vpack.c.b16 %v1720, %v1719
  %v1736 = vpack.c.b16 %v1722, %v1721
  %v1737 = vpack.c.b16 %v1724, %v1723
  %v1738 = vpack.c.b16 %v1726, %v1725
  %v1739 = vpack.c.b16 %v1728, %v1727
  %v1740 = vpack.c.b16 %v1730, %v1729
  %v1741 = vpack.c.b16 %v1732, %v1731
  %v1742 = vpack.c.b16 %v1734, %v1733
  %1751 = vmatprep.subr.bf16.mxu0 0
  %1752 = vmatpush1.bf16.msra.mxu0 %v1735
  %1753 = vmatprep.subr.bf16.mxu0 0
  %1754 = vmatpush1.bf16.msra.mxu0 %v1736
  %1755 = vmatprep.subr.bf16.mxu0 0
  %1756 = vmatpush1.bf16.msra.mxu0 %v1737
  %1757 = vmatprep.subr.bf16.mxu0 0
  %1758 = vmatpush1.bf16.msra.mxu0 %v1738
  %1759 = vmatprep.subr.bf16.mxu0 0
  %1760 = vmatpush1.bf16.msra.mxu0 %v1739
  %1761 = vmatprep.subr.bf16.mxu0 0
  %1762 = vmatpush1.bf16.msra.mxu0 %v1740
  %1763 = vmatprep.subr.bf16.mxu0 0
  %1764 = vmatpush1.bf16.msra.mxu0 %v1741
  %1765 = vmatprep.subr.bf16.mxu0 0
  %1766 = vmatpush1.bf16.msra.mxu0 %v1742
  %1767 = vmatprep.subr.bf16.mxu0 0
  %1768 = vmatpush1.bf16.msra.mxu0 0
  %1769 = vmatprep.subr.bf16.mxu0 0
  %1770 = vmatpush1.bf16.msra.mxu0 0
  %1771 = vmatprep.subr.bf16.mxu0 0
  %1772 = vmatpush1.bf16.msra.mxu0 0
  %1773 = vmatprep.subr.bf16.mxu0 0
  %1774 = vmatpush1.bf16.msra.mxu0 0
  %1775 = vmatprep.subr.bf16.mxu0 0
  %1776 = vmatpush1.bf16.msra.mxu0 0
  %1777 = vmatprep.subr.bf16.mxu0 0
  %1778 = vmatpush1.bf16.msra.mxu0 0
  %1779 = vmatprep.subr.bf16.mxu0 0
  %1780 = vmatpush1.bf16.msra.mxu0 0
  %1781 = vmatprep.subr.bf16.mxu0 0
  %1782 = vmatpush1.bf16.msra.mxu0 0
  %1783 = vmatprep.mubr.bf16.mxu0 0
  %1784 = vmatmul.mubr.bf16.gmra.mrb[0].mxu0 %v1670
  %v1785 = vpop.f32.mrb[0].mxu0
  %v1786 = vadd.f32 0.0, %v1785
  %v1787 = vpop.f32.mrb[0].mxu0
  %v1788 = vpop.f32.mrb[0].mxu0
  %v1789 = vpop.f32.mrb[0].mxu0
  %1790 = vdwg.mxu0
  %v1807 = vunpack.c.l.b16 %v1671
  %v1808 = vunpack.c.l.b16 %v1672
  %v1809 = vunpack.c.l.b16 %v1673
  %v1810 = vunpack.c.l.b16 %v1674
  %v1811 = vunpack.c.l.b16 %v1675
  %v1812 = vunpack.c.l.b16 %v1676
  %v1813 = vunpack.c.l.b16 %v1677
  %v1814 = vunpack.c.l.b16 %v1678
  %v1815 = vunpack.c.l.b16 %v1679
  %v1816 = vunpack.c.l.b16 %v1680
  %v1817 = vunpack.c.l.b16 %v1681
  %v1818 = vunpack.c.l.b16 %v1682
  %v1819 = vunpack.c.l.b16 %v1683
  %v1820 = vunpack.c.l.b16 %v1684
  %v1821 = vunpack.c.l.b16 %v1685
  %v1822 = vunpack.c.l.b16 %v1686
  %v1823 = vpack.c.b16 %v1808, %v1807
  %v1824 = vpack.c.b16 %v1810, %v1809
  %v1825 = vpack.c.b16 %v1812, %v1811
  %v1826 = vpack.c.b16 %v1814, %v1813
  %v1827 = vpack.c.b16 %v1816, %v1815
  %v1828 = vpack.c.b16 %v1818, %v1817
  %v1829 = vpack.c.b16 %v1820, %v1819
  %v1830 = vpack.c.b16 %v1822, %v1821
  %1839 = vmatprep.subr.bf16.mxu0 0
  %1840 = vmatpush1.bf16.msra.mxu0 %v1823
  %1841 = vmatprep.subr.bf16.mxu0 0
  %1842 = vmatpush1.bf16.msra.mxu0 %v1824
  %1843 = vmatprep.subr.bf16.mxu0 0
  %1844 = vmatpush1.bf16.msra.mxu0 %v1825
  %1845 = vmatprep.subr.bf16.mxu0 0
  %1846 = vmatpush1.bf16.msra.mxu0 %v1826
  %1847 = vmatprep.subr.bf16.mxu0 0
  %1848 = vmatpush1.bf16.msra.mxu0 %v1827
  %1849 = vmatprep.subr.bf16.mxu0 0
  %1850 = vmatpush1.bf16.msra.mxu0 %v1828
  %1851 = vmatprep.subr.bf16.mxu0 0
  %1852 = vmatpush1.bf16.msra.mxu0 %v1829
  %1853 = vmatprep.subr.bf16.mxu0 0
  %1854 = vmatpush1.bf16.msra.mxu0 %v1830
  %1855 = vmatprep.subr.bf16.mxu0 0
  %1856 = vmatpush1.bf16.msra.mxu0 0
  %1857 = vmatprep.subr.bf16.mxu0 0
  %1858 = vmatpush1.bf16.msra.mxu0 0
  %1859 = vmatprep.subr.bf16.mxu0 0
  %1860 = vmatpush1.bf16.msra.mxu0 0
  %1861 = vmatprep.subr.bf16.mxu0 0
  %1862 = vmatpush1.bf16.msra.mxu0 0
  %1863 = vmatprep.subr.bf16.mxu0 0
  %1864 = vmatpush1.bf16.msra.mxu0 0
  %1865 = vmatprep.subr.bf16.mxu0 0
  %1866 = vmatpush1.bf16.msra.mxu0 0
  %1867 = vmatprep.subr.bf16.mxu0 0
  %1868 = vmatpush1.bf16.msra.mxu0 0
  %1869 = vmatprep.subr.bf16.mxu0 0
  %1870 = vmatpush1.bf16.msra.mxu0 0
  %1871 = vmatprep.mubr.bf16.mxu0 0
  %1872 = vmatmul.mubr.bf16.gmra.mrb[0].mxu0 %v1621
  %v1873 = vpop.f32.mrb[0].mxu0
  %v1874 = vadd.f32 %v1786, %v1873
  %v1875 = vpop.f32.mrb[0].mxu0
  %v1876 = vpop.f32.mrb[0].mxu0
  %v1877 = vpop.f32.mrb[0].mxu0
  %1878 = vdwg.mxu0
  %v1879 = vld [vmem:[%s9] sm:$0x1]
  %v1881 = vlaneseq
  %v1882 = vshrl.u32 %v1881, 7
  %v1883 = vsub.s32 0, %v1882
  %v1884 = vrot.slane %v1879, %v1883
  %v1886 = vadd.f32 %v1874, %v1884
  %v1887 = vpack.c.bf16 %v1886, %v1886
  %v1888 = vld [vmem:[%s10] sm:$0xf]
  %v1889 = vld [vmem:[%s10 + $0x4] sm:$0xf]
  %v1890 = vld [vmem:[%s10 + $0x8] sm:$0xf]
  %v1891 = vld [vmem:[%s10 + $0xc] sm:$0xf]
  %v1892 = vld [vmem:[%s10 + $0x10] sm:$0xf]
  %v1893 = vld [vmem:[%s10 + $0x14] sm:$0xf]
  %v1894 = vld [vmem:[%s10 + $0x18] sm:$0xf]
  %v1895 = vld [vmem:[%s10 + $0x1c] sm:$0xf]
  %v1896 = vld [vmem:[%s10 + $0x20] sm:$0xf]
  %v1897 = vld [vmem:[%s10 + $0x24] sm:$0xf]
  %v1898 = vld [vmem:[%s10 + $0x28] sm:$0xf]
  %v1899 = vld [vmem:[%s10 + $0x2c] sm:$0xf]
  %v1900 = vld [vmem:[%s10 + $0x30] sm:$0xf]
  %v1901 = vld [vmem:[%s10 + $0x34] sm:$0xf]
  %v1902 = vld [vmem:[%s10 + $0x38] sm:$0xf]
  %v1903 = vld [vmem:[%s10 + $0x3c] sm:$0xf]
  %v1904 = vld [vmem:[%s11] sm:$0x1]
  %v1906 = vlaneseq
  %v1907 = vshrl.u32 %v1906, 7
  %v1908 = vsub.s32 0, %v1907
  %v1909 = vrot.slane %v1904, %v1908
  %v1927 = vunpack.c.l.b16 %v1888
  %v1928 = vunpack.c.l.b16 %v1889
  %v1929 = vunpack.c.l.b16 %v1890
  %v1930 = vunpack.c.l.b16 %v1891
  %v1931 = vunpack.c.l.b16 %v1892
  %v1932 = vunpack.c.l.b16 %v1893
  %v1933 = vunpack.c.l.b16 %v1894
  %v1934 = vunpack.c.l.b16 %v1895
  %v1935 = vunpack.c.l.b16 %v1896
  %v1936 = vunpack.c.l.b16 %v1897
  %v1937 = vunpack.c.l.b16 %v1898
  %v1938 = vunpack.c.l.b16 %v1899
  %v1939 = vunpack.c.l.b16 %v1900
  %v1940 = vunpack.c.l.b16 %v1901
  %v1941 = vunpack.c.l.b16 %v1902
  %v1942 = vunpack.c.l.b16 %v1903
  %v1943 = vpack.c.b16 %v1928, %v1927
  %v1944 = vpack.c.b16 %v1930, %v1929
  %v1945 = vpack.c.b16 %v1932, %v1931
  %v1946 = vpack.c.b16 %v1934, %v1933
  %v1947 = vpack.c.b16 %v1936, %v1935
  %v1948 = vpack.c.b16 %v1938, %v1937
  %v1949 = vpack.c.b16 %v1940, %v1939
  %v1950 = vpack.c.b16 %v1942, %v1941
  %1959 = vmatprep.subr.bf16.mxu0 0
  %1960 = vmatpush1.bf16.msra.mxu0 %v1943
  %1961 = vmatprep.subr.bf16.mxu0 0
  %1962 = vmatpush1.bf16.msra.mxu0 %v1944
  %1963 = vmatprep.subr.bf16.mxu0 0
  %1964 = vmatpush1.bf16.msra.mxu0 %v1945
  %1965 = vmatprep.subr.bf16.mxu0 0
  %1966 = vmatpush1.bf16.msra.mxu0 %v1946
  %1967 = vmatprep.subr.bf16.mxu0 0
  %1968 = vmatpush1.bf16.msra.mxu0 %v1947
  %1969 = vmatprep.subr.bf16.mxu0 0
  %1970 = vmatpush1.bf16.msra.mxu0 %v1948
  %1971 = vmatprep.subr.bf16.mxu0 0
  %1972 = vmatpush1.bf16.msra.mxu0 %v1949
  %1973 = vmatprep.subr.bf16.mxu0 0
  %1974 = vmatpush1.bf16.msra.mxu0 %v1950
  %1975 = vmatprep.subr.bf16.mxu0 0
  %1976 = vmatpush1.bf16.msra.mxu0 0
  %1977 = vmatprep.subr.bf16.mxu0 0
  %1978 = vmatpush1.bf16.msra.mxu0 0
  %1979 = vmatprep.subr.bf16.mxu0 0
  %1980 = vmatpush1.bf16.msra.mxu0 0
  %1981 = vmatprep.subr.bf16.mxu0 0
  %1982 = vmatpush1.bf16.msra.mxu0 0
  %1983 = vmatprep.subr.bf16.mxu0 0
  %1984 = vmatpush1.bf16.msra.mxu0 0
  %1985 = vmatprep.subr.bf16.mxu0 0
  %1986 = vmatpush1.bf16.msra.mxu0 0
  %1987 = vmatprep.subr.bf16.mxu0 0
  %1988 = vmatpush1.bf16.msra.mxu0 0
  %1989 = vmatprep.subr.bf16.mxu0 0
  %1990 = vmatpush1.bf16.msra.mxu0 0
  %1991 = vmatprep.mubr.bf16.mxu0 0
  %1992 = vmatmul.mubr.bf16.gmra.mrb[0].mxu0 %v1887
  %v1993 = vpop.f32.mrb[0].mxu0
  %v1994 = vadd.f32 %v1909, %v1993
  %v1995 = vpop.f32.mrb[0].mxu0
  %v1996 = vpop.f32.mrb[0].mxu0
  %v1997 = vpop.f32.mrb[0].mxu0
  %1998 = vdwg.mxu0
  %v1999 = vpack.c.bf16 %v1994, %v1994
  %v2000 = vld [vmem:[%s12] sm:$0xf]
  %v2001 = vld [vmem:[%s12 + $0x4] sm:$0xf]
  %v2002 = vld [vmem:[%s12 + $0x8] sm:$0xf]
  %v2003 = vld [vmem:[%s12 + $0xc] sm:$0xf]
  %v2004 = vld [vmem:[%s12 + $0x10] sm:$0xf]
  %v2005 = vld [vmem:[%s12 + $0x14] sm:$0xf]
  %v2006 = vld [vmem:[%s12 + $0x18] sm:$0xf]
  %v2007 = vld [vmem:[%s12 + $0x1c] sm:$0xf]
  %v2008 = vld [vmem:[%s12 + $0x20] sm:$0xf]
  %v2009 = vld [vmem:[%s12 + $0x24] sm:$0xf]
  %v2010 = vld [vmem:[%s12 + $0x28] sm:$0xf]
  %v2011 = vld [vmem:[%s12 + $0x2c] sm:$0xf]
  %v2012 = vld [vmem:[%s12 + $0x30] sm:$0xf]
  %v2013 = vld [vmem:[%s12 + $0x34] sm:$0xf]
  %v2014 = vld [vmem:[%s12 + $0x38] sm:$0xf]
  %v2015 = vld [vmem:[%s12 + $0x3c] sm:$0xf]
  %v2016 = vld [vmem:[%s13] sm:$0x1]
  %v2018 = vlaneseq
  %v2019 = vshrl.u32 %v2018, 7
  %v2020 = vsub.s32 0, %v2019
  %v2021 = vrot.slane %v2016, %v2020
  %v2039 = vunpack.c.l.b16 %v2000
  %v2040 = vunpack.c.l.b16 %v2001
  %v2041 = vunpack.c.l.b16 %v2002
  %v2042 = vunpack.c.l.b16 %v2003
  %v2043 = vunpack.c.l.b16 %v2004
  %v2044 = vunpack.c.l.b16 %v2005
  %v2045 = vunpack.c.l.b16 %v2006
  %v2046 = vunpack.c.l.b16 %v2007
  %v2047 = vunpack.c.l.b16 %v2008
  %v2048 = vunpack.c.l.b16 %v2009
  %v2049 = vunpack.c.l.b16 %v2010
  %v2050 = vunpack.c.l.b16 %v2011
  %v2051 = vunpack.c.l.b16 %v2012
  %v2052 = vunpack.c.l.b16 %v2013
  %v2053 = vunpack.c.l.b16 %v2014
  %v2054 = vunpack.c.l.b16 %v2015
  %v2055 = vpack.c.b16 %v2040, %v2039
  %v2056 = vpack.c.b16 %v2042, %v2041
  %v2057 = vpack.c.b16 %v2044, %v2043
  %v2058 = vpack.c.b16 %v2046, %v2045
  %v2059 = vpack.c.b16 %v2048, %v2047
  %v2060 = vpack.c.b16 %v2050, %v2049
  %v2061 = vpack.c.b16 %v2052, %v2051
  %v2062 = vpack.c.b16 %v2054, %v2053
  %2071 = vmatprep.subr.bf16.mxu0 0
  %2072 = vmatpush1.bf16.msra.mxu0 %v2055
  %2073 = vmatprep.subr.bf16.mxu0 0
  %2074 = vmatpush1.bf16.msra.mxu0 %v2056
  %2075 = vmatprep.subr.bf16.mxu0 0
  %2076 = vmatpush1.bf16.msra.mxu0 %v2057
  %2077 = vmatprep.subr.bf16.mxu0 0
  %2078 = vmatpush1.bf16.msra.mxu0 %v2058
  %2079 = vmatprep.subr.bf16.mxu0 0
  %2080 = vmatpush1.bf16.msra.mxu0 %v2059
  %2081 = vmatprep.subr.bf16.mxu0 0
  %2082 = vmatpush1.bf16.msra.mxu0 %v2060
  %2083 = vmatprep.subr.bf16.mxu0 0
  %2084 = vmatpush1.bf16.msra.mxu0 %v2061
  %2085 = vmatprep.subr.bf16.mxu0 0
  %2086 = vmatpush1.bf16.msra.mxu0 %v2062
  %2087 = vmatprep.subr.bf16.mxu0 0
  %2088 = vmatpush1.bf16.msra.mxu0 0
  %2089 = vmatprep.subr.bf16.mxu0 0
  %2090 = vmatpush1.bf16.msra.mxu0 0
  %2091 = vmatprep.subr.bf16.mxu0 0
  %2092 = vmatpush1.bf16.msra.mxu0 0
  %2093 = vmatprep.subr.bf16.mxu0 0
  %2094 = vmatpush1.bf16.msra.mxu0 0
  %2095 = vmatprep.subr.bf16.mxu0 0
  %2096 = vmatpush1.bf16.msra.mxu0 0
  %2097 = vmatprep.subr.bf16.mxu0 0
  %2098 = vmatpush1.bf16.msra.mxu0 0
  %2099 = vmatprep.subr.bf16.mxu0 0
  %2100 = vmatpush1.bf16.msra.mxu0 0
  %2101 = vmatprep.subr.bf16.mxu0 0
  %2102 = vmatpush1.bf16.msra.mxu0 0
  %2103 = vmatprep.mubr.bf16.mxu0 0
  %2104 = vmatmul.mubr.bf16.gmra.mrb[0].mxu0 %v1999
  %v2105 = vpop.f32.mrb[0].mxu0
  %v2106 = vadd.f32 %v2021, %v2105
  %v2107 = vpop.f32.mrb[0].mxu0
  %v2108 = vpop.f32.mrb[0].mxu0
  %v2109 = vpop.f32.mrb[0].mxu0
  %2110 = vdwg.mxu0
  %v2111 = vtanh.pop %v2106
  %2112 = vst [vmem:[%s14] sm:$0xff] %v2111
  // Predicated region
  $region58: #{_lambda_.7} parent=0 // pred_check
    _
  $region59: #{_lambda_.7} parent=0 // pred_check_branch
    %2114 = sbr.rel (0) target = $region61
  $region60: #{_lambda_.7} parent=0 // pred_region
    _
  $region61: #{_lambda_.7} parent=0 // pred_fallthru
    _
  // Predicated region
  $region62: #{_lambda_.7} parent=0 // pred_check
    _
  $region63: #{_lambda_.7} parent=0 // pred_check_branch
    %2116 = sbr.rel (0) target = $region65
  $region64: #{_lambda_.7} parent=0 // pred_region
    _
  $region65: #{_lambda_.7} parent=0 // pred_fallthru
    _

</llo_original>
